<compile_context>
chip_gen: v5e
topology: v5e:2x2
jax: 0.10.0
libtpu: 0.0.40
codegen_flags: <defaults>
</compile_context>

<pallas_src>
import jax
import jax.numpy as jnp
from jax.experimental import pallas as pl
from jax.experimental.pallas import tpu as pltpu

N_EMBD = 384
N_HEAD = 6
HEAD_SIZE = N_EMBD // N_HEAD       # 64
BLOCK_SIZE = 8                     # max sequence length (T)
LN_EPS = 1e-5


def _layernorm(x, gamma, beta):
    # Two-pass LayerNorm (matches the reference; no E[x^2]-E[x]^2 cancellation).
    mu = jnp.mean(x, axis=-1, keepdims=True)
    xc = x - mu
    var = jnp.mean(xc * xc, axis=-1, keepdims=True)
    return xc * jax.lax.rsqrt(var + LN_EPS) * gamma + beta


def block_kernel(x_ref,
                 ln1g_ref, ln1b_ref,
                 wqkv_ref,
                 wproj_ref, bproj_ref,
                 ln2g_ref, ln2b_ref,
                 w1_ref, b1_ref, w2_ref, b2_ref,
                 o_ref,
                 att_ref):
    BB, T, C = x_ref.shape
    M = BB * T
    x = x_ref[...].reshape(M, C)          # free relayout: T == 8 == sublane tile

    # ---------------- self-attention branch ----------------
    xln = _layernorm(x, ln1g_ref[...], ln1b_ref[...])

    # Fused QKV projection: one MXU matmul (M, C) x (C, 3C), bf16 operands, f32 acc.
    qkv = jnp.dot(xln.astype(jnp.bfloat16), wqkv_ref[...],
                  preferred_element_type=jnp.float32)
    qkv = qkv.astype(jnp.bfloat16)        # single downcast; attention operands are bf16

    # Combined additive mask over the whole (M, M) token slab:
    #   keep (r, c)  <=>  same batch element AND causal (c <= r)
    #   <=> 0 <= r - c <= (r mod T).        (T is a power of two.)
    ri = jax.lax.broadcasted_iota(jnp.int32, (M, M), 0)
    ci = jax.lax.broadcasted_iota(jnp.int32, (M, M), 1)
    d = ri - ci
    keep = (d >= 0) & (d <= jnp.bitwise_and(ri, T - 1))
    bias = jnp.where(keep, 0.0, -1e9).astype(jnp.float32)

    scale = HEAD_SIZE ** -0.5
    for h in range(N_HEAD):               # static unroll: 6 x 2 slab-wide MXU matmuls
        lo = h * HEAD_SIZE
        q_h = qkv[:, lo:lo + HEAD_SIZE]                       # (M, 64) bf16
        k_h = qkv[:, C + lo:C + lo + HEAD_SIZE]               # (M, 64) bf16
        v_h = qkv[:, 2 * C + lo:2 * C + lo + HEAD_SIZE]       # (M, 64) bf16
        # q @ k^T over the whole slab (cross-batch terms masked below).
        s = jax.lax.dot_general(q_h, k_h, (((1,), (1,)), ((), ())),
                                preferred_element_type=jnp.float32)   # (M, M)
        s = s * scale + bias
        s = s - jnp.max(s, axis=-1, keepdims=True)
        p = jnp.exp(s)                                        # masked entries -> 0.0
        p = p * pl.reciprocal(jnp.sum(p, axis=-1, keepdims=True), approx=True)
        out_h = jnp.dot(p.astype(jnp.bfloat16), v_h,
                        preferred_element_type=jnp.float32)   # (M, 64)
        att_ref[:, lo:lo + HEAD_SIZE] = out_h                 # static 64-lane offset

    att = att_ref[...]                                        # (M, C) f32

    sa = jnp.dot(att.astype(jnp.bfloat16), wproj_ref[...],
                 preferred_element_type=jnp.float32) + bproj_ref[...]
    x1 = x + sa                                               # first residual

    # ---------------- feed-forward branch ----------------
    xln2 = _layernorm(x1, ln2g_ref[...], ln2b_ref[...])
    h1 = jnp.dot(xln2.astype(jnp.bfloat16), w1_ref[...],
                 preferred_element_type=jnp.float32) + b1_ref[...]
    h1 = jnp.maximum(h1, 0.0)                                 # ReLU
    ff = jnp.dot(h1.astype(jnp.bfloat16), w2_ref[...],
                 preferred_element_type=jnp.float32) + b2_ref[...]

    o_ref[...] = (x1 + ff).reshape(BB, T, C).astype(o_ref.dtype)   # second residual


def transformer_block(x, params, *, max_rows=256):
    B, T, C = x.shape
    assert C == N_EMBD
    assert T <= BLOCK_SIZE and (T & (T - 1)) == 0, "T must be a power of two <= block_size"

    # Slab sizing: target ~max_rows MXU rows (BB*T) per grid step.  If one step would
    # hold everything but there are >= 256 rows of work, split into two steps so both
    # v7x TensorCores can run (the batch grid axis is "parallel").
    bb_cap = max(1, max_rows // T)
    n_steps = -(-B // bb_cap)
    if n_steps == 1 and B * T >= 256:
        n_steps = 2
    bb = -(-B // n_steps)
    b_pad = bb * n_steps
    if b_pad != B:
        x = jnp.pad(x, ((0, b_pad - B), (0, 0), (0, 0)))

    w_spec = lambda shape: pl.BlockSpec(shape, lambda b: (0,) * len(shape))

    in_specs = [
        pl.BlockSpec((bb, T, C), lambda b: (b, 0, 0)),          # x slab
        w_spec((1, C)), w_spec((1, C)),                         # ln1 gamma, beta
        w_spec((C, 3 * C)),                                     # fused Wqkv (bf16)
        w_spec((C, C)), w_spec((1, C)),                         # Wproj (bf16), bproj
        w_spec((1, C)), w_spec((1, C)),                         # ln2 gamma, beta
        w_spec((C, 4 * C)), w_spec((1, 4 * C)),                 # W1 (bf16), b1
        w_spec((4 * C, C)), w_spec((1, C)),                     # W2 (bf16), b2
    ]

    out = pl.pallas_call(
        block_kernel,
        out_shape=jax.ShapeDtypeStruct((b_pad, T, C), x.dtype),
        grid_spec=pltpu.PrefetchScalarGridSpec(
            num_scalar_prefetch=0,
            grid=(n_steps,),
            in_specs=in_specs,
            out_specs=pl.BlockSpec((bb, T, C), lambda b: (b, 0, 0)),
            scratch_shapes=[pltpu.VMEM((bb * T, C), jnp.float32)],   # head-output slab
        ),
        compiler_params=pltpu.CompilerParams(
            dimension_semantics=("parallel",),   # megacore / 2-TC sharding on v7x
            vmem_limit_bytes=32 << 20,           # safe on v7x's 64 MiB physical VMEM
        ),
    )(x, *params)
    return out[:B]


def init_params(key):
    C = N_EMBD
    ks = jax.random.split(key, 8)
    scale = 0.02
    # Fused QKV weight: columns [Q | K | V], each (C, C) with per-head column blocks.
    wqkv = (scale * jax.random.normal(ks[0], (C, 3 * C), jnp.float32)).astype(jnp.bfloat16)
    wproj = (scale * jax.random.normal(ks[1], (C, C), jnp.float32)).astype(jnp.bfloat16)
    bproj = jnp.zeros((1, C), jnp.float32)
    w1 = (scale * jax.random.normal(ks[2], (C, 4 * C), jnp.float32)).astype(jnp.bfloat16)
    b1 = 0.01 * jax.random.normal(ks[3], (1, 4 * C), jnp.float32)
    w2 = (scale * jax.random.normal(ks[4], (4 * C, C), jnp.float32)).astype(jnp.bfloat16)
    b2 = 0.01 * jax.random.normal(ks[5], (1, C), jnp.float32)
    ln1g = jnp.ones((1, C), jnp.float32)
    ln1b = jnp.zeros((1, C), jnp.float32)
    ln2g = jnp.ones((1, C), jnp.float32)
    ln2b = jnp.zeros((1, C), jnp.float32)
    return (ln1g, ln1b, wqkv, wproj, bproj, ln2g, ln2b, w1, b1, w2, b2)


def reference_block(x, params):
    (ln1g, ln1b, wqkv, wproj, bproj, ln2g, ln2b, w1, b1, w2, b2) = params
    wqkv = wqkv.astype(jnp.float32)
    wproj = wproj.astype(jnp.float32)
    w1 = w1.astype(jnp.float32)
    w2 = w2.astype(jnp.float32)
    C = N_EMBD

    def ln(x, g, b):
        mu = jnp.mean(x, axis=-1, keepdims=True)
        var = jnp.mean((x - mu) ** 2, axis=-1, keepdims=True)
        return (x - mu) / jnp.sqrt(var + LN_EPS) * g + b

    B, T, _ = x.shape
    xln = ln(x, ln1g, ln1b)
    q = xln @ wqkv[:, :C]
    k = xln @ wqkv[:, C:2 * C]
    v = xln @ wqkv[:, 2 * C:]
    q = q.reshape(B, T, N_HEAD, HEAD_SIZE).transpose(0, 2, 1, 3)
    k = k.reshape(B, T, N_HEAD, HEAD_SIZE).transpose(0, 2, 1, 3)
    v = v.reshape(B, T, N_HEAD, HEAD_SIZE).transpose(0, 2, 1, 3)
    s = (q @ k.transpose(0, 1, 3, 2)) * HEAD_SIZE ** -0.5
    mask = jnp.tril(jnp.ones((T, T), bool))
    s = jnp.where(mask, s, -jnp.inf)
    p = jax.nn.softmax(s, axis=-1)
    att = (p @ v).transpose(0, 2, 1, 3).reshape(B, T, C)
    x1 = x + att @ wproj + bproj
    xln2 = ln(x1, ln2g, ln2b)
    ff = jnp.maximum(xln2 @ w1 + b1, 0.0) @ w2 + b2
    return x1 + ff


if __name__ == "__main__":
    key = jax.random.PRNGKey(0)
    pkey, xkey = jax.random.split(key)
    params = init_params(pkey)

    B, T = 2, BLOCK_SIZE
    x = jax.random.normal(xkey, (B, T, N_EMBD), jnp.float32)

    out = transformer_block(x, params)
    out = jax.block_until_ready(out)

    ref = reference_block(x, params)
    assert out.shape == (B, T, N_EMBD)
    assert jnp.allclose(out, ref, atol=2e-2, rtol=2e-2), "mismatch vs JAX reference"

    print("KERNEL_OK")
</pallas_src>

<mosaic_0001>
module attributes {stable_mosaic.version = 11 : i64} {
  func.func @block_kernel(%arg0: i32, %arg1: memref<2x8x384xf32, #tpu.memory_space<vmem>>, %arg2: memref<1x384xf32, #tpu.memory_space<vmem>>, %arg3: memref<1x384xf32, #tpu.memory_space<vmem>>, %arg4: memref<384x1152xbf16, #tpu.memory_space<vmem>>, %arg5: memref<384x384xbf16, #tpu.memory_space<vmem>>, %arg6: memref<1x384xf32, #tpu.memory_space<vmem>>, %arg7: memref<1x384xf32, #tpu.memory_space<vmem>>, %arg8: memref<1x384xf32, #tpu.memory_space<vmem>>, %arg9: memref<384x1536xbf16, #tpu.memory_space<vmem>>, %arg10: memref<1x1536xf32, #tpu.memory_space<vmem>>, %arg11: memref<1536x384xbf16, #tpu.memory_space<vmem>>, %arg12: memref<1x384xf32, #tpu.memory_space<vmem>>, %arg13: memref<2x8x384xf32, #tpu.memory_space<vmem>>, %arg14: memref<16x384xf32, #tpu.memory_space<vmem>>) attributes {dimension_semantics = [#tpu.dimension_semantics<parallel>], iteration_bounds = array<i64: 1>, scalar_prefetch = 0 : i64, scratch_operands = 1 : i64, tpu.core_type = #tpu.core_type<tc>, window_params = [{transform_indices = @transform_0, window_bounds = array<i64: 2, 8, 384>}, {pipeline_mode = #tpu.pipeline_mode<synchronous>, transform_indices = @transform_1, window_bounds = array<i64: 1, 384>}, {pipeline_mode = #tpu.pipeline_mode<synchronous>, transform_indices = @transform_2, window_bounds = array<i64: 1, 384>}, {pipeline_mode = #tpu.pipeline_mode<synchronous>, transform_indices = @transform_3, window_bounds = array<i64: 384, 1152>}, {pipeline_mode = #tpu.pipeline_mode<synchronous>, transform_indices = @transform_4, window_bounds = array<i64: 384, 384>}, {pipeline_mode = #tpu.pipeline_mode<synchronous>, transform_indices = @transform_5, window_bounds = array<i64: 1, 384>}, {pipeline_mode = #tpu.pipeline_mode<synchronous>, transform_indices = @transform_6, window_bounds = array<i64: 1, 384>}, {pipeline_mode = #tpu.pipeline_mode<synchronous>, transform_indices = @transform_7, window_bounds = array<i64: 1, 384>}, {pipeline_mode = #tpu.pipeline_mode<synchronous>, transform_indices = @transform_8, window_bounds = array<i64: 384, 1536>}, {pipeline_mode = #tpu.pipeline_mode<synchronous>, transform_indices = @transform_9, window_bounds = array<i64: 1, 1536>}, {pipeline_mode = #tpu.pipeline_mode<synchronous>, transform_indices = @transform_10, window_bounds = array<i64: 1536, 384>}, {pipeline_mode = #tpu.pipeline_mode<synchronous>, transform_indices = @transform_11, window_bounds = array<i64: 1, 384>}, {transform_indices = @transform_12, window_bounds = array<i64: 2, 8, 384>}]} {
    %c0 = arith.constant 0 : index
    %c0_0 = arith.constant 0 : index
    %c0_1 = arith.constant 0 : index
    %0 = vector.load %arg1[%c0, %c0_0, %c0_1] : memref<2x8x384xf32, #tpu.memory_space<vmem>>, vector<2x8x384xf32>
    %1 = vector.shape_cast %0 : vector<2x8x384xf32> to vector<16x384xf32>
    %c0_2 = arith.constant 0 : index
    %c0_3 = arith.constant 0 : index
    %2 = vector.load %arg2[%c0_2, %c0_3] : memref<1x384xf32, #tpu.memory_space<vmem>>, vector<1x384xf32>
    %c0_4 = arith.constant 0 : index
    %c0_5 = arith.constant 0 : index
    %3 = vector.load %arg3[%c0_4, %c0_5] : memref<1x384xf32, #tpu.memory_space<vmem>>, vector<1x384xf32>
    %cst = arith.constant dense<0.000000e+00> : vector<16xf32>
    %4 = vector.multi_reduction <add>, %1, %cst [1] : vector<16x384xf32> to vector<16xf32>
    %5 = vector.shape_cast %4 : vector<16xf32> to vector<16x1xf32>
    %cst_6 = arith.constant 3.840000e+02 : f32
    %6 = vector.broadcast %cst_6 : f32 to vector<16x1xf32>
    %7 = arith.divf %5, %6 : vector<16x1xf32>
    %8 = vector.broadcast %7 : vector<16x1xf32> to vector<16x384xf32>
    %9 = arith.subf %1, %8 : vector<16x384xf32>
    %10 = arith.mulf %9, %9 : vector<16x384xf32>
    %cst_7 = arith.constant dense<0.000000e+00> : vector<16xf32>
    %11 = vector.multi_reduction <add>, %10, %cst_7 [1] : vector<16x384xf32> to vector<16xf32>
    %12 = vector.shape_cast %11 : vector<16xf32> to vector<16x1xf32>
    %cst_8 = arith.constant 3.840000e+02 : f32
    %13 = vector.broadcast %cst_8 : f32 to vector<16x1xf32>
    %14 = arith.divf %12, %13 : vector<16x1xf32>
    %cst_9 = arith.constant 9.99999974E-6 : f32
    %15 = vector.broadcast %cst_9 : f32 to vector<16x1xf32>
    %16 = arith.addf %14, %15 : vector<16x1xf32>
    %17 = math.rsqrt %16 : vector<16x1xf32>
    %18 = vector.broadcast %17 : vector<16x1xf32> to vector<16x384xf32>
    %19 = arith.mulf %9, %18 : vector<16x384xf32>
    %20 = vector.broadcast %2 : vector<1x384xf32> to vector<16x384xf32>
    %21 = arith.mulf %19, %20 : vector<16x384xf32>
    %22 = vector.broadcast %3 : vector<1x384xf32> to vector<16x384xf32>
    %23 = arith.addf %21, %22 : vector<16x384xf32>
    %24 = arith.truncf %23 : vector<16x384xf32> to vector<16x384xbf16>
    %c0_10 = arith.constant 0 : index
    %c0_11 = arith.constant 0 : index
    %25 = vector.load %arg4[%c0_10, %c0_11] : memref<384x1152xbf16, #tpu.memory_space<vmem>>, vector<384x1152xbf16>
    %cst_12 = arith.constant dense<0.000000e+00> : vector<16x1152xf32>
    %26 = tpu.matmul %24, %25, %cst_12 {dimension_numbers = #tpu.dot_dimension_numbers<[1], [0], [0], [1], [0, 0, 1, 1], [], []>} : vector<16x384xbf16>, vector<384x1152xbf16>, vector<16x1152xf32> -> vector<16x1152xf32>
    %27 = arith.truncf %26 : vector<16x1152xf32> to vector<16x1152xbf16>
    %28 = tpu.iota {dimensions = array<i32: 0>} : vector<16x16xi32>
    %29 = tpu.iota {dimensions = array<i32: 1>} : vector<16x16xi32>
    %30 = arith.subi %28, %29 : vector<16x16xi32>
    %c0_i32 = arith.constant 0 : i32
    %31 = vector.broadcast %c0_i32 : i32 to vector<16x16xi32>
    %32 = arith.cmpi sge, %30, %31 : vector<16x16xi32>
    %c7_i32 = arith.constant 7 : i32
    %33 = vector.broadcast %c7_i32 : i32 to vector<16x16xi32>
    %34 = arith.andi %28, %33 : vector<16x16xi32>
    %35 = arith.cmpi sle, %30, %34 : vector<16x16xi32>
    %36 = arith.andi %32, %35 : vector<16x16xi1>
    %cst_13 = arith.constant 0.000000e+00 : f32
    %cst_14 = arith.constant -1.000000e+09 : f32
    %37 = vector.broadcast %cst_13 : f32 to vector<16x16xf32>
    %38 = vector.broadcast %cst_14 : f32 to vector<16x16xf32>
    %39 = arith.select %36, %37, %38 : vector<16x16xi1>, vector<16x16xf32>
    %40 = vector.extract_strided_slice %27 {offsets = [0, 0], sizes = [16, 64], strides = [1, 1]} : vector<16x1152xbf16> to vector<16x64xbf16>
    %41 = vector.extract_strided_slice %27 {offsets = [0, 384], sizes = [16, 64], strides = [1, 1]} : vector<16x1152xbf16> to vector<16x64xbf16>
    %42 = vector.extract_strided_slice %27 {offsets = [0, 768], sizes = [16, 64], strides = [1, 1]} : vector<16x1152xbf16> to vector<16x64xbf16>
    %cst_15 = arith.constant dense<0.000000e+00> : vector<16x16xf32>
    %43 = tpu.matmul %40, %41, %cst_15 {dimension_numbers = #tpu.dot_dimension_numbers<[1], [1], [0], [0], [0, 0, 1, 0], [], []>} : vector<16x64xbf16>, vector<16x64xbf16>, vector<16x16xf32> -> vector<16x16xf32>
    %cst_16 = arith.constant 1.250000e-01 : f32
    %44 = vector.broadcast %cst_16 : f32 to vector<16x16xf32>
    %45 = arith.mulf %43, %44 : vector<16x16xf32>
    %46 = arith.addf %45, %39 : vector<16x16xf32>
    %cst_17 = arith.constant dense<0xFF800000> : vector<16xf32>
    %47 = vector.multi_reduction <maximumf>, %46, %cst_17 [1] : vector<16x16xf32> to vector<16xf32>
    %48 = vector.shape_cast %47 : vector<16xf32> to vector<16x1xf32>
    %49 = vector.broadcast %48 : vector<16x1xf32> to vector<16x16xf32>
    %50 = arith.subf %46, %49 : vector<16x16xf32>
    %51 = math.exp %50 : vector<16x16xf32>
    %cst_18 = arith.constant dense<0.000000e+00> : vector<16xf32>
    %52 = vector.multi_reduction <add>, %51, %cst_18 [1] : vector<16x16xf32> to vector<16xf32>
    %53 = vector.shape_cast %52 : vector<16xf32> to vector<16x1xf32>
    %54 = tpu.reciprocal %53 {approx = true} : vector<16x1xf32> -> vector<16x1xf32>
    %55 = vector.broadcast %54 : vector<16x1xf32> to vector<16x16xf32>
    %56 = arith.mulf %51, %55 : vector<16x16xf32>
    %57 = arith.truncf %56 : vector<16x16xf32> to vector<16x16xbf16>
    %cst_19 = arith.constant dense<0.000000e+00> : vector<16x64xf32>
    %58 = tpu.matmul %57, %42, %cst_19 {dimension_numbers = #tpu.dot_dimension_numbers<[1], [0], [0], [1], [0, 0, 1, 1], [], []>} : vector<16x16xbf16>, vector<16x64xbf16>, vector<16x64xf32> -> vector<16x64xf32>
    %c0_20 = arith.constant 0 : index
    %c0_21 = arith.constant 0 : index
    %59 = vector.load %arg14[%c0_20, %c0_21] : memref<16x384xf32, #tpu.memory_space<vmem>>, vector<16x64xf32>
    tpu.vector_store %arg14[%c0_20, %c0_21], %58 {strides = array<i32>} : memref<16x384xf32, #tpu.memory_space<vmem>>, vector<16x64xf32>,
    %60 = vector.extract_strided_slice %27 {offsets = [0, 64], sizes = [16, 64], strides = [1, 1]} : vector<16x1152xbf16> to vector<16x64xbf16>
    %61 = vector.extract_strided_slice %27 {offsets = [0, 448], sizes = [16, 64], strides = [1, 1]} : vector<16x1152xbf16> to vector<16x64xbf16>
    %62 = vector.extract_strided_slice %27 {offsets = [0, 832], sizes = [16, 64], strides = [1, 1]} : vector<16x1152xbf16> to vector<16x64xbf16>
    %cst_22 = arith.constant dense<0.000000e+00> : vector<16x16xf32>
    %63 = tpu.matmul %60, %61, %cst_22 {dimension_numbers = #tpu.dot_dimension_numbers<[1], [1], [0], [0], [0, 0, 1, 0], [], []>} : vector<16x64xbf16>, vector<16x64xbf16>, vector<16x16xf32> -> vector<16x16xf32>
    %cst_23 = arith.constant 1.250000e-01 : f32
    %64 = vector.broadcast %cst_23 : f32 to vector<16x16xf32>
    %65 = arith.mulf %63, %64 : vector<16x16xf32>
    %66 = arith.addf %65, %39 : vector<16x16xf32>
    %cst_24 = arith.constant dense<0xFF800000> : vector<16xf32>
    %67 = vector.multi_reduction <maximumf>, %66, %cst_24 [1] : vector<16x16xf32> to vector<16xf32>
    %68 = vector.shape_cast %67 : vector<16xf32> to vector<16x1xf32>
    %69 = vector.broadcast %68 : vector<16x1xf32> to vector<16x16xf32>
    %70 = arith.subf %66, %69 : vector<16x16xf32>
    %71 = math.exp %70 : vector<16x16xf32>
    %cst_25 = arith.constant dense<0.000000e+00> : vector<16xf32>
    %72 = vector.multi_reduction <add>, %71, %cst_25 [1] : vector<16x16xf32> to vector<16xf32>
    %73 = vector.shape_cast %72 : vector<16xf32> to vector<16x1xf32>
    %74 = tpu.reciprocal %73 {approx = true} : vector<16x1xf32> -> vector<16x1xf32>
    %75 = vector.broadcast %74 : vector<16x1xf32> to vector<16x16xf32>
    %76 = arith.mulf %71, %75 : vector<16x16xf32>
    %77 = arith.truncf %76 : vector<16x16xf32> to vector<16x16xbf16>
    %cst_26 = arith.constant dense<0.000000e+00> : vector<16x64xf32>
    %78 = tpu.matmul %77, %62, %cst_26 {dimension_numbers = #tpu.dot_dimension_numbers<[1], [0], [0], [1], [0, 0, 1, 1], [], []>} : vector<16x16xbf16>, vector<16x64xbf16>, vector<16x64xf32> -> vector<16x64xf32>
    %c0_27 = arith.constant 0 : index
    %c64 = arith.constant 64 : index
    %79 = vector.load %arg14[%c0_27, %c64] : memref<16x384xf32, #tpu.memory_space<vmem>>, vector<16x64xf32>
    tpu.vector_store %arg14[%c0_27, %c64], %78 {strides = array<i32>} : memref<16x384xf32, #tpu.memory_space<vmem>>, vector<16x64xf32>,
    %80 = vector.extract_strided_slice %27 {offsets = [0, 128], sizes = [16, 64], strides = [1, 1]} : vector<16x1152xbf16> to vector<16x64xbf16>
    %81 = vector.extract_strided_slice %27 {offsets = [0, 512], sizes = [16, 64], strides = [1, 1]} : vector<16x1152xbf16> to vector<16x64xbf16>
    %82 = vector.extract_strided_slice %27 {offsets = [0, 896], sizes = [16, 64], strides = [1, 1]} : vector<16x1152xbf16> to vector<16x64xbf16>
    %cst_28 = arith.constant dense<0.000000e+00> : vector<16x16xf32>
    %83 = tpu.matmul %80, %81, %cst_28 {dimension_numbers = #tpu.dot_dimension_numbers<[1], [1], [0], [0], [0, 0, 1, 0], [], []>} : vector<16x64xbf16>, vector<16x64xbf16>, vector<16x16xf32> -> vector<16x16xf32>
    %cst_29 = arith.constant 1.250000e-01 : f32
    %84 = vector.broadcast %cst_29 : f32 to vector<16x16xf32>
    %85 = arith.mulf %83, %84 : vector<16x16xf32>
    %86 = arith.addf %85, %39 : vector<16x16xf32>
    %cst_30 = arith.constant dense<0xFF800000> : vector<16xf32>
    %87 = vector.multi_reduction <maximumf>, %86, %cst_30 [1] : vector<16x16xf32> to vector<16xf32>
    %88 = vector.shape_cast %87 : vector<16xf32> to vector<16x1xf32>
    %89 = vector.broadcast %88 : vector<16x1xf32> to vector<16x16xf32>
    %90 = arith.subf %86, %89 : vector<16x16xf32>
    %91 = math.exp %90 : vector<16x16xf32>
    %cst_31 = arith.constant dense<0.000000e+00> : vector<16xf32>
    %92 = vector.multi_reduction <add>, %91, %cst_31 [1] : vector<16x16xf32> to vector<16xf32>
    %93 = vector.shape_cast %92 : vector<16xf32> to vector<16x1xf32>
    %94 = tpu.reciprocal %93 {approx = true} : vector<16x1xf32> -> vector<16x1xf32>
    %95 = vector.broadcast %94 : vector<16x1xf32> to vector<16x16xf32>
    %96 = arith.mulf %91, %95 : vector<16x16xf32>
    %97 = arith.truncf %96 : vector<16x16xf32> to vector<16x16xbf16>
    %cst_32 = arith.constant dense<0.000000e+00> : vector<16x64xf32>
    %98 = tpu.matmul %97, %82, %cst_32 {dimension_numbers = #tpu.dot_dimension_numbers<[1], [0], [0], [1], [0, 0, 1, 1], [], []>} : vector<16x16xbf16>, vector<16x64xbf16>, vector<16x64xf32> -> vector<16x64xf32>
    %c0_33 = arith.constant 0 : index
    %c128 = arith.constant 128 : index
    %99 = vector.load %arg14[%c0_33, %c128] : memref<16x384xf32, #tpu.memory_space<vmem>>, vector<16x64xf32>
    tpu.vector_store %arg14[%c0_33, %c128], %98 {strides = array<i32>} : memref<16x384xf32, #tpu.memory_space<vmem>>, vector<16x64xf32>,
    %100 = vector.extract_strided_slice %27 {offsets = [0, 192], sizes = [16, 64], strides = [1, 1]} : vector<16x1152xbf16> to vector<16x64xbf16>
    %101 = vector.extract_strided_slice %27 {offsets = [0, 576], sizes = [16, 64], strides = [1, 1]} : vector<16x1152xbf16> to vector<16x64xbf16>
    %102 = vector.extract_strided_slice %27 {offsets = [0, 960], sizes = [16, 64], strides = [1, 1]} : vector<16x1152xbf16> to vector<16x64xbf16>
    %cst_34 = arith.constant dense<0.000000e+00> : vector<16x16xf32>
    %103 = tpu.matmul %100, %101, %cst_34 {dimension_numbers = #tpu.dot_dimension_numbers<[1], [1], [0], [0], [0, 0, 1, 0], [], []>} : vector<16x64xbf16>, vector<16x64xbf16>, vector<16x16xf32> -> vector<16x16xf32>
    %cst_35 = arith.constant 1.250000e-01 : f32
    %104 = vector.broadcast %cst_35 : f32 to vector<16x16xf32>
    %105 = arith.mulf %103, %104 : vector<16x16xf32>
    %106 = arith.addf %105, %39 : vector<16x16xf32>
    %cst_36 = arith.constant dense<0xFF800000> : vector<16xf32>
    %107 = vector.multi_reduction <maximumf>, %106, %cst_36 [1] : vector<16x16xf32> to vector<16xf32>
    %108 = vector.shape_cast %107 : vector<16xf32> to vector<16x1xf32>
    %109 = vector.broadcast %108 : vector<16x1xf32> to vector<16x16xf32>
    %110 = arith.subf %106, %109 : vector<16x16xf32>
    %111 = math.exp %110 : vector<16x16xf32>
    %cst_37 = arith.constant dense<0.000000e+00> : vector<16xf32>
    %112 = vector.multi_reduction <add>, %111, %cst_37 [1] : vector<16x16xf32> to vector<16xf32>
    %113 = vector.shape_cast %112 : vector<16xf32> to vector<16x1xf32>
    %114 = tpu.reciprocal %113 {approx = true} : vector<16x1xf32> -> vector<16x1xf32>
    %115 = vector.broadcast %114 : vector<16x1xf32> to vector<16x16xf32>
    %116 = arith.mulf %111, %115 : vector<16x16xf32>
    %117 = arith.truncf %116 : vector<16x16xf32> to vector<16x16xbf16>
    %cst_38 = arith.constant dense<0.000000e+00> : vector<16x64xf32>
    %118 = tpu.matmul %117, %102, %cst_38 {dimension_numbers = #tpu.dot_dimension_numbers<[1], [0], [0], [1], [0, 0, 1, 1], [], []>} : vector<16x16xbf16>, vector<16x64xbf16>, vector<16x64xf32> -> vector<16x64xf32>
    %c0_39 = arith.constant 0 : index
    %c192 = arith.constant 192 : index
    %119 = vector.load %arg14[%c0_39, %c192] : memref<16x384xf32, #tpu.memory_space<vmem>>, vector<16x64xf32>
    tpu.vector_store %arg14[%c0_39, %c192], %118 {strides = array<i32>} : memref<16x384xf32, #tpu.memory_space<vmem>>, vector<16x64xf32>,
    %120 = vector.extract_strided_slice %27 {offsets = [0, 256], sizes = [16, 64], strides = [1, 1]} : vector<16x1152xbf16> to vector<16x64xbf16>
    %121 = vector.extract_strided_slice %27 {offsets = [0, 640], sizes = [16, 64], strides = [1, 1]} : vector<16x1152xbf16> to vector<16x64xbf16>
    %122 = vector.extract_strided_slice %27 {offsets = [0, 1024], sizes = [16, 64], strides = [1, 1]} : vector<16x1152xbf16> to vector<16x64xbf16>
    %cst_40 = arith.constant dense<0.000000e+00> : vector<16x16xf32>
    %123 = tpu.matmul %120, %121, %cst_40 {dimension_numbers = #tpu.dot_dimension_numbers<[1], [1], [0], [0], [0, 0, 1, 0], [], []>} : vector<16x64xbf16>, vector<16x64xbf16>, vector<16x16xf32> -> vector<16x16xf32>
    %cst_41 = arith.constant 1.250000e-01 : f32
    %124 = vector.broadcast %cst_41 : f32 to vector<16x16xf32>
    %125 = arith.mulf %123, %124 : vector<16x16xf32>
    %126 = arith.addf %125, %39 : vector<16x16xf32>
    %cst_42 = arith.constant dense<0xFF800000> : vector<16xf32>
    %127 = vector.multi_reduction <maximumf>, %126, %cst_42 [1] : vector<16x16xf32> to vector<16xf32>
    %128 = vector.shape_cast %127 : vector<16xf32> to vector<16x1xf32>
    %129 = vector.broadcast %128 : vector<16x1xf32> to vector<16x16xf32>
    %130 = arith.subf %126, %129 : vector<16x16xf32>
    %131 = math.exp %130 : vector<16x16xf32>
    %cst_43 = arith.constant dense<0.000000e+00> : vector<16xf32>
    %132 = vector.multi_reduction <add>, %131, %cst_43 [1] : vector<16x16xf32> to vector<16xf32>
    %133 = vector.shape_cast %132 : vector<16xf32> to vector<16x1xf32>
    %134 = tpu.reciprocal %133 {approx = true} : vector<16x1xf32> -> vector<16x1xf32>
    %135 = vector.broadcast %134 : vector<16x1xf32> to vector<16x16xf32>
    %136 = arith.mulf %131, %135 : vector<16x16xf32>
    %137 = arith.truncf %136 : vector<16x16xf32> to vector<16x16xbf16>
    %cst_44 = arith.constant dense<0.000000e+00> : vector<16x64xf32>
    %138 = tpu.matmul %137, %122, %cst_44 {dimension_numbers = #tpu.dot_dimension_numbers<[1], [0], [0], [1], [0, 0, 1, 1], [], []>} : vector<16x16xbf16>, vector<16x64xbf16>, vector<16x64xf32> -> vector<16x64xf32>
    %c0_45 = arith.constant 0 : index
    %c256 = arith.constant 256 : index
    %139 = vector.load %arg14[%c0_45, %c256] : memref<16x384xf32, #tpu.memory_space<vmem>>, vector<16x64xf32>
    tpu.vector_store %arg14[%c0_45, %c256], %138 {strides = array<i32>} : memref<16x384xf32, #tpu.memory_space<vmem>>, vector<16x64xf32>,
    %140 = vector.extract_strided_slice %27 {offsets = [0, 320], sizes = [16, 64], strides = [1, 1]} : vector<16x1152xbf16> to vector<16x64xbf16>
    %141 = vector.extract_strided_slice %27 {offsets = [0, 704], sizes = [16, 64], strides = [1, 1]} : vector<16x1152xbf16> to vector<16x64xbf16>
    %142 = vector.extract_strided_slice %27 {offsets = [0, 1088], sizes = [16, 64], strides = [1, 1]} : vector<16x1152xbf16> to vector<16x64xbf16>
    %cst_46 = arith.constant dense<0.000000e+00> : vector<16x16xf32>
    %143 = tpu.matmul %140, %141, %cst_46 {dimension_numbers = #tpu.dot_dimension_numbers<[1], [1], [0], [0], [0, 0, 1, 0], [], []>} : vector<16x64xbf16>, vector<16x64xbf16>, vector<16x16xf32> -> vector<16x16xf32>
    %cst_47 = arith.constant 1.250000e-01 : f32
    %144 = vector.broadcast %cst_47 : f32 to vector<16x16xf32>
    %145 = arith.mulf %143, %144 : vector<16x16xf32>
    %146 = arith.addf %145, %39 : vector<16x16xf32>
    %cst_48 = arith.constant dense<0xFF800000> : vector<16xf32>
    %147 = vector.multi_reduction <maximumf>, %146, %cst_48 [1] : vector<16x16xf32> to vector<16xf32>
    %148 = vector.shape_cast %147 : vector<16xf32> to vector<16x1xf32>
    %149 = vector.broadcast %148 : vector<16x1xf32> to vector<16x16xf32>
    %150 = arith.subf %146, %149 : vector<16x16xf32>
    %151 = math.exp %150 : vector<16x16xf32>
    %cst_49 = arith.constant dense<0.000000e+00> : vector<16xf32>
    %152 = vector.multi_reduction <add>, %151, %cst_49 [1] : vector<16x16xf32> to vector<16xf32>
    %153 = vector.shape_cast %152 : vector<16xf32> to vector<16x1xf32>
    %154 = tpu.reciprocal %153 {approx = true} : vector<16x1xf32> -> vector<16x1xf32>
    %155 = vector.broadcast %154 : vector<16x1xf32> to vector<16x16xf32>
    %156 = arith.mulf %151, %155 : vector<16x16xf32>
    %157 = arith.truncf %156 : vector<16x16xf32> to vector<16x16xbf16>
    %cst_50 = arith.constant dense<0.000000e+00> : vector<16x64xf32>
    %158 = tpu.matmul %157, %142, %cst_50 {dimension_numbers = #tpu.dot_dimension_numbers<[1], [0], [0], [1], [0, 0, 1, 1], [], []>} : vector<16x16xbf16>, vector<16x64xbf16>, vector<16x64xf32> -> vector<16x64xf32>
    %c0_51 = arith.constant 0 : index
    %c320 = arith.constant 320 : index
    %159 = vector.load %arg14[%c0_51, %c320] : memref<16x384xf32, #tpu.memory_space<vmem>>, vector<16x64xf32>
    tpu.vector_store %arg14[%c0_51, %c320], %158 {strides = array<i32>} : memref<16x384xf32, #tpu.memory_space<vmem>>, vector<16x64xf32>,
    %c0_52 = arith.constant 0 : index
    %c0_53 = arith.constant 0 : index
    %160 = vector.load %arg14[%c0_52, %c0_53] : memref<16x384xf32, #tpu.memory_space<vmem>>, vector<16x384xf32>
    %161 = arith.truncf %160 : vector<16x384xf32> to vector<16x384xbf16>
    %c0_54 = arith.constant 0 : index
    %c0_55 = arith.constant 0 : index
    %162 = vector.load %arg5[%c0_54, %c0_55] : memref<384x384xbf16, #tpu.memory_space<vmem>>, vector<384x384xbf16>
    %cst_56 = arith.constant dense<0.000000e+00> : vector<16x384xf32>
    %163 = tpu.matmul %161, %162, %cst_56 {dimension_numbers = #tpu.dot_dimension_numbers<[1], [0], [0], [1], [0, 0, 1, 1], [], []>} : vector<16x384xbf16>, vector<384x384xbf16>, vector<16x384xf32> -> vector<16x384xf32>
    %c0_57 = arith.constant 0 : index
    %c0_58 = arith.constant 0 : index
    %164 = vector.load %arg6[%c0_57, %c0_58] : memref<1x384xf32, #tpu.memory_space<vmem>>, vector<1x384xf32>
    %165 = vector.broadcast %164 : vector<1x384xf32> to vector<16x384xf32>
    %166 = arith.addf %163, %165 : vector<16x384xf32>
    %167 = arith.addf %1, %166 : vector<16x384xf32>
    %c0_59 = arith.constant 0 : index
    %c0_60 = arith.constant 0 : index
    %168 = vector.load %arg7[%c0_59, %c0_60] : memref<1x384xf32, #tpu.memory_space<vmem>>, vector<1x384xf32>
    %c0_61 = arith.constant 0 : index
    %c0_62 = arith.constant 0 : index
    %169 = vector.load %arg8[%c0_61, %c0_62] : memref<1x384xf32, #tpu.memory_space<vmem>>, vector<1x384xf32>
    %cst_63 = arith.constant dense<0.000000e+00> : vector<16xf32>
    %170 = vector.multi_reduction <add>, %167, %cst_63 [1] : vector<16x384xf32> to vector<16xf32>
    %171 = vector.shape_cast %170 : vector<16xf32> to vector<16x1xf32>
    %cst_64 = arith.constant 3.840000e+02 : f32
    %172 = vector.broadcast %cst_64 : f32 to vector<16x1xf32>
    %173 = arith.divf %171, %172 : vector<16x1xf32>
    %174 = vector.broadcast %173 : vector<16x1xf32> to vector<16x384xf32>
    %175 = arith.subf %167, %174 : vector<16x384xf32>
    %176 = arith.mulf %175, %175 : vector<16x384xf32>
    %cst_65 = arith.constant dense<0.000000e+00> : vector<16xf32>
    %177 = vector.multi_reduction <add>, %176, %cst_65 [1] : vector<16x384xf32> to vector<16xf32>
    %178 = vector.shape_cast %177 : vector<16xf32> to vector<16x1xf32>
    %cst_66 = arith.constant 3.840000e+02 : f32
    %179 = vector.broadcast %cst_66 : f32 to vector<16x1xf32>
    %180 = arith.divf %178, %179 : vector<16x1xf32>
    %cst_67 = arith.constant 9.99999974E-6 : f32
    %181 = vector.broadcast %cst_67 : f32 to vector<16x1xf32>
    %182 = arith.addf %180, %181 : vector<16x1xf32>
    %183 = math.rsqrt %182 : vector<16x1xf32>
    %184 = vector.broadcast %183 : vector<16x1xf32> to vector<16x384xf32>
    %185 = arith.mulf %175, %184 : vector<16x384xf32>
    %186 = vector.broadcast %168 : vector<1x384xf32> to vector<16x384xf32>
    %187 = arith.mulf %185, %186 : vector<16x384xf32>
    %188 = vector.broadcast %169 : vector<1x384xf32> to vector<16x384xf32>
    %189 = arith.addf %187, %188 : vector<16x384xf32>
    %190 = arith.truncf %189 : vector<16x384xf32> to vector<16x384xbf16>
    %c0_68 = arith.constant 0 : index
    %c0_69 = arith.constant 0 : index
    %191 = vector.load %arg9[%c0_68, %c0_69] : memref<384x1536xbf16, #tpu.memory_space<vmem>>, vector<384x1536xbf16>
    %cst_70 = arith.constant dense<0.000000e+00> : vector<16x1536xf32>
    %192 = tpu.matmul %190, %191, %cst_70 {dimension_numbers = #tpu.dot_dimension_numbers<[1], [0], [0], [1], [0, 0, 1, 1], [], []>} : vector<16x384xbf16>, vector<384x1536xbf16>, vector<16x1536xf32> -> vector<16x1536xf32>
    %c0_71 = arith.constant 0 : index
    %c0_72 = arith.constant 0 : index
    %193 = vector.load %arg10[%c0_71, %c0_72] : memref<1x1536xf32, #tpu.memory_space<vmem>>, vector<1x1536xf32>
    %194 = vector.broadcast %193 : vector<1x1536xf32> to vector<16x1536xf32>
    %195 = arith.addf %192, %194 : vector<16x1536xf32>
    %cst_73 = arith.constant 0.000000e+00 : f32
    %196 = vector.broadcast %cst_73 : f32 to vector<16x1536xf32>
    %197 = arith.maximumf %195, %196 : vector<16x1536xf32>
    %198 = arith.truncf %197 : vector<16x1536xf32> to vector<16x1536xbf16>
    %c0_74 = arith.constant 0 : index
    %c0_75 = arith.constant 0 : index
    %199 = vector.load %arg11[%c0_74, %c0_75] : memref<1536x384xbf16, #tpu.memory_space<vmem>>, vector<1536x384xbf16>
    %cst_76 = arith.constant dense<0.000000e+00> : vector<16x384xf32>
    %200 = tpu.matmul %198, %199, %cst_76 {dimension_numbers = #tpu.dot_dimension_numbers<[1], [0], [0], [1], [0, 0, 1, 1], [], []>} : vector<16x1536xbf16>, vector<1536x384xbf16>, vector<16x384xf32> -> vector<16x384xf32>
    %c0_77 = arith.constant 0 : index
    %c0_78 = arith.constant 0 : index
    %201 = vector.load %arg12[%c0_77, %c0_78] : memref<1x384xf32, #tpu.memory_space<vmem>>, vector<1x384xf32>
    %202 = vector.broadcast %201 : vector<1x384xf32> to vector<16x384xf32>
    %203 = arith.addf %200, %202 : vector<16x384xf32>
    %204 = arith.addf %167, %203 : vector<16x384xf32>
    %205 = vector.shape_cast %204 : vector<16x384xf32> to vector<2x8x384xf32>
    %c0_79 = arith.constant 0 : index
    %c0_80 = arith.constant 0 : index
    %c0_81 = arith.constant 0 : index
    %206 = vector.load %arg13[%c0_79, %c0_80, %c0_81] : memref<2x8x384xf32, #tpu.memory_space<vmem>>, vector<2x8x384xf32>
    tpu.vector_store %arg13[%c0_79, %c0_80, %c0_81], %205 {strides = array<i32>} : memref<2x8x384xf32, #tpu.memory_space<vmem>>, vector<2x8x384xf32>,
    return
  }
  func.func @transform_0(%arg0: i32) -> (i32, i32, i32) {
    %c0_i32 = arith.constant 0 : i32
    %c0_i32_0 = arith.constant 0 : i32
    %c0_i32_1 = arith.constant 0 : i32
    return %arg0, %c0_i32, %c0_i32_0 : i32, i32, i32
  }
  func.func @transform_1(%arg0: i32) -> (i32, i32) {
    %c0_i32 = arith.constant 0 : i32
    %c0_i32_0 = arith.constant 0 : i32
    %c0_i32_1 = arith.constant 0 : i32
    return %c0_i32, %c0_i32_0 : i32, i32
  }
  func.func @transform_2(%arg0: i32) -> (i32, i32) {
    %c0_i32 = arith.constant 0 : i32
    %c0_i32_0 = arith.constant 0 : i32
    %c0_i32_1 = arith.constant 0 : i32
    return %c0_i32, %c0_i32_0 : i32, i32
  }
  func.func @transform_3(%arg0: i32) -> (i32, i32) {
    %c0_i32 = arith.constant 0 : i32
    %c0_i32_0 = arith.constant 0 : i32
    %c0_i32_1 = arith.constant 0 : i32
    return %c0_i32, %c0_i32_0 : i32, i32
  }
  func.func @transform_4(%arg0: i32) -> (i32, i32) {
    %c0_i32 = arith.constant 0 : i32
    %c0_i32_0 = arith.constant 0 : i32
    %c0_i32_1 = arith.constant 0 : i32
    return %c0_i32, %c0_i32_0 : i32, i32
  }
  func.func @transform_5(%arg0: i32) -> (i32, i32) {
    %c0_i32 = arith.constant 0 : i32
    %c0_i32_0 = arith.constant 0 : i32
    %c0_i32_1 = arith.constant 0 : i32
    return %c0_i32, %c0_i32_0 : i32, i32
  }
  func.func @transform_6(%arg0: i32) -> (i32, i32) {
    %c0_i32 = arith.constant 0 : i32
    %c0_i32_0 = arith.constant 0 : i32
    %c0_i32_1 = arith.constant 0 : i32
    return %c0_i32, %c0_i32_0 : i32, i32
  }
  func.func @transform_7(%arg0: i32) -> (i32, i32) {
    %c0_i32 = arith.constant 0 : i32
    %c0_i32_0 = arith.constant 0 : i32
    %c0_i32_1 = arith.constant 0 : i32
    return %c0_i32, %c0_i32_0 : i32, i32
  }
  func.func @transform_8(%arg0: i32) -> (i32, i32) {
    %c0_i32 = arith.constant 0 : i32
    %c0_i32_0 = arith.constant 0 : i32
    %c0_i32_1 = arith.constant 0 : i32
    return %c0_i32, %c0_i32_0 : i32, i32
  }
  func.func @transform_9(%arg0: i32) -> (i32, i32) {
    %c0_i32 = arith.constant 0 : i32
    %c0_i32_0 = arith.constant 0 : i32
    %c0_i32_1 = arith.constant 0 : i32
    return %c0_i32, %c0_i32_0 : i32, i32
  }
  func.func @transform_10(%arg0: i32) -> (i32, i32) {
    %c0_i32 = arith.constant 0 : i32
    %c0_i32_0 = arith.constant 0 : i32
    %c0_i32_1 = arith.constant 0 : i32
    return %c0_i32, %c0_i32_0 : i32, i32
  }
  func.func @transform_11(%arg0: i32) -> (i32, i32) {
    %c0_i32 = arith.constant 0 : i32
    %c0_i32_0 = arith.constant 0 : i32
    %c0_i32_1 = arith.constant 0 : i32
    return %c0_i32, %c0_i32_0 : i32, i32
  }
  func.func @transform_12(%arg0: i32) -> (i32, i32, i32) {
    %c0_i32 = arith.constant 0 : i32
    %c0_i32_0 = arith.constant 0 : i32
    %c0_i32_1 = arith.constant 0 : i32
    return %arg0, %c0_i32, %c0_i32_0 : i32, i32, i32
  }
}

</mosaic_0001>

<llo_original>
// kernel: tpu_custom_call.1
$region0: #{tpu_custom_call.1}
  #allocation0 [shape = 'u32[]', space=smem, size = 0x4, offset = 0x4, fixed_abs, tag = 'smem constant byte address 0x4 - core index']
  #allocation1 [shape = 'u32[72,128]{1,0:T(1,128)}', space=vmem, size = 0x9000, scoped, tag = 'internal scratch']
  #allocation2 [shape = 'f32[16,384]{1,0:T(8,128)}', space=vmem, size = 0x6000, scoped, tag = 'scratch operand']
  %s0 = inlined_call_operand.hbm [shape: f32[2,8,384], index: 0, kind: input, shape index: {}]
  %s1 = inlined_call_operand.hbm [shape: f32[1,384], index: 1, kind: input, shape index: {}]
  %s2 = inlined_call_operand.hbm [shape: f32[1,384], index: 2, kind: input, shape index: {}]
  %s3 = inlined_call_operand.hbm [shape: bf16[384,1152], index: 3, kind: input, shape index: {}]
  %s4 = inlined_call_operand.hbm [shape: bf16[384,384], index: 4, kind: input, shape index: {}]
  %s5 = inlined_call_operand.hbm [shape: f32[1,384], index: 5, kind: input, shape index: {}]
  %s6 = inlined_call_operand.hbm [shape: f32[1,384], index: 6, kind: input, shape index: {}]
  %s7 = inlined_call_operand.hbm [shape: f32[1,384], index: 7, kind: input, shape index: {}]
  %s8 = inlined_call_operand.hbm [shape: bf16[384,1536], index: 8, kind: input, shape index: {}]
  %s9 = inlined_call_operand.hbm [shape: f32[1,1536], index: 9, kind: input, shape index: {}]
  %s10 = inlined_call_operand.hbm [shape: bf16[1536,384], index: 10, kind: input, shape index: {}]
  %s11 = inlined_call_operand.hbm [shape: f32[1,384], index: 11, kind: input, shape index: {}]
  %s12 = inlined_call_operand.hbm [shape: f32[2,8,384], index: 12, kind: output, shape index: {}]
  %s13 = sld [smem:[#allocation0]]
  $region106: #{tpu_custom_call.1} parent=0
    _
  %s15 = ssub.s32 1, %s13
  %s16 = scalar_select 0, %s15, %s13
  $region1: #{tpu_custom_call.1} parent=0
    #allocation3 [shape = 'u8[24576]{0}', space=vmem, size = 0x6000, scoped, tag = 'input window, operand 0, single buffered']
    #allocation4 [shape = 's32[1]{0}', space=sflag, size = 0x4, scoped, tag = 'scoped memory for tpu_custom_call.1']
    #allocation5 [shape = 's32[1]{0}', space=sflag, size = 0x4, scoped, tag = 'scoped memory for tpu_custom_call.1']
    #allocation6 [shape = 'u8[1536]{0}', space=vmem, size = 0x800, scoped, tag = 'input window, operand 1, single buffered']
    #allocation7 [shape = 's32[1]{0}', space=sflag, size = 0x4, scoped, tag = 'scoped memory for tpu_custom_call.1']
    #allocation8 [shape = 'u8[1536]{0}', space=vmem, size = 0x800, scoped, tag = 'input window, operand 2, single buffered']
    #allocation9 [shape = 'u8[884736]{0}', space=vmem, size = 0xd8000, scoped, tag = 'input window, operand 3, single buffered']
    #allocation10 [shape = 's32[1]{0}', space=sflag, size = 0x4, scoped, tag = 'scoped memory for tpu_custom_call.1']
    #allocation11 [shape = 'u8[294912]{0}', space=vmem, size = 0x48000, scoped, tag = 'input window, operand 4, single buffered']
    #allocation12 [shape = 'u8[1536]{0}', space=vmem, size = 0x800, scoped, tag = 'input window, operand 5, single buffered']
    #allocation13 [shape = 's32[1]{0}', space=sflag, size = 0x4, scoped, tag = 'scoped memory for tpu_custom_call.1']
    #allocation14 [shape = 'u8[1536]{0}', space=vmem, size = 0x800, scoped, tag = 'input window, operand 6, single buffered']
    #allocation15 [shape = 'u8[1536]{0}', space=vmem, size = 0x800, scoped, tag = 'input window, operand 7, single buffered']
    #allocation16 [shape = 's32[1]{0}', space=sflag, size = 0x4, scoped, tag = 'scoped memory for tpu_custom_call.1']
    #allocation17 [shape = 'u8[1179648]{0}', space=vmem, size = 0x120000, scoped, tag = 'input window, operand 8, single buffered']
    #allocation18 [shape = 'u8[6144]{0}', space=vmem, size = 0x1800, scoped, tag = 'input window, operand 9, single buffered']
    #allocation19 [shape = 's32[1]{0}', space=sflag, size = 0x4, scoped, tag = 'scoped memory for tpu_custom_call.1']
    #allocation20 [shape = 'u8[1179648]{0}', space=vmem, size = 0x120000, scoped, tag = 'input window, operand 10, single buffered']
    #allocation21 [shape = 'u8[1536]{0}', space=vmem, size = 0x800, scoped, tag = 'input window, operand 11, single buffered']
    #allocation22 [shape = 's32[1]{0}', space=sflag, size = 0x4, scoped, tag = 'scoped memory for tpu_custom_call.1']
    #allocation23 [shape = 'u8[24576]{0}', space=vmem, size = 0x6000, scoped, tag = 'output window, operand 0, single buffered']
    %17 = vsyncpa [#allocation4], 0
    %18 = vsyncpa [#allocation7], 0
    %19 = vsyncpa [#allocation10], 0
    %20 = vsyncpa [#allocation13], 0
    %21 = vsyncpa [#allocation16], 0
    %22 = vsyncpa [#allocation19], 0
    %23 = vsyncpa [#allocation22], 0
    %24 = vsyncpa [#allocation5], 0
    // Predicated region
    $region2: #{tpu_custom_call.1} parent=1 // pred_check
      _
    $region3: #{tpu_custom_call.1} parent=1 // pred_check_branch
      %26 = sbr.rel (0) target = $region5
    $region4: #{tpu_custom_call.1} parent=1 // pred_region
      %28 = vsyncadd [#allocation4], 0
      %s29 = sshll.u32 %s0, 4
      %s30 = int_to_ptr.hbm [resolvable:$true] %s29
      %s31 = sshll.u32 [#allocation3], 4
      %s32 = int_to_ptr.vmem [resolvable:$true] %s31
      %37 = dma.hbm_to_vmem [thread:$0]  %s30, 768, %s32, [#allocation4], 384, 384, 24
    $region5: #{tpu_custom_call.1} parent=1 // pred_fallthru
      _
    // Predicated region
    $region6: #{tpu_custom_call.1} parent=1 // pred_check
      _
    $region7: #{tpu_custom_call.1} parent=1 // pred_check_branch
      %39 = sbr.rel (0) target = $region9
    $region8: #{tpu_custom_call.1} parent=1 // pred_region
      %41 = vsyncadd [#allocation7], 0
      %s43 = sshll.u32 %s1, 4
      %s44 = int_to_ptr.hbm [resolvable:$true] %s43
      %s45 = sshll.u32 [#allocation6], 4
      %s46 = int_to_ptr.vmem [resolvable:$true] %s45
      %48 = dma.hbm_to_vmem [thread:$0]  %s44, 48, %s46, [#allocation7]
    $region9: #{tpu_custom_call.1} parent=1 // pred_fallthru
      _
    // Predicated region
    $region10: #{tpu_custom_call.1} parent=1 // pred_check
      _
    $region11: #{tpu_custom_call.1} parent=1 // pred_check_branch
      %50 = sbr.rel (0) target = $region13
    $region12: #{tpu_custom_call.1} parent=1 // pred_region
      %52 = vsyncadd [#allocation7], 0
      %s54 = sshll.u32 %s2, 4
      %s55 = int_to_ptr.hbm [resolvable:$true] %s54
      %s56 = sshll.u32 [#allocation8], 4
      %s57 = int_to_ptr.vmem [resolvable:$true] %s56
      %59 = dma.hbm_to_vmem [thread:$0]  %s55, 48, %s57, [#allocation7]
    $region13: #{tpu_custom_call.1} parent=1 // pred_fallthru
      _
    // Predicated region
    $region14: #{tpu_custom_call.1} parent=1 // pred_check
      _
    $region15: #{tpu_custom_call.1} parent=1 // pred_check_branch
      %61 = sbr.rel (0) target = $region17
    $region16: #{tpu_custom_call.1} parent=1 // pred_region
      %63 = vsyncadd [#allocation10], 0
      %s64 = sshll.u32 %s3, 4
      %s65 = int_to_ptr.hbm [resolvable:$true] %s64
      %s66 = sshll.u32 [#allocation9], 4
      %s67 = int_to_ptr.vmem [resolvable:$true] %s66
      %72 = dma.hbm_to_vmem [thread:$0]  %s65, 27648, %s67, [#allocation10], 576, 576, 36
    $region17: #{tpu_custom_call.1} parent=1 // pred_fallthru
      _
    // Predicated region
    $region18: #{tpu_custom_call.1} parent=1 // pred_check
      _
    $region19: #{tpu_custom_call.1} parent=1 // pred_check_branch
      %74 = sbr.rel (0) target = $region21
    $region20: #{tpu_custom_call.1} parent=1 // pred_region
      %76 = vsyncadd [#allocation10], 0
      %s77 = sshll.u32 %s4, 4
      %s78 = int_to_ptr.hbm [resolvable:$true] %s77
      %s79 = sshll.u32 [#allocation11], 4
      %s80 = int_to_ptr.vmem [resolvable:$true] %s79
      %85 = dma.hbm_to_vmem [thread:$0]  %s78, 9216, %s80, [#allocation10], 192, 192, 12
    $region21: #{tpu_custom_call.1} parent=1 // pred_fallthru
      _
    // Predicated region
    $region22: #{tpu_custom_call.1} parent=1 // pred_check
      _
    $region23: #{tpu_custom_call.1} parent=1 // pred_check_branch
      %87 = sbr.rel (0) target = $region25
    $region24: #{tpu_custom_call.1} parent=1 // pred_region
      %89 = vsyncadd [#allocation13], 0
      %s91 = sshll.u32 %s5, 4
      %s92 = int_to_ptr.hbm [resolvable:$true] %s91
      %s93 = sshll.u32 [#allocation12], 4
      %s94 = int_to_ptr.vmem [resolvable:$true] %s93
      %96 = dma.hbm_to_vmem [thread:$0]  %s92, 48, %s94, [#allocation13]
    $region25: #{tpu_custom_call.1} parent=1 // pred_fallthru
      _
    // Predicated region
    $region26: #{tpu_custom_call.1} parent=1 // pred_check
      _
    $region27: #{tpu_custom_call.1} parent=1 // pred_check_branch
      %98 = sbr.rel (0) target = $region29
    $region28: #{tpu_custom_call.1} parent=1 // pred_region
      %100 = vsyncadd [#allocation13], 0
      %s102 = sshll.u32 %s6, 4
      %s103 = int_to_ptr.hbm [resolvable:$true] %s102
      %s104 = sshll.u32 [#allocation14], 4
      %s105 = int_to_ptr.vmem [resolvable:$true] %s104
      %107 = dma.hbm_to_vmem [thread:$0]  %s103, 48, %s105, [#allocation13]
    $region29: #{tpu_custom_call.1} parent=1 // pred_fallthru
      _
    // Predicated region
    $region30: #{tpu_custom_call.1} parent=1 // pred_check
      _
    $region31: #{tpu_custom_call.1} parent=1 // pred_check_branch
      %109 = sbr.rel (0) target = $region33
    $region32: #{tpu_custom_call.1} parent=1 // pred_region
      %111 = vsyncadd [#allocation16], 0
      %s113 = sshll.u32 %s7, 4
      %s114 = int_to_ptr.hbm [resolvable:$true] %s113
      %s115 = sshll.u32 [#allocation15], 4
      %s116 = int_to_ptr.vmem [resolvable:$true] %s115
      %118 = dma.hbm_to_vmem [thread:$0]  %s114, 48, %s116, [#allocation16]
    $region33: #{tpu_custom_call.1} parent=1 // pred_fallthru
      _
    // Predicated region
    $region34: #{tpu_custom_call.1} parent=1 // pred_check
      _
    $region35: #{tpu_custom_call.1} parent=1 // pred_check_branch
      %120 = sbr.rel (0) target = $region37
    $region36: #{tpu_custom_call.1} parent=1 // pred_region
      %122 = vsyncadd [#allocation16], 0
      %s123 = sshll.u32 %s8, 4
      %s124 = int_to_ptr.hbm [resolvable:$true] %s123
      %s125 = sshll.u32 [#allocation17], 4
      %s126 = int_to_ptr.vmem [resolvable:$true] %s125
      %131 = dma.hbm_to_vmem [thread:$0]  %s124, 36864, %s126, [#allocation16], 768, 768, 48
    $region37: #{tpu_custom_call.1} parent=1 // pred_fallthru
      _
    // Predicated region
    $region38: #{tpu_custom_call.1} parent=1 // pred_check
      _
    $region39: #{tpu_custom_call.1} parent=1 // pred_check_branch
      %133 = sbr.rel (0) target = $region41
    $region40: #{tpu_custom_call.1} parent=1 // pred_region
      %135 = vsyncadd [#allocation19], 0
      %s137 = sshll.u32 %s9, 4
      %s138 = int_to_ptr.hbm [resolvable:$true] %s137
      %s139 = sshll.u32 [#allocation18], 4
      %s140 = int_to_ptr.vmem [resolvable:$true] %s139
      %142 = dma.hbm_to_vmem [thread:$0]  %s138, 192, %s140, [#allocation19]
    $region41: #{tpu_custom_call.1} parent=1 // pred_fallthru
      _
    // Predicated region
    $region42: #{tpu_custom_call.1} parent=1 // pred_check
      _
    $region43: #{tpu_custom_call.1} parent=1 // pred_check_branch
      %144 = sbr.rel (0) target = $region45
    $region44: #{tpu_custom_call.1} parent=1 // pred_region
      %146 = vsyncadd [#allocation19], 0
      %s147 = sshll.u32 %s10, 4
      %s148 = int_to_ptr.hbm [resolvable:$true] %s147
      %s149 = sshll.u32 [#allocation20], 4
      %s150 = int_to_ptr.vmem [resolvable:$true] %s149
      %155 = dma.hbm_to_vmem [thread:$0]  %s148, 36864, %s150, [#allocation19], 192, 192, 12
    $region45: #{tpu_custom_call.1} parent=1 // pred_fallthru
      _
    // Predicated region
    $region46: #{tpu_custom_call.1} parent=1 // pred_check
      _
    $region47: #{tpu_custom_call.1} parent=1 // pred_check_branch
      %157 = sbr.rel (0) target = $region49
    $region48: #{tpu_custom_call.1} parent=1 // pred_region
      %159 = vsyncadd [#allocation22], 0
      %s161 = sshll.u32 %s11, 4
      %s162 = int_to_ptr.hbm [resolvable:$true] %s161
      %s163 = sshll.u32 [#allocation21], 4
      %s164 = int_to_ptr.vmem [resolvable:$true] %s163
      %166 = dma.hbm_to_vmem [thread:$0]  %s162, 48, %s164, [#allocation22]
    $region49: #{tpu_custom_call.1} parent=1 // pred_fallthru
      _
    // Predicated region
    $region50: #{tpu_custom_call.1} parent=1 // pred_check
      _
    $region51: #{tpu_custom_call.1} parent=1 // pred_check_branch
      %168 = sbr.rel (0) target = $region53
    $region52: #{tpu_custom_call.1} parent=1 // pred_region
      %170 = dma.done [#allocation4], 768
    $region53: #{tpu_custom_call.1} parent=1 // pred_fallthru
      _
    // Predicated region
    $region54: #{tpu_custom_call.1} parent=1 // pred_check
      _
    $region55: #{tpu_custom_call.1} parent=1 // pred_check_branch
      %172 = sbr.rel (0) target = $region57
    $region56: #{tpu_custom_call.1} parent=1 // pred_region
      %174 = dma.done [#allocation7], 48
    $region57: #{tpu_custom_call.1} parent=1 // pred_fallthru
      _
    // Predicated region
    $region58: #{tpu_custom_call.1} parent=1 // pred_check
      _
    $region59: #{tpu_custom_call.1} parent=1 // pred_check_branch
      %176 = sbr.rel (0) target = $region61
    $region60: #{tpu_custom_call.1} parent=1 // pred_region
      %178 = dma.done [#allocation7], 48
    $region61: #{tpu_custom_call.1} parent=1 // pred_fallthru
      _
    // Predicated region
    $region62: #{tpu_custom_call.1} parent=1 // pred_check
      _
    $region63: #{tpu_custom_call.1} parent=1 // pred_check_branch
      %180 = sbr.rel (0) target = $region65
    $region64: #{tpu_custom_call.1} parent=1 // pred_region
      %182 = dma.done [#allocation10], 27648
    $region65: #{tpu_custom_call.1} parent=1 // pred_fallthru
      _
    // Predicated region
    $region66: #{tpu_custom_call.1} parent=1 // pred_check
      _
    $region67: #{tpu_custom_call.1} parent=1 // pred_check_branch
      %184 = sbr.rel (0) target = $region69
    $region68: #{tpu_custom_call.1} parent=1 // pred_region
      %186 = dma.done [#allocation10], 9216
    $region69: #{tpu_custom_call.1} parent=1 // pred_fallthru
      _
    // Predicated region
    $region70: #{tpu_custom_call.1} parent=1 // pred_check
      _
    $region71: #{tpu_custom_call.1} parent=1 // pred_check_branch
      %188 = sbr.rel (0) target = $region73
    $region72: #{tpu_custom_call.1} parent=1 // pred_region
      %190 = dma.done [#allocation13], 48
    $region73: #{tpu_custom_call.1} parent=1 // pred_fallthru
      _
    // Predicated region
    $region74: #{tpu_custom_call.1} parent=1 // pred_check
      _
    $region75: #{tpu_custom_call.1} parent=1 // pred_check_branch
      %192 = sbr.rel (0) target = $region77
    $region76: #{tpu_custom_call.1} parent=1 // pred_region
      %194 = dma.done [#allocation13], 48
    $region77: #{tpu_custom_call.1} parent=1 // pred_fallthru
      _
    // Predicated region
    $region78: #{tpu_custom_call.1} parent=1 // pred_check
      _
    $region79: #{tpu_custom_call.1} parent=1 // pred_check_branch
      %196 = sbr.rel (0) target = $region81
    $region80: #{tpu_custom_call.1} parent=1 // pred_region
      %198 = dma.done [#allocation16], 48
    $region81: #{tpu_custom_call.1} parent=1 // pred_fallthru
      _
    // Predicated region
    $region82: #{tpu_custom_call.1} parent=1 // pred_check
      _
    $region83: #{tpu_custom_call.1} parent=1 // pred_check_branch
      %200 = sbr.rel (0) target = $region85
    $region84: #{tpu_custom_call.1} parent=1 // pred_region
      %202 = dma.done [#allocation16], 36864
    $region85: #{tpu_custom_call.1} parent=1 // pred_fallthru
      _
    // Predicated region
    $region86: #{tpu_custom_call.1} parent=1 // pred_check
      _
    $region87: #{tpu_custom_call.1} parent=1 // pred_check_branch
      %204 = sbr.rel (0) target = $region89
    $region88: #{tpu_custom_call.1} parent=1 // pred_region
      %206 = dma.done [#allocation19], 192
    $region89: #{tpu_custom_call.1} parent=1 // pred_fallthru
      _
    // Predicated region
    $region90: #{tpu_custom_call.1} parent=1 // pred_check
      _
    $region91: #{tpu_custom_call.1} parent=1 // pred_check_branch
      %208 = sbr.rel (0) target = $region93
    $region92: #{tpu_custom_call.1} parent=1 // pred_region
      %210 = dma.done [#allocation19], 36864
    $region93: #{tpu_custom_call.1} parent=1 // pred_fallthru
      _
    // Predicated region
    $region94: #{tpu_custom_call.1} parent=1 // pred_check
      _
    $region95: #{tpu_custom_call.1} parent=1 // pred_check_branch
      %212 = sbr.rel (0) target = $region97
    $region96: #{tpu_custom_call.1} parent=1 // pred_region
      %214 = dma.done [#allocation22], 48
    $region97: #{tpu_custom_call.1} parent=1 // pred_fallthru
      _
    %v216 = vld [vmem:[#allocation3] sm:$0xff]
    %v217 = vld [vmem:[#allocation3 + $0x8] sm:$0xff]
    %v218 = vld [vmem:[#allocation3 + $0x10] sm:$0xff]
    %v219 = vld [vmem:[#allocation3 + $0x18] sm:$0xff]
    %v220 = vld [vmem:[#allocation3 + $0x20] sm:$0xff]
    %v221 = vld [vmem:[#allocation3 + $0x28] sm:$0xff]
    %v222 = vld [vmem:[#allocation6] sm:$0x7]
    %v223 = vld [vmem:[#allocation8] sm:$0x7]
    %v224 = vadd.f32 %v216, %v217
    %v225 = vadd.f32 %v224, %v218
    %226 = vadd.xlane.f32.xlu0 %v225
    %v227 = vpop.xlane.xlu0 %226
    %v228 = vadd.f32 %v219, %v220
    %v229 = vadd.f32 %v228, %v221
    %230 = vadd.xlane.f32.xlu0 %v229
    %v231 = vpop.xlane.xlu0 %230
    %v232 = vrcp.pop 384.0
    %v233 = vmul.f32 384.0, %v232
    %v234 = vsub.f32 1.0, %v233
    %v235 = vmul.f32 %v232, %v234
    %v236 = vadd.f32 %v232, %v235
    %vm237 = vweird.f32 %v232
    %v238 = vsel %vm237, %v232, %v236
    %v239 = vmul.f32 %v227, %v238
    %v240 = vmul.f32 %v231, %v238
    %v241 = vsub.f32 %v216, %v239
    %v242 = vsub.f32 %v217, %v239
    %v243 = vsub.f32 %v218, %v239
    %v244 = vsub.f32 %v219, %v240
    %v245 = vsub.f32 %v220, %v240
    %v246 = vsub.f32 %v221, %v240
    %v247 = vmul.f32 %v241, %v241
    %v248 = vmul.f32 %v242, %v242
    %v249 = vmul.f32 %v243, %v243
    %v250 = vmul.f32 %v244, %v244
    %v251 = vmul.f32 %v245, %v245
    %v252 = vmul.f32 %v246, %v246
    %v253 = vadd.f32 %v247, %v248
    %v254 = vadd.f32 %v253, %v249
    %255 = vadd.xlane.f32.xlu0 %v254
    %v256 = vpop.xlane.xlu0 %255
    %v257 = vadd.f32 %v250, %v251
    %v258 = vadd.f32 %v257, %v252
    %259 = vadd.xlane.f32.xlu0 %v258
    %v260 = vpop.xlane.xlu0 %259
    %v261 = vmul.f32 %v256, %v238
    %v262 = vmul.f32 %v260, %v238
    %v263 = vadd.f32 %v261, 1e-05
    %v264 = vadd.f32 %v262, 1e-05
    %v265 = vrsqrt.pop %v263
    %v266 = vmul.f32 %v265, %v263
    %v267 = vmul.f32 %v266, %v265
    %v268 = vmul.f32 0.5, %v267
    %v269 = vsub.f32 1.5, %v268
    %v270 = vmul.f32 %v265, %v269
    %vm271 = vweird.f32 %v263
    %vm272 = vweird.f32 %v265
    %vm273 = vmor %vm271, %vm272
    %v274 = vsel %vm273, %v265, %v270
    %v275 = vrsqrt.pop %v264
    %v276 = vmul.f32 %v275, %v264
    %v277 = vmul.f32 %v276, %v275
    %v278 = vmul.f32 0.5, %v277
    %v279 = vsub.f32 1.5, %v278
    %v280 = vmul.f32 %v275, %v279
    %vm281 = vweird.f32 %v264
    %vm282 = vweird.f32 %v275
    %vm283 = vmor %vm281, %vm282
    %v284 = vsel %vm283, %v275, %v280
    %v285 = vmul.f32 %v241, %v274
    %v286 = vmul.f32 %v242, %v274
    %v287 = vmul.f32 %v243, %v274
    %v288 = vmul.f32 %v244, %v284
    %v289 = vmul.f32 %v245, %v284
    %v290 = vmul.f32 %v246, %v284
    %v292 = vperm.slane %v222, 0
    %v293 = vperm.slane %v222, 1
    %v294 = vperm.slane %v222, 2
    %v298 = vmul.f32 %v285, %v292
    %v299 = vmul.f32 %v286, %v293
    %v300 = vmul.f32 %v287, %v294
    %v301 = vmul.f32 %v288, %v292
    %v302 = vmul.f32 %v289, %v293
    %v303 = vmul.f32 %v290, %v294
    %v305 = vperm.slane %v223, 0
    %v306 = vperm.slane %v223, 1
    %v307 = vperm.slane %v223, 2
    %v311 = vadd.f32 %v298, %v305
    %v312 = vadd.f32 %v299, %v306
    %v313 = vadd.f32 %v300, %v307
    %v314 = vadd.f32 %v301, %v305
    %v315 = vadd.f32 %v302, %v306
    %v316 = vadd.f32 %v303, %v307
    %v317 = vpack.c.bf16 %v314, %v311
    %v318 = vpack.c.bf16 %v315, %v312
    %v319 = vpack.c.bf16 %v316, %v313
    %v320 = vld [vmem:[#allocation9] sm:$0xff]
    %v321 = vld [vmem:[#allocation9 + $0x8] sm:$0xff]
    %v322 = vld [vmem:[#allocation9 + $0x10] sm:$0xff]
    %v323 = vld [vmem:[#allocation9 + $0x18] sm:$0xff]
    %v324 = vld [vmem:[#allocation9 + $0x20] sm:$0xf]
    %v325 = vld [vmem:[#allocation9 + $0x24] sm:$0xff]
    %v326 = vld [vmem:[#allocation9 + $0x2c] sm:$0xff]
    %v327 = vld [vmem:[#allocation9 + $0x34] sm:$0xff]
    %v328 = vld [vmem:[#allocation9 + $0x3c] sm:$0xff]
    %v329 = vld [vmem:[#allocation9 + $0x44] sm:$0xf]
    %v330 = vld [vmem:[#allocation9 + $0x48] sm:$0xff]
    %v331 = vld [vmem:[#allocation9 + $0x50] sm:$0xff]
    %v332 = vld [vmem:[#allocation9 + $0x58] sm:$0xff]
    %v333 = vld [vmem:[#allocation9 + $0x60] sm:$0xff]
    %v334 = vld [vmem:[#allocation9 + $0x68] sm:$0xf]
    %v335 = vld [vmem:[#allocation9 + $0x6c] sm:$0xff]
    %v336 = vld [vmem:[#allocation9 + $0x74] sm:$0xff]
    %v337 = vld [vmem:[#allocation9 + $0x7c] sm:$0xff]
    %v338 = vld [vmem:[#allocation9 + $0x84] sm:$0xff]
    %v339 = vld [vmem:[#allocation9 + $0x8c] sm:$0xf]
    %v340 = vld [vmem:[#allocation9 + $0x90] sm:$0xff]
    %v341 = vld [vmem:[#allocation9 + $0x98] sm:$0xff]
    %v342 = vld [vmem:[#allocation9 + $0xa0] sm:$0xff]
    %v343 = vld [vmem:[#allocation9 + $0xa8] sm:$0xff]
    %v344 = vld [vmem:[#allocation9 + $0xb0] sm:$0xf]
    %v345 = vld [vmem:[#allocation9 + $0xb4] sm:$0xff]
    %v346 = vld [vmem:[#allocation9 + $0xbc] sm:$0xff]
    %v347 = vld [vmem:[#allocation9 + $0xc4] sm:$0xff]
    %v348 = vld [vmem:[#allocation9 + $0xcc] sm:$0xff]
    %v349 = vld [vmem:[#allocation9 + $0xd4] sm:$0xf]
    %v350 = vld [vmem:[#allocation9 + $0xd8] sm:$0xff]
    %v351 = vld [vmem:[#allocation9 + $0xe0] sm:$0xff]
    %v352 = vld [vmem:[#allocation9 + $0xe8] sm:$0xff]
    %v353 = vld [vmem:[#allocation9 + $0xf0] sm:$0xff]
    %v354 = vld [vmem:[#allocation9 + $0xf8] sm:$0xf]
    %v355 = vld [vmem:[#allocation9 + $0xfc] sm:$0xff]
    %v356 = vld [vmem:[#allocation9 + $0x104] sm:$0xff]
    %v357 = vld [vmem:[#allocation9 + $0x10c] sm:$0xff]
    %v358 = vld [vmem:[#allocation9 + $0x114] sm:$0xff]
    %v359 = vld [vmem:[#allocation9 + $0x11c] sm:$0xf]
    %v360 = vld [vmem:[#allocation9 + $0x120] sm:$0xff]
    %v361 = vld [vmem:[#allocation9 + $0x128] sm:$0xff]
    %v362 = vld [vmem:[#allocation9 + $0x130] sm:$0xff]
    %v363 = vld [vmem:[#allocation9 + $0x138] sm:$0xff]
    %v364 = vld [vmem:[#allocation9 + $0x140] sm:$0xf]
    %v365 = vld [vmem:[#allocation9 + $0x144] sm:$0xff]
    %v366 = vld [vmem:[#allocation9 + $0x14c] sm:$0xff]
    %v367 = vld [vmem:[#allocation9 + $0x154] sm:$0xff]
    %v368 = vld [vmem:[#allocation9 + $0x15c] sm:$0xff]
    %v369 = vld [vmem:[#allocation9 + $0x164] sm:$0xf]
    %v370 = vld [vmem:[#allocation9 + $0x168] sm:$0xff]
    %v371 = vld [vmem:[#allocation9 + $0x170] sm:$0xff]
    %v372 = vld [vmem:[#allocation9 + $0x178] sm:$0xff]
    %v373 = vld [vmem:[#allocation9 + $0x180] sm:$0xff]
    %v374 = vld [vmem:[#allocation9 + $0x188] sm:$0xf]
    %v375 = vld [vmem:[#allocation9 + $0x18c] sm:$0xff]
    %v376 = vld [vmem:[#allocation9 + $0x194] sm:$0xff]
    %v377 = vld [vmem:[#allocation9 + $0x19c] sm:$0xff]
    %v378 = vld [vmem:[#allocation9 + $0x1a4] sm:$0xff]
    %v379 = vld [vmem:[#allocation9 + $0x1ac] sm:$0xf]
    %v380 = vld [vmem:[#allocation9 + $0x1b0] sm:$0xff]
    %v381 = vld [vmem:[#allocation9 + $0x1b8] sm:$0xff]
    %v382 = vld [vmem:[#allocation9 + $0x1c0] sm:$0xff]
    %v383 = vld [vmem:[#allocation9 + $0x1c8] sm:$0xff]
    %v384 = vld [vmem:[#allocation9 + $0x1d0] sm:$0xf]
    %v385 = vld [vmem:[#allocation9 + $0x1d4] sm:$0xff]
    %v386 = vld [vmem:[#allocation9 + $0x1dc] sm:$0xff]
    %v387 = vld [vmem:[#allocation9 + $0x1e4] sm:$0xff]
    %v388 = vld [vmem:[#allocation9 + $0x1ec] sm:$0xff]
    %v389 = vld [vmem:[#allocation9 + $0x1f4] sm:$0xf]
    %v390 = vld [vmem:[#allocation9 + $0x1f8] sm:$0xff]
    %v391 = vld [vmem:[#allocation9 + $0x200] sm:$0xff]
    %v392 = vld [vmem:[#allocation9 + $0x208] sm:$0xff]
    %v393 = vld [vmem:[#allocation9 + $0x210] sm:$0xff]
    %v394 = vld [vmem:[#allocation9 + $0x218] sm:$0xf]
    %v395 = vld [vmem:[#allocation9 + $0x21c] sm:$0xff]
    %v396 = vld [vmem:[#allocation9 + $0x224] sm:$0xff]
    %v397 = vld [vmem:[#allocation9 + $0x22c] sm:$0xff]
    %v398 = vld [vmem:[#allocation9 + $0x234] sm:$0xff]
    %v399 = vld [vmem:[#allocation9 + $0x23c] sm:$0xf]
    %v400 = vld [vmem:[#allocation9 + $0x240] sm:$0xff]
    %v401 = vld [vmem:[#allocation9 + $0x248] sm:$0xff]
    %v402 = vld [vmem:[#allocation9 + $0x250] sm:$0xff]
    %v403 = vld [vmem:[#allocation9 + $0x258] sm:$0xff]
    %v404 = vld [vmem:[#allocation9 + $0x260] sm:$0xf]
    %v405 = vld [vmem:[#allocation9 + $0x264] sm:$0xff]
    %v406 = vld [vmem:[#allocation9 + $0x26c] sm:$0xff]
    %v407 = vld [vmem:[#allocation9 + $0x274] sm:$0xff]
    %v408 = vld [vmem:[#allocation9 + $0x27c] sm:$0xff]
    %v409 = vld [vmem:[#allocation9 + $0x284] sm:$0xf]
    %v410 = vld [vmem:[#allocation9 + $0x288] sm:$0xff]
    %v411 = vld [vmem:[#allocation9 + $0x290] sm:$0xff]
    %v412 = vld [vmem:[#allocation9 + $0x298] sm:$0xff]
    %v413 = vld [vmem:[#allocation9 + $0x2a0] sm:$0xff]
    %v414 = vld [vmem:[#allocation9 + $0x2a8] sm:$0xf]
    %v415 = vld [vmem:[#allocation9 + $0x2ac] sm:$0xff]
    %v416 = vld [vmem:[#allocation9 + $0x2b4] sm:$0xff]
    %v417 = vld [vmem:[#allocation9 + $0x2bc] sm:$0xff]
    %v418 = vld [vmem:[#allocation9 + $0x2c4] sm:$0xff]
    %v419 = vld [vmem:[#allocation9 + $0x2cc] sm:$0xf]
    %v420 = vld [vmem:[#allocation9 + $0x2d0] sm:$0xff]
    %v421 = vld [vmem:[#allocation9 + $0x2d8] sm:$0xff]
    %v422 = vld [vmem:[#allocation9 + $0x2e0] sm:$0xff]
    %v423 = vld [vmem:[#allocation9 + $0x2e8] sm:$0xff]
    %v424 = vld [vmem:[#allocation9 + $0x2f0] sm:$0xf]
    %v425 = vld [vmem:[#allocation9 + $0x2f4] sm:$0xff]
    %v426 = vld [vmem:[#allocation9 + $0x2fc] sm:$0xff]
    %v427 = vld [vmem:[#allocation9 + $0x304] sm:$0xff]
    %v428 = vld [vmem:[#allocation9 + $0x30c] sm:$0xff]
    %v429 = vld [vmem:[#allocation9 + $0x314] sm:$0xf]
    %v430 = vld [vmem:[#allocation9 + $0x318] sm:$0xff]
    %v431 = vld [vmem:[#allocation9 + $0x320] sm:$0xff]
    %v432 = vld [vmem:[#allocation9 + $0x328] sm:$0xff]
    %v433 = vld [vmem:[#allocation9 + $0x330] sm:$0xff]
    %v434 = vld [vmem:[#allocation9 + $0x338] sm:$0xf]
    %v435 = vld [vmem:[#allocation9 + $0x33c] sm:$0xff]
    %v436 = vld [vmem:[#allocation9 + $0x344] sm:$0xff]
    %v437 = vld [vmem:[#allocation9 + $0x34c] sm:$0xff]
    %v438 = vld [vmem:[#allocation9 + $0x354] sm:$0xff]
    %v439 = vld [vmem:[#allocation9 + $0x35c] sm:$0xf]
    %v440 = vld [vmem:[#allocation9 + $0x360] sm:$0xff]
    %v441 = vld [vmem:[#allocation9 + $0x368] sm:$0xff]
    %v442 = vld [vmem:[#allocation9 + $0x370] sm:$0xff]
    %v443 = vld [vmem:[#allocation9 + $0x378] sm:$0xff]
    %v444 = vld [vmem:[#allocation9 + $0x380] sm:$0xf]
    %v445 = vld [vmem:[#allocation9 + $0x384] sm:$0xff]
    %v446 = vld [vmem:[#allocation9 + $0x38c] sm:$0xff]
    %v447 = vld [vmem:[#allocation9 + $0x394] sm:$0xff]
    %v448 = vld [vmem:[#allocation9 + $0x39c] sm:$0xff]
    %v449 = vld [vmem:[#allocation9 + $0x3a4] sm:$0xf]
    %v450 = vld [vmem:[#allocation9 + $0x3a8] sm:$0xff]
    %v451 = vld [vmem:[#allocation9 + $0x3b0] sm:$0xff]
    %v452 = vld [vmem:[#allocation9 + $0x3b8] sm:$0xff]
    %v453 = vld [vmem:[#allocation9 + $0x3c0] sm:$0xff]
    %v454 = vld [vmem:[#allocation9 + $0x3c8] sm:$0xf]
    %v455 = vld [vmem:[#allocation9 + $0x3cc] sm:$0xff]
    %v456 = vld [vmem:[#allocation9 + $0x3d4] sm:$0xff]
    %v457 = vld [vmem:[#allocation9 + $0x3dc] sm:$0xff]
    %v458 = vld [vmem:[#allocation9 + $0x3e4] sm:$0xff]
    %v459 = vld [vmem:[#allocation9 + $0x3ec] sm:$0xf]
    %v460 = vld [vmem:[#allocation9 + $0x3f0] sm:$0xff]
    %v461 = vld [vmem:[#allocation9 + $0x3f8] sm:$0xff]
    %v462 = vld [vmem:[#allocation9 + $0x400] sm:$0xff]
    %v463 = vld [vmem:[#allocation9 + $0x408] sm:$0xff]
    %v464 = vld [vmem:[#allocation9 + $0x410] sm:$0xf]
    %v465 = vld [vmem:[#allocation9 + $0x414] sm:$0xff]
    %v466 = vld [vmem:[#allocation9 + $0x41c] sm:$0xff]
    %v467 = vld [vmem:[#allocation9 + $0x424] sm:$0xff]
    %v468 = vld [vmem:[#allocation9 + $0x42c] sm:$0xff]
    %v469 = vld [vmem:[#allocation9 + $0x434] sm:$0xf]
    %v470 = vld [vmem:[#allocation9 + $0x438] sm:$0xff]
    %v471 = vld [vmem:[#allocation9 + $0x440] sm:$0xff]
    %v472 = vld [vmem:[#allocation9 + $0x448] sm:$0xff]
    %v473 = vld [vmem:[#allocation9 + $0x450] sm:$0xff]
    %v474 = vld [vmem:[#allocation9 + $0x458] sm:$0xf]
    %v475 = vld [vmem:[#allocation9 + $0x45c] sm:$0xff]
    %v476 = vld [vmem:[#allocation9 + $0x464] sm:$0xff]
    %v477 = vld [vmem:[#allocation9 + $0x46c] sm:$0xff]
    %v478 = vld [vmem:[#allocation9 + $0x474] sm:$0xff]
    %v479 = vld [vmem:[#allocation9 + $0x47c] sm:$0xf]
    %v480 = vld [vmem:[#allocation9 + $0x480] sm:$0xff]
    %v481 = vld [vmem:[#allocation9 + $0x488] sm:$0xff]
    %v482 = vld [vmem:[#allocation9 + $0x490] sm:$0xff]
    %v483 = vld [vmem:[#allocation9 + $0x498] sm:$0xff]
    %v484 = vld [vmem:[#allocation9 + $0x4a0] sm:$0xf]
    %v485 = vld [vmem:[#allocation9 + $0x4a4] sm:$0xff]
    %v486 = vld [vmem:[#allocation9 + $0x4ac] sm:$0xff]
    %v487 = vld [vmem:[#allocation9 + $0x4b4] sm:$0xff]
    %v488 = vld [vmem:[#allocation9 + $0x4bc] sm:$0xff]
    %v489 = vld [vmem:[#allocation9 + $0x4c4] sm:$0xf]
    %v490 = vld [vmem:[#allocation9 + $0x4c8] sm:$0xff]
    %v491 = vld [vmem:[#allocation9 + $0x4d0] sm:$0xff]
    %v492 = vld [vmem:[#allocation9 + $0x4d8] sm:$0xff]
    %v493 = vld [vmem:[#allocation9 + $0x4e0] sm:$0xff]
    %v494 = vld [vmem:[#allocation9 + $0x4e8] sm:$0xf]
    %v495 = vld [vmem:[#allocation9 + $0x4ec] sm:$0xff]
    %v496 = vld [vmem:[#allocation9 + $0x4f4] sm:$0xff]
    %v497 = vld [vmem:[#allocation9 + $0x4fc] sm:$0xff]
    %v498 = vld [vmem:[#allocation9 + $0x504] sm:$0xff]
    %v499 = vld [vmem:[#allocation9 + $0x50c] sm:$0xf]
    %v500 = vld [vmem:[#allocation9 + $0x510] sm:$0xff]
    %v501 = vld [vmem:[#allocation9 + $0x518] sm:$0xff]
    %v502 = vld [vmem:[#allocation9 + $0x520] sm:$0xff]
    %v503 = vld [vmem:[#allocation9 + $0x528] sm:$0xff]
    %v504 = vld [vmem:[#allocation9 + $0x530] sm:$0xf]
    %v505 = vld [vmem:[#allocation9 + $0x534] sm:$0xff]
    %v506 = vld [vmem:[#allocation9 + $0x53c] sm:$0xff]
    %v507 = vld [vmem:[#allocation9 + $0x544] sm:$0xff]
    %v508 = vld [vmem:[#allocation9 + $0x54c] sm:$0xff]
    %v509 = vld [vmem:[#allocation9 + $0x554] sm:$0xf]
    %v510 = vld [vmem:[#allocation9 + $0x558] sm:$0xff]
    %v511 = vld [vmem:[#allocation9 + $0x560] sm:$0xff]
    %v512 = vld [vmem:[#allocation9 + $0x568] sm:$0xff]
    %v513 = vld [vmem:[#allocation9 + $0x570] sm:$0xff]
    %v514 = vld [vmem:[#allocation9 + $0x578] sm:$0xf]
    %v515 = vld [vmem:[#allocation9 + $0x57c] sm:$0xff]
    %v516 = vld [vmem:[#allocation9 + $0x584] sm:$0xff]
    %v517 = vld [vmem:[#allocation9 + $0x58c] sm:$0xff]
    %v518 = vld [vmem:[#allocation9 + $0x594] sm:$0xff]
    %v519 = vld [vmem:[#allocation9 + $0x59c] sm:$0xf]
    %v520 = vld [vmem:[#allocation9 + $0x5a0] sm:$0xff]
    %v521 = vld [vmem:[#allocation9 + $0x5a8] sm:$0xff]
    %v522 = vld [vmem:[#allocation9 + $0x5b0] sm:$0xff]
    %v523 = vld [vmem:[#allocation9 + $0x5b8] sm:$0xff]
    %v524 = vld [vmem:[#allocation9 + $0x5c0] sm:$0xf]
    %v525 = vld [vmem:[#allocation9 + $0x5c4] sm:$0xff]
    %v526 = vld [vmem:[#allocation9 + $0x5cc] sm:$0xff]
    %v527 = vld [vmem:[#allocation9 + $0x5d4] sm:$0xff]
    %v528 = vld [vmem:[#allocation9 + $0x5dc] sm:$0xff]
    %v529 = vld [vmem:[#allocation9 + $0x5e4] sm:$0xf]
    %v530 = vld [vmem:[#allocation9 + $0x5e8] sm:$0xff]
    %v531 = vld [vmem:[#allocation9 + $0x5f0] sm:$0xff]
    %v532 = vld [vmem:[#allocation9 + $0x5f8] sm:$0xff]
    %v533 = vld [vmem:[#allocation9 + $0x600] sm:$0xff]
    %v534 = vld [vmem:[#allocation9 + $0x608] sm:$0xf]
    %v535 = vld [vmem:[#allocation9 + $0x60c] sm:$0xff]
    %v536 = vld [vmem:[#allocation9 + $0x614] sm:$0xff]
    %v537 = vld [vmem:[#allocation9 + $0x61c] sm:$0xff]
    %v538 = vld [vmem:[#allocation9 + $0x624] sm:$0xff]
    %v539 = vld [vmem:[#allocation9 + $0x62c] sm:$0xf]
    %v540 = vld [vmem:[#allocation9 + $0x630] sm:$0xff]
    %v541 = vld [vmem:[#allocation9 + $0x638] sm:$0xff]
    %v542 = vld [vmem:[#allocation9 + $0x640] sm:$0xff]
    %v543 = vld [vmem:[#allocation9 + $0x648] sm:$0xff]
    %v544 = vld [vmem:[#allocation9 + $0x650] sm:$0xf]
    %v545 = vld [vmem:[#allocation9 + $0x654] sm:$0xff]
    %v546 = vld [vmem:[#allocation9 + $0x65c] sm:$0xff]
    %v547 = vld [vmem:[#allocation9 + $0x664] sm:$0xff]
    %v548 = vld [vmem:[#allocation9 + $0x66c] sm:$0xff]
    %v549 = vld [vmem:[#allocation9 + $0x674] sm:$0xf]
    %v550 = vld [vmem:[#allocation9 + $0x678] sm:$0xff]
    %v551 = vld [vmem:[#allocation9 + $0x680] sm:$0xff]
    %v552 = vld [vmem:[#allocation9 + $0x688] sm:$0xff]
    %v553 = vld [vmem:[#allocation9 + $0x690] sm:$0xff]
    %v554 = vld [vmem:[#allocation9 + $0x698] sm:$0xf]
    %v555 = vld [vmem:[#allocation9 + $0x69c] sm:$0xff]
    %v556 = vld [vmem:[#allocation9 + $0x6a4] sm:$0xff]
    %v557 = vld [vmem:[#allocation9 + $0x6ac] sm:$0xff]
    %v558 = vld [vmem:[#allocation9 + $0x6b4] sm:$0xff]
    %v559 = vld [vmem:[#allocation9 + $0x6bc] sm:$0xf]
    %v800 = vunpack.c.l.b16 %v320
    %v801 = vunpack.c.h.b16 %v320
    %v802 = vunpack.c.l.b16 %v321
    %v803 = vunpack.c.h.b16 %v321
    %v804 = vunpack.c.l.b16 %v322
    %v805 = vunpack.c.h.b16 %v322
    %v806 = vunpack.c.l.b16 %v323
    %v807 = vunpack.c.h.b16 %v323
    %v808 = vunpack.c.l.b16 %v324
    %v809 = vunpack.c.l.b16 %v325
    %v810 = vunpack.c.h.b16 %v325
    %v811 = vunpack.c.l.b16 %v326
    %v812 = vunpack.c.h.b16 %v326
    %v813 = vunpack.c.l.b16 %v327
    %v814 = vunpack.c.h.b16 %v327
    %v815 = vunpack.c.l.b16 %v328
    %v816 = vunpack.c.h.b16 %v328
    %v817 = vunpack.c.l.b16 %v329
    %v818 = vunpack.c.l.b16 %v330
    %v819 = vunpack.c.h.b16 %v330
    %v820 = vunpack.c.l.b16 %v331
    %v821 = vunpack.c.h.b16 %v331
    %v822 = vunpack.c.l.b16 %v332
    %v823 = vunpack.c.h.b16 %v332
    %v824 = vunpack.c.l.b16 %v333
    %v825 = vunpack.c.h.b16 %v333
    %v826 = vunpack.c.l.b16 %v334
    %v827 = vunpack.c.l.b16 %v335
    %v828 = vunpack.c.h.b16 %v335
    %v829 = vunpack.c.l.b16 %v336
    %v830 = vunpack.c.h.b16 %v336
    %v831 = vunpack.c.l.b16 %v337
    %v832 = vunpack.c.h.b16 %v337
    %v833 = vunpack.c.l.b16 %v338
    %v834 = vunpack.c.h.b16 %v338
    %v835 = vunpack.c.l.b16 %v339
    %v836 = vunpack.c.l.b16 %v340
    %v837 = vunpack.c.h.b16 %v340
    %v838 = vunpack.c.l.b16 %v341
    %v839 = vunpack.c.h.b16 %v341
    %v840 = vunpack.c.l.b16 %v342
    %v841 = vunpack.c.h.b16 %v342
    %v842 = vunpack.c.l.b16 %v343
    %v843 = vunpack.c.h.b16 %v343
    %v844 = vunpack.c.l.b16 %v344
    %v845 = vunpack.c.l.b16 %v345
    %v846 = vunpack.c.h.b16 %v345
    %v847 = vunpack.c.l.b16 %v346
    %v848 = vunpack.c.h.b16 %v346
    %v849 = vunpack.c.l.b16 %v347
    %v850 = vunpack.c.h.b16 %v347
    %v851 = vunpack.c.l.b16 %v348
    %v852 = vunpack.c.h.b16 %v348
    %v853 = vunpack.c.l.b16 %v349
    %v854 = vunpack.c.l.b16 %v350
    %v855 = vunpack.c.h.b16 %v350
    %v856 = vunpack.c.l.b16 %v351
    %v857 = vunpack.c.h.b16 %v351
    %v858 = vunpack.c.l.b16 %v352
    %v859 = vunpack.c.h.b16 %v352
    %v860 = vunpack.c.l.b16 %v353
    %v861 = vunpack.c.h.b16 %v353
    %v862 = vunpack.c.l.b16 %v354
    %v863 = vunpack.c.l.b16 %v355
    %v864 = vunpack.c.h.b16 %v355
    %v865 = vunpack.c.l.b16 %v356
    %v866 = vunpack.c.h.b16 %v356
    %v867 = vunpack.c.l.b16 %v357
    %v868 = vunpack.c.h.b16 %v357
    %v869 = vunpack.c.l.b16 %v358
    %v870 = vunpack.c.h.b16 %v358
    %v871 = vunpack.c.l.b16 %v359
    %v872 = vunpack.c.l.b16 %v360
    %v873 = vunpack.c.h.b16 %v360
    %v874 = vunpack.c.l.b16 %v361
    %v875 = vunpack.c.h.b16 %v361
    %v876 = vunpack.c.l.b16 %v362
    %v877 = vunpack.c.h.b16 %v362
    %v878 = vunpack.c.l.b16 %v363
    %v879 = vunpack.c.h.b16 %v363
    %v880 = vunpack.c.l.b16 %v364
    %v881 = vunpack.c.l.b16 %v365
    %v882 = vunpack.c.h.b16 %v365
    %v883 = vunpack.c.l.b16 %v366
    %v884 = vunpack.c.h.b16 %v366
    %v885 = vunpack.c.l.b16 %v367
    %v886 = vunpack.c.h.b16 %v367
    %v887 = vunpack.c.l.b16 %v368
    %v888 = vunpack.c.h.b16 %v368
    %v889 = vunpack.c.l.b16 %v369
    %v890 = vunpack.c.l.b16 %v370
    %v891 = vunpack.c.h.b16 %v370
    %v892 = vunpack.c.l.b16 %v371
    %v893 = vunpack.c.h.b16 %v371
    %v894 = vunpack.c.l.b16 %v372
    %v895 = vunpack.c.h.b16 %v372
    %v896 = vunpack.c.l.b16 %v373
    %v897 = vunpack.c.h.b16 %v373
    %v898 = vunpack.c.l.b16 %v374
    %v899 = vunpack.c.l.b16 %v375
    %v900 = vunpack.c.h.b16 %v375
    %v901 = vunpack.c.l.b16 %v376
    %v902 = vunpack.c.h.b16 %v376
    %v903 = vunpack.c.l.b16 %v377
    %v904 = vunpack.c.h.b16 %v377
    %v905 = vunpack.c.l.b16 %v378
    %v906 = vunpack.c.h.b16 %v378
    %v907 = vunpack.c.l.b16 %v379
    %v908 = vunpack.c.l.b16 %v380
    %v909 = vunpack.c.h.b16 %v380
    %v910 = vunpack.c.l.b16 %v381
    %v911 = vunpack.c.h.b16 %v381
    %v912 = vunpack.c.l.b16 %v382
    %v913 = vunpack.c.h.b16 %v382
    %v914 = vunpack.c.l.b16 %v383
    %v915 = vunpack.c.h.b16 %v383
    %v916 = vunpack.c.l.b16 %v384
    %v917 = vunpack.c.l.b16 %v385
    %v918 = vunpack.c.h.b16 %v385
    %v919 = vunpack.c.l.b16 %v386
    %v920 = vunpack.c.h.b16 %v386
    %v921 = vunpack.c.l.b16 %v387
    %v922 = vunpack.c.h.b16 %v387
    %v923 = vunpack.c.l.b16 %v388
    %v924 = vunpack.c.h.b16 %v388
    %v925 = vunpack.c.l.b16 %v389
    %v926 = vunpack.c.l.b16 %v390
    %v927 = vunpack.c.h.b16 %v390
    %v928 = vunpack.c.l.b16 %v391
    %v929 = vunpack.c.h.b16 %v391
    %v930 = vunpack.c.l.b16 %v392
    %v931 = vunpack.c.h.b16 %v392
    %v932 = vunpack.c.l.b16 %v393
    %v933 = vunpack.c.h.b16 %v393
    %v934 = vunpack.c.l.b16 %v394
    %v935 = vunpack.c.l.b16 %v395
    %v936 = vunpack.c.h.b16 %v395
    %v937 = vunpack.c.l.b16 %v396
    %v938 = vunpack.c.h.b16 %v396
    %v939 = vunpack.c.l.b16 %v397
    %v940 = vunpack.c.h.b16 %v397
    %v941 = vunpack.c.l.b16 %v398
    %v942 = vunpack.c.h.b16 %v398
    %v943 = vunpack.c.l.b16 %v399
    %v944 = vunpack.c.l.b16 %v400
    %v945 = vunpack.c.h.b16 %v400
    %v946 = vunpack.c.l.b16 %v401
    %v947 = vunpack.c.h.b16 %v401
    %v948 = vunpack.c.l.b16 %v402
    %v949 = vunpack.c.h.b16 %v402
    %v950 = vunpack.c.l.b16 %v403
    %v951 = vunpack.c.h.b16 %v403
    %v952 = vunpack.c.l.b16 %v404
    %v953 = vunpack.c.l.b16 %v405
    %v954 = vunpack.c.h.b16 %v405
    %v955 = vunpack.c.l.b16 %v406
    %v956 = vunpack.c.h.b16 %v406
    %v957 = vunpack.c.l.b16 %v407
    %v958 = vunpack.c.h.b16 %v407
    %v959 = vunpack.c.l.b16 %v408
    %v960 = vunpack.c.h.b16 %v408
    %v961 = vunpack.c.l.b16 %v409
    %v962 = vunpack.c.l.b16 %v410
    %v963 = vunpack.c.h.b16 %v410
    %v964 = vunpack.c.l.b16 %v411
    %v965 = vunpack.c.h.b16 %v411
    %v966 = vunpack.c.l.b16 %v412
    %v967 = vunpack.c.h.b16 %v412
    %v968 = vunpack.c.l.b16 %v413
    %v969 = vunpack.c.h.b16 %v413
    %v970 = vunpack.c.l.b16 %v414
    %v971 = vunpack.c.l.b16 %v415
    %v972 = vunpack.c.h.b16 %v415
    %v973 = vunpack.c.l.b16 %v416
    %v974 = vunpack.c.h.b16 %v416
    %v975 = vunpack.c.l.b16 %v417
    %v976 = vunpack.c.h.b16 %v417
    %v977 = vunpack.c.l.b16 %v418
    %v978 = vunpack.c.h.b16 %v418
    %v979 = vunpack.c.l.b16 %v419
    %v980 = vunpack.c.l.b16 %v420
    %v981 = vunpack.c.h.b16 %v420
    %v982 = vunpack.c.l.b16 %v421
    %v983 = vunpack.c.h.b16 %v421
    %v984 = vunpack.c.l.b16 %v422
    %v985 = vunpack.c.h.b16 %v422
    %v986 = vunpack.c.l.b16 %v423
    %v987 = vunpack.c.h.b16 %v423
    %v988 = vunpack.c.l.b16 %v424
    %v989 = vunpack.c.l.b16 %v425
    %v990 = vunpack.c.h.b16 %v425
    %v991 = vunpack.c.l.b16 %v426
    %v992 = vunpack.c.h.b16 %v426
    %v993 = vunpack.c.l.b16 %v427
    %v994 = vunpack.c.h.b16 %v427
    %v995 = vunpack.c.l.b16 %v428
    %v996 = vunpack.c.h.b16 %v428
    %v997 = vunpack.c.l.b16 %v429
    %v998 = vunpack.c.l.b16 %v430
    %v999 = vunpack.c.h.b16 %v430
    %v1000 = vunpack.c.l.b16 %v431
    %v1001 = vunpack.c.h.b16 %v431
    %v1002 = vunpack.c.l.b16 %v432
    %v1003 = vunpack.c.h.b16 %v432
    %v1004 = vunpack.c.l.b16 %v433
    %v1005 = vunpack.c.h.b16 %v433
    %v1006 = vunpack.c.l.b16 %v434
    %v1007 = vunpack.c.l.b16 %v435
    %v1008 = vunpack.c.h.b16 %v435
    %v1009 = vunpack.c.l.b16 %v436
    %v1010 = vunpack.c.h.b16 %v436
    %v1011 = vunpack.c.l.b16 %v437
    %v1012 = vunpack.c.h.b16 %v437
    %v1013 = vunpack.c.l.b16 %v438
    %v1014 = vunpack.c.h.b16 %v438
    %v1015 = vunpack.c.l.b16 %v439
    %v1016 = vunpack.c.l.b16 %v440
    %v1017 = vunpack.c.h.b16 %v440
    %v1018 = vunpack.c.l.b16 %v441
    %v1019 = vunpack.c.h.b16 %v441
    %v1020 = vunpack.c.l.b16 %v442
    %v1021 = vunpack.c.h.b16 %v442
    %v1022 = vunpack.c.l.b16 %v443
    %v1023 = vunpack.c.h.b16 %v443
    %v1024 = vunpack.c.l.b16 %v444
    %v1025 = vunpack.c.l.b16 %v445
    %v1026 = vunpack.c.h.b16 %v445
    %v1027 = vunpack.c.l.b16 %v446
    %v1028 = vunpack.c.h.b16 %v446
    %v1029 = vunpack.c.l.b16 %v447
    %v1030 = vunpack.c.h.b16 %v447
    %v1031 = vunpack.c.l.b16 %v448
    %v1032 = vunpack.c.h.b16 %v448
    %v1033 = vunpack.c.l.b16 %v449
    %v1034 = vunpack.c.l.b16 %v450
    %v1035 = vunpack.c.h.b16 %v450
    %v1036 = vunpack.c.l.b16 %v451
    %v1037 = vunpack.c.h.b16 %v451
    %v1038 = vunpack.c.l.b16 %v452
    %v1039 = vunpack.c.h.b16 %v452
    %v1040 = vunpack.c.l.b16 %v453
    %v1041 = vunpack.c.h.b16 %v453
    %v1042 = vunpack.c.l.b16 %v454
    %v1043 = vunpack.c.l.b16 %v455
    %v1044 = vunpack.c.h.b16 %v455
    %v1045 = vunpack.c.l.b16 %v456
    %v1046 = vunpack.c.h.b16 %v456
    %v1047 = vunpack.c.l.b16 %v457
    %v1048 = vunpack.c.h.b16 %v457
    %v1049 = vunpack.c.l.b16 %v458
    %v1050 = vunpack.c.h.b16 %v458
    %v1051 = vunpack.c.l.b16 %v459
    %v1052 = vunpack.c.l.b16 %v460
    %v1053 = vunpack.c.h.b16 %v460
    %v1054 = vunpack.c.l.b16 %v461
    %v1055 = vunpack.c.h.b16 %v461
    %v1056 = vunpack.c.l.b16 %v462
    %v1057 = vunpack.c.h.b16 %v462
    %v1058 = vunpack.c.l.b16 %v463
    %v1059 = vunpack.c.h.b16 %v463
    %v1060 = vunpack.c.l.b16 %v464
    %v1061 = vunpack.c.l.b16 %v465
    %v1062 = vunpack.c.h.b16 %v465
    %v1063 = vunpack.c.l.b16 %v466
    %v1064 = vunpack.c.h.b16 %v466
    %v1065 = vunpack.c.l.b16 %v467
    %v1066 = vunpack.c.h.b16 %v467
    %v1067 = vunpack.c.l.b16 %v468
    %v1068 = vunpack.c.h.b16 %v468
    %v1069 = vunpack.c.l.b16 %v469
    %v1070 = vunpack.c.l.b16 %v470
    %v1071 = vunpack.c.h.b16 %v470
    %v1072 = vunpack.c.l.b16 %v471
    %v1073 = vunpack.c.h.b16 %v471
    %v1074 = vunpack.c.l.b16 %v472
    %v1075 = vunpack.c.h.b16 %v472
    %v1076 = vunpack.c.l.b16 %v473
    %v1077 = vunpack.c.h.b16 %v473
    %v1078 = vunpack.c.l.b16 %v474
    %v1079 = vunpack.c.l.b16 %v475
    %v1080 = vunpack.c.h.b16 %v475
    %v1081 = vunpack.c.l.b16 %v476
    %v1082 = vunpack.c.h.b16 %v476
    %v1083 = vunpack.c.l.b16 %v477
    %v1084 = vunpack.c.h.b16 %v477
    %v1085 = vunpack.c.l.b16 %v478
    %v1086 = vunpack.c.h.b16 %v478
    %v1087 = vunpack.c.l.b16 %v479
    %v1088 = vunpack.c.l.b16 %v480
    %v1089 = vunpack.c.h.b16 %v480
    %v1090 = vunpack.c.l.b16 %v481
    %v1091 = vunpack.c.h.b16 %v481
    %v1092 = vunpack.c.l.b16 %v482
    %v1093 = vunpack.c.h.b16 %v482
    %v1094 = vunpack.c.l.b16 %v483
    %v1095 = vunpack.c.h.b16 %v483
    %v1096 = vunpack.c.l.b16 %v484
    %v1097 = vunpack.c.l.b16 %v485
    %v1098 = vunpack.c.h.b16 %v485
    %v1099 = vunpack.c.l.b16 %v486
    %v1100 = vunpack.c.h.b16 %v486
    %v1101 = vunpack.c.l.b16 %v487
    %v1102 = vunpack.c.h.b16 %v487
    %v1103 = vunpack.c.l.b16 %v488
    %v1104 = vunpack.c.h.b16 %v488
    %v1105 = vunpack.c.l.b16 %v489
    %v1106 = vunpack.c.l.b16 %v490
    %v1107 = vunpack.c.h.b16 %v490
    %v1108 = vunpack.c.l.b16 %v491
    %v1109 = vunpack.c.h.b16 %v491
    %v1110 = vunpack.c.l.b16 %v492
    %v1111 = vunpack.c.h.b16 %v492
    %v1112 = vunpack.c.l.b16 %v493
    %v1113 = vunpack.c.h.b16 %v493
    %v1114 = vunpack.c.l.b16 %v494
    %v1115 = vunpack.c.l.b16 %v495
    %v1116 = vunpack.c.h.b16 %v495
    %v1117 = vunpack.c.l.b16 %v496
    %v1118 = vunpack.c.h.b16 %v496
    %v1119 = vunpack.c.l.b16 %v497
    %v1120 = vunpack.c.h.b16 %v497
    %v1121 = vunpack.c.l.b16 %v498
    %v1122 = vunpack.c.h.b16 %v498
    %v1123 = vunpack.c.l.b16 %v499
    %v1124 = vunpack.c.l.b16 %v500
    %v1125 = vunpack.c.h.b16 %v500
    %v1126 = vunpack.c.l.b16 %v501
    %v1127 = vunpack.c.h.b16 %v501
    %v1128 = vunpack.c.l.b16 %v502
    %v1129 = vunpack.c.h.b16 %v502
    %v1130 = vunpack.c.l.b16 %v503
    %v1131 = vunpack.c.h.b16 %v503
    %v1132 = vunpack.c.l.b16 %v504
    %v1133 = vunpack.c.l.b16 %v505
    %v1134 = vunpack.c.h.b16 %v505
    %v1135 = vunpack.c.l.b16 %v506
    %v1136 = vunpack.c.h.b16 %v506
    %v1137 = vunpack.c.l.b16 %v507
    %v1138 = vunpack.c.h.b16 %v507
    %v1139 = vunpack.c.l.b16 %v508
    %v1140 = vunpack.c.h.b16 %v508
    %v1141 = vunpack.c.l.b16 %v509
    %v1142 = vunpack.c.l.b16 %v510
    %v1143 = vunpack.c.h.b16 %v510
    %v1144 = vunpack.c.l.b16 %v511
    %v1145 = vunpack.c.h.b16 %v511
    %v1146 = vunpack.c.l.b16 %v512
    %v1147 = vunpack.c.h.b16 %v512
    %v1148 = vunpack.c.l.b16 %v513
    %v1149 = vunpack.c.h.b16 %v513
    %v1150 = vunpack.c.l.b16 %v514
    %v1151 = vunpack.c.l.b16 %v515
    %v1152 = vunpack.c.h.b16 %v515
    %v1153 = vunpack.c.l.b16 %v516
    %v1154 = vunpack.c.h.b16 %v516
    %v1155 = vunpack.c.l.b16 %v517
    %v1156 = vunpack.c.h.b16 %v517
    %v1157 = vunpack.c.l.b16 %v518
    %v1158 = vunpack.c.h.b16 %v518
    %v1159 = vunpack.c.l.b16 %v519
    %v1160 = vunpack.c.l.b16 %v520
    %v1161 = vunpack.c.h.b16 %v520
    %v1162 = vunpack.c.l.b16 %v521
    %v1163 = vunpack.c.h.b16 %v521
    %v1164 = vunpack.c.l.b16 %v522
    %v1165 = vunpack.c.h.b16 %v522
    %v1166 = vunpack.c.l.b16 %v523
    %v1167 = vunpack.c.h.b16 %v523
    %v1168 = vunpack.c.l.b16 %v524
    %v1169 = vunpack.c.l.b16 %v525
    %v1170 = vunpack.c.h.b16 %v525
    %v1171 = vunpack.c.l.b16 %v526
    %v1172 = vunpack.c.h.b16 %v526
    %v1173 = vunpack.c.l.b16 %v527
    %v1174 = vunpack.c.h.b16 %v527
    %v1175 = vunpack.c.l.b16 %v528
    %v1176 = vunpack.c.h.b16 %v528
    %v1177 = vunpack.c.l.b16 %v529
    %v1178 = vunpack.c.l.b16 %v530
    %v1179 = vunpack.c.h.b16 %v530
    %v1180 = vunpack.c.l.b16 %v531
    %v1181 = vunpack.c.h.b16 %v531
    %v1182 = vunpack.c.l.b16 %v532
    %v1183 = vunpack.c.h.b16 %v532
    %v1184 = vunpack.c.l.b16 %v533
    %v1185 = vunpack.c.h.b16 %v533
    %v1186 = vunpack.c.l.b16 %v534
    %v1187 = vunpack.c.l.b16 %v535
    %v1188 = vunpack.c.h.b16 %v535
    %v1189 = vunpack.c.l.b16 %v536
    %v1190 = vunpack.c.h.b16 %v536
    %v1191 = vunpack.c.l.b16 %v537
    %v1192 = vunpack.c.h.b16 %v537
    %v1193 = vunpack.c.l.b16 %v538
    %v1194 = vunpack.c.h.b16 %v538
    %v1195 = vunpack.c.l.b16 %v539
    %v1196 = vunpack.c.l.b16 %v540
    %v1197 = vunpack.c.h.b16 %v540
    %v1198 = vunpack.c.l.b16 %v541
    %v1199 = vunpack.c.h.b16 %v541
    %v1200 = vunpack.c.l.b16 %v542
    %v1201 = vunpack.c.h.b16 %v542
    %v1202 = vunpack.c.l.b16 %v543
    %v1203 = vunpack.c.h.b16 %v543
    %v1204 = vunpack.c.l.b16 %v544
    %v1205 = vunpack.c.l.b16 %v545
    %v1206 = vunpack.c.h.b16 %v545
    %v1207 = vunpack.c.l.b16 %v546
    %v1208 = vunpack.c.h.b16 %v546
    %v1209 = vunpack.c.l.b16 %v547
    %v1210 = vunpack.c.h.b16 %v547
    %v1211 = vunpack.c.l.b16 %v548
    %v1212 = vunpack.c.h.b16 %v548
    %v1213 = vunpack.c.l.b16 %v549
    %v1214 = vunpack.c.l.b16 %v550
    %v1215 = vunpack.c.h.b16 %v550
    %v1216 = vunpack.c.l.b16 %v551
    %v1217 = vunpack.c.h.b16 %v551
    %v1218 = vunpack.c.l.b16 %v552
    %v1219 = vunpack.c.h.b16 %v552
    %v1220 = vunpack.c.l.b16 %v553
    %v1221 = vunpack.c.h.b16 %v553
    %v1222 = vunpack.c.l.b16 %v554
    %v1223 = vunpack.c.l.b16 %v555
    %v1224 = vunpack.c.h.b16 %v555
    %v1225 = vunpack.c.l.b16 %v556
    %v1226 = vunpack.c.h.b16 %v556
    %v1227 = vunpack.c.l.b16 %v557
    %v1228 = vunpack.c.h.b16 %v557
    %v1229 = vunpack.c.l.b16 %v558
    %v1230 = vunpack.c.h.b16 %v558
    %v1231 = vunpack.c.l.b16 %v559
    %v1232 = vpack.c.b16 %v809, %v800
    %v1233 = vpack.c.b16 %v810, %v801
    %v1234 = vpack.c.b16 %v811, %v802
    %v1235 = vpack.c.b16 %v812, %v803
    %v1236 = vpack.c.b16 %v813, %v804
    %v1237 = vpack.c.b16 %v814, %v805
    %v1238 = vpack.c.b16 %v815, %v806
    %v1239 = vpack.c.b16 %v816, %v807
    %v1240 = vpack.c.b16 %v817, %v808
    %v1241 = vpack.c.b16 %v827, %v818
    %v1242 = vpack.c.b16 %v828, %v819
    %v1243 = vpack.c.b16 %v829, %v820
    %v1244 = vpack.c.b16 %v830, %v821
    %v1245 = vpack.c.b16 %v831, %v822
    %v1246 = vpack.c.b16 %v832, %v823
    %v1247 = vpack.c.b16 %v833, %v824
    %v1248 = vpack.c.b16 %v834, %v825
    %v1249 = vpack.c.b16 %v835, %v826
    %v1250 = vpack.c.b16 %v845, %v836
    %v1251 = vpack.c.b16 %v846, %v837
    %v1252 = vpack.c.b16 %v847, %v838
    %v1253 = vpack.c.b16 %v848, %v839
    %v1254 = vpack.c.b16 %v849, %v840
    %v1255 = vpack.c.b16 %v850, %v841
    %v1256 = vpack.c.b16 %v851, %v842
    %v1257 = vpack.c.b16 %v852, %v843
    %v1258 = vpack.c.b16 %v853, %v844
    %v1259 = vpack.c.b16 %v863, %v854
    %v1260 = vpack.c.b16 %v864, %v855
    %v1261 = vpack.c.b16 %v865, %v856
    %v1262 = vpack.c.b16 %v866, %v857
    %v1263 = vpack.c.b16 %v867, %v858
    %v1264 = vpack.c.b16 %v868, %v859
    %v1265 = vpack.c.b16 %v869, %v860
    %v1266 = vpack.c.b16 %v870, %v861
    %v1267 = vpack.c.b16 %v871, %v862
    %v1268 = vpack.c.b16 %v881, %v872
    %v1269 = vpack.c.b16 %v882, %v873
    %v1270 = vpack.c.b16 %v883, %v874
    %v1271 = vpack.c.b16 %v884, %v875
    %v1272 = vpack.c.b16 %v885, %v876
    %v1273 = vpack.c.b16 %v886, %v877
    %v1274 = vpack.c.b16 %v887, %v878
    %v1275 = vpack.c.b16 %v888, %v879
    %v1276 = vpack.c.b16 %v889, %v880
    %v1277 = vpack.c.b16 %v899, %v890
    %v1278 = vpack.c.b16 %v900, %v891
    %v1279 = vpack.c.b16 %v901, %v892
    %v1280 = vpack.c.b16 %v902, %v893
    %v1281 = vpack.c.b16 %v903, %v894
    %v1282 = vpack.c.b16 %v904, %v895
    %v1283 = vpack.c.b16 %v905, %v896
    %v1284 = vpack.c.b16 %v906, %v897
    %v1285 = vpack.c.b16 %v907, %v898
    %v1286 = vpack.c.b16 %v917, %v908
    %v1287 = vpack.c.b16 %v918, %v909
    %v1288 = vpack.c.b16 %v919, %v910
    %v1289 = vpack.c.b16 %v920, %v911
    %v1290 = vpack.c.b16 %v921, %v912
    %v1291 = vpack.c.b16 %v922, %v913
    %v1292 = vpack.c.b16 %v923, %v914
    %v1293 = vpack.c.b16 %v924, %v915
    %v1294 = vpack.c.b16 %v925, %v916
    %v1295 = vpack.c.b16 %v935, %v926
    %v1296 = vpack.c.b16 %v936, %v927
    %v1297 = vpack.c.b16 %v937, %v928
    %v1298 = vpack.c.b16 %v938, %v929
    %v1299 = vpack.c.b16 %v939, %v930
    %v1300 = vpack.c.b16 %v940, %v931
    %v1301 = vpack.c.b16 %v941, %v932
    %v1302 = vpack.c.b16 %v942, %v933
    %v1303 = vpack.c.b16 %v943, %v934
    %v1304 = vpack.c.b16 %v953, %v944
    %v1305 = vpack.c.b16 %v954, %v945
    %v1306 = vpack.c.b16 %v955, %v946
    %v1307 = vpack.c.b16 %v956, %v947
    %v1308 = vpack.c.b16 %v957, %v948
    %v1309 = vpack.c.b16 %v958, %v949
    %v1310 = vpack.c.b16 %v959, %v950
    %v1311 = vpack.c.b16 %v960, %v951
    %v1312 = vpack.c.b16 %v961, %v952
    %v1313 = vpack.c.b16 %v971, %v962
    %v1314 = vpack.c.b16 %v972, %v963
    %v1315 = vpack.c.b16 %v973, %v964
    %v1316 = vpack.c.b16 %v974, %v965
    %v1317 = vpack.c.b16 %v975, %v966
    %v1318 = vpack.c.b16 %v976, %v967
    %v1319 = vpack.c.b16 %v977, %v968
    %v1320 = vpack.c.b16 %v978, %v969
    %v1321 = vpack.c.b16 %v979, %v970
    %v1322 = vpack.c.b16 %v989, %v980
    %v1323 = vpack.c.b16 %v990, %v981
    %v1324 = vpack.c.b16 %v991, %v982
    %v1325 = vpack.c.b16 %v992, %v983
    %v1326 = vpack.c.b16 %v993, %v984
    %v1327 = vpack.c.b16 %v994, %v985
    %v1328 = vpack.c.b16 %v995, %v986
    %v1329 = vpack.c.b16 %v996, %v987
    %v1330 = vpack.c.b16 %v997, %v988
    %v1331 = vpack.c.b16 %v1007, %v998
    %v1332 = vpack.c.b16 %v1008, %v999
    %v1333 = vpack.c.b16 %v1009, %v1000
    %v1334 = vpack.c.b16 %v1010, %v1001
    %v1335 = vpack.c.b16 %v1011, %v1002
    %v1336 = vpack.c.b16 %v1012, %v1003
    %v1337 = vpack.c.b16 %v1013, %v1004
    %v1338 = vpack.c.b16 %v1014, %v1005
    %v1339 = vpack.c.b16 %v1015, %v1006
    %v1340 = vpack.c.b16 %v1025, %v1016
    %v1341 = vpack.c.b16 %v1026, %v1017
    %v1342 = vpack.c.b16 %v1027, %v1018
    %v1343 = vpack.c.b16 %v1028, %v1019
    %v1344 = vpack.c.b16 %v1029, %v1020
    %v1345 = vpack.c.b16 %v1030, %v1021
    %v1346 = vpack.c.b16 %v1031, %v1022
    %v1347 = vpack.c.b16 %v1032, %v1023
    %v1348 = vpack.c.b16 %v1033, %v1024
    %v1349 = vpack.c.b16 %v1043, %v1034
    %v1350 = vpack.c.b16 %v1044, %v1035
    %v1351 = vpack.c.b16 %v1045, %v1036
    %v1352 = vpack.c.b16 %v1046, %v1037
    %v1353 = vpack.c.b16 %v1047, %v1038
    %v1354 = vpack.c.b16 %v1048, %v1039
    %v1355 = vpack.c.b16 %v1049, %v1040
    %v1356 = vpack.c.b16 %v1050, %v1041
    %v1357 = vpack.c.b16 %v1051, %v1042
    %v1358 = vpack.c.b16 %v1061, %v1052
    %v1359 = vpack.c.b16 %v1062, %v1053
    %v1360 = vpack.c.b16 %v1063, %v1054
    %v1361 = vpack.c.b16 %v1064, %v1055
    %v1362 = vpack.c.b16 %v1065, %v1056
    %v1363 = vpack.c.b16 %v1066, %v1057
    %v1364 = vpack.c.b16 %v1067, %v1058
    %v1365 = vpack.c.b16 %v1068, %v1059
    %v1366 = vpack.c.b16 %v1069, %v1060
    %v1367 = vpack.c.b16 %v1079, %v1070
    %v1368 = vpack.c.b16 %v1080, %v1071
    %v1369 = vpack.c.b16 %v1081, %v1072
    %v1370 = vpack.c.b16 %v1082, %v1073
    %v1371 = vpack.c.b16 %v1083, %v1074
    %v1372 = vpack.c.b16 %v1084, %v1075
    %v1373 = vpack.c.b16 %v1085, %v1076
    %v1374 = vpack.c.b16 %v1086, %v1077
    %v1375 = vpack.c.b16 %v1087, %v1078
    %v1376 = vpack.c.b16 %v1097, %v1088
    %v1377 = vpack.c.b16 %v1098, %v1089
    %v1378 = vpack.c.b16 %v1099, %v1090
    %v1379 = vpack.c.b16 %v1100, %v1091
    %v1380 = vpack.c.b16 %v1101, %v1092
    %v1381 = vpack.c.b16 %v1102, %v1093
    %v1382 = vpack.c.b16 %v1103, %v1094
    %v1383 = vpack.c.b16 %v1104, %v1095
    %v1384 = vpack.c.b16 %v1105, %v1096
    %v1385 = vpack.c.b16 %v1115, %v1106
    %v1386 = vpack.c.b16 %v1116, %v1107
    %v1387 = vpack.c.b16 %v1117, %v1108
    %v1388 = vpack.c.b16 %v1118, %v1109
    %v1389 = vpack.c.b16 %v1119, %v1110
    %v1390 = vpack.c.b16 %v1120, %v1111
    %v1391 = vpack.c.b16 %v1121, %v1112
    %v1392 = vpack.c.b16 %v1122, %v1113
    %v1393 = vpack.c.b16 %v1123, %v1114
    %v1394 = vpack.c.b16 %v1133, %v1124
    %v1395 = vpack.c.b16 %v1134, %v1125
    %v1396 = vpack.c.b16 %v1135, %v1126
    %v1397 = vpack.c.b16 %v1136, %v1127
    %v1398 = vpack.c.b16 %v1137, %v1128
    %v1399 = vpack.c.b16 %v1138, %v1129
    %v1400 = vpack.c.b16 %v1139, %v1130
    %v1401 = vpack.c.b16 %v1140, %v1131
    %v1402 = vpack.c.b16 %v1141, %v1132
    %v1403 = vpack.c.b16 %v1151, %v1142
    %v1404 = vpack.c.b16 %v1152, %v1143
    %v1405 = vpack.c.b16 %v1153, %v1144
    %v1406 = vpack.c.b16 %v1154, %v1145
    %v1407 = vpack.c.b16 %v1155, %v1146
    %v1408 = vpack.c.b16 %v1156, %v1147
    %v1409 = vpack.c.b16 %v1157, %v1148
    %v1410 = vpack.c.b16 %v1158, %v1149
    %v1411 = vpack.c.b16 %v1159, %v1150
    %v1412 = vpack.c.b16 %v1169, %v1160
    %v1413 = vpack.c.b16 %v1170, %v1161
    %v1414 = vpack.c.b16 %v1171, %v1162
    %v1415 = vpack.c.b16 %v1172, %v1163
    %v1416 = vpack.c.b16 %v1173, %v1164
    %v1417 = vpack.c.b16 %v1174, %v1165
    %v1418 = vpack.c.b16 %v1175, %v1166
    %v1419 = vpack.c.b16 %v1176, %v1167
    %v1420 = vpack.c.b16 %v1177, %v1168
    %v1421 = vpack.c.b16 %v1187, %v1178
    %v1422 = vpack.c.b16 %v1188, %v1179
    %v1423 = vpack.c.b16 %v1189, %v1180
    %v1424 = vpack.c.b16 %v1190, %v1181
    %v1425 = vpack.c.b16 %v1191, %v1182
    %v1426 = vpack.c.b16 %v1192, %v1183
    %v1427 = vpack.c.b16 %v1193, %v1184
    %v1428 = vpack.c.b16 %v1194, %v1185
    %v1429 = vpack.c.b16 %v1195, %v1186
    %v1430 = vpack.c.b16 %v1205, %v1196
    %v1431 = vpack.c.b16 %v1206, %v1197
    %v1432 = vpack.c.b16 %v1207, %v1198
    %v1433 = vpack.c.b16 %v1208, %v1199
    %v1434 = vpack.c.b16 %v1209, %v1200
    %v1435 = vpack.c.b16 %v1210, %v1201
    %v1436 = vpack.c.b16 %v1211, %v1202
    %v1437 = vpack.c.b16 %v1212, %v1203
    %v1438 = vpack.c.b16 %v1213, %v1204
    %v1439 = vpack.c.b16 %v1223, %v1214
    %v1440 = vpack.c.b16 %v1224, %v1215
    %v1441 = vpack.c.b16 %v1225, %v1216
    %v1442 = vpack.c.b16 %v1226, %v1217
    %v1443 = vpack.c.b16 %v1227, %v1218
    %v1444 = vpack.c.b16 %v1228, %v1219
    %v1445 = vpack.c.b16 %v1229, %v1220
    %v1446 = vpack.c.b16 %v1230, %v1221
    %v1447 = vpack.c.b16 %v1231, %v1222
    %1664 = vmatpush.bf16.msra.mxu0 %v1295
    %1665 = vmatpush.bf16.msra.mxu0 %v1286
    %1666 = vmatpush.bf16.msra.mxu0 %v1277
    %1667 = vmatpush.bf16.msra.mxu0 %v1268
    %1668 = vmatpush.bf16.msra.mxu0 %v1259
    %1669 = vmatpush.bf16.msra.mxu0 %v1250
    %1670 = vmatpush.bf16.msra.mxu0 %v1241
    %1671 = vmatpush.bf16.msra.mxu0 %v1232
    %1672 = vmatmul.bf16.gmra.mxu0 %v317
    %v1673 = vpop.f32.mrf.mxu0
    %v1674 = vadd.f32 0.0, %v1673
    %v1675 = vpop.f32.mrf.mxu0
    %v1676 = vadd.f32 0.0, %v1675
    %1677 = vdwg.mxu0
    %1678 = vmatpush.bf16.msra.mxu0 %v1367
    %1679 = vmatpush.bf16.msra.mxu0 %v1358
    %1680 = vmatpush.bf16.msra.mxu0 %v1349
    %1681 = vmatpush.bf16.msra.mxu0 %v1340
    %1682 = vmatpush.bf16.msra.mxu0 %v1331
    %1683 = vmatpush.bf16.msra.mxu0 %v1322
    %1684 = vmatpush.bf16.msra.mxu0 %v1313
    %1685 = vmatpush.bf16.msra.mxu0 %v1304
    %1686 = vmatmul.bf16.gmra.mxu0 %v318
    %v1687 = vpop.f32.mrf.mxu0
    %v1688 = vadd.f32 %v1674, %v1687
    %v1689 = vpop.f32.mrf.mxu0
    %v1690 = vadd.f32 %v1676, %v1689
    %1691 = vdwg.mxu0
    %1692 = vmatpush.bf16.msra.mxu0 %v1439
    %1693 = vmatpush.bf16.msra.mxu0 %v1430
    %1694 = vmatpush.bf16.msra.mxu0 %v1421
    %1695 = vmatpush.bf16.msra.mxu0 %v1412
    %1696 = vmatpush.bf16.msra.mxu0 %v1403
    %1697 = vmatpush.bf16.msra.mxu0 %v1394
    %1698 = vmatpush.bf16.msra.mxu0 %v1385
    %1699 = vmatpush.bf16.msra.mxu0 %v1376
    %1700 = vmatmul.bf16.gmra.mxu0 %v319
    %v1701 = vpop.f32.mrf.mxu0
    %v1702 = vadd.f32 %v1688, %v1701
    %v1703 = vpop.f32.mrf.mxu0
    %v1704 = vadd.f32 %v1690, %v1703
    %1705 = vdwg.mxu0
    %1706 = vmatpush.bf16.msra.mxu0 %v1296
    %1707 = vmatpush.bf16.msra.mxu0 %v1287
    %1708 = vmatpush.bf16.msra.mxu0 %v1278
    %1709 = vmatpush.bf16.msra.mxu0 %v1269
    %1710 = vmatpush.bf16.msra.mxu0 %v1260
    %1711 = vmatpush.bf16.msra.mxu0 %v1251
    %1712 = vmatpush.bf16.msra.mxu0 %v1242
    %1713 = vmatpush.bf16.msra.mxu0 %v1233
    %1714 = vmatmul.bf16.gmra.mxu0 %v317
    %v1715 = vpop.f32.mrf.mxu0
    %v1716 = vadd.f32 0.0, %v1715
    %v1717 = vpop.f32.mrf.mxu0
    %v1718 = vadd.f32 0.0, %v1717
    %1719 = vdwg.mxu0
    %1720 = vmatpush.bf16.msra.mxu0 %v1368
    %1721 = vmatpush.bf16.msra.mxu0 %v1359
    %1722 = vmatpush.bf16.msra.mxu0 %v1350
    %1723 = vmatpush.bf16.msra.mxu0 %v1341
    %1724 = vmatpush.bf16.msra.mxu0 %v1332
    %1725 = vmatpush.bf16.msra.mxu0 %v1323
    %1726 = vmatpush.bf16.msra.mxu0 %v1314
    %1727 = vmatpush.bf16.msra.mxu0 %v1305
    %1728 = vmatmul.bf16.gmra.mxu0 %v318
    %v1729 = vpop.f32.mrf.mxu0
    %v1730 = vadd.f32 %v1716, %v1729
    %v1731 = vpop.f32.mrf.mxu0
    %v1732 = vadd.f32 %v1718, %v1731
    %1733 = vdwg.mxu0
    %1734 = vmatpush.bf16.msra.mxu0 %v1440
    %1735 = vmatpush.bf16.msra.mxu0 %v1431
    %1736 = vmatpush.bf16.msra.mxu0 %v1422
    %1737 = vmatpush.bf16.msra.mxu0 %v1413
    %1738 = vmatpush.bf16.msra.mxu0 %v1404
    %1739 = vmatpush.bf16.msra.mxu0 %v1395
    %1740 = vmatpush.bf16.msra.mxu0 %v1386
    %1741 = vmatpush.bf16.msra.mxu0 %v1377
    %1742 = vmatmul.bf16.gmra.mxu0 %v319
    %v1743 = vpop.f32.mrf.mxu0
    %v1744 = vadd.f32 %v1730, %v1743
    %v1745 = vpop.f32.mrf.mxu0
    %v1746 = vadd.f32 %v1732, %v1745
    %1747 = vdwg.mxu0
    %1748 = vmatpush.bf16.msra.mxu0 %v1297
    %1749 = vmatpush.bf16.msra.mxu0 %v1288
    %1750 = vmatpush.bf16.msra.mxu0 %v1279
    %1751 = vmatpush.bf16.msra.mxu0 %v1270
    %1752 = vmatpush.bf16.msra.mxu0 %v1261
    %1753 = vmatpush.bf16.msra.mxu0 %v1252
    %1754 = vmatpush.bf16.msra.mxu0 %v1243
    %1755 = vmatpush.bf16.msra.mxu0 %v1234
    %1756 = vmatmul.bf16.gmra.mxu0 %v317
    %v1757 = vpop.f32.mrf.mxu0
    %v1758 = vadd.f32 0.0, %v1757
    %v1759 = vpop.f32.mrf.mxu0
    %v1760 = vadd.f32 0.0, %v1759
    %1761 = vdwg.mxu0
    %1762 = vmatpush.bf16.msra.mxu0 %v1369
    %1763 = vmatpush.bf16.msra.mxu0 %v1360
    %1764 = vmatpush.bf16.msra.mxu0 %v1351
    %1765 = vmatpush.bf16.msra.mxu0 %v1342
    %1766 = vmatpush.bf16.msra.mxu0 %v1333
    %1767 = vmatpush.bf16.msra.mxu0 %v1324
    %1768 = vmatpush.bf16.msra.mxu0 %v1315
    %1769 = vmatpush.bf16.msra.mxu0 %v1306
    %1770 = vmatmul.bf16.gmra.mxu0 %v318
    %v1771 = vpop.f32.mrf.mxu0
    %v1772 = vadd.f32 %v1758, %v1771
    %v1773 = vpop.f32.mrf.mxu0
    %v1774 = vadd.f32 %v1760, %v1773
    %1775 = vdwg.mxu0
    %1776 = vmatpush.bf16.msra.mxu0 %v1441
    %1777 = vmatpush.bf16.msra.mxu0 %v1432
    %1778 = vmatpush.bf16.msra.mxu0 %v1423
    %1779 = vmatpush.bf16.msra.mxu0 %v1414
    %1780 = vmatpush.bf16.msra.mxu0 %v1405
    %1781 = vmatpush.bf16.msra.mxu0 %v1396
    %1782 = vmatpush.bf16.msra.mxu0 %v1387
    %1783 = vmatpush.bf16.msra.mxu0 %v1378
    %1784 = vmatmul.bf16.gmra.mxu0 %v319
    %v1785 = vpop.f32.mrf.mxu0
    %v1786 = vadd.f32 %v1772, %v1785
    %v1787 = vpop.f32.mrf.mxu0
    %v1788 = vadd.f32 %v1774, %v1787
    %1789 = vdwg.mxu0
    %1790 = vmatpush.bf16.msra.mxu0 %v1298
    %1791 = vmatpush.bf16.msra.mxu0 %v1289
    %1792 = vmatpush.bf16.msra.mxu0 %v1280
    %1793 = vmatpush.bf16.msra.mxu0 %v1271
    %1794 = vmatpush.bf16.msra.mxu0 %v1262
    %1795 = vmatpush.bf16.msra.mxu0 %v1253
    %1796 = vmatpush.bf16.msra.mxu0 %v1244
    %1797 = vmatpush.bf16.msra.mxu0 %v1235
    %1798 = vmatmul.bf16.gmra.mxu0 %v317
    %v1799 = vpop.f32.mrf.mxu0
    %v1800 = vadd.f32 0.0, %v1799
    %v1801 = vpop.f32.mrf.mxu0
    %v1802 = vadd.f32 0.0, %v1801
    %1803 = vdwg.mxu0
    %1804 = vmatpush.bf16.msra.mxu0 %v1370
    %1805 = vmatpush.bf16.msra.mxu0 %v1361
    %1806 = vmatpush.bf16.msra.mxu0 %v1352
    %1807 = vmatpush.bf16.msra.mxu0 %v1343
    %1808 = vmatpush.bf16.msra.mxu0 %v1334
    %1809 = vmatpush.bf16.msra.mxu0 %v1325
    %1810 = vmatpush.bf16.msra.mxu0 %v1316
    %1811 = vmatpush.bf16.msra.mxu0 %v1307
    %1812 = vmatmul.bf16.gmra.mxu0 %v318
    %v1813 = vpop.f32.mrf.mxu0
    %v1814 = vadd.f32 %v1800, %v1813
    %v1815 = vpop.f32.mrf.mxu0
    %v1816 = vadd.f32 %v1802, %v1815
    %1817 = vdwg.mxu0
    %1818 = vmatpush.bf16.msra.mxu0 %v1442
    %1819 = vmatpush.bf16.msra.mxu0 %v1433
    %1820 = vmatpush.bf16.msra.mxu0 %v1424
    %1821 = vmatpush.bf16.msra.mxu0 %v1415
    %1822 = vmatpush.bf16.msra.mxu0 %v1406
    %1823 = vmatpush.bf16.msra.mxu0 %v1397
    %1824 = vmatpush.bf16.msra.mxu0 %v1388
    %1825 = vmatpush.bf16.msra.mxu0 %v1379
    %1826 = vmatmul.bf16.gmra.mxu0 %v319
    %v1827 = vpop.f32.mrf.mxu0
    %v1828 = vadd.f32 %v1814, %v1827
    %v1829 = vpop.f32.mrf.mxu0
    %v1830 = vadd.f32 %v1816, %v1829
    %1831 = vdwg.mxu0
    %1832 = vmatpush.bf16.msra.mxu0 %v1299
    %1833 = vmatpush.bf16.msra.mxu0 %v1290
    %1834 = vmatpush.bf16.msra.mxu0 %v1281
    %1835 = vmatpush.bf16.msra.mxu0 %v1272
    %1836 = vmatpush.bf16.msra.mxu0 %v1263
    %1837 = vmatpush.bf16.msra.mxu0 %v1254
    %1838 = vmatpush.bf16.msra.mxu0 %v1245
    %1839 = vmatpush.bf16.msra.mxu0 %v1236
    %1840 = vmatmul.bf16.gmra.mxu0 %v317
    %v1841 = vpop.f32.mrf.mxu0
    %v1842 = vadd.f32 0.0, %v1841
    %v1843 = vpop.f32.mrf.mxu0
    %v1844 = vadd.f32 0.0, %v1843
    %1845 = vdwg.mxu0
    %1846 = vmatpush.bf16.msra.mxu0 %v1371
    %1847 = vmatpush.bf16.msra.mxu0 %v1362
    %1848 = vmatpush.bf16.msra.mxu0 %v1353
    %1849 = vmatpush.bf16.msra.mxu0 %v1344
    %1850 = vmatpush.bf16.msra.mxu0 %v1335
    %1851 = vmatpush.bf16.msra.mxu0 %v1326
    %1852 = vmatpush.bf16.msra.mxu0 %v1317
    %1853 = vmatpush.bf16.msra.mxu0 %v1308
    %1854 = vmatmul.bf16.gmra.mxu0 %v318
    %v1855 = vpop.f32.mrf.mxu0
    %v1856 = vadd.f32 %v1842, %v1855
    %v1857 = vpop.f32.mrf.mxu0
    %v1858 = vadd.f32 %v1844, %v1857
    %1859 = vdwg.mxu0
    %1860 = vmatpush.bf16.msra.mxu0 %v1443
    %1861 = vmatpush.bf16.msra.mxu0 %v1434
    %1862 = vmatpush.bf16.msra.mxu0 %v1425
    %1863 = vmatpush.bf16.msra.mxu0 %v1416
    %1864 = vmatpush.bf16.msra.mxu0 %v1407
    %1865 = vmatpush.bf16.msra.mxu0 %v1398
    %1866 = vmatpush.bf16.msra.mxu0 %v1389
    %1867 = vmatpush.bf16.msra.mxu0 %v1380
    %1868 = vmatmul.bf16.gmra.mxu0 %v319
    %v1869 = vpop.f32.mrf.mxu0
    %v1870 = vadd.f32 %v1856, %v1869
    %v1871 = vpop.f32.mrf.mxu0
    %v1872 = vadd.f32 %v1858, %v1871
    %1873 = vdwg.mxu0
    %1874 = vmatpush.bf16.msra.mxu0 %v1300
    %1875 = vmatpush.bf16.msra.mxu0 %v1291
    %1876 = vmatpush.bf16.msra.mxu0 %v1282
    %1877 = vmatpush.bf16.msra.mxu0 %v1273
    %1878 = vmatpush.bf16.msra.mxu0 %v1264
    %1879 = vmatpush.bf16.msra.mxu0 %v1255
    %1880 = vmatpush.bf16.msra.mxu0 %v1246
    %1881 = vmatpush.bf16.msra.mxu0 %v1237
    %1882 = vmatmul.bf16.gmra.mxu0 %v317
    %v1883 = vpop.f32.mrf.mxu0
    %v1884 = vadd.f32 0.0, %v1883
    %v1885 = vpop.f32.mrf.mxu0
    %v1886 = vadd.f32 0.0, %v1885
    %1887 = vdwg.mxu0
    %1888 = vmatpush.bf16.msra.mxu0 %v1372
    %1889 = vmatpush.bf16.msra.mxu0 %v1363
    %1890 = vmatpush.bf16.msra.mxu0 %v1354
    %1891 = vmatpush.bf16.msra.mxu0 %v1345
    %1892 = vmatpush.bf16.msra.mxu0 %v1336
    %1893 = vmatpush.bf16.msra.mxu0 %v1327
    %1894 = vmatpush.bf16.msra.mxu0 %v1318
    %1895 = vmatpush.bf16.msra.mxu0 %v1309
    %1896 = vmatmul.bf16.gmra.mxu0 %v318
    %v1897 = vpop.f32.mrf.mxu0
    %v1898 = vadd.f32 %v1884, %v1897
    %v1899 = vpop.f32.mrf.mxu0
    %v1900 = vadd.f32 %v1886, %v1899
    %1901 = vdwg.mxu0
    %1902 = vmatpush.bf16.msra.mxu0 %v1444
    %1903 = vmatpush.bf16.msra.mxu0 %v1435
    %1904 = vmatpush.bf16.msra.mxu0 %v1426
    %1905 = vmatpush.bf16.msra.mxu0 %v1417
    %1906 = vmatpush.bf16.msra.mxu0 %v1408
    %1907 = vmatpush.bf16.msra.mxu0 %v1399
    %1908 = vmatpush.bf16.msra.mxu0 %v1390
    %1909 = vmatpush.bf16.msra.mxu0 %v1381
    %1910 = vmatmul.bf16.gmra.mxu0 %v319
    %v1911 = vpop.f32.mrf.mxu0
    %v1912 = vadd.f32 %v1898, %v1911
    %v1913 = vpop.f32.mrf.mxu0
    %v1914 = vadd.f32 %v1900, %v1913
    %1915 = vdwg.mxu0
    %1916 = vmatpush.bf16.msra.mxu0 %v1301
    %1917 = vmatpush.bf16.msra.mxu0 %v1292
    %1918 = vmatpush.bf16.msra.mxu0 %v1283
    %1919 = vmatpush.bf16.msra.mxu0 %v1274
    %1920 = vmatpush.bf16.msra.mxu0 %v1265
    %1921 = vmatpush.bf16.msra.mxu0 %v1256
    %1922 = vmatpush.bf16.msra.mxu0 %v1247
    %1923 = vmatpush.bf16.msra.mxu0 %v1238
    %1924 = vmatmul.bf16.gmra.mxu0 %v317
    %v1925 = vpop.f32.mrf.mxu0
    %v1926 = vadd.f32 0.0, %v1925
    %v1927 = vpop.f32.mrf.mxu0
    %v1928 = vadd.f32 0.0, %v1927
    %1929 = vdwg.mxu0
    %1930 = vmatpush.bf16.msra.mxu0 %v1373
    %1931 = vmatpush.bf16.msra.mxu0 %v1364
    %1932 = vmatpush.bf16.msra.mxu0 %v1355
    %1933 = vmatpush.bf16.msra.mxu0 %v1346
    %1934 = vmatpush.bf16.msra.mxu0 %v1337
    %1935 = vmatpush.bf16.msra.mxu0 %v1328
    %1936 = vmatpush.bf16.msra.mxu0 %v1319
    %1937 = vmatpush.bf16.msra.mxu0 %v1310
    %1938 = vmatmul.bf16.gmra.mxu0 %v318
    %v1939 = vpop.f32.mrf.mxu0
    %v1940 = vadd.f32 %v1926, %v1939
    %v1941 = vpop.f32.mrf.mxu0
    %v1942 = vadd.f32 %v1928, %v1941
    %1943 = vdwg.mxu0
    %1944 = vmatpush.bf16.msra.mxu0 %v1445
    %1945 = vmatpush.bf16.msra.mxu0 %v1436
    %1946 = vmatpush.bf16.msra.mxu0 %v1427
    %1947 = vmatpush.bf16.msra.mxu0 %v1418
    %1948 = vmatpush.bf16.msra.mxu0 %v1409
    %1949 = vmatpush.bf16.msra.mxu0 %v1400
    %1950 = vmatpush.bf16.msra.mxu0 %v1391
    %1951 = vmatpush.bf16.msra.mxu0 %v1382
    %1952 = vmatmul.bf16.gmra.mxu0 %v319
    %v1953 = vpop.f32.mrf.mxu0
    %v1954 = vadd.f32 %v1940, %v1953
    %v1955 = vpop.f32.mrf.mxu0
    %v1956 = vadd.f32 %v1942, %v1955
    %1957 = vdwg.mxu0
    %1958 = vmatpush.bf16.msra.mxu0 %v1302
    %1959 = vmatpush.bf16.msra.mxu0 %v1293
    %1960 = vmatpush.bf16.msra.mxu0 %v1284
    %1961 = vmatpush.bf16.msra.mxu0 %v1275
    %1962 = vmatpush.bf16.msra.mxu0 %v1266
    %1963 = vmatpush.bf16.msra.mxu0 %v1257
    %1964 = vmatpush.bf16.msra.mxu0 %v1248
    %1965 = vmatpush.bf16.msra.mxu0 %v1239
    %1966 = vmatmul.bf16.gmra.mxu0 %v317
    %v1967 = vpop.f32.mrf.mxu0
    %v1968 = vadd.f32 0.0, %v1967
    %v1969 = vpop.f32.mrf.mxu0
    %v1970 = vadd.f32 0.0, %v1969
    %1971 = vdwg.mxu0
    %1972 = vmatpush.bf16.msra.mxu0 %v1374
    %1973 = vmatpush.bf16.msra.mxu0 %v1365
    %1974 = vmatpush.bf16.msra.mxu0 %v1356
    %1975 = vmatpush.bf16.msra.mxu0 %v1347
    %1976 = vmatpush.bf16.msra.mxu0 %v1338
    %1977 = vmatpush.bf16.msra.mxu0 %v1329
    %1978 = vmatpush.bf16.msra.mxu0 %v1320
    %1979 = vmatpush.bf16.msra.mxu0 %v1311
    %1980 = vmatmul.bf16.gmra.mxu0 %v318
    %v1981 = vpop.f32.mrf.mxu0
    %v1982 = vadd.f32 %v1968, %v1981
    %v1983 = vpop.f32.mrf.mxu0
    %v1984 = vadd.f32 %v1970, %v1983
    %1985 = vdwg.mxu0
    %1986 = vmatpush.bf16.msra.mxu0 %v1446
    %1987 = vmatpush.bf16.msra.mxu0 %v1437
    %1988 = vmatpush.bf16.msra.mxu0 %v1428
    %1989 = vmatpush.bf16.msra.mxu0 %v1419
    %1990 = vmatpush.bf16.msra.mxu0 %v1410
    %1991 = vmatpush.bf16.msra.mxu0 %v1401
    %1992 = vmatpush.bf16.msra.mxu0 %v1392
    %1993 = vmatpush.bf16.msra.mxu0 %v1383
    %1994 = vmatmul.bf16.gmra.mxu0 %v319
    %v1995 = vpop.f32.mrf.mxu0
    %v1996 = vadd.f32 %v1982, %v1995
    %v1997 = vpop.f32.mrf.mxu0
    %v1998 = vadd.f32 %v1984, %v1997
    %1999 = vdwg.mxu0
    %2000 = vmatpush.bf16.msra.mxu0 %v1303
    %2001 = vmatpush.bf16.msra.mxu0 %v1294
    %2002 = vmatpush.bf16.msra.mxu0 %v1285
    %2003 = vmatpush.bf16.msra.mxu0 %v1276
    %2004 = vmatpush.bf16.msra.mxu0 %v1267
    %2005 = vmatpush.bf16.msra.mxu0 %v1258
    %2006 = vmatpush.bf16.msra.mxu0 %v1249
    %2007 = vmatpush.bf16.msra.mxu0 %v1240
    %2008 = vmatmul.bf16.gmra.mxu0 %v317
    %v2009 = vpop.f32.mrf.mxu0
    %v2010 = vadd.f32 0.0, %v2009
    %v2011 = vpop.f32.mrf.mxu0
    %v2012 = vadd.f32 0.0, %v2011
    %2013 = vdwg.mxu0
    %2014 = vmatpush.bf16.msra.mxu0 %v1375
    %2015 = vmatpush.bf16.msra.mxu0 %v1366
    %2016 = vmatpush.bf16.msra.mxu0 %v1357
    %2017 = vmatpush.bf16.msra.mxu0 %v1348
    %2018 = vmatpush.bf16.msra.mxu0 %v1339
    %2019 = vmatpush.bf16.msra.mxu0 %v1330
    %2020 = vmatpush.bf16.msra.mxu0 %v1321
    %2021 = vmatpush.bf16.msra.mxu0 %v1312
    %2022 = vmatmul.bf16.gmra.mxu0 %v318
    %v2023 = vpop.f32.mrf.mxu0
    %v2024 = vadd.f32 %v2010, %v2023
    %v2025 = vpop.f32.mrf.mxu0
    %v2026 = vadd.f32 %v2012, %v2025
    %2027 = vdwg.mxu0
    %2028 = vmatpush.bf16.msra.mxu0 %v1447
    %2029 = vmatpush.bf16.msra.mxu0 %v1438
    %2030 = vmatpush.bf16.msra.mxu0 %v1429
    %2031 = vmatpush.bf16.msra.mxu0 %v1420
    %2032 = vmatpush.bf16.msra.mxu0 %v1411
    %2033 = vmatpush.bf16.msra.mxu0 %v1402
    %2034 = vmatpush.bf16.msra.mxu0 %v1393
    %2035 = vmatpush.bf16.msra.mxu0 %v1384
    %2036 = vmatmul.bf16.gmra.mxu0 %v319
    %v2037 = vpop.f32.mrf.mxu0
    %v2038 = vadd.f32 %v2024, %v2037
    %v2039 = vpop.f32.mrf.mxu0
    %v2040 = vadd.f32 %v2026, %v2039
    %2041 = vdwg.mxu0
    %v2042 = vpack.c.bf16 %v1744, %v1702
    %v2043 = vpack.c.bf16 %v1828, %v1786
    %v2044 = vpack.c.bf16 %v1912, %v1870
    %v2045 = vpack.c.bf16 %v1996, %v1954
    %v2046 = vpack.c.bf16 %v2038, %v2038
    %v2047 = vpack.c.bf16 %v1746, %v1704
    %v2048 = vpack.c.bf16 %v1830, %v1788
    %v2049 = vpack.c.bf16 %v1914, %v1872
    %v2050 = vpack.c.bf16 %v1998, %v1956
    %v2051 = vpack.c.bf16 %v2040, %v2040
    %v2052 = vlaneseq
    %v2053 = vshrl.u32 %v2052, 7
    %v2054 = vadd.s32 %v2053, 8
    %v2055 = vlaneseq
    %v2056 = vand.u32 %v2055, 127
    %v2057 = vsub.s32 %v2053, %v2056
    %v2058 = vsub.s32 %v2054, %v2056
    %vm2059 = vcmp.ge.s32.totalorder %v2057, 0
    %vm2060 = vcmp.ge.s32.totalorder %v2058, 0
    %v2061 = vand.u32 %v2053, 7
    %v2062 = vand.u32 %v2054, 7
    %vm2063 = vcmp.le.s32.totalorder %v2057, %v2061
    %vm2064 = vcmp.le.s32.totalorder %v2058, %v2062
    %vm2065 = vmand %vm2059, %vm2063
    %vm2066 = vmand %vm2060, %vm2064
    %v2067 = vsel %vm2065, 0.0, -1e+09
    %v2068 = vsel %vm2066, 0.0, -1e+09
    %v2071 = vunpack.c.l.b16 %v2042
    %v2072 = vunpack.c.l.b16 %v2047
    %v2073 = vpack.c.b16 %v2072, %v2071
    %v2076 = vunpack.c.h.b16 %v2043
    %v2077 = vunpack.c.h.b16 %v2048
    %v2078 = vpack.c.b16 %v2077, %v2076
    %vm2079 = vcmask 523264
    %v2081 = vsel %vm2079, %v2073, 0
    %v2084 = vsel %vm2079, %v2078, 0
    %2086 = vmatpush.bf16.xpose.msra.mxu0 0
    %2087 = vmatpush.bf16.xpose.msra.mxu0 0
    %2088 = vmatpush.bf16.xpose.msra.mxu0 0
    %2089 = vmatpush.bf16.xpose.msra.mxu0 0
    %2090 = vmatpush.bf16.xpose.msra.mxu0 0
    %2091 = vmatpush.bf16.xpose.msra.mxu0 0
    %2092 = vmatpush.bf16.xpose.msra.mxu0 0
    %2093 = vmatpush.bf16.xpose.msra.mxu0 %v2084
    %2094 = vmatmul.bf16.gmra.mxu0 %v2081
    %v2095 = vpop.f32.mrf.mxu0
    %v2096 = vadd.f32 0.0, %v2095
    %v2097 = vpop.f32.mrf.mxu0
    %v2098 = vadd.f32 0.0, %v2097
    %2099 = vdwg.mxu0
    %v2100 = vmul.f32 %v2096, 0.125
    %v2101 = vmul.f32 %v2098, 0.125
    %v2102 = vadd.f32 %v2100, %v2067
    %v2103 = vadd.f32 %v2101, %v2068
    %vm2104 = vcmask 130048
    %v2105 = vsel %vm2104, %v2102, -inf
    %2106 = vmax.xlane.f32.xlu0 %v2105
    %v2107 = vpop.xlane.xlu0 %2106
    %v2108 = vsel %vm2104, %v2103, -inf
    %2109 = vmax.xlane.f32.xlu0 %v2108
    %v2110 = vpop.xlane.xlu0 %2109
    %v2111 = vsub.f32 %v2102, %v2107
    %v2112 = vsub.f32 %v2103, %v2110
    %v2113 = vmul.f32 %v2111, 1.442695
    %v2114 = vpow.pop %v2113
    %v2115 = vmul.f32 %v2112, 1.442695
    %v2116 = vpow.pop %v2115
    %v2117 = vsel %vm2104, %v2114, 0.0
    %2118 = vadd.xlane.f32.xlu0 %v2117
    %v2119 = vpop.xlane.xlu0 %2118
    %v2120 = vsel %vm2104, %v2116, 0.0
    %2121 = vadd.xlane.f32.xlu0 %v2120
    %v2122 = vpop.xlane.xlu0 %2121
    %v2123 = vrcp.pop %v2119
    %v2124 = vrcp.pop %v2122
    %v2125 = vmul.f32 %v2114, %v2123
    %v2126 = vmul.f32 %v2116, %v2124
    %v2127 = vpack.c.bf16 %v2126, %v2125
    %v2130 = vunpack.c.l.b16 %v2045
    %v2131 = vunpack.c.l.b16 %v2050
    %v2132 = vpack.c.b16 %v2131, %v2130
    %v2135 = vsel %vm2104, %v2127, 0
    %2137 = vmatpush.bf16.msra.mxu0 0
    %2138 = vmatpush.bf16.msra.mxu0 0
    %2139 = vmatpush.bf16.msra.mxu0 0
    %2140 = vmatpush.bf16.msra.mxu0 0
    %2141 = vmatpush.bf16.msra.mxu0 0
    %2142 = vmatpush.bf16.msra.mxu0 0
    %2143 = vmatpush.bf16.msra.mxu0 0
    %2144 = vmatpush.bf16.msra.mxu0 %v2132
    %2145 = vmatmul.bf16.gmra.mxu0 %v2135
    %v2146 = vpop.f32.mrf.mxu0
    %v2147 = vadd.f32 0.0, %v2146
    %v2148 = vpop.f32.mrf.mxu0
    %v2149 = vadd.f32 0.0, %v2148
    %2150 = vdwg.mxu0
    %2151 = vst.msk [vmem:[#allocation2] sm:$0xff] %vm2079, %v2147
    %2152 = vst.msk [vmem:[#allocation2 + $0x18] sm:$0xff] %vm2079, %v2149
    %2153 = vrot.lane.b32.xlu0 %v2073, 64
    %v2154 = vpop.permute.xlu0 %2153
    %2155 = vrot.lane.b32.xlu0 %v2078, 64
    %v2156 = vpop.permute.xlu0 %2155
    %v2158 = vsel %vm2079, %v2154, 0
    %v2161 = vsel %vm2079, %v2156, 0
    %2163 = vmatpush.bf16.xpose.msra.mxu0 0
    %2164 = vmatpush.bf16.xpose.msra.mxu0 0
    %2165 = vmatpush.bf16.xpose.msra.mxu0 0
    %2166 = vmatpush.bf16.xpose.msra.mxu0 0
    %2167 = vmatpush.bf16.xpose.msra.mxu0 0
    %2168 = vmatpush.bf16.xpose.msra.mxu0 0
    %2169 = vmatpush.bf16.xpose.msra.mxu0 0
    %2170 = vmatpush.bf16.xpose.msra.mxu0 %v2161
    %2171 = vmatmul.bf16.gmra.mxu0 %v2158
    %v2172 = vpop.f32.mrf.mxu0
    %v2173 = vadd.f32 0.0, %v2172
    %v2174 = vpop.f32.mrf.mxu0
    %v2175 = vadd.f32 0.0, %v2174
    %2176 = vdwg.mxu0
    %v2177 = vmul.f32 %v2173, 0.125
    %v2178 = vmul.f32 %v2175, 0.125
    %v2179 = vadd.f32 %v2177, %v2067
    %v2180 = vadd.f32 %v2178, %v2068
    %v2181 = vsel %vm2104, %v2179, -inf
    %2182 = vmax.xlane.f32.xlu0 %v2181
    %v2183 = vpop.xlane.xlu0 %2182
    %v2184 = vsel %vm2104, %v2180, -inf
    %2185 = vmax.xlane.f32.xlu0 %v2184
    %v2186 = vpop.xlane.xlu0 %2185
    %v2187 = vsub.f32 %v2179, %v2183
    %v2188 = vsub.f32 %v2180, %v2186
    %v2189 = vmul.f32 %v2187, 1.442695
    %v2190 = vpow.pop %v2189
    %v2191 = vmul.f32 %v2188, 1.442695
    %v2192 = vpow.pop %v2191
    %v2193 = vsel %vm2104, %v2190, 0.0
    %2194 = vadd.xlane.f32.xlu0 %v2193
    %v2195 = vpop.xlane.xlu0 %2194
    %v2196 = vsel %vm2104, %v2192, 0.0
    %2197 = vadd.xlane.f32.xlu0 %v2196
    %v2198 = vpop.xlane.xlu0 %2197
    %v2199 = vrcp.pop %v2195
    %v2200 = vrcp.pop %v2198
    %v2201 = vmul.f32 %v2190, %v2199
    %v2202 = vmul.f32 %v2192, %v2200
    %v2203 = vpack.c.bf16 %v2202, %v2201
    %2204 = vrot.lane.b32.xlu0 %v2132, 64
    %v2205 = vpop.permute.xlu0 %2204
    %v2208 = vsel %vm2104, %v2203, 0
    %2210 = vmatpush.bf16.msra.mxu0 0
    %2211 = vmatpush.bf16.msra.mxu0 0
    %2212 = vmatpush.bf16.msra.mxu0 0
    %2213 = vmatpush.bf16.msra.mxu0 0
    %2214 = vmatpush.bf16.msra.mxu0 0
    %2215 = vmatpush.bf16.msra.mxu0 0
    %2216 = vmatpush.bf16.msra.mxu0 0
    %2217 = vmatpush.bf16.msra.mxu0 %v2205
    %2218 = vmatmul.bf16.gmra.mxu0 %v2208
    %v2219 = vpop.f32.mrf.mxu0
    %v2220 = vadd.f32 0.0, %v2219
    %v2221 = vpop.f32.mrf.mxu0
    %v2222 = vadd.f32 0.0, %v2221
    %2223 = vdwg.mxu0
    %2226 = vrot.lane.b32.xlu0 %v2220, 64
    %v2227 = vpop.permute.xlu0 %2226
    %2228 = vrot.lane.b32.xlu0 %v2222, 64
    %v2229 = vpop.permute.xlu0 %2228
    %vm2232 = vcmask 1048064
    %2233 = vst.msk [vmem:[#allocation2] sm:$0xff] %vm2232, %v2227
    %2234 = vst.msk [vmem:[#allocation2 + $0x18] sm:$0xff] %vm2232, %v2229
    %v2235 = vunpack.c.h.b16 %v2042
    %v2236 = vunpack.c.h.b16 %v2047
    %v2237 = vpack.c.b16 %v2236, %v2235
    %v2240 = vunpack.c.l.b16 %v2044
    %v2241 = vunpack.c.l.b16 %v2049
    %v2242 = vpack.c.b16 %v2241, %v2240
    %v2244 = vsel %vm2079, %v2237, 0
    %v2247 = vsel %vm2079, %v2242, 0
    %2249 = vmatpush.bf16.xpose.msra.mxu0 0
    %2250 = vmatpush.bf16.xpose.msra.mxu0 0
    %2251 = vmatpush.bf16.xpose.msra.mxu0 0
    %2252 = vmatpush.bf16.xpose.msra.mxu0 0
    %2253 = vmatpush.bf16.xpose.msra.mxu0 0
    %2254 = vmatpush.bf16.xpose.msra.mxu0 0
    %2255 = vmatpush.bf16.xpose.msra.mxu0 0
    %2256 = vmatpush.bf16.xpose.msra.mxu0 %v2247
    %2257 = vmatmul.bf16.gmra.mxu0 %v2244
    %v2258 = vpop.f32.mrf.mxu0
    %v2259 = vadd.f32 0.0, %v2258
    %v2260 = vpop.f32.mrf.mxu0
    %v2261 = vadd.f32 0.0, %v2260
    %2262 = vdwg.mxu0
    %v2263 = vmul.f32 %v2259, 0.125
    %v2264 = vmul.f32 %v2261, 0.125
    %v2265 = vadd.f32 %v2263, %v2067
    %v2266 = vadd.f32 %v2264, %v2068
    %v2267 = vsel %vm2104, %v2265, -inf
    %2268 = vmax.xlane.f32.xlu0 %v2267
    %v2269 = vpop.xlane.xlu0 %2268
    %v2270 = vsel %vm2104, %v2266, -inf
    %2271 = vmax.xlane.f32.xlu0 %v2270
    %v2272 = vpop.xlane.xlu0 %2271
    %v2273 = vsub.f32 %v2265, %v2269
    %v2274 = vsub.f32 %v2266, %v2272
    %v2275 = vmul.f32 %v2273, 1.442695
    %v2276 = vpow.pop %v2275
    %v2277 = vmul.f32 %v2274, 1.442695
    %v2278 = vpow.pop %v2277
    %v2279 = vsel %vm2104, %v2276, 0.0
    %2280 = vadd.xlane.f32.xlu0 %v2279
    %v2281 = vpop.xlane.xlu0 %2280
    %v2282 = vsel %vm2104, %v2278, 0.0
    %2283 = vadd.xlane.f32.xlu0 %v2282
    %v2284 = vpop.xlane.xlu0 %2283
    %v2285 = vrcp.pop %v2281
    %v2286 = vrcp.pop %v2284
    %v2287 = vmul.f32 %v2276, %v2285
    %v2288 = vmul.f32 %v2278, %v2286
    %v2289 = vpack.c.bf16 %v2288, %v2287
    %v2290 = vunpack.c.h.b16 %v2045
    %v2291 = vunpack.c.h.b16 %v2050
    %v2292 = vpack.c.b16 %v2291, %v2290
    %v2295 = vsel %vm2104, %v2289, 0
    %2297 = vmatpush.bf16.msra.mxu0 0
    %2298 = vmatpush.bf16.msra.mxu0 0
    %2299 = vmatpush.bf16.msra.mxu0 0
    %2300 = vmatpush.bf16.msra.mxu0 0
    %2301 = vmatpush.bf16.msra.mxu0 0
    %2302 = vmatpush.bf16.msra.mxu0 0
    %2303 = vmatpush.bf16.msra.mxu0 0
    %2304 = vmatpush.bf16.msra.mxu0 %v2292
    %2305 = vmatmul.bf16.gmra.mxu0 %v2295
    %v2306 = vpop.f32.mrf.mxu0
    %v2307 = vadd.f32 0.0, %v2306
    %v2308 = vpop.f32.mrf.mxu0
    %v2309 = vadd.f32 0.0, %v2308
    %2310 = vdwg.mxu0
    %2311 = vst.msk [vmem:[#allocation2 + $0x8] sm:$0xff] %vm2079, %v2307
    %2312 = vst.msk [vmem:[#allocation2 + $0x20] sm:$0xff] %vm2079, %v2309
    %2313 = vrot.lane.b32.xlu0 %v2237, 64
    %v2314 = vpop.permute.xlu0 %2313
    %2315 = vrot.lane.b32.xlu0 %v2242, 64
    %v2316 = vpop.permute.xlu0 %2315
    %v2318 = vsel %vm2079, %v2314, 0
    %v2321 = vsel %vm2079, %v2316, 0
    %2323 = vmatpush.bf16.xpose.msra.mxu0 0
    %2324 = vmatpush.bf16.xpose.msra.mxu0 0
    %2325 = vmatpush.bf16.xpose.msra.mxu0 0
    %2326 = vmatpush.bf16.xpose.msra.mxu0 0
    %2327 = vmatpush.bf16.xpose.msra.mxu0 0
    %2328 = vmatpush.bf16.xpose.msra.mxu0 0
    %2329 = vmatpush.bf16.xpose.msra.mxu0 0
    %2330 = vmatpush.bf16.xpose.msra.mxu0 %v2321
    %2331 = vmatmul.bf16.gmra.mxu0 %v2318
    %v2332 = vpop.f32.mrf.mxu0
    %v2333 = vadd.f32 0.0, %v2332
    %v2334 = vpop.f32.mrf.mxu0
    %v2335 = vadd.f32 0.0, %v2334
    %2336 = vdwg.mxu0
    %v2337 = vmul.f32 %v2333, 0.125
    %v2338 = vmul.f32 %v2335, 0.125
    %v2339 = vadd.f32 %v2337, %v2067
    %v2340 = vadd.f32 %v2338, %v2068
    %v2341 = vsel %vm2104, %v2339, -inf
    %2342 = vmax.xlane.f32.xlu0 %v2341
    %v2343 = vpop.xlane.xlu0 %2342
    %v2344 = vsel %vm2104, %v2340, -inf
    %2345 = vmax.xlane.f32.xlu0 %v2344
    %v2346 = vpop.xlane.xlu0 %2345
    %v2347 = vsub.f32 %v2339, %v2343
    %v2348 = vsub.f32 %v2340, %v2346
    %v2349 = vmul.f32 %v2347, 1.442695
    %v2350 = vpow.pop %v2349
    %v2351 = vmul.f32 %v2348, 1.442695
    %v2352 = vpow.pop %v2351
    %v2353 = vsel %vm2104, %v2350, 0.0
    %2354 = vadd.xlane.f32.xlu0 %v2353
    %v2355 = vpop.xlane.xlu0 %2354
    %v2356 = vsel %vm2104, %v2352, 0.0
    %2357 = vadd.xlane.f32.xlu0 %v2356
    %v2358 = vpop.xlane.xlu0 %2357
    %v2359 = vrcp.pop %v2355
    %v2360 = vrcp.pop %v2358
    %v2361 = vmul.f32 %v2350, %v2359
    %v2362 = vmul.f32 %v2352, %v2360
    %v2363 = vpack.c.bf16 %v2362, %v2361
    %2364 = vrot.lane.b32.xlu0 %v2292, 64
    %v2365 = vpop.permute.xlu0 %2364
    %v2368 = vsel %vm2104, %v2363, 0
    %2370 = vmatpush.bf16.msra.mxu0 0
    %2371 = vmatpush.bf16.msra.mxu0 0
    %2372 = vmatpush.bf16.msra.mxu0 0
    %2373 = vmatpush.bf16.msra.mxu0 0
    %2374 = vmatpush.bf16.msra.mxu0 0
    %2375 = vmatpush.bf16.msra.mxu0 0
    %2376 = vmatpush.bf16.msra.mxu0 0
    %2377 = vmatpush.bf16.msra.mxu0 %v2365
    %2378 = vmatmul.bf16.gmra.mxu0 %v2368
    %v2379 = vpop.f32.mrf.mxu0
    %v2380 = vadd.f32 0.0, %v2379
    %v2381 = vpop.f32.mrf.mxu0
    %v2382 = vadd.f32 0.0, %v2381
    %2383 = vdwg.mxu0
    %2386 = vrot.lane.b32.xlu0 %v2380, 64
    %v2387 = vpop.permute.xlu0 %2386
    %2388 = vrot.lane.b32.xlu0 %v2382, 64
    %v2389 = vpop.permute.xlu0 %2388
    %2392 = vst.msk [vmem:[#allocation2 + $0x8] sm:$0xff] %vm2232, %v2387
    %2393 = vst.msk [vmem:[#allocation2 + $0x20] sm:$0xff] %vm2232, %v2389
    %v2394 = vunpack.c.l.b16 %v2043
    %v2395 = vunpack.c.l.b16 %v2048
    %v2396 = vpack.c.b16 %v2395, %v2394
    %v2397 = vunpack.c.h.b16 %v2044
    %v2398 = vunpack.c.h.b16 %v2049
    %v2399 = vpack.c.b16 %v2398, %v2397
    %v2401 = vsel %vm2079, %v2396, 0
    %v2404 = vsel %vm2079, %v2399, 0
    %2406 = vmatpush.bf16.xpose.msra.mxu0 0
    %2407 = vmatpush.bf16.xpose.msra.mxu0 0
    %2408 = vmatpush.bf16.xpose.msra.mxu0 0
    %2409 = vmatpush.bf16.xpose.msra.mxu0 0
    %2410 = vmatpush.bf16.xpose.msra.mxu0 0
    %2411 = vmatpush.bf16.xpose.msra.mxu0 0
    %2412 = vmatpush.bf16.xpose.msra.mxu0 0
    %2413 = vmatpush.bf16.xpose.msra.mxu0 %v2404
    %2414 = vmatmul.bf16.gmra.mxu0 %v2401
    %v2415 = vpop.f32.mrf.mxu0
    %v2416 = vadd.f32 0.0, %v2415
    %v2417 = vpop.f32.mrf.mxu0
    %v2418 = vadd.f32 0.0, %v2417
    %2419 = vdwg.mxu0
    %v2420 = vmul.f32 %v2416, 0.125
    %v2421 = vmul.f32 %v2418, 0.125
    %v2422 = vadd.f32 %v2420, %v2067
    %v2423 = vadd.f32 %v2421, %v2068
    %v2424 = vsel %vm2104, %v2422, -inf
    %2425 = vmax.xlane.f32.xlu0 %v2424
    %v2426 = vpop.xlane.xlu0 %2425
    %v2427 = vsel %vm2104, %v2423, -inf
    %2428 = vmax.xlane.f32.xlu0 %v2427
    %v2429 = vpop.xlane.xlu0 %2428
    %v2430 = vsub.f32 %v2422, %v2426
    %v2431 = vsub.f32 %v2423, %v2429
    %v2432 = vmul.f32 %v2430, 1.442695
    %v2433 = vpow.pop %v2432
    %v2434 = vmul.f32 %v2431, 1.442695
    %v2435 = vpow.pop %v2434
    %v2436 = vsel %vm2104, %v2433, 0.0
    %2437 = vadd.xlane.f32.xlu0 %v2436
    %v2438 = vpop.xlane.xlu0 %2437
    %v2439 = vsel %vm2104, %v2435, 0.0
    %2440 = vadd.xlane.f32.xlu0 %v2439
    %v2441 = vpop.xlane.xlu0 %2440
    %v2442 = vrcp.pop %v2438
    %v2443 = vrcp.pop %v2441
    %v2444 = vmul.f32 %v2433, %v2442
    %v2445 = vmul.f32 %v2435, %v2443
    %v2446 = vpack.c.bf16 %v2445, %v2444
    %v2449 = vunpack.c.l.b16 %v2046
    %v2450 = vunpack.c.l.b16 %v2051
    %v2451 = vpack.c.b16 %v2450, %v2449
    %v2454 = vsel %vm2104, %v2446, 0
    %2456 = vmatpush.bf16.msra.mxu0 0
    %2457 = vmatpush.bf16.msra.mxu0 0
    %2458 = vmatpush.bf16.msra.mxu0 0
    %2459 = vmatpush.bf16.msra.mxu0 0
    %2460 = vmatpush.bf16.msra.mxu0 0
    %2461 = vmatpush.bf16.msra.mxu0 0
    %2462 = vmatpush.bf16.msra.mxu0 0
    %2463 = vmatpush.bf16.msra.mxu0 %v2451
    %2464 = vmatmul.bf16.gmra.mxu0 %v2454
    %v2465 = vpop.f32.mrf.mxu0
    %v2466 = vadd.f32 0.0, %v2465
    %v2467 = vpop.f32.mrf.mxu0
    %v2468 = vadd.f32 0.0, %v2467
    %2469 = vdwg.mxu0
    %2470 = vst.msk [vmem:[#allocation2 + $0x10] sm:$0xff] %vm2079, %v2466
    %2471 = vst.msk [vmem:[#allocation2 + $0x28] sm:$0xff] %vm2079, %v2468
    %2472 = vrot.lane.b32.xlu0 %v2396, 64
    %v2473 = vpop.permute.xlu0 %2472
    %2474 = vrot.lane.b32.xlu0 %v2399, 64
    %v2475 = vpop.permute.xlu0 %2474
    %v2477 = vsel %vm2079, %v2473, 0
    %v2480 = vsel %vm2079, %v2475, 0
    %2482 = vmatpush.bf16.xpose.msra.mxu0 0
    %2483 = vmatpush.bf16.xpose.msra.mxu0 0
    %2484 = vmatpush.bf16.xpose.msra.mxu0 0
    %2485 = vmatpush.bf16.xpose.msra.mxu0 0
    %2486 = vmatpush.bf16.xpose.msra.mxu0 0
    %2487 = vmatpush.bf16.xpose.msra.mxu0 0
    %2488 = vmatpush.bf16.xpose.msra.mxu0 0
    %2489 = vmatpush.bf16.xpose.msra.mxu0 %v2480
    %2490 = vmatmul.bf16.gmra.mxu0 %v2477
    %v2491 = vpop.f32.mrf.mxu0
    %v2492 = vadd.f32 0.0, %v2491
    %v2493 = vpop.f32.mrf.mxu0
    %v2494 = vadd.f32 0.0, %v2493
    %2495 = vdwg.mxu0
    %v2496 = vmul.f32 %v2492, 0.125
    %v2497 = vmul.f32 %v2494, 0.125
    %v2498 = vadd.f32 %v2496, %v2067
    %v2499 = vadd.f32 %v2497, %v2068
    %v2500 = vsel %vm2104, %v2498, -inf
    %2501 = vmax.xlane.f32.xlu0 %v2500
    %v2502 = vpop.xlane.xlu0 %2501
    %v2503 = vsel %vm2104, %v2499, -inf
    %2504 = vmax.xlane.f32.xlu0 %v2503
    %v2505 = vpop.xlane.xlu0 %2504
    %v2506 = vsub.f32 %v2498, %v2502
    %v2507 = vsub.f32 %v2499, %v2505
    %v2508 = vmul.f32 %v2506, 1.442695
    %v2509 = vpow.pop %v2508
    %v2510 = vmul.f32 %v2507, 1.442695
    %v2511 = vpow.pop %v2510
    %v2512 = vsel %vm2104, %v2509, 0.0
    %2513 = vadd.xlane.f32.xlu0 %v2512
    %v2514 = vpop.xlane.xlu0 %2513
    %v2515 = vsel %vm2104, %v2511, 0.0
    %2516 = vadd.xlane.f32.xlu0 %v2515
    %v2517 = vpop.xlane.xlu0 %2516
    %v2518 = vrcp.pop %v2514
    %v2519 = vrcp.pop %v2517
    %v2520 = vmul.f32 %v2509, %v2518
    %v2521 = vmul.f32 %v2511, %v2519
    %v2522 = vpack.c.bf16 %v2521, %v2520
    %2523 = vrot.lane.b32.xlu0 %v2451, 64
    %v2524 = vpop.permute.xlu0 %2523
    %v2527 = vsel %vm2104, %v2522, 0
    %2529 = vmatpush.bf16.msra.mxu0 0
    %2530 = vmatpush.bf16.msra.mxu0 0
    %2531 = vmatpush.bf16.msra.mxu0 0
    %2532 = vmatpush.bf16.msra.mxu0 0
    %2533 = vmatpush.bf16.msra.mxu0 0
    %2534 = vmatpush.bf16.msra.mxu0 0
    %2535 = vmatpush.bf16.msra.mxu0 0
    %2536 = vmatpush.bf16.msra.mxu0 %v2524
    %2537 = vmatmul.bf16.gmra.mxu0 %v2527
    %v2538 = vpop.f32.mrf.mxu0
    %v2539 = vadd.f32 0.0, %v2538
    %v2540 = vpop.f32.mrf.mxu0
    %v2541 = vadd.f32 0.0, %v2540
    %2542 = vdwg.mxu0
    %2545 = vrot.lane.b32.xlu0 %v2539, 64
    %v2546 = vpop.permute.xlu0 %2545
    %2547 = vrot.lane.b32.xlu0 %v2541, 64
    %v2548 = vpop.permute.xlu0 %2547
    %2551 = vst.msk [vmem:[#allocation2 + $0x10] sm:$0xff] %vm2232, %v2546
    %2552 = vst.msk [vmem:[#allocation2 + $0x28] sm:$0xff] %vm2232, %v2548
    %v2553 = vld [vmem:[#allocation2] sm:$0xff]
    %v2554 = vld [vmem:[#allocation2 + $0x8] sm:$0xff]
    %v2555 = vld [vmem:[#allocation2 + $0x10] sm:$0xff]
    %v2556 = vld [vmem:[#allocation2 + $0x18] sm:$0xff]
    %v2557 = vld [vmem:[#allocation2 + $0x20] sm:$0xff]
    %v2558 = vld [vmem:[#allocation2 + $0x28] sm:$0xff]
    %v2559 = vpack.c.bf16 %v2556, %v2553
    %v2560 = vpack.c.bf16 %v2557, %v2554
    %v2561 = vpack.c.bf16 %v2558, %v2555
    %v2562 = vld [vmem:[#allocation11] sm:$0xff]
    %v2563 = vld [vmem:[#allocation11 + $0x8] sm:$0xf]
    %v2564 = vld [vmem:[#allocation11 + $0xc] sm:$0xff]
    %v2565 = vld [vmem:[#allocation11 + $0x14] sm:$0xf]
    %v2566 = vld [vmem:[#allocation11 + $0x18] sm:$0xff]
    %v2567 = vld [vmem:[#allocation11 + $0x20] sm:$0xf]
    %v2568 = vld [vmem:[#allocation11 + $0x24] sm:$0xff]
    %v2569 = vld [vmem:[#allocation11 + $0x2c] sm:$0xf]
    %v2570 = vld [vmem:[#allocation11 + $0x30] sm:$0xff]
    %v2571 = vld [vmem:[#allocation11 + $0x38] sm:$0xf]
    %v2572 = vld [vmem:[#allocation11 + $0x3c] sm:$0xff]
    %v2573 = vld [vmem:[#allocation11 + $0x44] sm:$0xf]
    %v2574 = vld [vmem:[#allocation11 + $0x48] sm:$0xff]
    %v2575 = vld [vmem:[#allocation11 + $0x50] sm:$0xf]
    %v2576 = vld [vmem:[#allocation11 + $0x54] sm:$0xff]
    %v2577 = vld [vmem:[#allocation11 + $0x5c] sm:$0xf]
    %v2578 = vld [vmem:[#allocation11 + $0x60] sm:$0xff]
    %v2579 = vld [vmem:[#allocation11 + $0x68] sm:$0xf]
    %v2580 = vld [vmem:[#allocation11 + $0x6c] sm:$0xff]
    %v2581 = vld [vmem:[#allocation11 + $0x74] sm:$0xf]
    %v2582 = vld [vmem:[#allocation11 + $0x78] sm:$0xff]
    %v2583 = vld [vmem:[#allocation11 + $0x80] sm:$0xf]
    %v2584 = vld [vmem:[#allocation11 + $0x84] sm:$0xff]
    %v2585 = vld [vmem:[#allocation11 + $0x8c] sm:$0xf]
    %v2586 = vld [vmem:[#allocation11 + $0x90] sm:$0xff]
    %v2587 = vld [vmem:[#allocation11 + $0x98] sm:$0xf]
    %v2588 = vld [vmem:[#allocation11 + $0x9c] sm:$0xff]
    %v2589 = vld [vmem:[#allocation11 + $0xa4] sm:$0xf]
    %v2590 = vld [vmem:[#allocation11 + $0xa8] sm:$0xff]
    %v2591 = vld [vmem:[#allocation11 + $0xb0] sm:$0xf]
    %v2592 = vld [vmem:[#allocation11 + $0xb4] sm:$0xff]
    %v2593 = vld [vmem:[#allocation11 + $0xbc] sm:$0xf]
    %v2594 = vld [vmem:[#allocation11 + $0xc0] sm:$0xff]
    %v2595 = vld [vmem:[#allocation11 + $0xc8] sm:$0xf]
    %v2596 = vld [vmem:[#allocation11 + $0xcc] sm:$0xff]
    %v2597 = vld [vmem:[#allocation11 + $0xd4] sm:$0xf]
    %v2598 = vld [vmem:[#allocation11 + $0xd8] sm:$0xff]
    %v2599 = vld [vmem:[#allocation11 + $0xe0] sm:$0xf]
    %v2600 = vld [vmem:[#allocation11 + $0xe4] sm:$0xff]
    %v2601 = vld [vmem:[#allocation11 + $0xec] sm:$0xf]
    %v2602 = vld [vmem:[#allocation11 + $0xf0] sm:$0xff]
    %v2603 = vld [vmem:[#allocation11 + $0xf8] sm:$0xf]
    %v2604 = vld [vmem:[#allocation11 + $0xfc] sm:$0xff]
    %v2605 = vld [vmem:[#allocation11 + $0x104] sm:$0xf]
    %v2606 = vld [vmem:[#allocation11 + $0x108] sm:$0xff]
    %v2607 = vld [vmem:[#allocation11 + $0x110] sm:$0xf]
    %v2608 = vld [vmem:[#allocation11 + $0x114] sm:$0xff]
    %v2609 = vld [vmem:[#allocation11 + $0x11c] sm:$0xf]
    %v2610 = vld [vmem:[#allocation11 + $0x120] sm:$0xff]
    %v2611 = vld [vmem:[#allocation11 + $0x128] sm:$0xf]
    %v2612 = vld [vmem:[#allocation11 + $0x12c] sm:$0xff]
    %v2613 = vld [vmem:[#allocation11 + $0x134] sm:$0xf]
    %v2614 = vld [vmem:[#allocation11 + $0x138] sm:$0xff]
    %v2615 = vld [vmem:[#allocation11 + $0x140] sm:$0xf]
    %v2616 = vld [vmem:[#allocation11 + $0x144] sm:$0xff]
    %v2617 = vld [vmem:[#allocation11 + $0x14c] sm:$0xf]
    %v2618 = vld [vmem:[#allocation11 + $0x150] sm:$0xff]
    %v2619 = vld [vmem:[#allocation11 + $0x158] sm:$0xf]
    %v2620 = vld [vmem:[#allocation11 + $0x15c] sm:$0xff]
    %v2621 = vld [vmem:[#allocation11 + $0x164] sm:$0xf]
    %v2622 = vld [vmem:[#allocation11 + $0x168] sm:$0xff]
    %v2623 = vld [vmem:[#allocation11 + $0x170] sm:$0xf]
    %v2624 = vld [vmem:[#allocation11 + $0x174] sm:$0xff]
    %v2625 = vld [vmem:[#allocation11 + $0x17c] sm:$0xf]
    %v2626 = vld [vmem:[#allocation11 + $0x180] sm:$0xff]
    %v2627 = vld [vmem:[#allocation11 + $0x188] sm:$0xf]
    %v2628 = vld [vmem:[#allocation11 + $0x18c] sm:$0xff]
    %v2629 = vld [vmem:[#allocation11 + $0x194] sm:$0xf]
    %v2630 = vld [vmem:[#allocation11 + $0x198] sm:$0xff]
    %v2631 = vld [vmem:[#allocation11 + $0x1a0] sm:$0xf]
    %v2632 = vld [vmem:[#allocation11 + $0x1a4] sm:$0xff]
    %v2633 = vld [vmem:[#allocation11 + $0x1ac] sm:$0xf]
    %v2634 = vld [vmem:[#allocation11 + $0x1b0] sm:$0xff]
    %v2635 = vld [vmem:[#allocation11 + $0x1b8] sm:$0xf]
    %v2636 = vld [vmem:[#allocation11 + $0x1bc] sm:$0xff]
    %v2637 = vld [vmem:[#allocation11 + $0x1c4] sm:$0xf]
    %v2638 = vld [vmem:[#allocation11 + $0x1c8] sm:$0xff]
    %v2639 = vld [vmem:[#allocation11 + $0x1d0] sm:$0xf]
    %v2640 = vld [vmem:[#allocation11 + $0x1d4] sm:$0xff]
    %v2641 = vld [vmem:[#allocation11 + $0x1dc] sm:$0xf]
    %v2642 = vld [vmem:[#allocation11 + $0x1e0] sm:$0xff]
    %v2643 = vld [vmem:[#allocation11 + $0x1e8] sm:$0xf]
    %v2644 = vld [vmem:[#allocation11 + $0x1ec] sm:$0xff]
    %v2645 = vld [vmem:[#allocation11 + $0x1f4] sm:$0xf]
    %v2646 = vld [vmem:[#allocation11 + $0x1f8] sm:$0xff]
    %v2647 = vld [vmem:[#allocation11 + $0x200] sm:$0xf]
    %v2648 = vld [vmem:[#allocation11 + $0x204] sm:$0xff]
    %v2649 = vld [vmem:[#allocation11 + $0x20c] sm:$0xf]
    %v2650 = vld [vmem:[#allocation11 + $0x210] sm:$0xff]
    %v2651 = vld [vmem:[#allocation11 + $0x218] sm:$0xf]
    %v2652 = vld [vmem:[#allocation11 + $0x21c] sm:$0xff]
    %v2653 = vld [vmem:[#allocation11 + $0x224] sm:$0xf]
    %v2654 = vld [vmem:[#allocation11 + $0x228] sm:$0xff]
    %v2655 = vld [vmem:[#allocation11 + $0x230] sm:$0xf]
    %v2656 = vld [vmem:[#allocation11 + $0x234] sm:$0xff]
    %v2657 = vld [vmem:[#allocation11 + $0x23c] sm:$0xf]
    %v2658 = vld [vmem:[#allocation12] sm:$0x7]
    %v2660 = vperm.slane %v2658, 0
    %v2661 = vperm.slane %v2658, 1
    %v2662 = vperm.slane %v2658, 2
    %v2762 = vunpack.c.l.b16 %v2562
    %v2763 = vunpack.c.h.b16 %v2562
    %v2764 = vunpack.c.l.b16 %v2563
    %v2765 = vunpack.c.l.b16 %v2564
    %v2766 = vunpack.c.h.b16 %v2564
    %v2767 = vunpack.c.l.b16 %v2565
    %v2768 = vunpack.c.l.b16 %v2566
    %v2769 = vunpack.c.h.b16 %v2566
    %v2770 = vunpack.c.l.b16 %v2567
    %v2771 = vunpack.c.l.b16 %v2568
    %v2772 = vunpack.c.h.b16 %v2568
    %v2773 = vunpack.c.l.b16 %v2569
    %v2774 = vunpack.c.l.b16 %v2570
    %v2775 = vunpack.c.h.b16 %v2570
    %v2776 = vunpack.c.l.b16 %v2571
    %v2777 = vunpack.c.l.b16 %v2572
    %v2778 = vunpack.c.h.b16 %v2572
    %v2779 = vunpack.c.l.b16 %v2573
    %v2780 = vunpack.c.l.b16 %v2574
    %v2781 = vunpack.c.h.b16 %v2574
    %v2782 = vunpack.c.l.b16 %v2575
    %v2783 = vunpack.c.l.b16 %v2576
    %v2784 = vunpack.c.h.b16 %v2576
    %v2785 = vunpack.c.l.b16 %v2577
    %v2786 = vunpack.c.l.b16 %v2578
    %v2787 = vunpack.c.h.b16 %v2578
    %v2788 = vunpack.c.l.b16 %v2579
    %v2789 = vunpack.c.l.b16 %v2580
    %v2790 = vunpack.c.h.b16 %v2580
    %v2791 = vunpack.c.l.b16 %v2581
    %v2792 = vunpack.c.l.b16 %v2582
    %v2793 = vunpack.c.h.b16 %v2582
    %v2794 = vunpack.c.l.b16 %v2583
    %v2795 = vunpack.c.l.b16 %v2584
    %v2796 = vunpack.c.h.b16 %v2584
    %v2797 = vunpack.c.l.b16 %v2585
    %v2798 = vunpack.c.l.b16 %v2586
    %v2799 = vunpack.c.h.b16 %v2586
    %v2800 = vunpack.c.l.b16 %v2587
    %v2801 = vunpack.c.l.b16 %v2588
    %v2802 = vunpack.c.h.b16 %v2588
    %v2803 = vunpack.c.l.b16 %v2589
    %v2804 = vunpack.c.l.b16 %v2590
    %v2805 = vunpack.c.h.b16 %v2590
    %v2806 = vunpack.c.l.b16 %v2591
    %v2807 = vunpack.c.l.b16 %v2592
    %v2808 = vunpack.c.h.b16 %v2592
    %v2809 = vunpack.c.l.b16 %v2593
    %v2810 = vunpack.c.l.b16 %v2594
    %v2811 = vunpack.c.h.b16 %v2594
    %v2812 = vunpack.c.l.b16 %v2595
    %v2813 = vunpack.c.l.b16 %v2596
    %v2814 = vunpack.c.h.b16 %v2596
    %v2815 = vunpack.c.l.b16 %v2597
    %v2816 = vunpack.c.l.b16 %v2598
    %v2817 = vunpack.c.h.b16 %v2598
    %v2818 = vunpack.c.l.b16 %v2599
    %v2819 = vunpack.c.l.b16 %v2600
    %v2820 = vunpack.c.h.b16 %v2600
    %v2821 = vunpack.c.l.b16 %v2601
    %v2822 = vunpack.c.l.b16 %v2602
    %v2823 = vunpack.c.h.b16 %v2602
    %v2824 = vunpack.c.l.b16 %v2603
    %v2825 = vunpack.c.l.b16 %v2604
    %v2826 = vunpack.c.h.b16 %v2604
    %v2827 = vunpack.c.l.b16 %v2605
    %v2828 = vunpack.c.l.b16 %v2606
    %v2829 = vunpack.c.h.b16 %v2606
    %v2830 = vunpack.c.l.b16 %v2607
    %v2831 = vunpack.c.l.b16 %v2608
    %v2832 = vunpack.c.h.b16 %v2608
    %v2833 = vunpack.c.l.b16 %v2609
    %v2834 = vunpack.c.l.b16 %v2610
    %v2835 = vunpack.c.h.b16 %v2610
    %v2836 = vunpack.c.l.b16 %v2611
    %v2837 = vunpack.c.l.b16 %v2612
    %v2838 = vunpack.c.h.b16 %v2612
    %v2839 = vunpack.c.l.b16 %v2613
    %v2840 = vunpack.c.l.b16 %v2614
    %v2841 = vunpack.c.h.b16 %v2614
    %v2842 = vunpack.c.l.b16 %v2615
    %v2843 = vunpack.c.l.b16 %v2616
    %v2844 = vunpack.c.h.b16 %v2616
    %v2845 = vunpack.c.l.b16 %v2617
    %v2846 = vunpack.c.l.b16 %v2618
    %v2847 = vunpack.c.h.b16 %v2618
    %v2848 = vunpack.c.l.b16 %v2619
    %v2849 = vunpack.c.l.b16 %v2620
    %v2850 = vunpack.c.h.b16 %v2620
    %v2851 = vunpack.c.l.b16 %v2621
    %v2852 = vunpack.c.l.b16 %v2622
    %v2853 = vunpack.c.h.b16 %v2622
    %v2854 = vunpack.c.l.b16 %v2623
    %v2855 = vunpack.c.l.b16 %v2624
    %v2856 = vunpack.c.h.b16 %v2624
    %v2857 = vunpack.c.l.b16 %v2625
    %v2858 = vunpack.c.l.b16 %v2626
    %v2859 = vunpack.c.h.b16 %v2626
    %v2860 = vunpack.c.l.b16 %v2627
    %v2861 = vunpack.c.l.b16 %v2628
    %v2862 = vunpack.c.h.b16 %v2628
    %v2863 = vunpack.c.l.b16 %v2629
    %v2864 = vunpack.c.l.b16 %v2630
    %v2865 = vunpack.c.h.b16 %v2630
    %v2866 = vunpack.c.l.b16 %v2631
    %v2867 = vunpack.c.l.b16 %v2632
    %v2868 = vunpack.c.h.b16 %v2632
    %v2869 = vunpack.c.l.b16 %v2633
    %v2870 = vunpack.c.l.b16 %v2634
    %v2871 = vunpack.c.h.b16 %v2634
    %v2872 = vunpack.c.l.b16 %v2635
    %v2873 = vunpack.c.l.b16 %v2636
    %v2874 = vunpack.c.h.b16 %v2636
    %v2875 = vunpack.c.l.b16 %v2637
    %v2876 = vunpack.c.l.b16 %v2638
    %v2877 = vunpack.c.h.b16 %v2638
    %v2878 = vunpack.c.l.b16 %v2639
    %v2879 = vunpack.c.l.b16 %v2640
    %v2880 = vunpack.c.h.b16 %v2640
    %v2881 = vunpack.c.l.b16 %v2641
    %v2882 = vunpack.c.l.b16 %v2642
    %v2883 = vunpack.c.h.b16 %v2642
    %v2884 = vunpack.c.l.b16 %v2643
    %v2885 = vunpack.c.l.b16 %v2644
    %v2886 = vunpack.c.h.b16 %v2644
    %v2887 = vunpack.c.l.b16 %v2645
    %v2888 = vunpack.c.l.b16 %v2646
    %v2889 = vunpack.c.h.b16 %v2646
    %v2890 = vunpack.c.l.b16 %v2647
    %v2891 = vunpack.c.l.b16 %v2648
    %v2892 = vunpack.c.h.b16 %v2648
    %v2893 = vunpack.c.l.b16 %v2649
    %v2894 = vunpack.c.l.b16 %v2650
    %v2895 = vunpack.c.h.b16 %v2650
    %v2896 = vunpack.c.l.b16 %v2651
    %v2897 = vunpack.c.l.b16 %v2652
    %v2898 = vunpack.c.h.b16 %v2652
    %v2899 = vunpack.c.l.b16 %v2653
    %v2900 = vunpack.c.l.b16 %v2654
    %v2901 = vunpack.c.h.b16 %v2654
    %v2902 = vunpack.c.l.b16 %v2655
    %v2903 = vunpack.c.l.b16 %v2656
    %v2904 = vunpack.c.h.b16 %v2656
    %v2905 = vunpack.c.l.b16 %v2657
    %v2906 = vpack.c.b16 %v2765, %v2762
    %v2907 = vpack.c.b16 %v2766, %v2763
    %v2908 = vpack.c.b16 %v2767, %v2764
    %v2909 = vpack.c.b16 %v2771, %v2768
    %v2910 = vpack.c.b16 %v2772, %v2769
    %v2911 = vpack.c.b16 %v2773, %v2770
    %v2912 = vpack.c.b16 %v2777, %v2774
    %v2913 = vpack.c.b16 %v2778, %v2775
    %v2914 = vpack.c.b16 %v2779, %v2776
    %v2915 = vpack.c.b16 %v2783, %v2780
    %v2916 = vpack.c.b16 %v2784, %v2781
    %v2917 = vpack.c.b16 %v2785, %v2782
    %v2918 = vpack.c.b16 %v2789, %v2786
    %v2919 = vpack.c.b16 %v2790, %v2787
    %v2920 = vpack.c.b16 %v2791, %v2788
    %v2921 = vpack.c.b16 %v2795, %v2792
    %v2922 = vpack.c.b16 %v2796, %v2793
    %v2923 = vpack.c.b16 %v2797, %v2794
    %v2924 = vpack.c.b16 %v2801, %v2798
    %v2925 = vpack.c.b16 %v2802, %v2799
    %v2926 = vpack.c.b16 %v2803, %v2800
    %v2927 = vpack.c.b16 %v2807, %v2804
    %v2928 = vpack.c.b16 %v2808, %v2805
    %v2929 = vpack.c.b16 %v2809, %v2806
    %v2930 = vpack.c.b16 %v2813, %v2810
    %v2931 = vpack.c.b16 %v2814, %v2811
    %v2932 = vpack.c.b16 %v2815, %v2812
    %v2933 = vpack.c.b16 %v2819, %v2816
    %v2934 = vpack.c.b16 %v2820, %v2817
    %v2935 = vpack.c.b16 %v2821, %v2818
    %v2936 = vpack.c.b16 %v2825, %v2822
    %v2937 = vpack.c.b16 %v2826, %v2823
    %v2938 = vpack.c.b16 %v2827, %v2824
    %v2939 = vpack.c.b16 %v2831, %v2828
    %v2940 = vpack.c.b16 %v2832, %v2829
    %v2941 = vpack.c.b16 %v2833, %v2830
    %v2942 = vpack.c.b16 %v2837, %v2834
    %v2943 = vpack.c.b16 %v2838, %v2835
    %v2944 = vpack.c.b16 %v2839, %v2836
    %v2945 = vpack.c.b16 %v2843, %v2840
    %v2946 = vpack.c.b16 %v2844, %v2841
    %v2947 = vpack.c.b16 %v2845, %v2842
    %v2948 = vpack.c.b16 %v2849, %v2846
    %v2949 = vpack.c.b16 %v2850, %v2847
    %v2950 = vpack.c.b16 %v2851, %v2848
    %v2951 = vpack.c.b16 %v2855, %v2852
    %v2952 = vpack.c.b16 %v2856, %v2853
    %v2953 = vpack.c.b16 %v2857, %v2854
    %v2954 = vpack.c.b16 %v2861, %v2858
    %v2955 = vpack.c.b16 %v2862, %v2859
    %v2956 = vpack.c.b16 %v2863, %v2860
    %v2957 = vpack.c.b16 %v2867, %v2864
    %v2958 = vpack.c.b16 %v2868, %v2865
    %v2959 = vpack.c.b16 %v2869, %v2866
    %v2960 = vpack.c.b16 %v2873, %v2870
    %v2961 = vpack.c.b16 %v2874, %v2871
    %v2962 = vpack.c.b16 %v2875, %v2872
    %v2963 = vpack.c.b16 %v2879, %v2876
    %v2964 = vpack.c.b16 %v2880, %v2877
    %v2965 = vpack.c.b16 %v2881, %v2878
    %v2966 = vpack.c.b16 %v2885, %v2882
    %v2967 = vpack.c.b16 %v2886, %v2883
    %v2968 = vpack.c.b16 %v2887, %v2884
    %v2969 = vpack.c.b16 %v2891, %v2888
    %v2970 = vpack.c.b16 %v2892, %v2889
    %v2971 = vpack.c.b16 %v2893, %v2890
    %v2972 = vpack.c.b16 %v2897, %v2894
    %v2973 = vpack.c.b16 %v2898, %v2895
    %v2974 = vpack.c.b16 %v2899, %v2896
    %v2975 = vpack.c.b16 %v2903, %v2900
    %v2976 = vpack.c.b16 %v2904, %v2901
    %v2977 = vpack.c.b16 %v2905, %v2902
    %3050 = vmatpush.bf16.msra.mxu0 %v2927
    %3051 = vmatpush.bf16.msra.mxu0 %v2924
    %3052 = vmatpush.bf16.msra.mxu0 %v2921
    %3053 = vmatpush.bf16.msra.mxu0 %v2918
    %3054 = vmatpush.bf16.msra.mxu0 %v2915
    %3055 = vmatpush.bf16.msra.mxu0 %v2912
    %3056 = vmatpush.bf16.msra.mxu0 %v2909
    %3057 = vmatpush.bf16.msra.mxu0 %v2906
    %3058 = vmatmul.bf16.gmra.mxu0 %v2559
    %v3059 = vpop.f32.mrf.mxu0
    %v3060 = vadd.f32 %v2660, %v3059
    %v3061 = vpop.f32.mrf.mxu0
    %v3062 = vadd.f32 %v2660, %v3061
    %3063 = vdwg.mxu0
    %3064 = vmatpush.bf16.msra.mxu0 %v2951
    %3065 = vmatpush.bf16.msra.mxu0 %v2948
    %3066 = vmatpush.bf16.msra.mxu0 %v2945
    %3067 = vmatpush.bf16.msra.mxu0 %v2942
    %3068 = vmatpush.bf16.msra.mxu0 %v2939
    %3069 = vmatpush.bf16.msra.mxu0 %v2936
    %3070 = vmatpush.bf16.msra.mxu0 %v2933
    %3071 = vmatpush.bf16.msra.mxu0 %v2930
    %3072 = vmatmul.bf16.gmra.mxu0 %v2560
    %v3073 = vpop.f32.mrf.mxu0
    %v3074 = vadd.f32 %v3060, %v3073
    %v3075 = vpop.f32.mrf.mxu0
    %v3076 = vadd.f32 %v3062, %v3075
    %3077 = vdwg.mxu0
    %3078 = vmatpush.bf16.msra.mxu0 %v2975
    %3079 = vmatpush.bf16.msra.mxu0 %v2972
    %3080 = vmatpush.bf16.msra.mxu0 %v2969
    %3081 = vmatpush.bf16.msra.mxu0 %v2966
    %3082 = vmatpush.bf16.msra.mxu0 %v2963
    %3083 = vmatpush.bf16.msra.mxu0 %v2960
    %3084 = vmatpush.bf16.msra.mxu0 %v2957
    %3085 = vmatpush.bf16.msra.mxu0 %v2954
    %3086 = vmatmul.bf16.gmra.mxu0 %v2561
    %v3087 = vpop.f32.mrf.mxu0
    %v3088 = vadd.f32 %v3074, %v3087
    %v3089 = vpop.f32.mrf.mxu0
    %v3090 = vadd.f32 %v3076, %v3089
    %3091 = vdwg.mxu0
    %3092 = vmatpush.bf16.msra.mxu0 %v2928
    %3093 = vmatpush.bf16.msra.mxu0 %v2925
    %3094 = vmatpush.bf16.msra.mxu0 %v2922
    %3095 = vmatpush.bf16.msra.mxu0 %v2919
    %3096 = vmatpush.bf16.msra.mxu0 %v2916
    %3097 = vmatpush.bf16.msra.mxu0 %v2913
    %3098 = vmatpush.bf16.msra.mxu0 %v2910
    %3099 = vmatpush.bf16.msra.mxu0 %v2907
    %3100 = vmatmul.bf16.gmra.mxu0 %v2559
    %v3101 = vpop.f32.mrf.mxu0
    %v3102 = vadd.f32 %v2661, %v3101
    %v3103 = vpop.f32.mrf.mxu0
    %v3104 = vadd.f32 %v2661, %v3103
    %3105 = vdwg.mxu0
    %3106 = vmatpush.bf16.msra.mxu0 %v2952
    %3107 = vmatpush.bf16.msra.mxu0 %v2949
    %3108 = vmatpush.bf16.msra.mxu0 %v2946
    %3109 = vmatpush.bf16.msra.mxu0 %v2943
    %3110 = vmatpush.bf16.msra.mxu0 %v2940
    %3111 = vmatpush.bf16.msra.mxu0 %v2937
    %3112 = vmatpush.bf16.msra.mxu0 %v2934
    %3113 = vmatpush.bf16.msra.mxu0 %v2931
    %3114 = vmatmul.bf16.gmra.mxu0 %v2560
    %v3115 = vpop.f32.mrf.mxu0
    %v3116 = vadd.f32 %v3102, %v3115
    %v3117 = vpop.f32.mrf.mxu0
    %v3118 = vadd.f32 %v3104, %v3117
    %3119 = vdwg.mxu0
    %3120 = vmatpush.bf16.msra.mxu0 %v2976
    %3121 = vmatpush.bf16.msra.mxu0 %v2973
    %3122 = vmatpush.bf16.msra.mxu0 %v2970
    %3123 = vmatpush.bf16.msra.mxu0 %v2967
    %3124 = vmatpush.bf16.msra.mxu0 %v2964
    %3125 = vmatpush.bf16.msra.mxu0 %v2961
    %3126 = vmatpush.bf16.msra.mxu0 %v2958
    %3127 = vmatpush.bf16.msra.mxu0 %v2955
    %3128 = vmatmul.bf16.gmra.mxu0 %v2561
    %v3129 = vpop.f32.mrf.mxu0
    %v3130 = vadd.f32 %v3116, %v3129
    %v3131 = vpop.f32.mrf.mxu0
    %v3132 = vadd.f32 %v3118, %v3131
    %3133 = vdwg.mxu0
    %3134 = vmatpush.bf16.msra.mxu0 %v2929
    %3135 = vmatpush.bf16.msra.mxu0 %v2926
    %3136 = vmatpush.bf16.msra.mxu0 %v2923
    %3137 = vmatpush.bf16.msra.mxu0 %v2920
    %3138 = vmatpush.bf16.msra.mxu0 %v2917
    %3139 = vmatpush.bf16.msra.mxu0 %v2914
    %3140 = vmatpush.bf16.msra.mxu0 %v2911
    %3141 = vmatpush.bf16.msra.mxu0 %v2908
    %3142 = vmatmul.bf16.gmra.mxu0 %v2559
    %v3143 = vpop.f32.mrf.mxu0
    %v3144 = vadd.f32 %v2662, %v3143
    %v3145 = vpop.f32.mrf.mxu0
    %v3146 = vadd.f32 %v2662, %v3145
    %3147 = vdwg.mxu0
    %3148 = vmatpush.bf16.msra.mxu0 %v2953
    %3149 = vmatpush.bf16.msra.mxu0 %v2950
    %3150 = vmatpush.bf16.msra.mxu0 %v2947
    %3151 = vmatpush.bf16.msra.mxu0 %v2944
    %3152 = vmatpush.bf16.msra.mxu0 %v2941
    %3153 = vmatpush.bf16.msra.mxu0 %v2938
    %3154 = vmatpush.bf16.msra.mxu0 %v2935
    %3155 = vmatpush.bf16.msra.mxu0 %v2932
    %3156 = vmatmul.bf16.gmra.mxu0 %v2560
    %v3157 = vpop.f32.mrf.mxu0
    %v3158 = vadd.f32 %v3144, %v3157
    %v3159 = vpop.f32.mrf.mxu0
    %v3160 = vadd.f32 %v3146, %v3159
    %3161 = vdwg.mxu0
    %3162 = vmatpush.bf16.msra.mxu0 %v2977
    %3163 = vmatpush.bf16.msra.mxu0 %v2974
    %3164 = vmatpush.bf16.msra.mxu0 %v2971
    %3165 = vmatpush.bf16.msra.mxu0 %v2968
    %3166 = vmatpush.bf16.msra.mxu0 %v2965
    %3167 = vmatpush.bf16.msra.mxu0 %v2962
    %3168 = vmatpush.bf16.msra.mxu0 %v2959
    %3169 = vmatpush.bf16.msra.mxu0 %v2956
    %3170 = vmatmul.bf16.gmra.mxu0 %v2561
    %v3171 = vpop.f32.mrf.mxu0
    %v3172 = vadd.f32 %v3158, %v3171
    %v3173 = vpop.f32.mrf.mxu0
    %v3174 = vadd.f32 %v3160, %v3173
    %3175 = vdwg.mxu0
    %v3176 = vadd.f32 %v216, %v3088
    %v3177 = vadd.f32 %v217, %v3130
    %v3178 = vadd.f32 %v218, %v3172
    %v3179 = vadd.f32 %v219, %v3090
    %v3180 = vadd.f32 %v220, %v3132
    %v3181 = vadd.f32 %v221, %v3174
    %v3182 = vld [vmem:[#allocation14] sm:$0x7]
    %v3183 = vld [vmem:[#allocation15] sm:$0x7]
    %v3184 = vadd.f32 %v3176, %v3177
    %v3185 = vadd.f32 %v3184, %v3178
    %3186 = vadd.xlane.f32.xlu0 %v3185
    %v3187 = vpop.xlane.xlu0 %3186
    %v3188 = vadd.f32 %v3179, %v3180
    %v3189 = vadd.f32 %v3188, %v3181
    %3190 = vadd.xlane.f32.xlu0 %v3189
    %v3191 = vpop.xlane.xlu0 %3190
    %v3192 = vmul.f32 %v3187, %v238
    %v3193 = vmul.f32 %v3191, %v238
    %v3194 = vsub.f32 %v3176, %v3192
    %v3195 = vsub.f32 %v3177, %v3192
    %v3196 = vsub.f32 %v3178, %v3192
    %v3197 = vsub.f32 %v3179, %v3193
    %v3198 = vsub.f32 %v3180, %v3193
    %v3199 = vsub.f32 %v3181, %v3193
    %v3200 = vmul.f32 %v3194, %v3194
    %v3201 = vmul.f32 %v3195, %v3195
    %v3202 = vmul.f32 %v3196, %v3196
    %v3203 = vmul.f32 %v3197, %v3197
    %v3204 = vmul.f32 %v3198, %v3198
    %v3205 = vmul.f32 %v3199, %v3199
    %v3206 = vadd.f32 %v3200, %v3201
    %v3207 = vadd.f32 %v3206, %v3202
    %3208 = vadd.xlane.f32.xlu0 %v3207
    %v3209 = vpop.xlane.xlu0 %3208
    %v3210 = vadd.f32 %v3203, %v3204
    %v3211 = vadd.f32 %v3210, %v3205
    %3212 = vadd.xlane.f32.xlu0 %v3211
    %v3213 = vpop.xlane.xlu0 %3212
    %v3214 = vmul.f32 %v3209, %v238
    %v3215 = vmul.f32 %v3213, %v238
    %v3216 = vadd.f32 %v3214, 1e-05
    %v3217 = vadd.f32 %v3215, 1e-05
    %v3218 = vrsqrt.pop %v3216
    %v3219 = vmul.f32 %v3218, %v3216
    %v3220 = vmul.f32 %v3219, %v3218
    %v3221 = vmul.f32 0.5, %v3220
    %v3222 = vsub.f32 1.5, %v3221
    %v3223 = vmul.f32 %v3218, %v3222
    %vm3224 = vweird.f32 %v3216
    %vm3225 = vweird.f32 %v3218
    %vm3226 = vmor %vm3224, %vm3225
    %v3227 = vsel %vm3226, %v3218, %v3223
    %v3228 = vrsqrt.pop %v3217
    %v3229 = vmul.f32 %v3228, %v3217
    %v3230 = vmul.f32 %v3229, %v3228
    %v3231 = vmul.f32 0.5, %v3230
    %v3232 = vsub.f32 1.5, %v3231
    %v3233 = vmul.f32 %v3228, %v3232
    %vm3234 = vweird.f32 %v3217
    %vm3235 = vweird.f32 %v3228
    %vm3236 = vmor %vm3234, %vm3235
    %v3237 = vsel %vm3236, %v3228, %v3233
    %v3238 = vmul.f32 %v3194, %v3227
    %v3239 = vmul.f32 %v3195, %v3227
    %v3240 = vmul.f32 %v3196, %v3227
    %v3241 = vmul.f32 %v3197, %v3237
    %v3242 = vmul.f32 %v3198, %v3237
    %v3243 = vmul.f32 %v3199, %v3237
    %v3245 = vperm.slane %v3182, 0
    %v3246 = vperm.slane %v3182, 1
    %v3247 = vperm.slane %v3182, 2
    %v3251 = vmul.f32 %v3238, %v3245
    %v3252 = vmul.f32 %v3239, %v3246
    %v3253 = vmul.f32 %v3240, %v3247
    %v3254 = vmul.f32 %v3241, %v3245
    %v3255 = vmul.f32 %v3242, %v3246
    %v3256 = vmul.f32 %v3243, %v3247
    %v3258 = vperm.slane %v3183, 0
    %v3259 = vperm.slane %v3183, 1
    %v3260 = vperm.slane %v3183, 2
    %v3264 = vadd.f32 %v3251, %v3258
    %v3265 = vadd.f32 %v3252, %v3259
    %v3266 = vadd.f32 %v3253, %v3260
    %v3267 = vadd.f32 %v3254, %v3258
    %v3268 = vadd.f32 %v3255, %v3259
    %v3269 = vadd.f32 %v3256, %v3260
    %v3270 = vpack.c.bf16 %v3267, %v3264
    %v3271 = vpack.c.bf16 %v3268, %v3265
    %v3272 = vpack.c.bf16 %v3269, %v3266
    %v3273 = vld [vmem:[#allocation17] sm:$0xff]
    %v3274 = vld [vmem:[#allocation17 + $0x8] sm:$0xff]
    %v3275 = vld [vmem:[#allocation17 + $0x10] sm:$0xff]
    %v3276 = vld [vmem:[#allocation17 + $0x18] sm:$0xff]
    %v3277 = vld [vmem:[#allocation17 + $0x20] sm:$0xff]
    %v3278 = vld [vmem:[#allocation17 + $0x28] sm:$0xff]
    %v3279 = vld [vmem:[#allocation17 + $0x30] sm:$0xff]
    %v3280 = vld [vmem:[#allocation17 + $0x38] sm:$0xff]
    %v3281 = vld [vmem:[#allocation17 + $0x40] sm:$0xff]
    %v3282 = vld [vmem:[#allocation17 + $0x48] sm:$0xff]
    %v3283 = vld [vmem:[#allocation17 + $0x50] sm:$0xff]
    %v3284 = vld [vmem:[#allocation17 + $0x58] sm:$0xff]
    %v3285 = vld [vmem:[#allocation17 + $0x60] sm:$0xff]
    %v3286 = vld [vmem:[#allocation17 + $0x68] sm:$0xff]
    %v3287 = vld [vmem:[#allocation17 + $0x70] sm:$0xff]
    %v3288 = vld [vmem:[#allocation17 + $0x78] sm:$0xff]
    %v3289 = vld [vmem:[#allocation17 + $0x80] sm:$0xff]
    %v3290 = vld [vmem:[#allocation17 + $0x88] sm:$0xff]
    %v3291 = vld [vmem:[#allocation17 + $0x90] sm:$0xff]
    %v3292 = vld [vmem:[#allocation17 + $0x98] sm:$0xff]
    %v3293 = vld [vmem:[#allocation17 + $0xa0] sm:$0xff]
    %v3294 = vld [vmem:[#allocation17 + $0xa8] sm:$0xff]
    %v3295 = vld [vmem:[#allocation17 + $0xb0] sm:$0xff]
    %v3296 = vld [vmem:[#allocation17 + $0xb8] sm:$0xff]
    %v3297 = vld [vmem:[#allocation17 + $0xc0] sm:$0xff]
    %v3298 = vld [vmem:[#allocation17 + $0xc8] sm:$0xff]
    %v3299 = vld [vmem:[#allocation17 + $0xd0] sm:$0xff]
    %v3300 = vld [vmem:[#allocation17 + $0xd8] sm:$0xff]
    %v3301 = vld [vmem:[#allocation17 + $0xe0] sm:$0xff]
    %v3302 = vld [vmem:[#allocation17 + $0xe8] sm:$0xff]
    %v3303 = vld [vmem:[#allocation17 + $0xf0] sm:$0xff]
    %v3304 = vld [vmem:[#allocation17 + $0xf8] sm:$0xff]
    %v3305 = vld [vmem:[#allocation17 + $0x100] sm:$0xff]
    %v3306 = vld [vmem:[#allocation17 + $0x108] sm:$0xff]
    %v3307 = vld [vmem:[#allocation17 + $0x110] sm:$0xff]
    %v3308 = vld [vmem:[#allocation17 + $0x118] sm:$0xff]
    %v3309 = vld [vmem:[#allocation17 + $0x120] sm:$0xff]
    %v3310 = vld [vmem:[#allocation17 + $0x128] sm:$0xff]
    %v3311 = vld [vmem:[#allocation17 + $0x130] sm:$0xff]
    %v3312 = vld [vmem:[#allocation17 + $0x138] sm:$0xff]
    %v3313 = vld [vmem:[#allocation17 + $0x140] sm:$0xff]
    %v3314 = vld [vmem:[#allocation17 + $0x148] sm:$0xff]
    %v3315 = vld [vmem:[#allocation17 + $0x150] sm:$0xff]
    %v3316 = vld [vmem:[#allocation17 + $0x158] sm:$0xff]
    %v3317 = vld [vmem:[#allocation17 + $0x160] sm:$0xff]
    %v3318 = vld [vmem:[#allocation17 + $0x168] sm:$0xff]
    %v3319 = vld [vmem:[#allocation17 + $0x170] sm:$0xff]
    %v3320 = vld [vmem:[#allocation17 + $0x178] sm:$0xff]
    %v3321 = vld [vmem:[#allocation17 + $0x180] sm:$0xff]
    %v3322 = vld [vmem:[#allocation17 + $0x188] sm:$0xff]
    %v3323 = vld [vmem:[#allocation17 + $0x190] sm:$0xff]
    %v3324 = vld [vmem:[#allocation17 + $0x198] sm:$0xff]
    %v3325 = vld [vmem:[#allocation17 + $0x1a0] sm:$0xff]
    %v3326 = vld [vmem:[#allocation17 + $0x1a8] sm:$0xff]
    %v3327 = vld [vmem:[#allocation17 + $0x1b0] sm:$0xff]
    %v3328 = vld [vmem:[#allocation17 + $0x1b8] sm:$0xff]
    %v3329 = vld [vmem:[#allocation17 + $0x1c0] sm:$0xff]
    %v3330 = vld [vmem:[#allocation17 + $0x1c8] sm:$0xff]
    %v3331 = vld [vmem:[#allocation17 + $0x1d0] sm:$0xff]
    %v3332 = vld [vmem:[#allocation17 + $0x1d8] sm:$0xff]
    %v3333 = vld [vmem:[#allocation17 + $0x1e0] sm:$0xff]
    %v3334 = vld [vmem:[#allocation17 + $0x1e8] sm:$0xff]
    %v3335 = vld [vmem:[#allocation17 + $0x1f0] sm:$0xff]
    %v3336 = vld [vmem:[#allocation17 + $0x1f8] sm:$0xff]
    %v3337 = vld [vmem:[#allocation17 + $0x200] sm:$0xff]
    %v3338 = vld [vmem:[#allocation17 + $0x208] sm:$0xff]
    %v3339 = vld [vmem:[#allocation17 + $0x210] sm:$0xff]
    %v3340 = vld [vmem:[#allocation17 + $0x218] sm:$0xff]
    %v3341 = vld [vmem:[#allocation17 + $0x220] sm:$0xff]
    %v3342 = vld [vmem:[#allocation17 + $0x228] sm:$0xff]
    %v3343 = vld [vmem:[#allocation17 + $0x230] sm:$0xff]
    %v3344 = vld [vmem:[#allocation17 + $0x238] sm:$0xff]
    %v3345 = vld [vmem:[#allocation17 + $0x240] sm:$0xff]
    %v3346 = vld [vmem:[#allocation17 + $0x248] sm:$0xff]
    %v3347 = vld [vmem:[#allocation17 + $0x250] sm:$0xff]
    %v3348 = vld [vmem:[#allocation17 + $0x258] sm:$0xff]
    %v3349 = vld [vmem:[#allocation17 + $0x260] sm:$0xff]
    %v3350 = vld [vmem:[#allocation17 + $0x268] sm:$0xff]
    %v3351 = vld [vmem:[#allocation17 + $0x270] sm:$0xff]
    %v3352 = vld [vmem:[#allocation17 + $0x278] sm:$0xff]
    %v3353 = vld [vmem:[#allocation17 + $0x280] sm:$0xff]
    %v3354 = vld [vmem:[#allocation17 + $0x288] sm:$0xff]
    %v3355 = vld [vmem:[#allocation17 + $0x290] sm:$0xff]
    %v3356 = vld [vmem:[#allocation17 + $0x298] sm:$0xff]
    %v3357 = vld [vmem:[#allocation17 + $0x2a0] sm:$0xff]
    %v3358 = vld [vmem:[#allocation17 + $0x2a8] sm:$0xff]
    %v3359 = vld [vmem:[#allocation17 + $0x2b0] sm:$0xff]
    %v3360 = vld [vmem:[#allocation17 + $0x2b8] sm:$0xff]
    %v3361 = vld [vmem:[#allocation17 + $0x2c0] sm:$0xff]
    %v3362 = vld [vmem:[#allocation17 + $0x2c8] sm:$0xff]
    %v3363 = vld [vmem:[#allocation17 + $0x2d0] sm:$0xff]
    %v3364 = vld [vmem:[#allocation17 + $0x2d8] sm:$0xff]
    %v3365 = vld [vmem:[#allocation17 + $0x2e0] sm:$0xff]
    %v3366 = vld [vmem:[#allocation17 + $0x2e8] sm:$0xff]
    %v3367 = vld [vmem:[#allocation17 + $0x2f0] sm:$0xff]
    %v3368 = vld [vmem:[#allocation17 + $0x2f8] sm:$0xff]
    %v3369 = vld [vmem:[#allocation17 + $0x300] sm:$0xff]
    %v3370 = vld [vmem:[#allocation17 + $0x308] sm:$0xff]
    %v3371 = vld [vmem:[#allocation17 + $0x310] sm:$0xff]
    %v3372 = vld [vmem:[#allocation17 + $0x318] sm:$0xff]
    %v3373 = vld [vmem:[#allocation17 + $0x320] sm:$0xff]
    %v3374 = vld [vmem:[#allocation17 + $0x328] sm:$0xff]
    %v3375 = vld [vmem:[#allocation17 + $0x330] sm:$0xff]
    %v3376 = vld [vmem:[#allocation17 + $0x338] sm:$0xff]
    %v3377 = vld [vmem:[#allocation17 + $0x340] sm:$0xff]
    %v3378 = vld [vmem:[#allocation17 + $0x348] sm:$0xff]
    %v3379 = vld [vmem:[#allocation17 + $0x350] sm:$0xff]
    %v3380 = vld [vmem:[#allocation17 + $0x358] sm:$0xff]
    %v3381 = vld [vmem:[#allocation17 + $0x360] sm:$0xff]
    %v3382 = vld [vmem:[#allocation17 + $0x368] sm:$0xff]
    %v3383 = vld [vmem:[#allocation17 + $0x370] sm:$0xff]
    %v3384 = vld [vmem:[#allocation17 + $0x378] sm:$0xff]
    %v3385 = vld [vmem:[#allocation17 + $0x380] sm:$0xff]
    %v3386 = vld [vmem:[#allocation17 + $0x388] sm:$0xff]
    %v3387 = vld [vmem:[#allocation17 + $0x390] sm:$0xff]
    %v3388 = vld [vmem:[#allocation17 + $0x398] sm:$0xff]
    %v3389 = vld [vmem:[#allocation17 + $0x3a0] sm:$0xff]
    %v3390 = vld [vmem:[#allocation17 + $0x3a8] sm:$0xff]
    %v3391 = vld [vmem:[#allocation17 + $0x3b0] sm:$0xff]
    %v3392 = vld [vmem:[#allocation17 + $0x3b8] sm:$0xff]
    %v3393 = vld [vmem:[#allocation17 + $0x3c0] sm:$0xff]
    %v3394 = vld [vmem:[#allocation17 + $0x3c8] sm:$0xff]
    %v3395 = vld [vmem:[#allocation17 + $0x3d0] sm:$0xff]
    %v3396 = vld [vmem:[#allocation17 + $0x3d8] sm:$0xff]
    %v3397 = vld [vmem:[#allocation17 + $0x3e0] sm:$0xff]
    %v3398 = vld [vmem:[#allocation17 + $0x3e8] sm:$0xff]
    %v3399 = vld [vmem:[#allocation17 + $0x3f0] sm:$0xff]
    %v3400 = vld [vmem:[#allocation17 + $0x3f8] sm:$0xff]
    %v3401 = vld [vmem:[#allocation17 + $0x400] sm:$0xff]
    %v3402 = vld [vmem:[#allocation17 + $0x408] sm:$0xff]
    %v3403 = vld [vmem:[#allocation17 + $0x410] sm:$0xff]
    %v3404 = vld [vmem:[#allocation17 + $0x418] sm:$0xff]
    %v3405 = vld [vmem:[#allocation17 + $0x420] sm:$0xff]
    %v3406 = vld [vmem:[#allocation17 + $0x428] sm:$0xff]
    %v3407 = vld [vmem:[#allocation17 + $0x430] sm:$0xff]
    %v3408 = vld [vmem:[#allocation17 + $0x438] sm:$0xff]
    %v3409 = vld [vmem:[#allocation17 + $0x440] sm:$0xff]
    %v3410 = vld [vmem:[#allocation17 + $0x448] sm:$0xff]
    %v3411 = vld [vmem:[#allocation17 + $0x450] sm:$0xff]
    %v3412 = vld [vmem:[#allocation17 + $0x458] sm:$0xff]
    %v3413 = vld [vmem:[#allocation17 + $0x460] sm:$0xff]
    %v3414 = vld [vmem:[#allocation17 + $0x468] sm:$0xff]
    %v3415 = vld [vmem:[#allocation17 + $0x470] sm:$0xff]
    %v3416 = vld [vmem:[#allocation17 + $0x478] sm:$0xff]
    %v3417 = vld [vmem:[#allocation17 + $0x480] sm:$0xff]
    %v3418 = vld [vmem:[#allocation17 + $0x488] sm:$0xff]
    %v3419 = vld [vmem:[#allocation17 + $0x490] sm:$0xff]
    %v3420 = vld [vmem:[#allocation17 + $0x498] sm:$0xff]
    %v3421 = vld [vmem:[#allocation17 + $0x4a0] sm:$0xff]
    %v3422 = vld [vmem:[#allocation17 + $0x4a8] sm:$0xff]
    %v3423 = vld [vmem:[#allocation17 + $0x4b0] sm:$0xff]
    %v3424 = vld [vmem:[#allocation17 + $0x4b8] sm:$0xff]
    %v3425 = vld [vmem:[#allocation17 + $0x4c0] sm:$0xff]
    %v3426 = vld [vmem:[#allocation17 + $0x4c8] sm:$0xff]
    %v3427 = vld [vmem:[#allocation17 + $0x4d0] sm:$0xff]
    %v3428 = vld [vmem:[#allocation17 + $0x4d8] sm:$0xff]
    %v3429 = vld [vmem:[#allocation17 + $0x4e0] sm:$0xff]
    %v3430 = vld [vmem:[#allocation17 + $0x4e8] sm:$0xff]
    %v3431 = vld [vmem:[#allocation17 + $0x4f0] sm:$0xff]
    %v3432 = vld [vmem:[#allocation17 + $0x4f8] sm:$0xff]
    %v3433 = vld [vmem:[#allocation17 + $0x500] sm:$0xff]
    %v3434 = vld [vmem:[#allocation17 + $0x508] sm:$0xff]
    %v3435 = vld [vmem:[#allocation17 + $0x510] sm:$0xff]
    %v3436 = vld [vmem:[#allocation17 + $0x518] sm:$0xff]
    %v3437 = vld [vmem:[#allocation17 + $0x520] sm:$0xff]
    %v3438 = vld [vmem:[#allocation17 + $0x528] sm:$0xff]
    %v3439 = vld [vmem:[#allocation17 + $0x530] sm:$0xff]
    %v3440 = vld [vmem:[#allocation17 + $0x538] sm:$0xff]
    %v3441 = vld [vmem:[#allocation17 + $0x540] sm:$0xff]
    %v3442 = vld [vmem:[#allocation17 + $0x548] sm:$0xff]
    %v3443 = vld [vmem:[#allocation17 + $0x550] sm:$0xff]
    %v3444 = vld [vmem:[#allocation17 + $0x558] sm:$0xff]
    %v3445 = vld [vmem:[#allocation17 + $0x560] sm:$0xff]
    %v3446 = vld [vmem:[#allocation17 + $0x568] sm:$0xff]
    %v3447 = vld [vmem:[#allocation17 + $0x570] sm:$0xff]
    %v3448 = vld [vmem:[#allocation17 + $0x578] sm:$0xff]
    %v3449 = vld [vmem:[#allocation17 + $0x580] sm:$0xff]
    %v3450 = vld [vmem:[#allocation17 + $0x588] sm:$0xff]
    %v3451 = vld [vmem:[#allocation17 + $0x590] sm:$0xff]
    %v3452 = vld [vmem:[#allocation17 + $0x598] sm:$0xff]
    %v3453 = vld [vmem:[#allocation17 + $0x5a0] sm:$0xff]
    %v3454 = vld [vmem:[#allocation17 + $0x5a8] sm:$0xff]
    %v3455 = vld [vmem:[#allocation17 + $0x5b0] sm:$0xff]
    %v3456 = vld [vmem:[#allocation17 + $0x5b8] sm:$0xff]
    %v3457 = vld [vmem:[#allocation17 + $0x5c0] sm:$0xff]
    %v3458 = vld [vmem:[#allocation17 + $0x5c8] sm:$0xff]
    %v3459 = vld [vmem:[#allocation17 + $0x5d0] sm:$0xff]
    %v3460 = vld [vmem:[#allocation17 + $0x5d8] sm:$0xff]
    %v3461 = vld [vmem:[#allocation17 + $0x5e0] sm:$0xff]
    %v3462 = vld [vmem:[#allocation17 + $0x5e8] sm:$0xff]
    %v3463 = vld [vmem:[#allocation17 + $0x5f0] sm:$0xff]
    %v3464 = vld [vmem:[#allocation17 + $0x5f8] sm:$0xff]
    %v3465 = vld [vmem:[#allocation17 + $0x600] sm:$0xff]
    %v3466 = vld [vmem:[#allocation17 + $0x608] sm:$0xff]
    %v3467 = vld [vmem:[#allocation17 + $0x610] sm:$0xff]
    %v3468 = vld [vmem:[#allocation17 + $0x618] sm:$0xff]
    %v3469 = vld [vmem:[#allocation17 + $0x620] sm:$0xff]
    %v3470 = vld [vmem:[#allocation17 + $0x628] sm:$0xff]
    %v3471 = vld [vmem:[#allocation17 + $0x630] sm:$0xff]
    %v3472 = vld [vmem:[#allocation17 + $0x638] sm:$0xff]
    %v3473 = vld [vmem:[#allocation17 + $0x640] sm:$0xff]
    %v3474 = vld [vmem:[#allocation17 + $0x648] sm:$0xff]
    %v3475 = vld [vmem:[#allocation17 + $0x650] sm:$0xff]
    %v3476 = vld [vmem:[#allocation17 + $0x658] sm:$0xff]
    %v3477 = vld [vmem:[#allocation17 + $0x660] sm:$0xff]
    %v3478 = vld [vmem:[#allocation17 + $0x668] sm:$0xff]
    %v3479 = vld [vmem:[#allocation17 + $0x670] sm:$0xff]
    %v3480 = vld [vmem:[#allocation17 + $0x678] sm:$0xff]
    %v3481 = vld [vmem:[#allocation17 + $0x680] sm:$0xff]
    %v3482 = vld [vmem:[#allocation17 + $0x688] sm:$0xff]
    %v3483 = vld [vmem:[#allocation17 + $0x690] sm:$0xff]
    %v3484 = vld [vmem:[#allocation17 + $0x698] sm:$0xff]
    %v3485 = vld [vmem:[#allocation17 + $0x6a0] sm:$0xff]
    %v3486 = vld [vmem:[#allocation17 + $0x6a8] sm:$0xff]
    %v3487 = vld [vmem:[#allocation17 + $0x6b0] sm:$0xff]
    %v3488 = vld [vmem:[#allocation17 + $0x6b8] sm:$0xff]
    %v3489 = vld [vmem:[#allocation17 + $0x6c0] sm:$0xff]
    %v3490 = vld [vmem:[#allocation17 + $0x6c8] sm:$0xff]
    %v3491 = vld [vmem:[#allocation17 + $0x6d0] sm:$0xff]
    %v3492 = vld [vmem:[#allocation17 + $0x6d8] sm:$0xff]
    %v3493 = vld [vmem:[#allocation17 + $0x6e0] sm:$0xff]
    %v3494 = vld [vmem:[#allocation17 + $0x6e8] sm:$0xff]
    %v3495 = vld [vmem:[#allocation17 + $0x6f0] sm:$0xff]
    %v3496 = vld [vmem:[#allocation17 + $0x6f8] sm:$0xff]
    %v3497 = vld [vmem:[#allocation17 + $0x700] sm:$0xff]
    %v3498 = vld [vmem:[#allocation17 + $0x708] sm:$0xff]
    %v3499 = vld [vmem:[#allocation17 + $0x710] sm:$0xff]
    %v3500 = vld [vmem:[#allocation17 + $0x718] sm:$0xff]
    %v3501 = vld [vmem:[#allocation17 + $0x720] sm:$0xff]
    %v3502 = vld [vmem:[#allocation17 + $0x728] sm:$0xff]
    %v3503 = vld [vmem:[#allocation17 + $0x730] sm:$0xff]
    %v3504 = vld [vmem:[#allocation17 + $0x738] sm:$0xff]
    %v3505 = vld [vmem:[#allocation17 + $0x740] sm:$0xff]
    %v3506 = vld [vmem:[#allocation17 + $0x748] sm:$0xff]
    %v3507 = vld [vmem:[#allocation17 + $0x750] sm:$0xff]
    %v3508 = vld [vmem:[#allocation17 + $0x758] sm:$0xff]
    %v3509 = vld [vmem:[#allocation17 + $0x760] sm:$0xff]
    %v3510 = vld [vmem:[#allocation17 + $0x768] sm:$0xff]
    %v3511 = vld [vmem:[#allocation17 + $0x770] sm:$0xff]
    %v3512 = vld [vmem:[#allocation17 + $0x778] sm:$0xff]
    %v3513 = vld [vmem:[#allocation17 + $0x780] sm:$0xff]
    %v3514 = vld [vmem:[#allocation17 + $0x788] sm:$0xff]
    %v3515 = vld [vmem:[#allocation17 + $0x790] sm:$0xff]
    %v3516 = vld [vmem:[#allocation17 + $0x798] sm:$0xff]
    %v3517 = vld [vmem:[#allocation17 + $0x7a0] sm:$0xff]
    %v3518 = vld [vmem:[#allocation17 + $0x7a8] sm:$0xff]
    %v3519 = vld [vmem:[#allocation17 + $0x7b0] sm:$0xff]
    %v3520 = vld [vmem:[#allocation17 + $0x7b8] sm:$0xff]
    %v3521 = vld [vmem:[#allocation17 + $0x7c0] sm:$0xff]
    %v3522 = vld [vmem:[#allocation17 + $0x7c8] sm:$0xff]
    %v3523 = vld [vmem:[#allocation17 + $0x7d0] sm:$0xff]
    %v3524 = vld [vmem:[#allocation17 + $0x7d8] sm:$0xff]
    %v3525 = vld [vmem:[#allocation17 + $0x7e0] sm:$0xff]
    %v3526 = vld [vmem:[#allocation17 + $0x7e8] sm:$0xff]
    %v3527 = vld [vmem:[#allocation17 + $0x7f0] sm:$0xff]
    %v3528 = vld [vmem:[#allocation17 + $0x7f8] sm:$0xff]
    %v3529 = vld [vmem:[#allocation17 + $0x800] sm:$0xff]
    %v3530 = vld [vmem:[#allocation17 + $0x808] sm:$0xff]
    %v3531 = vld [vmem:[#allocation17 + $0x810] sm:$0xff]
    %v3532 = vld [vmem:[#allocation17 + $0x818] sm:$0xff]
    %v3533 = vld [vmem:[#allocation17 + $0x820] sm:$0xff]
    %v3534 = vld [vmem:[#allocation17 + $0x828] sm:$0xff]
    %v3535 = vld [vmem:[#allocation17 + $0x830] sm:$0xff]
    %v3536 = vld [vmem:[#allocation17 + $0x838] sm:$0xff]
    %v3537 = vld [vmem:[#allocation17 + $0x840] sm:$0xff]
    %v3538 = vld [vmem:[#allocation17 + $0x848] sm:$0xff]
    %v3539 = vld [vmem:[#allocation17 + $0x850] sm:$0xff]
    %v3540 = vld [vmem:[#allocation17 + $0x858] sm:$0xff]
    %v3541 = vld [vmem:[#allocation17 + $0x860] sm:$0xff]
    %v3542 = vld [vmem:[#allocation17 + $0x868] sm:$0xff]
    %v3543 = vld [vmem:[#allocation17 + $0x870] sm:$0xff]
    %v3544 = vld [vmem:[#allocation17 + $0x878] sm:$0xff]
    %v3545 = vld [vmem:[#allocation17 + $0x880] sm:$0xff]
    %v3546 = vld [vmem:[#allocation17 + $0x888] sm:$0xff]
    %v3547 = vld [vmem:[#allocation17 + $0x890] sm:$0xff]
    %v3548 = vld [vmem:[#allocation17 + $0x898] sm:$0xff]
    %v3549 = vld [vmem:[#allocation17 + $0x8a0] sm:$0xff]
    %v3550 = vld [vmem:[#allocation17 + $0x8a8] sm:$0xff]
    %v3551 = vld [vmem:[#allocation17 + $0x8b0] sm:$0xff]
    %v3552 = vld [vmem:[#allocation17 + $0x8b8] sm:$0xff]
    %v3553 = vld [vmem:[#allocation17 + $0x8c0] sm:$0xff]
    %v3554 = vld [vmem:[#allocation17 + $0x8c8] sm:$0xff]
    %v3555 = vld [vmem:[#allocation17 + $0x8d0] sm:$0xff]
    %v3556 = vld [vmem:[#allocation17 + $0x8d8] sm:$0xff]
    %v3557 = vld [vmem:[#allocation17 + $0x8e0] sm:$0xff]
    %v3558 = vld [vmem:[#allocation17 + $0x8e8] sm:$0xff]
    %v3559 = vld [vmem:[#allocation17 + $0x8f0] sm:$0xff]
    %v3560 = vld [vmem:[#allocation17 + $0x8f8] sm:$0xff]
    %v3561 = vld [vmem:[#allocation18] sm:$0xff]
    %v3562 = vld [vmem:[#allocation18 + $0x8] sm:$0xf]
    %v3565 = vperm.slane %v3561, 0
    %v3566 = vperm.slane %v3561, 1
    %v3567 = vperm.slane %v3561, 2
    %v3568 = vperm.slane %v3561, 3
    %v3569 = vperm.slane %v3561, 4
    %v3570 = vperm.slane %v3561, 5
    %v3571 = vperm.slane %v3561, 6
    %v3572 = vperm.slane %v3561, 7
    %v3573 = vperm.slane %v3562, 0
    %v3574 = vperm.slane %v3562, 1
    %v3575 = vperm.slane %v3562, 2
    %v3576 = vperm.slane %v3562, 3
    %v3877 = vunpack.c.l.b16 %v3273
    %v3878 = vunpack.c.h.b16 %v3273
    %v3879 = vunpack.c.l.b16 %v3274
    %v3880 = vunpack.c.h.b16 %v3274
    %v3881 = vunpack.c.l.b16 %v3275
    %v3882 = vunpack.c.h.b16 %v3275
    %v3883 = vunpack.c.l.b16 %v3276
    %v3884 = vunpack.c.h.b16 %v3276
    %v3885 = vunpack.c.l.b16 %v3277
    %v3886 = vunpack.c.h.b16 %v3277
    %v3887 = vunpack.c.l.b16 %v3278
    %v3888 = vunpack.c.h.b16 %v3278
    %v3889 = vunpack.c.l.b16 %v3279
    %v3890 = vunpack.c.h.b16 %v3279
    %v3891 = vunpack.c.l.b16 %v3280
    %v3892 = vunpack.c.h.b16 %v3280
    %v3893 = vunpack.c.l.b16 %v3281
    %v3894 = vunpack.c.h.b16 %v3281
    %v3895 = vunpack.c.l.b16 %v3282
    %v3896 = vunpack.c.h.b16 %v3282
    %v3897 = vunpack.c.l.b16 %v3283
    %v3898 = vunpack.c.h.b16 %v3283
    %v3899 = vunpack.c.l.b16 %v3284
    %v3900 = vunpack.c.h.b16 %v3284
    %v3901 = vunpack.c.l.b16 %v3285
    %v3902 = vunpack.c.h.b16 %v3285
    %v3903 = vunpack.c.l.b16 %v3286
    %v3904 = vunpack.c.h.b16 %v3286
    %v3905 = vunpack.c.l.b16 %v3287
    %v3906 = vunpack.c.h.b16 %v3287
    %v3907 = vunpack.c.l.b16 %v3288
    %v3908 = vunpack.c.h.b16 %v3288
    %v3909 = vunpack.c.l.b16 %v3289
    %v3910 = vunpack.c.h.b16 %v3289
    %v3911 = vunpack.c.l.b16 %v3290
    %v3912 = vunpack.c.h.b16 %v3290
    %v3913 = vunpack.c.l.b16 %v3291
    %v3914 = vunpack.c.h.b16 %v3291
    %v3915 = vunpack.c.l.b16 %v3292
    %v3916 = vunpack.c.h.b16 %v3292
    %v3917 = vunpack.c.l.b16 %v3293
    %v3918 = vunpack.c.h.b16 %v3293
    %v3919 = vunpack.c.l.b16 %v3294
    %v3920 = vunpack.c.h.b16 %v3294
    %v3921 = vunpack.c.l.b16 %v3295
    %v3922 = vunpack.c.h.b16 %v3295
    %v3923 = vunpack.c.l.b16 %v3296
    %v3924 = vunpack.c.h.b16 %v3296
    %v3925 = vunpack.c.l.b16 %v3297
    %v3926 = vunpack.c.h.b16 %v3297
    %v3927 = vunpack.c.l.b16 %v3298
    %v3928 = vunpack.c.h.b16 %v3298
    %v3929 = vunpack.c.l.b16 %v3299
    %v3930 = vunpack.c.h.b16 %v3299
    %v3931 = vunpack.c.l.b16 %v3300
    %v3932 = vunpack.c.h.b16 %v3300
    %v3933 = vunpack.c.l.b16 %v3301
    %v3934 = vunpack.c.h.b16 %v3301
    %v3935 = vunpack.c.l.b16 %v3302
    %v3936 = vunpack.c.h.b16 %v3302
    %v3937 = vunpack.c.l.b16 %v3303
    %v3938 = vunpack.c.h.b16 %v3303
    %v3939 = vunpack.c.l.b16 %v3304
    %v3940 = vunpack.c.h.b16 %v3304
    %v3941 = vunpack.c.l.b16 %v3305
    %v3942 = vunpack.c.h.b16 %v3305
    %v3943 = vunpack.c.l.b16 %v3306
    %v3944 = vunpack.c.h.b16 %v3306
    %v3945 = vunpack.c.l.b16 %v3307
    %v3946 = vunpack.c.h.b16 %v3307
    %v3947 = vunpack.c.l.b16 %v3308
    %v3948 = vunpack.c.h.b16 %v3308
    %v3949 = vunpack.c.l.b16 %v3309
    %v3950 = vunpack.c.h.b16 %v3309
    %v3951 = vunpack.c.l.b16 %v3310
    %v3952 = vunpack.c.h.b16 %v3310
    %v3953 = vunpack.c.l.b16 %v3311
    %v3954 = vunpack.c.h.b16 %v3311
    %v3955 = vunpack.c.l.b16 %v3312
    %v3956 = vunpack.c.h.b16 %v3312
    %v3957 = vunpack.c.l.b16 %v3313
    %v3958 = vunpack.c.h.b16 %v3313
    %v3959 = vunpack.c.l.b16 %v3314
    %v3960 = vunpack.c.h.b16 %v3314
    %v3961 = vunpack.c.l.b16 %v3315
    %v3962 = vunpack.c.h.b16 %v3315
    %v3963 = vunpack.c.l.b16 %v3316
    %v3964 = vunpack.c.h.b16 %v3316
    %v3965 = vunpack.c.l.b16 %v3317
    %v3966 = vunpack.c.h.b16 %v3317
    %v3967 = vunpack.c.l.b16 %v3318
    %v3968 = vunpack.c.h.b16 %v3318
    %v3969 = vunpack.c.l.b16 %v3319
    %v3970 = vunpack.c.h.b16 %v3319
    %v3971 = vunpack.c.l.b16 %v3320
    %v3972 = vunpack.c.h.b16 %v3320
    %v3973 = vunpack.c.l.b16 %v3321
    %v3974 = vunpack.c.h.b16 %v3321
    %v3975 = vunpack.c.l.b16 %v3322
    %v3976 = vunpack.c.h.b16 %v3322
    %v3977 = vunpack.c.l.b16 %v3323
    %v3978 = vunpack.c.h.b16 %v3323
    %v3979 = vunpack.c.l.b16 %v3324
    %v3980 = vunpack.c.h.b16 %v3324
    %v3981 = vunpack.c.l.b16 %v3325
    %v3982 = vunpack.c.h.b16 %v3325
    %v3983 = vunpack.c.l.b16 %v3326
    %v3984 = vunpack.c.h.b16 %v3326
    %v3985 = vunpack.c.l.b16 %v3327
    %v3986 = vunpack.c.h.b16 %v3327
    %v3987 = vunpack.c.l.b16 %v3328
    %v3988 = vunpack.c.h.b16 %v3328
    %v3989 = vunpack.c.l.b16 %v3329
    %v3990 = vunpack.c.h.b16 %v3329
    %v3991 = vunpack.c.l.b16 %v3330
    %v3992 = vunpack.c.h.b16 %v3330
    %v3993 = vunpack.c.l.b16 %v3331
    %v3994 = vunpack.c.h.b16 %v3331
    %v3995 = vunpack.c.l.b16 %v3332
    %v3996 = vunpack.c.h.b16 %v3332
    %v3997 = vunpack.c.l.b16 %v3333
    %v3998 = vunpack.c.h.b16 %v3333
    %v3999 = vunpack.c.l.b16 %v3334
    %v4000 = vunpack.c.h.b16 %v3334
    %v4001 = vunpack.c.l.b16 %v3335
    %v4002 = vunpack.c.h.b16 %v3335
    %v4003 = vunpack.c.l.b16 %v3336
    %v4004 = vunpack.c.h.b16 %v3336
    %v4005 = vunpack.c.l.b16 %v3337
    %v4006 = vunpack.c.h.b16 %v3337
    %v4007 = vunpack.c.l.b16 %v3338
    %v4008 = vunpack.c.h.b16 %v3338
    %v4009 = vunpack.c.l.b16 %v3339
    %v4010 = vunpack.c.h.b16 %v3339
    %v4011 = vunpack.c.l.b16 %v3340
    %v4012 = vunpack.c.h.b16 %v3340
    %v4013 = vunpack.c.l.b16 %v3341
    %v4014 = vunpack.c.h.b16 %v3341
    %v4015 = vunpack.c.l.b16 %v3342
    %v4016 = vunpack.c.h.b16 %v3342
    %v4017 = vunpack.c.l.b16 %v3343
    %v4018 = vunpack.c.h.b16 %v3343
    %v4019 = vunpack.c.l.b16 %v3344
    %v4020 = vunpack.c.h.b16 %v3344
    %v4021 = vunpack.c.l.b16 %v3345
    %v4022 = vunpack.c.h.b16 %v3345
    %v4023 = vunpack.c.l.b16 %v3346
    %v4024 = vunpack.c.h.b16 %v3346
    %v4025 = vunpack.c.l.b16 %v3347
    %v4026 = vunpack.c.h.b16 %v3347
    %v4027 = vunpack.c.l.b16 %v3348
    %v4028 = vunpack.c.h.b16 %v3348
    %v4029 = vunpack.c.l.b16 %v3349
    %v4030 = vunpack.c.h.b16 %v3349
    %v4031 = vunpack.c.l.b16 %v3350
    %v4032 = vunpack.c.h.b16 %v3350
    %v4033 = vunpack.c.l.b16 %v3351
    %v4034 = vunpack.c.h.b16 %v3351
    %v4035 = vunpack.c.l.b16 %v3352
    %v4036 = vunpack.c.h.b16 %v3352
    %v4037 = vunpack.c.l.b16 %v3353
    %v4038 = vunpack.c.h.b16 %v3353
    %v4039 = vunpack.c.l.b16 %v3354
    %v4040 = vunpack.c.h.b16 %v3354
    %v4041 = vunpack.c.l.b16 %v3355
    %v4042 = vunpack.c.h.b16 %v3355
    %v4043 = vunpack.c.l.b16 %v3356
    %v4044 = vunpack.c.h.b16 %v3356
    %v4045 = vunpack.c.l.b16 %v3357
    %v4046 = vunpack.c.h.b16 %v3357
    %v4047 = vunpack.c.l.b16 %v3358
    %v4048 = vunpack.c.h.b16 %v3358
    %v4049 = vunpack.c.l.b16 %v3359
    %v4050 = vunpack.c.h.b16 %v3359
    %v4051 = vunpack.c.l.b16 %v3360
    %v4052 = vunpack.c.h.b16 %v3360
    %v4053 = vunpack.c.l.b16 %v3361
    %v4054 = vunpack.c.h.b16 %v3361
    %v4055 = vunpack.c.l.b16 %v3362
    %v4056 = vunpack.c.h.b16 %v3362
    %v4057 = vunpack.c.l.b16 %v3363
    %v4058 = vunpack.c.h.b16 %v3363
    %v4059 = vunpack.c.l.b16 %v3364
    %v4060 = vunpack.c.h.b16 %v3364
    %v4061 = vunpack.c.l.b16 %v3365
    %v4062 = vunpack.c.h.b16 %v3365
    %v4063 = vunpack.c.l.b16 %v3366
    %v4064 = vunpack.c.h.b16 %v3366
    %v4065 = vunpack.c.l.b16 %v3367
    %v4066 = vunpack.c.h.b16 %v3367
    %v4067 = vunpack.c.l.b16 %v3368
    %v4068 = vunpack.c.h.b16 %v3368
    %v4069 = vunpack.c.l.b16 %v3369
    %v4070 = vunpack.c.h.b16 %v3369
    %v4071 = vunpack.c.l.b16 %v3370
    %v4072 = vunpack.c.h.b16 %v3370
    %v4073 = vunpack.c.l.b16 %v3371
    %v4074 = vunpack.c.h.b16 %v3371
    %v4075 = vunpack.c.l.b16 %v3372
    %v4076 = vunpack.c.h.b16 %v3372
    %v4077 = vunpack.c.l.b16 %v3373
    %v4078 = vunpack.c.h.b16 %v3373
    %v4079 = vunpack.c.l.b16 %v3374
    %v4080 = vunpack.c.h.b16 %v3374
    %v4081 = vunpack.c.l.b16 %v3375
    %v4082 = vunpack.c.h.b16 %v3375
    %v4083 = vunpack.c.l.b16 %v3376
    %v4084 = vunpack.c.h.b16 %v3376
    %v4085 = vunpack.c.l.b16 %v3377
    %v4086 = vunpack.c.h.b16 %v3377
    %v4087 = vunpack.c.l.b16 %v3378
    %v4088 = vunpack.c.h.b16 %v3378
    %v4089 = vunpack.c.l.b16 %v3379
    %v4090 = vunpack.c.h.b16 %v3379
    %v4091 = vunpack.c.l.b16 %v3380
    %v4092 = vunpack.c.h.b16 %v3380
    %v4093 = vunpack.c.l.b16 %v3381
    %v4094 = vunpack.c.h.b16 %v3381
    %v4095 = vunpack.c.l.b16 %v3382
    %v4096 = vunpack.c.h.b16 %v3382
    %v4097 = vunpack.c.l.b16 %v3383
    %v4098 = vunpack.c.h.b16 %v3383
    %v4099 = vunpack.c.l.b16 %v3384
    %v4100 = vunpack.c.h.b16 %v3384
    %v4101 = vunpack.c.l.b16 %v3385
    %v4102 = vunpack.c.h.b16 %v3385
    %v4103 = vunpack.c.l.b16 %v3386
    %v4104 = vunpack.c.h.b16 %v3386
    %v4105 = vunpack.c.l.b16 %v3387
    %v4106 = vunpack.c.h.b16 %v3387
    %v4107 = vunpack.c.l.b16 %v3388
    %v4108 = vunpack.c.h.b16 %v3388
    %v4109 = vunpack.c.l.b16 %v3389
    %v4110 = vunpack.c.h.b16 %v3389
    %v4111 = vunpack.c.l.b16 %v3390
    %v4112 = vunpack.c.h.b16 %v3390
    %v4113 = vunpack.c.l.b16 %v3391
    %v4114 = vunpack.c.h.b16 %v3391
    %v4115 = vunpack.c.l.b16 %v3392
    %v4116 = vunpack.c.h.b16 %v3392
    %v4117 = vunpack.c.l.b16 %v3393
    %v4118 = vunpack.c.h.b16 %v3393
    %v4119 = vunpack.c.l.b16 %v3394
    %v4120 = vunpack.c.h.b16 %v3394
    %v4121 = vunpack.c.l.b16 %v3395
    %v4122 = vunpack.c.h.b16 %v3395
    %v4123 = vunpack.c.l.b16 %v3396
    %v4124 = vunpack.c.h.b16 %v3396
    %v4125 = vunpack.c.l.b16 %v3397
    %v4126 = vunpack.c.h.b16 %v3397
    %v4127 = vunpack.c.l.b16 %v3398
    %v4128 = vunpack.c.h.b16 %v3398
    %v4129 = vunpack.c.l.b16 %v3399
    %v4130 = vunpack.c.h.b16 %v3399
    %v4131 = vunpack.c.l.b16 %v3400
    %v4132 = vunpack.c.h.b16 %v3400
    %v4133 = vunpack.c.l.b16 %v3401
    %v4134 = vunpack.c.h.b16 %v3401
    %v4135 = vunpack.c.l.b16 %v3402
    %v4136 = vunpack.c.h.b16 %v3402
    %v4137 = vunpack.c.l.b16 %v3403
    %v4138 = vunpack.c.h.b16 %v3403
    %v4139 = vunpack.c.l.b16 %v3404
    %v4140 = vunpack.c.h.b16 %v3404
    %v4141 = vunpack.c.l.b16 %v3405
    %v4142 = vunpack.c.h.b16 %v3405
    %v4143 = vunpack.c.l.b16 %v3406
    %v4144 = vunpack.c.h.b16 %v3406
    %v4145 = vunpack.c.l.b16 %v3407
    %v4146 = vunpack.c.h.b16 %v3407
    %v4147 = vunpack.c.l.b16 %v3408
    %v4148 = vunpack.c.h.b16 %v3408
    %v4149 = vunpack.c.l.b16 %v3409
    %v4150 = vunpack.c.h.b16 %v3409
    %v4151 = vunpack.c.l.b16 %v3410
    %v4152 = vunpack.c.h.b16 %v3410
    %v4153 = vunpack.c.l.b16 %v3411
    %v4154 = vunpack.c.h.b16 %v3411
    %v4155 = vunpack.c.l.b16 %v3412
    %v4156 = vunpack.c.h.b16 %v3412
    %v4157 = vunpack.c.l.b16 %v3413
    %v4158 = vunpack.c.h.b16 %v3413
    %v4159 = vunpack.c.l.b16 %v3414
    %v4160 = vunpack.c.h.b16 %v3414
    %v4161 = vunpack.c.l.b16 %v3415
    %v4162 = vunpack.c.h.b16 %v3415
    %v4163 = vunpack.c.l.b16 %v3416
    %v4164 = vunpack.c.h.b16 %v3416
    %v4165 = vunpack.c.l.b16 %v3417
    %v4166 = vunpack.c.h.b16 %v3417
    %v4167 = vunpack.c.l.b16 %v3418
    %v4168 = vunpack.c.h.b16 %v3418
    %v4169 = vunpack.c.l.b16 %v3419
    %v4170 = vunpack.c.h.b16 %v3419
    %v4171 = vunpack.c.l.b16 %v3420
    %v4172 = vunpack.c.h.b16 %v3420
    %v4173 = vunpack.c.l.b16 %v3421
    %v4174 = vunpack.c.h.b16 %v3421
    %v4175 = vunpack.c.l.b16 %v3422
    %v4176 = vunpack.c.h.b16 %v3422
    %v4177 = vunpack.c.l.b16 %v3423
    %v4178 = vunpack.c.h.b16 %v3423
    %v4179 = vunpack.c.l.b16 %v3424
    %v4180 = vunpack.c.h.b16 %v3424
    %v4181 = vunpack.c.l.b16 %v3425
    %v4182 = vunpack.c.h.b16 %v3425
    %v4183 = vunpack.c.l.b16 %v3426
    %v4184 = vunpack.c.h.b16 %v3426
    %v4185 = vunpack.c.l.b16 %v3427
    %v4186 = vunpack.c.h.b16 %v3427
    %v4187 = vunpack.c.l.b16 %v3428
    %v4188 = vunpack.c.h.b16 %v3428
    %v4189 = vunpack.c.l.b16 %v3429
    %v4190 = vunpack.c.h.b16 %v3429
    %v4191 = vunpack.c.l.b16 %v3430
    %v4192 = vunpack.c.h.b16 %v3430
    %v4193 = vunpack.c.l.b16 %v3431
    %v4194 = vunpack.c.h.b16 %v3431
    %v4195 = vunpack.c.l.b16 %v3432
    %v4196 = vunpack.c.h.b16 %v3432
    %v4197 = vunpack.c.l.b16 %v3433
    %v4198 = vunpack.c.h.b16 %v3433
    %v4199 = vunpack.c.l.b16 %v3434
    %v4200 = vunpack.c.h.b16 %v3434
    %v4201 = vunpack.c.l.b16 %v3435
    %v4202 = vunpack.c.h.b16 %v3435
    %v4203 = vunpack.c.l.b16 %v3436
    %v4204 = vunpack.c.h.b16 %v3436
    %v4205 = vunpack.c.l.b16 %v3437
    %v4206 = vunpack.c.h.b16 %v3437
    %v4207 = vunpack.c.l.b16 %v3438
    %v4208 = vunpack.c.h.b16 %v3438
    %v4209 = vunpack.c.l.b16 %v3439
    %v4210 = vunpack.c.h.b16 %v3439
    %v4211 = vunpack.c.l.b16 %v3440
    %v4212 = vunpack.c.h.b16 %v3440
    %v4213 = vunpack.c.l.b16 %v3441
    %v4214 = vunpack.c.h.b16 %v3441
    %v4215 = vunpack.c.l.b16 %v3442
    %v4216 = vunpack.c.h.b16 %v3442
    %v4217 = vunpack.c.l.b16 %v3443
    %v4218 = vunpack.c.h.b16 %v3443
    %v4219 = vunpack.c.l.b16 %v3444
    %v4220 = vunpack.c.h.b16 %v3444
    %v4221 = vunpack.c.l.b16 %v3445
    %v4222 = vunpack.c.h.b16 %v3445
    %v4223 = vunpack.c.l.b16 %v3446
    %v4224 = vunpack.c.h.b16 %v3446
    %v4225 = vunpack.c.l.b16 %v3447
    %v4226 = vunpack.c.h.b16 %v3447
    %v4227 = vunpack.c.l.b16 %v3448
    %v4228 = vunpack.c.h.b16 %v3448
    %v4229 = vunpack.c.l.b16 %v3449
    %v4230 = vunpack.c.h.b16 %v3449
    %v4231 = vunpack.c.l.b16 %v3450
    %v4232 = vunpack.c.h.b16 %v3450
    %v4233 = vunpack.c.l.b16 %v3451
    %v4234 = vunpack.c.h.b16 %v3451
    %v4235 = vunpack.c.l.b16 %v3452
    %v4236 = vunpack.c.h.b16 %v3452
    %v4237 = vunpack.c.l.b16 %v3453
    %v4238 = vunpack.c.h.b16 %v3453
    %v4239 = vunpack.c.l.b16 %v3454
    %v4240 = vunpack.c.h.b16 %v3454
    %v4241 = vunpack.c.l.b16 %v3455
    %v4242 = vunpack.c.h.b16 %v3455
    %v4243 = vunpack.c.l.b16 %v3456
    %v4244 = vunpack.c.h.b16 %v3456
    %v4245 = vunpack.c.l.b16 %v3457
    %v4246 = vunpack.c.h.b16 %v3457
    %v4247 = vunpack.c.l.b16 %v3458
    %v4248 = vunpack.c.h.b16 %v3458
    %v4249 = vunpack.c.l.b16 %v3459
    %v4250 = vunpack.c.h.b16 %v3459
    %v4251 = vunpack.c.l.b16 %v3460
    %v4252 = vunpack.c.h.b16 %v3460
    %v4253 = vunpack.c.l.b16 %v3461
    %v4254 = vunpack.c.h.b16 %v3461
    %v4255 = vunpack.c.l.b16 %v3462
    %v4256 = vunpack.c.h.b16 %v3462
    %v4257 = vunpack.c.l.b16 %v3463
    %v4258 = vunpack.c.h.b16 %v3463
    %v4259 = vunpack.c.l.b16 %v3464
    %v4260 = vunpack.c.h.b16 %v3464
    %v4261 = vunpack.c.l.b16 %v3465
    %v4262 = vunpack.c.h.b16 %v3465
    %v4263 = vunpack.c.l.b16 %v3466
    %v4264 = vunpack.c.h.b16 %v3466
    %v4265 = vunpack.c.l.b16 %v3467
    %v4266 = vunpack.c.h.b16 %v3467
    %v4267 = vunpack.c.l.b16 %v3468
    %v4268 = vunpack.c.h.b16 %v3468
    %v4269 = vunpack.c.l.b16 %v3469
    %v4270 = vunpack.c.h.b16 %v3469
    %v4271 = vunpack.c.l.b16 %v3470
    %v4272 = vunpack.c.h.b16 %v3470
    %v4273 = vunpack.c.l.b16 %v3471
    %v4274 = vunpack.c.h.b16 %v3471
    %v4275 = vunpack.c.l.b16 %v3472
    %v4276 = vunpack.c.h.b16 %v3472
    %v4277 = vunpack.c.l.b16 %v3473
    %v4278 = vunpack.c.h.b16 %v3473
    %v4279 = vunpack.c.l.b16 %v3474
    %v4280 = vunpack.c.h.b16 %v3474
    %v4281 = vunpack.c.l.b16 %v3475
    %v4282 = vunpack.c.h.b16 %v3475
    %v4283 = vunpack.c.l.b16 %v3476
    %v4284 = vunpack.c.h.b16 %v3476
    %v4285 = vunpack.c.l.b16 %v3477
    %v4286 = vunpack.c.h.b16 %v3477
    %v4287 = vunpack.c.l.b16 %v3478
    %v4288 = vunpack.c.h.b16 %v3478
    %v4289 = vunpack.c.l.b16 %v3479
    %v4290 = vunpack.c.h.b16 %v3479
    %v4291 = vunpack.c.l.b16 %v3480
    %v4292 = vunpack.c.h.b16 %v3480
    %v4293 = vunpack.c.l.b16 %v3481
    %v4294 = vunpack.c.h.b16 %v3481
    %v4295 = vunpack.c.l.b16 %v3482
    %v4296 = vunpack.c.h.b16 %v3482
    %v4297 = vunpack.c.l.b16 %v3483
    %v4298 = vunpack.c.h.b16 %v3483
    %v4299 = vunpack.c.l.b16 %v3484
    %v4300 = vunpack.c.h.b16 %v3484
    %v4301 = vunpack.c.l.b16 %v3485
    %v4302 = vunpack.c.h.b16 %v3485
    %v4303 = vunpack.c.l.b16 %v3486
    %v4304 = vunpack.c.h.b16 %v3486
    %v4305 = vunpack.c.l.b16 %v3487
    %v4306 = vunpack.c.h.b16 %v3487
    %v4307 = vunpack.c.l.b16 %v3488
    %v4308 = vunpack.c.h.b16 %v3488
    %v4309 = vunpack.c.l.b16 %v3489
    %v4310 = vunpack.c.h.b16 %v3489
    %v4311 = vunpack.c.l.b16 %v3490
    %v4312 = vunpack.c.h.b16 %v3490
    %v4313 = vunpack.c.l.b16 %v3491
    %v4314 = vunpack.c.h.b16 %v3491
    %v4315 = vunpack.c.l.b16 %v3492
    %v4316 = vunpack.c.h.b16 %v3492
    %v4317 = vunpack.c.l.b16 %v3493
    %v4318 = vunpack.c.h.b16 %v3493
    %v4319 = vunpack.c.l.b16 %v3494
    %v4320 = vunpack.c.h.b16 %v3494
    %v4321 = vunpack.c.l.b16 %v3495
    %v4322 = vunpack.c.h.b16 %v3495
    %v4323 = vunpack.c.l.b16 %v3496
    %v4324 = vunpack.c.h.b16 %v3496
    %v4325 = vunpack.c.l.b16 %v3497
    %v4326 = vunpack.c.h.b16 %v3497
    %v4327 = vunpack.c.l.b16 %v3498
    %v4328 = vunpack.c.h.b16 %v3498
    %v4329 = vunpack.c.l.b16 %v3499
    %v4330 = vunpack.c.h.b16 %v3499
    %v4331 = vunpack.c.l.b16 %v3500
    %v4332 = vunpack.c.h.b16 %v3500
    %v4333 = vunpack.c.l.b16 %v3501
    %v4334 = vunpack.c.h.b16 %v3501
    %v4335 = vunpack.c.l.b16 %v3502
    %v4336 = vunpack.c.h.b16 %v3502
    %v4337 = vunpack.c.l.b16 %v3503
    %v4338 = vunpack.c.h.b16 %v3503
    %v4339 = vunpack.c.l.b16 %v3504
    %v4340 = vunpack.c.h.b16 %v3504
    %v4341 = vunpack.c.l.b16 %v3505
    %v4342 = vunpack.c.h.b16 %v3505
    %v4343 = vunpack.c.l.b16 %v3506
    %v4344 = vunpack.c.h.b16 %v3506
    %v4345 = vunpack.c.l.b16 %v3507
    %v4346 = vunpack.c.h.b16 %v3507
    %v4347 = vunpack.c.l.b16 %v3508
    %v4348 = vunpack.c.h.b16 %v3508
    %v4349 = vunpack.c.l.b16 %v3509
    %v4350 = vunpack.c.h.b16 %v3509
    %v4351 = vunpack.c.l.b16 %v3510
    %v4352 = vunpack.c.h.b16 %v3510
    %v4353 = vunpack.c.l.b16 %v3511
    %v4354 = vunpack.c.h.b16 %v3511
    %v4355 = vunpack.c.l.b16 %v3512
    %v4356 = vunpack.c.h.b16 %v3512
    %v4357 = vunpack.c.l.b16 %v3513
    %v4358 = vunpack.c.h.b16 %v3513
    %v4359 = vunpack.c.l.b16 %v3514
    %v4360 = vunpack.c.h.b16 %v3514
    %v4361 = vunpack.c.l.b16 %v3515
    %v4362 = vunpack.c.h.b16 %v3515
    %v4363 = vunpack.c.l.b16 %v3516
    %v4364 = vunpack.c.h.b16 %v3516
    %v4365 = vunpack.c.l.b16 %v3517
    %v4366 = vunpack.c.h.b16 %v3517
    %v4367 = vunpack.c.l.b16 %v3518
    %v4368 = vunpack.c.h.b16 %v3518
    %v4369 = vunpack.c.l.b16 %v3519
    %v4370 = vunpack.c.h.b16 %v3519
    %v4371 = vunpack.c.l.b16 %v3520
    %v4372 = vunpack.c.h.b16 %v3520
    %v4373 = vunpack.c.l.b16 %v3521
    %v4374 = vunpack.c.h.b16 %v3521
    %v4375 = vunpack.c.l.b16 %v3522
    %v4376 = vunpack.c.h.b16 %v3522
    %v4377 = vunpack.c.l.b16 %v3523
    %v4378 = vunpack.c.h.b16 %v3523
    %v4379 = vunpack.c.l.b16 %v3524
    %v4380 = vunpack.c.h.b16 %v3524
    %v4381 = vunpack.c.l.b16 %v3525
    %v4382 = vunpack.c.h.b16 %v3525
    %v4383 = vunpack.c.l.b16 %v3526
    %v4384 = vunpack.c.h.b16 %v3526
    %v4385 = vunpack.c.l.b16 %v3527
    %v4386 = vunpack.c.h.b16 %v3527
    %v4387 = vunpack.c.l.b16 %v3528
    %v4388 = vunpack.c.h.b16 %v3528
    %v4389 = vunpack.c.l.b16 %v3529
    %v4390 = vunpack.c.h.b16 %v3529
    %v4391 = vunpack.c.l.b16 %v3530
    %v4392 = vunpack.c.h.b16 %v3530
    %v4393 = vunpack.c.l.b16 %v3531
    %v4394 = vunpack.c.h.b16 %v3531
    %v4395 = vunpack.c.l.b16 %v3532
    %v4396 = vunpack.c.h.b16 %v3532
    %v4397 = vunpack.c.l.b16 %v3533
    %v4398 = vunpack.c.h.b16 %v3533
    %v4399 = vunpack.c.l.b16 %v3534
    %v4400 = vunpack.c.h.b16 %v3534
    %v4401 = vunpack.c.l.b16 %v3535
    %v4402 = vunpack.c.h.b16 %v3535
    %v4403 = vunpack.c.l.b16 %v3536
    %v4404 = vunpack.c.h.b16 %v3536
    %v4405 = vunpack.c.l.b16 %v3537
    %v4406 = vunpack.c.h.b16 %v3537
    %v4407 = vunpack.c.l.b16 %v3538
    %v4408 = vunpack.c.h.b16 %v3538
    %v4409 = vunpack.c.l.b16 %v3539
    %v4410 = vunpack.c.h.b16 %v3539
    %v4411 = vunpack.c.l.b16 %v3540
    %v4412 = vunpack.c.h.b16 %v3540
    %v4413 = vunpack.c.l.b16 %v3541
    %v4414 = vunpack.c.h.b16 %v3541
    %v4415 = vunpack.c.l.b16 %v3542
    %v4416 = vunpack.c.h.b16 %v3542
    %v4417 = vunpack.c.l.b16 %v3543
    %v4418 = vunpack.c.h.b16 %v3543
    %v4419 = vunpack.c.l.b16 %v3544
    %v4420 = vunpack.c.h.b16 %v3544
    %v4421 = vunpack.c.l.b16 %v3545
    %v4422 = vunpack.c.h.b16 %v3545
    %v4423 = vunpack.c.l.b16 %v3546
    %v4424 = vunpack.c.h.b16 %v3546
    %v4425 = vunpack.c.l.b16 %v3547
    %v4426 = vunpack.c.h.b16 %v3547
    %v4427 = vunpack.c.l.b16 %v3548
    %v4428 = vunpack.c.h.b16 %v3548
    %v4429 = vunpack.c.l.b16 %v3549
    %v4430 = vunpack.c.h.b16 %v3549
    %v4431 = vunpack.c.l.b16 %v3550
    %v4432 = vunpack.c.h.b16 %v3550
    %v4433 = vunpack.c.l.b16 %v3551
    %v4434 = vunpack.c.h.b16 %v3551
    %v4435 = vunpack.c.l.b16 %v3552
    %v4436 = vunpack.c.h.b16 %v3552
    %v4437 = vunpack.c.l.b16 %v3553
    %v4438 = vunpack.c.h.b16 %v3553
    %v4439 = vunpack.c.l.b16 %v3554
    %v4440 = vunpack.c.h.b16 %v3554
    %v4441 = vunpack.c.l.b16 %v3555
    %v4442 = vunpack.c.h.b16 %v3555
    %v4443 = vunpack.c.l.b16 %v3556
    %v4444 = vunpack.c.h.b16 %v3556
    %v4445 = vunpack.c.l.b16 %v3557
    %v4446 = vunpack.c.h.b16 %v3557
    %v4447 = vunpack.c.l.b16 %v3558
    %v4448 = vunpack.c.h.b16 %v3558
    %v4449 = vunpack.c.l.b16 %v3559
    %v4450 = vunpack.c.h.b16 %v3559
    %v4451 = vunpack.c.l.b16 %v3560
    %v4452 = vunpack.c.h.b16 %v3560
    %v4453 = vpack.c.b16 %v3889, %v3877
    %v4454 = vpack.c.b16 %v3890, %v3878
    %v4455 = vpack.c.b16 %v3891, %v3879
    %v4456 = vpack.c.b16 %v3892, %v3880
    %v4457 = vpack.c.b16 %v3893, %v3881
    %v4458 = vpack.c.b16 %v3894, %v3882
    %v4459 = vpack.c.b16 %v3895, %v3883
    %v4460 = vpack.c.b16 %v3896, %v3884
    %v4461 = vpack.c.b16 %v3897, %v3885
    %v4462 = vpack.c.b16 %v3898, %v3886
    %v4463 = vpack.c.b16 %v3899, %v3887
    %v4464 = vpack.c.b16 %v3900, %v3888
    %v4465 = vpack.c.b16 %v3913, %v3901
    %v4466 = vpack.c.b16 %v3914, %v3902
    %v4467 = vpack.c.b16 %v3915, %v3903
    %v4468 = vpack.c.b16 %v3916, %v3904
    %v4469 = vpack.c.b16 %v3917, %v3905
    %v4470 = vpack.c.b16 %v3918, %v3906
    %v4471 = vpack.c.b16 %v3919, %v3907
    %v4472 = vpack.c.b16 %v3920, %v3908
    %v4473 = vpack.c.b16 %v3921, %v3909
    %v4474 = vpack.c.b16 %v3922, %v3910
    %v4475 = vpack.c.b16 %v3923, %v3911
    %v4476 = vpack.c.b16 %v3924, %v3912
    %v4477 = vpack.c.b16 %v3937, %v3925
    %v4478 = vpack.c.b16 %v3938, %v3926
    %v4479 = vpack.c.b16 %v3939, %v3927
    %v4480 = vpack.c.b16 %v3940, %v3928
    %v4481 = vpack.c.b16 %v3941, %v3929
    %v4482 = vpack.c.b16 %v3942, %v3930
    %v4483 = vpack.c.b16 %v3943, %v3931
    %v4484 = vpack.c.b16 %v3944, %v3932
    %v4485 = vpack.c.b16 %v3945, %v3933
    %v4486 = vpack.c.b16 %v3946, %v3934
    %v4487 = vpack.c.b16 %v3947, %v3935
    %v4488 = vpack.c.b16 %v3948, %v3936
    %v4489 = vpack.c.b16 %v3961, %v3949
    %v4490 = vpack.c.b16 %v3962, %v3950
    %v4491 = vpack.c.b16 %v3963, %v3951
    %v4492 = vpack.c.b16 %v3964, %v3952
    %v4493 = vpack.c.b16 %v3965, %v3953
    %v4494 = vpack.c.b16 %v3966, %v3954
    %v4495 = vpack.c.b16 %v3967, %v3955
    %v4496 = vpack.c.b16 %v3968, %v3956
    %v4497 = vpack.c.b16 %v3969, %v3957
    %v4498 = vpack.c.b16 %v3970, %v3958
    %v4499 = vpack.c.b16 %v3971, %v3959
    %v4500 = vpack.c.b16 %v3972, %v3960
    %v4501 = vpack.c.b16 %v3985, %v3973
    %v4502 = vpack.c.b16 %v3986, %v3974
    %v4503 = vpack.c.b16 %v3987, %v3975
    %v4504 = vpack.c.b16 %v3988, %v3976
    %v4505 = vpack.c.b16 %v3989, %v3977
    %v4506 = vpack.c.b16 %v3990, %v3978
    %v4507 = vpack.c.b16 %v3991, %v3979
    %v4508 = vpack.c.b16 %v3992, %v3980
    %v4509 = vpack.c.b16 %v3993, %v3981
    %v4510 = vpack.c.b16 %v3994, %v3982
    %v4511 = vpack.c.b16 %v3995, %v3983
    %v4512 = vpack.c.b16 %v3996, %v3984
    %v4513 = vpack.c.b16 %v4009, %v3997
    %v4514 = vpack.c.b16 %v4010, %v3998
    %v4515 = vpack.c.b16 %v4011, %v3999
    %v4516 = vpack.c.b16 %v4012, %v4000
    %v4517 = vpack.c.b16 %v4013, %v4001
    %v4518 = vpack.c.b16 %v4014, %v4002
    %v4519 = vpack.c.b16 %v4015, %v4003
    %v4520 = vpack.c.b16 %v4016, %v4004
    %v4521 = vpack.c.b16 %v4017, %v4005
    %v4522 = vpack.c.b16 %v4018, %v4006
    %v4523 = vpack.c.b16 %v4019, %v4007
    %v4524 = vpack.c.b16 %v4020, %v4008
    %v4525 = vpack.c.b16 %v4033, %v4021
    %v4526 = vpack.c.b16 %v4034, %v4022
    %v4527 = vpack.c.b16 %v4035, %v4023
    %v4528 = vpack.c.b16 %v4036, %v4024
    %v4529 = vpack.c.b16 %v4037, %v4025
    %v4530 = vpack.c.b16 %v4038, %v4026
    %v4531 = vpack.c.b16 %v4039, %v4027
    %v4532 = vpack.c.b16 %v4040, %v4028
    %v4533 = vpack.c.b16 %v4041, %v4029
    %v4534 = vpack.c.b16 %v4042, %v4030
    %v4535 = vpack.c.b16 %v4043, %v4031
    %v4536 = vpack.c.b16 %v4044, %v4032
    %v4537 = vpack.c.b16 %v4057, %v4045
    %v4538 = vpack.c.b16 %v4058, %v4046
    %v4539 = vpack.c.b16 %v4059, %v4047
    %v4540 = vpack.c.b16 %v4060, %v4048
    %v4541 = vpack.c.b16 %v4061, %v4049
    %v4542 = vpack.c.b16 %v4062, %v4050
    %v4543 = vpack.c.b16 %v4063, %v4051
    %v4544 = vpack.c.b16 %v4064, %v4052
    %v4545 = vpack.c.b16 %v4065, %v4053
    %v4546 = vpack.c.b16 %v4066, %v4054
    %v4547 = vpack.c.b16 %v4067, %v4055
    %v4548 = vpack.c.b16 %v4068, %v4056
    %v4549 = vpack.c.b16 %v4081, %v4069
    %v4550 = vpack.c.b16 %v4082, %v4070
    %v4551 = vpack.c.b16 %v4083, %v4071
    %v4552 = vpack.c.b16 %v4084, %v4072
    %v4553 = vpack.c.b16 %v4085, %v4073
    %v4554 = vpack.c.b16 %v4086, %v4074
    %v4555 = vpack.c.b16 %v4087, %v4075
    %v4556 = vpack.c.b16 %v4088, %v4076
    %v4557 = vpack.c.b16 %v4089, %v4077
    %v4558 = vpack.c.b16 %v4090, %v4078
    %v4559 = vpack.c.b16 %v4091, %v4079
    %v4560 = vpack.c.b16 %v4092, %v4080
    %v4561 = vpack.c.b16 %v4105, %v4093
    %v4562 = vpack.c.b16 %v4106, %v4094
    %v4563 = vpack.c.b16 %v4107, %v4095
    %v4564 = vpack.c.b16 %v4108, %v4096
    %v4565 = vpack.c.b16 %v4109, %v4097
    %v4566 = vpack.c.b16 %v4110, %v4098
    %v4567 = vpack.c.b16 %v4111, %v4099
    %v4568 = vpack.c.b16 %v4112, %v4100
    %v4569 = vpack.c.b16 %v4113, %v4101
    %v4570 = vpack.c.b16 %v4114, %v4102
    %v4571 = vpack.c.b16 %v4115, %v4103
    %v4572 = vpack.c.b16 %v4116, %v4104
    %v4573 = vpack.c.b16 %v4129, %v4117
    %v4574 = vpack.c.b16 %v4130, %v4118
    %v4575 = vpack.c.b16 %v4131, %v4119
    %v4576 = vpack.c.b16 %v4132, %v4120
    %v4577 = vpack.c.b16 %v4133, %v4121
    %v4578 = vpack.c.b16 %v4134, %v4122
    %v4579 = vpack.c.b16 %v4135, %v4123
    %v4580 = vpack.c.b16 %v4136, %v4124
    %v4581 = vpack.c.b16 %v4137, %v4125
    %v4582 = vpack.c.b16 %v4138, %v4126
    %v4583 = vpack.c.b16 %v4139, %v4127
    %v4584 = vpack.c.b16 %v4140, %v4128
    %v4585 = vpack.c.b16 %v4153, %v4141
    %v4586 = vpack.c.b16 %v4154, %v4142
    %v4587 = vpack.c.b16 %v4155, %v4143
    %v4588 = vpack.c.b16 %v4156, %v4144
    %v4589 = vpack.c.b16 %v4157, %v4145
    %v4590 = vpack.c.b16 %v4158, %v4146
    %v4591 = vpack.c.b16 %v4159, %v4147
    %v4592 = vpack.c.b16 %v4160, %v4148
    %v4593 = vpack.c.b16 %v4161, %v4149
    %v4594 = vpack.c.b16 %v4162, %v4150
    %v4595 = vpack.c.b16 %v4163, %v4151
    %v4596 = vpack.c.b16 %v4164, %v4152
    %v4597 = vpack.c.b16 %v4177, %v4165
    %v4598 = vpack.c.b16 %v4178, %v4166
    %v4599 = vpack.c.b16 %v4179, %v4167
    %v4600 = vpack.c.b16 %v4180, %v4168
    %v4601 = vpack.c.b16 %v4181, %v4169
    %v4602 = vpack.c.b16 %v4182, %v4170
    %v4603 = vpack.c.b16 %v4183, %v4171
    %v4604 = vpack.c.b16 %v4184, %v4172
    %v4605 = vpack.c.b16 %v4185, %v4173
    %v4606 = vpack.c.b16 %v4186, %v4174
    %v4607 = vpack.c.b16 %v4187, %v4175
    %v4608 = vpack.c.b16 %v4188, %v4176
    %v4609 = vpack.c.b16 %v4201, %v4189
    %v4610 = vpack.c.b16 %v4202, %v4190
    %v4611 = vpack.c.b16 %v4203, %v4191
    %v4612 = vpack.c.b16 %v4204, %v4192
    %v4613 = vpack.c.b16 %v4205, %v4193
    %v4614 = vpack.c.b16 %v4206, %v4194
    %v4615 = vpack.c.b16 %v4207, %v4195
    %v4616 = vpack.c.b16 %v4208, %v4196
    %v4617 = vpack.c.b16 %v4209, %v4197
    %v4618 = vpack.c.b16 %v4210, %v4198
    %v4619 = vpack.c.b16 %v4211, %v4199
    %v4620 = vpack.c.b16 %v4212, %v4200
    %v4621 = vpack.c.b16 %v4225, %v4213
    %v4622 = vpack.c.b16 %v4226, %v4214
    %v4623 = vpack.c.b16 %v4227, %v4215
    %v4624 = vpack.c.b16 %v4228, %v4216
    %v4625 = vpack.c.b16 %v4229, %v4217
    %v4626 = vpack.c.b16 %v4230, %v4218
    %v4627 = vpack.c.b16 %v4231, %v4219
    %v4628 = vpack.c.b16 %v4232, %v4220
    %v4629 = vpack.c.b16 %v4233, %v4221
    %v4630 = vpack.c.b16 %v4234, %v4222
    %v4631 = vpack.c.b16 %v4235, %v4223
    %v4632 = vpack.c.b16 %v4236, %v4224
    %v4633 = vpack.c.b16 %v4249, %v4237
    %v4634 = vpack.c.b16 %v4250, %v4238
    %v4635 = vpack.c.b16 %v4251, %v4239
    %v4636 = vpack.c.b16 %v4252, %v4240
    %v4637 = vpack.c.b16 %v4253, %v4241
    %v4638 = vpack.c.b16 %v4254, %v4242
    %v4639 = vpack.c.b16 %v4255, %v4243
    %v4640 = vpack.c.b16 %v4256, %v4244
    %v4641 = vpack.c.b16 %v4257, %v4245
    %v4642 = vpack.c.b16 %v4258, %v4246
    %v4643 = vpack.c.b16 %v4259, %v4247
    %v4644 = vpack.c.b16 %v4260, %v4248
    %v4645 = vpack.c.b16 %v4273, %v4261
    %v4646 = vpack.c.b16 %v4274, %v4262
    %v4647 = vpack.c.b16 %v4275, %v4263
    %v4648 = vpack.c.b16 %v4276, %v4264
    %v4649 = vpack.c.b16 %v4277, %v4265
    %v4650 = vpack.c.b16 %v4278, %v4266
    %v4651 = vpack.c.b16 %v4279, %v4267
    %v4652 = vpack.c.b16 %v4280, %v4268
    %v4653 = vpack.c.b16 %v4281, %v4269
    %v4654 = vpack.c.b16 %v4282, %v4270
    %v4655 = vpack.c.b16 %v4283, %v4271
    %v4656 = vpack.c.b16 %v4284, %v4272
    %v4657 = vpack.c.b16 %v4297, %v4285
    %v4658 = vpack.c.b16 %v4298, %v4286
    %v4659 = vpack.c.b16 %v4299, %v4287
    %v4660 = vpack.c.b16 %v4300, %v4288
    %v4661 = vpack.c.b16 %v4301, %v4289
    %v4662 = vpack.c.b16 %v4302, %v4290
    %v4663 = vpack.c.b16 %v4303, %v4291
    %v4664 = vpack.c.b16 %v4304, %v4292
    %v4665 = vpack.c.b16 %v4305, %v4293
    %v4666 = vpack.c.b16 %v4306, %v4294
    %v4667 = vpack.c.b16 %v4307, %v4295
    %v4668 = vpack.c.b16 %v4308, %v4296
    %v4669 = vpack.c.b16 %v4321, %v4309
    %v4670 = vpack.c.b16 %v4322, %v4310
    %v4671 = vpack.c.b16 %v4323, %v4311
    %v4672 = vpack.c.b16 %v4324, %v4312
    %v4673 = vpack.c.b16 %v4325, %v4313
    %v4674 = vpack.c.b16 %v4326, %v4314
    %v4675 = vpack.c.b16 %v4327, %v4315
    %v4676 = vpack.c.b16 %v4328, %v4316
    %v4677 = vpack.c.b16 %v4329, %v4317
    %v4678 = vpack.c.b16 %v4330, %v4318
    %v4679 = vpack.c.b16 %v4331, %v4319
    %v4680 = vpack.c.b16 %v4332, %v4320
    %v4681 = vpack.c.b16 %v4345, %v4333
    %v4682 = vpack.c.b16 %v4346, %v4334
    %v4683 = vpack.c.b16 %v4347, %v4335
    %v4684 = vpack.c.b16 %v4348, %v4336
    %v4685 = vpack.c.b16 %v4349, %v4337
    %v4686 = vpack.c.b16 %v4350, %v4338
    %v4687 = vpack.c.b16 %v4351, %v4339
    %v4688 = vpack.c.b16 %v4352, %v4340
    %v4689 = vpack.c.b16 %v4353, %v4341
    %v4690 = vpack.c.b16 %v4354, %v4342
    %v4691 = vpack.c.b16 %v4355, %v4343
    %v4692 = vpack.c.b16 %v4356, %v4344
    %v4693 = vpack.c.b16 %v4369, %v4357
    %v4694 = vpack.c.b16 %v4370, %v4358
    %v4695 = vpack.c.b16 %v4371, %v4359
    %v4696 = vpack.c.b16 %v4372, %v4360
    %v4697 = vpack.c.b16 %v4373, %v4361
    %v4698 = vpack.c.b16 %v4374, %v4362
    %v4699 = vpack.c.b16 %v4375, %v4363
    %v4700 = vpack.c.b16 %v4376, %v4364
    %v4701 = vpack.c.b16 %v4377, %v4365
    %v4702 = vpack.c.b16 %v4378, %v4366
    %v4703 = vpack.c.b16 %v4379, %v4367
    %v4704 = vpack.c.b16 %v4380, %v4368
    %v4705 = vpack.c.b16 %v4393, %v4381
    %v4706 = vpack.c.b16 %v4394, %v4382
    %v4707 = vpack.c.b16 %v4395, %v4383
    %v4708 = vpack.c.b16 %v4396, %v4384
    %v4709 = vpack.c.b16 %v4397, %v4385
    %v4710 = vpack.c.b16 %v4398, %v4386
    %v4711 = vpack.c.b16 %v4399, %v4387
    %v4712 = vpack.c.b16 %v4400, %v4388
    %v4713 = vpack.c.b16 %v4401, %v4389
    %v4714 = vpack.c.b16 %v4402, %v4390
    %v4715 = vpack.c.b16 %v4403, %v4391
    %v4716 = vpack.c.b16 %v4404, %v4392
    %v4717 = vpack.c.b16 %v4417, %v4405
    %v4718 = vpack.c.b16 %v4418, %v4406
    %v4719 = vpack.c.b16 %v4419, %v4407
    %v4720 = vpack.c.b16 %v4420, %v4408
    %v4721 = vpack.c.b16 %v4421, %v4409
    %v4722 = vpack.c.b16 %v4422, %v4410
    %v4723 = vpack.c.b16 %v4423, %v4411
    %v4724 = vpack.c.b16 %v4424, %v4412
    %v4725 = vpack.c.b16 %v4425, %v4413
    %v4726 = vpack.c.b16 %v4426, %v4414
    %v4727 = vpack.c.b16 %v4427, %v4415
    %v4728 = vpack.c.b16 %v4428, %v4416
    %v4729 = vpack.c.b16 %v4441, %v4429
    %v4730 = vpack.c.b16 %v4442, %v4430
    %v4731 = vpack.c.b16 %v4443, %v4431
    %v4732 = vpack.c.b16 %v4444, %v4432
    %v4733 = vpack.c.b16 %v4445, %v4433
    %v4734 = vpack.c.b16 %v4446, %v4434
    %v4735 = vpack.c.b16 %v4447, %v4435
    %v4736 = vpack.c.b16 %v4448, %v4436
    %v4737 = vpack.c.b16 %v4449, %v4437
    %v4738 = vpack.c.b16 %v4450, %v4438
    %v4739 = vpack.c.b16 %v4451, %v4439
    %v4740 = vpack.c.b16 %v4452, %v4440
    %5029 = vmatpush.bf16.msra.mxu0 %v4537
    %5030 = vmatpush.bf16.msra.mxu0 %v4525
    %5031 = vmatpush.bf16.msra.mxu0 %v4513
    %5032 = vmatpush.bf16.msra.mxu0 %v4501
    %5033 = vmatpush.bf16.msra.mxu0 %v4489
    %5034 = vmatpush.bf16.msra.mxu0 %v4477
    %5035 = vmatpush.bf16.msra.mxu0 %v4465
    %5036 = vmatpush.bf16.msra.mxu0 %v4453
    %5037 = vmatmul.bf16.gmra.mxu0 %v3270
    %v5038 = vpop.f32.mrf.mxu0
    %v5039 = vadd.f32 %v3565, %v5038
    %v5040 = vpop.f32.mrf.mxu0
    %v5041 = vadd.f32 %v3565, %v5040
    %5042 = vdwg.mxu0
    %5043 = vmatpush.bf16.msra.mxu0 %v4633
    %5044 = vmatpush.bf16.msra.mxu0 %v4621
    %5045 = vmatpush.bf16.msra.mxu0 %v4609
    %5046 = vmatpush.bf16.msra.mxu0 %v4597
    %5047 = vmatpush.bf16.msra.mxu0 %v4585
    %5048 = vmatpush.bf16.msra.mxu0 %v4573
    %5049 = vmatpush.bf16.msra.mxu0 %v4561
    %5050 = vmatpush.bf16.msra.mxu0 %v4549
    %5051 = vmatmul.bf16.gmra.mxu0 %v3271
    %v5052 = vpop.f32.mrf.mxu0
    %v5053 = vadd.f32 %v5039, %v5052
    %v5054 = vpop.f32.mrf.mxu0
    %v5055 = vadd.f32 %v5041, %v5054
    %5056 = vdwg.mxu0
    %5057 = vmatpush.bf16.msra.mxu0 %v4729
    %5058 = vmatpush.bf16.msra.mxu0 %v4717
    %5059 = vmatpush.bf16.msra.mxu0 %v4705
    %5060 = vmatpush.bf16.msra.mxu0 %v4693
    %5061 = vmatpush.bf16.msra.mxu0 %v4681
    %5062 = vmatpush.bf16.msra.mxu0 %v4669
    %5063 = vmatpush.bf16.msra.mxu0 %v4657
    %5064 = vmatpush.bf16.msra.mxu0 %v4645
    %5065 = vmatmul.bf16.gmra.mxu0 %v3272
    %v5066 = vpop.f32.mrf.mxu0
    %v5067 = vadd.f32 %v5053, %v5066
    %v5068 = vpop.f32.mrf.mxu0
    %v5069 = vadd.f32 %v5055, %v5068
    %5070 = vdwg.mxu0
    %5071 = vmatpush.bf16.msra.mxu0 %v4538
    %5072 = vmatpush.bf16.msra.mxu0 %v4526
    %5073 = vmatpush.bf16.msra.mxu0 %v4514
    %5074 = vmatpush.bf16.msra.mxu0 %v4502
    %5075 = vmatpush.bf16.msra.mxu0 %v4490
    %5076 = vmatpush.bf16.msra.mxu0 %v4478
    %5077 = vmatpush.bf16.msra.mxu0 %v4466
    %5078 = vmatpush.bf16.msra.mxu0 %v4454
    %5079 = vmatmul.bf16.gmra.mxu0 %v3270
    %v5080 = vpop.f32.mrf.mxu0
    %v5081 = vadd.f32 %v3566, %v5080
    %v5082 = vpop.f32.mrf.mxu0
    %v5083 = vadd.f32 %v3566, %v5082
    %5084 = vdwg.mxu0
    %5085 = vmatpush.bf16.msra.mxu0 %v4634
    %5086 = vmatpush.bf16.msra.mxu0 %v4622
    %5087 = vmatpush.bf16.msra.mxu0 %v4610
    %5088 = vmatpush.bf16.msra.mxu0 %v4598
    %5089 = vmatpush.bf16.msra.mxu0 %v4586
    %5090 = vmatpush.bf16.msra.mxu0 %v4574
    %5091 = vmatpush.bf16.msra.mxu0 %v4562
    %5092 = vmatpush.bf16.msra.mxu0 %v4550
    %5093 = vmatmul.bf16.gmra.mxu0 %v3271
    %v5094 = vpop.f32.mrf.mxu0
    %v5095 = vadd.f32 %v5081, %v5094
    %v5096 = vpop.f32.mrf.mxu0
    %v5097 = vadd.f32 %v5083, %v5096
    %5098 = vdwg.mxu0
    %5099 = vmatpush.bf16.msra.mxu0 %v4730
    %5100 = vmatpush.bf16.msra.mxu0 %v4718
    %5101 = vmatpush.bf16.msra.mxu0 %v4706
    %5102 = vmatpush.bf16.msra.mxu0 %v4694
    %5103 = vmatpush.bf16.msra.mxu0 %v4682
    %5104 = vmatpush.bf16.msra.mxu0 %v4670
    %5105 = vmatpush.bf16.msra.mxu0 %v4658
    %5106 = vmatpush.bf16.msra.mxu0 %v4646
    %5107 = vmatmul.bf16.gmra.mxu0 %v3272
    %v5108 = vpop.f32.mrf.mxu0
    %v5109 = vadd.f32 %v5095, %v5108
    %v5110 = vpop.f32.mrf.mxu0
    %v5111 = vadd.f32 %v5097, %v5110
    %5112 = vdwg.mxu0
    %5113 = vmatpush.bf16.msra.mxu0 %v4539
    %5114 = vmatpush.bf16.msra.mxu0 %v4527
    %5115 = vmatpush.bf16.msra.mxu0 %v4515
    %5116 = vmatpush.bf16.msra.mxu0 %v4503
    %5117 = vmatpush.bf16.msra.mxu0 %v4491
    %5118 = vmatpush.bf16.msra.mxu0 %v4479
    %5119 = vmatpush.bf16.msra.mxu0 %v4467
    %5120 = vmatpush.bf16.msra.mxu0 %v4455
    %5121 = vmatmul.bf16.gmra.mxu0 %v3270
    %v5122 = vpop.f32.mrf.mxu0
    %v5123 = vadd.f32 %v3567, %v5122
    %v5124 = vpop.f32.mrf.mxu0
    %v5125 = vadd.f32 %v3567, %v5124
    %5126 = vdwg.mxu0
    %5127 = vmatpush.bf16.msra.mxu0 %v4635
    %5128 = vmatpush.bf16.msra.mxu0 %v4623
    %5129 = vmatpush.bf16.msra.mxu0 %v4611
    %5130 = vmatpush.bf16.msra.mxu0 %v4599
    %5131 = vmatpush.bf16.msra.mxu0 %v4587
    %5132 = vmatpush.bf16.msra.mxu0 %v4575
    %5133 = vmatpush.bf16.msra.mxu0 %v4563
    %5134 = vmatpush.bf16.msra.mxu0 %v4551
    %5135 = vmatmul.bf16.gmra.mxu0 %v3271
    %v5136 = vpop.f32.mrf.mxu0
    %v5137 = vadd.f32 %v5123, %v5136
    %v5138 = vpop.f32.mrf.mxu0
    %v5139 = vadd.f32 %v5125, %v5138
    %5140 = vdwg.mxu0
    %5141 = vmatpush.bf16.msra.mxu0 %v4731
    %5142 = vmatpush.bf16.msra.mxu0 %v4719
    %5143 = vmatpush.bf16.msra.mxu0 %v4707
    %5144 = vmatpush.bf16.msra.mxu0 %v4695
    %5145 = vmatpush.bf16.msra.mxu0 %v4683
    %5146 = vmatpush.bf16.msra.mxu0 %v4671
    %5147 = vmatpush.bf16.msra.mxu0 %v4659
    %5148 = vmatpush.bf16.msra.mxu0 %v4647
    %5149 = vmatmul.bf16.gmra.mxu0 %v3272
    %v5150 = vpop.f32.mrf.mxu0
    %v5151 = vadd.f32 %v5137, %v5150
    %v5152 = vpop.f32.mrf.mxu0
    %v5153 = vadd.f32 %v5139, %v5152
    %5154 = vdwg.mxu0
    %5155 = vmatpush.bf16.msra.mxu0 %v4540
    %5156 = vmatpush.bf16.msra.mxu0 %v4528
    %5157 = vmatpush.bf16.msra.mxu0 %v4516
    %5158 = vmatpush.bf16.msra.mxu0 %v4504
    %5159 = vmatpush.bf16.msra.mxu0 %v4492
    %5160 = vmatpush.bf16.msra.mxu0 %v4480
    %5161 = vmatpush.bf16.msra.mxu0 %v4468
    %5162 = vmatpush.bf16.msra.mxu0 %v4456
    %5163 = vmatmul.bf16.gmra.mxu0 %v3270
    %v5164 = vpop.f32.mrf.mxu0
    %v5165 = vadd.f32 %v3568, %v5164
    %v5166 = vpop.f32.mrf.mxu0
    %v5167 = vadd.f32 %v3568, %v5166
    %5168 = vdwg.mxu0
    %5169 = vmatpush.bf16.msra.mxu0 %v4636
    %5170 = vmatpush.bf16.msra.mxu0 %v4624
    %5171 = vmatpush.bf16.msra.mxu0 %v4612
    %5172 = vmatpush.bf16.msra.mxu0 %v4600
    %5173 = vmatpush.bf16.msra.mxu0 %v4588
    %5174 = vmatpush.bf16.msra.mxu0 %v4576
    %5175 = vmatpush.bf16.msra.mxu0 %v4564
    %5176 = vmatpush.bf16.msra.mxu0 %v4552
    %5177 = vmatmul.bf16.gmra.mxu0 %v3271
    %v5178 = vpop.f32.mrf.mxu0
    %v5179 = vadd.f32 %v5165, %v5178
    %v5180 = vpop.f32.mrf.mxu0
    %v5181 = vadd.f32 %v5167, %v5180
    %5182 = vdwg.mxu0
    %5183 = vmatpush.bf16.msra.mxu0 %v4732
    %5184 = vmatpush.bf16.msra.mxu0 %v4720
    %5185 = vmatpush.bf16.msra.mxu0 %v4708
    %5186 = vmatpush.bf16.msra.mxu0 %v4696
    %5187 = vmatpush.bf16.msra.mxu0 %v4684
    %5188 = vmatpush.bf16.msra.mxu0 %v4672
    %5189 = vmatpush.bf16.msra.mxu0 %v4660
    %5190 = vmatpush.bf16.msra.mxu0 %v4648
    %5191 = vmatmul.bf16.gmra.mxu0 %v3272
    %v5192 = vpop.f32.mrf.mxu0
    %v5193 = vadd.f32 %v5179, %v5192
    %v5194 = vpop.f32.mrf.mxu0
    %v5195 = vadd.f32 %v5181, %v5194
    %5196 = vdwg.mxu0
    %5197 = vmatpush.bf16.msra.mxu0 %v4541
    %5198 = vmatpush.bf16.msra.mxu0 %v4529
    %5199 = vmatpush.bf16.msra.mxu0 %v4517
    %5200 = vmatpush.bf16.msra.mxu0 %v4505
    %5201 = vmatpush.bf16.msra.mxu0 %v4493
    %5202 = vmatpush.bf16.msra.mxu0 %v4481
    %5203 = vmatpush.bf16.msra.mxu0 %v4469
    %5204 = vmatpush.bf16.msra.mxu0 %v4457
    %5205 = vmatmul.bf16.gmra.mxu0 %v3270
    %v5206 = vpop.f32.mrf.mxu0
    %v5207 = vadd.f32 %v3569, %v5206
    %v5208 = vpop.f32.mrf.mxu0
    %v5209 = vadd.f32 %v3569, %v5208
    %5210 = vdwg.mxu0
    %5211 = vmatpush.bf16.msra.mxu0 %v4637
    %5212 = vmatpush.bf16.msra.mxu0 %v4625
    %5213 = vmatpush.bf16.msra.mxu0 %v4613
    %5214 = vmatpush.bf16.msra.mxu0 %v4601
    %5215 = vmatpush.bf16.msra.mxu0 %v4589
    %5216 = vmatpush.bf16.msra.mxu0 %v4577
    %5217 = vmatpush.bf16.msra.mxu0 %v4565
    %5218 = vmatpush.bf16.msra.mxu0 %v4553
    %5219 = vmatmul.bf16.gmra.mxu0 %v3271
    %v5220 = vpop.f32.mrf.mxu0
    %v5221 = vadd.f32 %v5207, %v5220
    %v5222 = vpop.f32.mrf.mxu0
    %v5223 = vadd.f32 %v5209, %v5222
    %5224 = vdwg.mxu0
    %5225 = vmatpush.bf16.msra.mxu0 %v4733
    %5226 = vmatpush.bf16.msra.mxu0 %v4721
    %5227 = vmatpush.bf16.msra.mxu0 %v4709
    %5228 = vmatpush.bf16.msra.mxu0 %v4697
    %5229 = vmatpush.bf16.msra.mxu0 %v4685
    %5230 = vmatpush.bf16.msra.mxu0 %v4673
    %5231 = vmatpush.bf16.msra.mxu0 %v4661
    %5232 = vmatpush.bf16.msra.mxu0 %v4649
    %5233 = vmatmul.bf16.gmra.mxu0 %v3272
    %v5234 = vpop.f32.mrf.mxu0
    %v5235 = vadd.f32 %v5221, %v5234
    %v5236 = vpop.f32.mrf.mxu0
    %v5237 = vadd.f32 %v5223, %v5236
    %5238 = vdwg.mxu0
    %5239 = vmatpush.bf16.msra.mxu0 %v4542
    %5240 = vmatpush.bf16.msra.mxu0 %v4530
    %5241 = vmatpush.bf16.msra.mxu0 %v4518
    %5242 = vmatpush.bf16.msra.mxu0 %v4506
    %5243 = vmatpush.bf16.msra.mxu0 %v4494
    %5244 = vmatpush.bf16.msra.mxu0 %v4482
    %5245 = vmatpush.bf16.msra.mxu0 %v4470
    %5246 = vmatpush.bf16.msra.mxu0 %v4458
    %5247 = vmatmul.bf16.gmra.mxu0 %v3270
    %v5248 = vpop.f32.mrf.mxu0
    %v5249 = vadd.f32 %v3570, %v5248
    %v5250 = vpop.f32.mrf.mxu0
    %v5251 = vadd.f32 %v3570, %v5250
    %5252 = vdwg.mxu0
    %5253 = vmatpush.bf16.msra.mxu0 %v4638
    %5254 = vmatpush.bf16.msra.mxu0 %v4626
    %5255 = vmatpush.bf16.msra.mxu0 %v4614
    %5256 = vmatpush.bf16.msra.mxu0 %v4602
    %5257 = vmatpush.bf16.msra.mxu0 %v4590
    %5258 = vmatpush.bf16.msra.mxu0 %v4578
    %5259 = vmatpush.bf16.msra.mxu0 %v4566
    %5260 = vmatpush.bf16.msra.mxu0 %v4554
    %5261 = vmatmul.bf16.gmra.mxu0 %v3271
    %v5262 = vpop.f32.mrf.mxu0
    %v5263 = vadd.f32 %v5249, %v5262
    %v5264 = vpop.f32.mrf.mxu0
    %v5265 = vadd.f32 %v5251, %v5264
    %5266 = vdwg.mxu0
    %5267 = vmatpush.bf16.msra.mxu0 %v4734
    %5268 = vmatpush.bf16.msra.mxu0 %v4722
    %5269 = vmatpush.bf16.msra.mxu0 %v4710
    %5270 = vmatpush.bf16.msra.mxu0 %v4698
    %5271 = vmatpush.bf16.msra.mxu0 %v4686
    %5272 = vmatpush.bf16.msra.mxu0 %v4674
    %5273 = vmatpush.bf16.msra.mxu0 %v4662
    %5274 = vmatpush.bf16.msra.mxu0 %v4650
    %5275 = vmatmul.bf16.gmra.mxu0 %v3272
    %v5276 = vpop.f32.mrf.mxu0
    %v5277 = vadd.f32 %v5263, %v5276
    %v5278 = vpop.f32.mrf.mxu0
    %v5279 = vadd.f32 %v5265, %v5278
    %5280 = vdwg.mxu0
    %5281 = vmatpush.bf16.msra.mxu0 %v4543
    %5282 = vmatpush.bf16.msra.mxu0 %v4531
    %5283 = vmatpush.bf16.msra.mxu0 %v4519
    %5284 = vmatpush.bf16.msra.mxu0 %v4507
    %5285 = vmatpush.bf16.msra.mxu0 %v4495
    %5286 = vmatpush.bf16.msra.mxu0 %v4483
    %5287 = vmatpush.bf16.msra.mxu0 %v4471
    %5288 = vmatpush.bf16.msra.mxu0 %v4459
    %5289 = vmatmul.bf16.gmra.mxu0 %v3270
    %v5290 = vpop.f32.mrf.mxu0
    %v5291 = vadd.f32 %v3571, %v5290
    %v5292 = vpop.f32.mrf.mxu0
    %v5293 = vadd.f32 %v3571, %v5292
    %5294 = vdwg.mxu0
    %5295 = vmatpush.bf16.msra.mxu0 %v4639
    %5296 = vmatpush.bf16.msra.mxu0 %v4627
    %5297 = vmatpush.bf16.msra.mxu0 %v4615
    %5298 = vmatpush.bf16.msra.mxu0 %v4603
    %5299 = vmatpush.bf16.msra.mxu0 %v4591
    %5300 = vmatpush.bf16.msra.mxu0 %v4579
    %5301 = vmatpush.bf16.msra.mxu0 %v4567
    %5302 = vmatpush.bf16.msra.mxu0 %v4555
    %5303 = vmatmul.bf16.gmra.mxu0 %v3271
    %v5304 = vpop.f32.mrf.mxu0
    %v5305 = vadd.f32 %v5291, %v5304
    %v5306 = vpop.f32.mrf.mxu0
    %v5307 = vadd.f32 %v5293, %v5306
    %5308 = vdwg.mxu0
    %5309 = vmatpush.bf16.msra.mxu0 %v4735
    %5310 = vmatpush.bf16.msra.mxu0 %v4723
    %5311 = vmatpush.bf16.msra.mxu0 %v4711
    %5312 = vmatpush.bf16.msra.mxu0 %v4699
    %5313 = vmatpush.bf16.msra.mxu0 %v4687
    %5314 = vmatpush.bf16.msra.mxu0 %v4675
    %5315 = vmatpush.bf16.msra.mxu0 %v4663
    %5316 = vmatpush.bf16.msra.mxu0 %v4651
    %5317 = vmatmul.bf16.gmra.mxu0 %v3272
    %v5318 = vpop.f32.mrf.mxu0
    %v5319 = vadd.f32 %v5305, %v5318
    %v5320 = vpop.f32.mrf.mxu0
    %v5321 = vadd.f32 %v5307, %v5320
    %5322 = vdwg.mxu0
    %5323 = vmatpush.bf16.msra.mxu0 %v4544
    %5324 = vmatpush.bf16.msra.mxu0 %v4532
    %5325 = vmatpush.bf16.msra.mxu0 %v4520
    %5326 = vmatpush.bf16.msra.mxu0 %v4508
    %5327 = vmatpush.bf16.msra.mxu0 %v4496
    %5328 = vmatpush.bf16.msra.mxu0 %v4484
    %5329 = vmatpush.bf16.msra.mxu0 %v4472
    %5330 = vmatpush.bf16.msra.mxu0 %v4460
    %5331 = vmatmul.bf16.gmra.mxu0 %v3270
    %v5332 = vpop.f32.mrf.mxu0
    %v5333 = vadd.f32 %v3572, %v5332
    %v5334 = vpop.f32.mrf.mxu0
    %v5335 = vadd.f32 %v3572, %v5334
    %5336 = vdwg.mxu0
    %5337 = vmatpush.bf16.msra.mxu0 %v4640
    %5338 = vmatpush.bf16.msra.mxu0 %v4628
    %5339 = vmatpush.bf16.msra.mxu0 %v4616
    %5340 = vmatpush.bf16.msra.mxu0 %v4604
    %5341 = vmatpush.bf16.msra.mxu0 %v4592
    %5342 = vmatpush.bf16.msra.mxu0 %v4580
    %5343 = vmatpush.bf16.msra.mxu0 %v4568
    %5344 = vmatpush.bf16.msra.mxu0 %v4556
    %5345 = vmatmul.bf16.gmra.mxu0 %v3271
    %v5346 = vpop.f32.mrf.mxu0
    %v5347 = vadd.f32 %v5333, %v5346
    %v5348 = vpop.f32.mrf.mxu0
    %v5349 = vadd.f32 %v5335, %v5348
    %5350 = vdwg.mxu0
    %5351 = vmatpush.bf16.msra.mxu0 %v4736
    %5352 = vmatpush.bf16.msra.mxu0 %v4724
    %5353 = vmatpush.bf16.msra.mxu0 %v4712
    %5354 = vmatpush.bf16.msra.mxu0 %v4700
    %5355 = vmatpush.bf16.msra.mxu0 %v4688
    %5356 = vmatpush.bf16.msra.mxu0 %v4676
    %5357 = vmatpush.bf16.msra.mxu0 %v4664
    %5358 = vmatpush.bf16.msra.mxu0 %v4652
    %5359 = vmatmul.bf16.gmra.mxu0 %v3272
    %v5360 = vpop.f32.mrf.mxu0
    %v5361 = vadd.f32 %v5347, %v5360
    %v5362 = vpop.f32.mrf.mxu0
    %v5363 = vadd.f32 %v5349, %v5362
    %5364 = vdwg.mxu0
    %5365 = vmatpush.bf16.msra.mxu0 %v4545
    %5366 = vmatpush.bf16.msra.mxu0 %v4533
    %5367 = vmatpush.bf16.msra.mxu0 %v4521
    %5368 = vmatpush.bf16.msra.mxu0 %v4509
    %5369 = vmatpush.bf16.msra.mxu0 %v4497
    %5370 = vmatpush.bf16.msra.mxu0 %v4485
    %5371 = vmatpush.bf16.msra.mxu0 %v4473
    %5372 = vmatpush.bf16.msra.mxu0 %v4461
    %5373 = vmatmul.bf16.gmra.mxu0 %v3270
    %v5374 = vpop.f32.mrf.mxu0
    %v5375 = vadd.f32 %v3573, %v5374
    %v5376 = vpop.f32.mrf.mxu0
    %v5377 = vadd.f32 %v3573, %v5376
    %5378 = vdwg.mxu0
    %5379 = vmatpush.bf16.msra.mxu0 %v4641
    %5380 = vmatpush.bf16.msra.mxu0 %v4629
    %5381 = vmatpush.bf16.msra.mxu0 %v4617
    %5382 = vmatpush.bf16.msra.mxu0 %v4605
    %5383 = vmatpush.bf16.msra.mxu0 %v4593
    %5384 = vmatpush.bf16.msra.mxu0 %v4581
    %5385 = vmatpush.bf16.msra.mxu0 %v4569
    %5386 = vmatpush.bf16.msra.mxu0 %v4557
    %5387 = vmatmul.bf16.gmra.mxu0 %v3271
    %v5388 = vpop.f32.mrf.mxu0
    %v5389 = vadd.f32 %v5375, %v5388
    %v5390 = vpop.f32.mrf.mxu0
    %v5391 = vadd.f32 %v5377, %v5390
    %5392 = vdwg.mxu0
    %5393 = vmatpush.bf16.msra.mxu0 %v4737
    %5394 = vmatpush.bf16.msra.mxu0 %v4725
    %5395 = vmatpush.bf16.msra.mxu0 %v4713
    %5396 = vmatpush.bf16.msra.mxu0 %v4701
    %5397 = vmatpush.bf16.msra.mxu0 %v4689
    %5398 = vmatpush.bf16.msra.mxu0 %v4677
    %5399 = vmatpush.bf16.msra.mxu0 %v4665
    %5400 = vmatpush.bf16.msra.mxu0 %v4653
    %5401 = vmatmul.bf16.gmra.mxu0 %v3272
    %v5402 = vpop.f32.mrf.mxu0
    %v5403 = vadd.f32 %v5389, %v5402
    %v5404 = vpop.f32.mrf.mxu0
    %v5405 = vadd.f32 %v5391, %v5404
    %5406 = vdwg.mxu0
    %5407 = vmatpush.bf16.msra.mxu0 %v4546
    %5408 = vmatpush.bf16.msra.mxu0 %v4534
    %5409 = vmatpush.bf16.msra.mxu0 %v4522
    %5410 = vmatpush.bf16.msra.mxu0 %v4510
    %5411 = vmatpush.bf16.msra.mxu0 %v4498
    %5412 = vmatpush.bf16.msra.mxu0 %v4486
    %5413 = vmatpush.bf16.msra.mxu0 %v4474
    %5414 = vmatpush.bf16.msra.mxu0 %v4462
    %5415 = vmatmul.bf16.gmra.mxu0 %v3270
    %v5416 = vpop.f32.mrf.mxu0
    %v5417 = vadd.f32 %v3574, %v5416
    %v5418 = vpop.f32.mrf.mxu0
    %v5419 = vadd.f32 %v3574, %v5418
    %5420 = vdwg.mxu0
    %5421 = vmatpush.bf16.msra.mxu0 %v4642
    %5422 = vmatpush.bf16.msra.mxu0 %v4630
    %5423 = vmatpush.bf16.msra.mxu0 %v4618
    %5424 = vmatpush.bf16.msra.mxu0 %v4606
    %5425 = vmatpush.bf16.msra.mxu0 %v4594
    %5426 = vmatpush.bf16.msra.mxu0 %v4582
    %5427 = vmatpush.bf16.msra.mxu0 %v4570
    %5428 = vmatpush.bf16.msra.mxu0 %v4558
    %5429 = vmatmul.bf16.gmra.mxu0 %v3271
    %v5430 = vpop.f32.mrf.mxu0
    %v5431 = vadd.f32 %v5417, %v5430
    %v5432 = vpop.f32.mrf.mxu0
    %v5433 = vadd.f32 %v5419, %v5432
    %5434 = vdwg.mxu0
    %5435 = vmatpush.bf16.msra.mxu0 %v4738
    %5436 = vmatpush.bf16.msra.mxu0 %v4726
    %5437 = vmatpush.bf16.msra.mxu0 %v4714
    %5438 = vmatpush.bf16.msra.mxu0 %v4702
    %5439 = vmatpush.bf16.msra.mxu0 %v4690
    %5440 = vmatpush.bf16.msra.mxu0 %v4678
    %5441 = vmatpush.bf16.msra.mxu0 %v4666
    %5442 = vmatpush.bf16.msra.mxu0 %v4654
    %5443 = vmatmul.bf16.gmra.mxu0 %v3272
    %v5444 = vpop.f32.mrf.mxu0
    %v5445 = vadd.f32 %v5431, %v5444
    %v5446 = vpop.f32.mrf.mxu0
    %v5447 = vadd.f32 %v5433, %v5446
    %5448 = vdwg.mxu0
    %5449 = vmatpush.bf16.msra.mxu0 %v4547
    %5450 = vmatpush.bf16.msra.mxu0 %v4535
    %5451 = vmatpush.bf16.msra.mxu0 %v4523
    %5452 = vmatpush.bf16.msra.mxu0 %v4511
    %5453 = vmatpush.bf16.msra.mxu0 %v4499
    %5454 = vmatpush.bf16.msra.mxu0 %v4487
    %5455 = vmatpush.bf16.msra.mxu0 %v4475
    %5456 = vmatpush.bf16.msra.mxu0 %v4463
    %5457 = vmatmul.bf16.gmra.mxu0 %v3270
    %v5458 = vpop.f32.mrf.mxu0
    %v5459 = vadd.f32 %v3575, %v5458
    %v5460 = vpop.f32.mrf.mxu0
    %v5461 = vadd.f32 %v3575, %v5460
    %5462 = vdwg.mxu0
    %5463 = vmatpush.bf16.msra.mxu0 %v4643
    %5464 = vmatpush.bf16.msra.mxu0 %v4631
    %5465 = vmatpush.bf16.msra.mxu0 %v4619
    %5466 = vmatpush.bf16.msra.mxu0 %v4607
    %5467 = vmatpush.bf16.msra.mxu0 %v4595
    %5468 = vmatpush.bf16.msra.mxu0 %v4583
    %5469 = vmatpush.bf16.msra.mxu0 %v4571
    %5470 = vmatpush.bf16.msra.mxu0 %v4559
    %5471 = vmatmul.bf16.gmra.mxu0 %v3271
    %v5472 = vpop.f32.mrf.mxu0
    %v5473 = vadd.f32 %v5459, %v5472
    %v5474 = vpop.f32.mrf.mxu0
    %v5475 = vadd.f32 %v5461, %v5474
    %5476 = vdwg.mxu0
    %5477 = vmatpush.bf16.msra.mxu0 %v4739
    %5478 = vmatpush.bf16.msra.mxu0 %v4727
    %5479 = vmatpush.bf16.msra.mxu0 %v4715
    %5480 = vmatpush.bf16.msra.mxu0 %v4703
    %5481 = vmatpush.bf16.msra.mxu0 %v4691
    %5482 = vmatpush.bf16.msra.mxu0 %v4679
    %5483 = vmatpush.bf16.msra.mxu0 %v4667
    %5484 = vmatpush.bf16.msra.mxu0 %v4655
    %5485 = vmatmul.bf16.gmra.mxu0 %v3272
    %v5486 = vpop.f32.mrf.mxu0
    %v5487 = vadd.f32 %v5473, %v5486
    %v5488 = vpop.f32.mrf.mxu0
    %v5489 = vadd.f32 %v5475, %v5488
    %5490 = vdwg.mxu0
    %5491 = vmatpush.bf16.msra.mxu0 %v4548
    %5492 = vmatpush.bf16.msra.mxu0 %v4536
    %5493 = vmatpush.bf16.msra.mxu0 %v4524
    %5494 = vmatpush.bf16.msra.mxu0 %v4512
    %5495 = vmatpush.bf16.msra.mxu0 %v4500
    %5496 = vmatpush.bf16.msra.mxu0 %v4488
    %5497 = vmatpush.bf16.msra.mxu0 %v4476
    %5498 = vmatpush.bf16.msra.mxu0 %v4464
    %5499 = vmatmul.bf16.gmra.mxu0 %v3270
    %v5500 = vpop.f32.mrf.mxu0
    %v5501 = vadd.f32 %v3576, %v5500
    %v5502 = vpop.f32.mrf.mxu0
    %v5503 = vadd.f32 %v3576, %v5502
    %5504 = vdwg.mxu0
    %5505 = vmatpush.bf16.msra.mxu0 %v4644
    %5506 = vmatpush.bf16.msra.mxu0 %v4632
    %5507 = vmatpush.bf16.msra.mxu0 %v4620
    %5508 = vmatpush.bf16.msra.mxu0 %v4608
    %5509 = vmatpush.bf16.msra.mxu0 %v4596
    %5510 = vmatpush.bf16.msra.mxu0 %v4584
    %5511 = vmatpush.bf16.msra.mxu0 %v4572
    %5512 = vmatpush.bf16.msra.mxu0 %v4560
    %5513 = vmatmul.bf16.gmra.mxu0 %v3271
    %v5514 = vpop.f32.mrf.mxu0
    %v5515 = vadd.f32 %v5501, %v5514
    %v5516 = vpop.f32.mrf.mxu0
    %v5517 = vadd.f32 %v5503, %v5516
    %5518 = vdwg.mxu0
    %5519 = vmatpush.bf16.msra.mxu0 %v4740
    %5520 = vmatpush.bf16.msra.mxu0 %v4728
    %5521 = vmatpush.bf16.msra.mxu0 %v4716
    %5522 = vmatpush.bf16.msra.mxu0 %v4704
    %5523 = vmatpush.bf16.msra.mxu0 %v4692
    %5524 = vmatpush.bf16.msra.mxu0 %v4680
    %5525 = vmatpush.bf16.msra.mxu0 %v4668
    %5526 = vmatpush.bf16.msra.mxu0 %v4656
    %5527 = vmatmul.bf16.gmra.mxu0 %v3272
    %v5528 = vpop.f32.mrf.mxu0
    %v5529 = vadd.f32 %v5515, %v5528
    %v5530 = vpop.f32.mrf.mxu0
    %v5531 = vadd.f32 %v5517, %v5530
    %5532 = vdwg.mxu0
    %v5533 = vmax.f32 %v5067, 0.0
    %v5534 = vmax.f32 %v5109, 0.0
    %v5535 = vmax.f32 %v5151, 0.0
    %v5536 = vmax.f32 %v5193, 0.0
    %v5537 = vmax.f32 %v5235, 0.0
    %v5538 = vmax.f32 %v5277, 0.0
    %v5539 = vmax.f32 %v5319, 0.0
    %v5540 = vmax.f32 %v5361, 0.0
    %v5541 = vmax.f32 %v5403, 0.0
    %v5542 = vmax.f32 %v5445, 0.0
    %v5543 = vmax.f32 %v5487, 0.0
    %v5544 = vmax.f32 %v5529, 0.0
    %v5545 = vmax.f32 %v5069, 0.0
    %v5546 = vmax.f32 %v5111, 0.0
    %v5547 = vmax.f32 %v5153, 0.0
    %v5548 = vmax.f32 %v5195, 0.0
    %v5549 = vmax.f32 %v5237, 0.0
    %v5550 = vmax.f32 %v5279, 0.0
    %v5551 = vmax.f32 %v5321, 0.0
    %v5552 = vmax.f32 %v5363, 0.0
    %v5553 = vmax.f32 %v5405, 0.0
    %v5554 = vmax.f32 %v5447, 0.0
    %v5555 = vmax.f32 %v5489, 0.0
    %v5556 = vmax.f32 %v5531, 0.0
    %v5557 = vpack.c.bf16 %v5545, %v5533
    %v5558 = vpack.c.bf16 %v5546, %v5534
    %v5559 = vpack.c.bf16 %v5547, %v5535
    %v5560 = vpack.c.bf16 %v5548, %v5536
    %v5561 = vpack.c.bf16 %v5549, %v5537
    %v5562 = vpack.c.bf16 %v5550, %v5538
    %v5563 = vpack.c.bf16 %v5551, %v5539
    %v5564 = vpack.c.bf16 %v5552, %v5540
    %v5565 = vpack.c.bf16 %v5553, %v5541
    %v5566 = vpack.c.bf16 %v5554, %v5542
    %v5567 = vpack.c.bf16 %v5555, %v5543
    %v5568 = vpack.c.bf16 %v5556, %v5544
    %v5569 = vld [vmem:[#allocation20] sm:$0xff]
    %v5570 = vld [vmem:[#allocation20 + $0x8] sm:$0xf]
    %v5571 = vld [vmem:[#allocation20 + $0xc] sm:$0xff]
    %v5572 = vld [vmem:[#allocation20 + $0x14] sm:$0xf]
    %v5573 = vld [vmem:[#allocation20 + $0x18] sm:$0xff]
    %v5574 = vld [vmem:[#allocation20 + $0x20] sm:$0xf]
    %v5575 = vld [vmem:[#allocation20 + $0x24] sm:$0xff]
    %v5576 = vld [vmem:[#allocation20 + $0x2c] sm:$0xf]
    %v5577 = vld [vmem:[#allocation20 + $0x30] sm:$0xff]
    %v5578 = vld [vmem:[#allocation20 + $0x38] sm:$0xf]
    %v5579 = vld [vmem:[#allocation20 + $0x3c] sm:$0xff]
    %v5580 = vld [vmem:[#allocation20 + $0x44] sm:$0xf]
    %v5581 = vld [vmem:[#allocation20 + $0x48] sm:$0xff]
    %v5582 = vld [vmem:[#allocation20 + $0x50] sm:$0xf]
    %v5583 = vld [vmem:[#allocation20 + $0x54] sm:$0xff]
    %v5584 = vld [vmem:[#allocation20 + $0x5c] sm:$0xf]
    %v5585 = vld [vmem:[#allocation20 + $0x60] sm:$0xff]
    %v5586 = vld [vmem:[#allocation20 + $0x68] sm:$0xf]
    %v5587 = vld [vmem:[#allocation20 + $0x6c] sm:$0xff]
    %v5588 = vld [vmem:[#allocation20 + $0x74] sm:$0xf]
    %v5589 = vld [vmem:[#allocation20 + $0x78] sm:$0xff]
    %v5590 = vld [vmem:[#allocation20 + $0x80] sm:$0xf]
    %v5591 = vld [vmem:[#allocation20 + $0x84] sm:$0xff]
    %v5592 = vld [vmem:[#allocation20 + $0x8c] sm:$0xf]
    %v5593 = vld [vmem:[#allocation20 + $0x90] sm:$0xff]
    %v5594 = vld [vmem:[#allocation20 + $0x98] sm:$0xf]
    %v5595 = vld [vmem:[#allocation20 + $0x9c] sm:$0xff]
    %v5596 = vld [vmem:[#allocation20 + $0xa4] sm:$0xf]
    %v5597 = vld [vmem:[#allocation20 + $0xa8] sm:$0xff]
    %v5598 = vld [vmem:[#allocation20 + $0xb0] sm:$0xf]
    %v5599 = vld [vmem:[#allocation20 + $0xb4] sm:$0xff]
    %v5600 = vld [vmem:[#allocation20 + $0xbc] sm:$0xf]
    %v5601 = vld [vmem:[#allocation20 + $0xc0] sm:$0xff]
    %v5602 = vld [vmem:[#allocation20 + $0xc8] sm:$0xf]
    %v5603 = vld [vmem:[#allocation20 + $0xcc] sm:$0xff]
    %v5604 = vld [vmem:[#allocation20 + $0xd4] sm:$0xf]
    %v5605 = vld [vmem:[#allocation20 + $0xd8] sm:$0xff]
    %v5606 = vld [vmem:[#allocation20 + $0xe0] sm:$0xf]
    %v5607 = vld [vmem:[#allocation20 + $0xe4] sm:$0xff]
    %v5608 = vld [vmem:[#allocation20 + $0xec] sm:$0xf]
    %v5609 = vld [vmem:[#allocation20 + $0xf0] sm:$0xff]
    %v5610 = vld [vmem:[#allocation20 + $0xf8] sm:$0xf]
    %v5611 = vld [vmem:[#allocation20 + $0xfc] sm:$0xff]
    %v5612 = vld [vmem:[#allocation20 + $0x104] sm:$0xf]
    %v5613 = vld [vmem:[#allocation20 + $0x108] sm:$0xff]
    %v5614 = vld [vmem:[#allocation20 + $0x110] sm:$0xf]
    %v5615 = vld [vmem:[#allocation20 + $0x114] sm:$0xff]
    %v5616 = vld [vmem:[#allocation20 + $0x11c] sm:$0xf]
    %v5617 = vld [vmem:[#allocation20 + $0x120] sm:$0xff]
    %v5618 = vld [vmem:[#allocation20 + $0x128] sm:$0xf]
    %v5619 = vld [vmem:[#allocation20 + $0x12c] sm:$0xff]
    %v5620 = vld [vmem:[#allocation20 + $0x134] sm:$0xf]
    %v5621 = vld [vmem:[#allocation20 + $0x138] sm:$0xff]
    %v5622 = vld [vmem:[#allocation20 + $0x140] sm:$0xf]
    %v5623 = vld [vmem:[#allocation20 + $0x144] sm:$0xff]
    %v5624 = vld [vmem:[#allocation20 + $0x14c] sm:$0xf]
    %v5625 = vld [vmem:[#allocation20 + $0x150] sm:$0xff]
    %v5626 = vld [vmem:[#allocation20 + $0x158] sm:$0xf]
    %v5627 = vld [vmem:[#allocation20 + $0x15c] sm:$0xff]
    %v5628 = vld [vmem:[#allocation20 + $0x164] sm:$0xf]
    %v5629 = vld [vmem:[#allocation20 + $0x168] sm:$0xff]
    %v5630 = vld [vmem:[#allocation20 + $0x170] sm:$0xf]
    %v5631 = vld [vmem:[#allocation20 + $0x174] sm:$0xff]
    %v5632 = vld [vmem:[#allocation20 + $0x17c] sm:$0xf]
    %v5633 = vld [vmem:[#allocation20 + $0x180] sm:$0xff]
    %v5634 = vld [vmem:[#allocation20 + $0x188] sm:$0xf]
    %v5635 = vld [vmem:[#allocation20 + $0x18c] sm:$0xff]
    %v5636 = vld [vmem:[#allocation20 + $0x194] sm:$0xf]
    %v5637 = vld [vmem:[#allocation20 + $0x198] sm:$0xff]
    %v5638 = vld [vmem:[#allocation20 + $0x1a0] sm:$0xf]
    %v5639 = vld [vmem:[#allocation20 + $0x1a4] sm:$0xff]
    %v5640 = vld [vmem:[#allocation20 + $0x1ac] sm:$0xf]
    %v5641 = vld [vmem:[#allocation20 + $0x1b0] sm:$0xff]
    %v5642 = vld [vmem:[#allocation20 + $0x1b8] sm:$0xf]
    %v5643 = vld [vmem:[#allocation20 + $0x1bc] sm:$0xff]
    %v5644 = vld [vmem:[#allocation20 + $0x1c4] sm:$0xf]
    %v5645 = vld [vmem:[#allocation20 + $0x1c8] sm:$0xff]
    %v5646 = vld [vmem:[#allocation20 + $0x1d0] sm:$0xf]
    %v5647 = vld [vmem:[#allocation20 + $0x1d4] sm:$0xff]
    %v5648 = vld [vmem:[#allocation20 + $0x1dc] sm:$0xf]
    %v5649 = vld [vmem:[#allocation20 + $0x1e0] sm:$0xff]
    %v5650 = vld [vmem:[#allocation20 + $0x1e8] sm:$0xf]
    %v5651 = vld [vmem:[#allocation20 + $0x1ec] sm:$0xff]
    %v5652 = vld [vmem:[#allocation20 + $0x1f4] sm:$0xf]
    %v5653 = vld [vmem:[#allocation20 + $0x1f8] sm:$0xff]
    %v5654 = vld [vmem:[#allocation20 + $0x200] sm:$0xf]
    %v5655 = vld [vmem:[#allocation20 + $0x204] sm:$0xff]
    %v5656 = vld [vmem:[#allocation20 + $0x20c] sm:$0xf]
    %v5657 = vld [vmem:[#allocation20 + $0x210] sm:$0xff]
    %v5658 = vld [vmem:[#allocation20 + $0x218] sm:$0xf]
    %v5659 = vld [vmem:[#allocation20 + $0x21c] sm:$0xff]
    %v5660 = vld [vmem:[#allocation20 + $0x224] sm:$0xf]
    %v5661 = vld [vmem:[#allocation20 + $0x228] sm:$0xff]
    %v5662 = vld [vmem:[#allocation20 + $0x230] sm:$0xf]
    %v5663 = vld [vmem:[#allocation20 + $0x234] sm:$0xff]
    %v5664 = vld [vmem:[#allocation20 + $0x23c] sm:$0xf]
    %v5665 = vld [vmem:[#allocation20 + $0x240] sm:$0xff]
    %v5666 = vld [vmem:[#allocation20 + $0x248] sm:$0xf]
    %v5667 = vld [vmem:[#allocation20 + $0x24c] sm:$0xff]
    %v5668 = vld [vmem:[#allocation20 + $0x254] sm:$0xf]
    %v5669 = vld [vmem:[#allocation20 + $0x258] sm:$0xff]
    %v5670 = vld [vmem:[#allocation20 + $0x260] sm:$0xf]
    %v5671 = vld [vmem:[#allocation20 + $0x264] sm:$0xff]
    %v5672 = vld [vmem:[#allocation20 + $0x26c] sm:$0xf]
    %v5673 = vld [vmem:[#allocation20 + $0x270] sm:$0xff]
    %v5674 = vld [vmem:[#allocation20 + $0x278] sm:$0xf]
    %v5675 = vld [vmem:[#allocation20 + $0x27c] sm:$0xff]
    %v5676 = vld [vmem:[#allocation20 + $0x284] sm:$0xf]
    %v5677 = vld [vmem:[#allocation20 + $0x288] sm:$0xff]
    %v5678 = vld [vmem:[#allocation20 + $0x290] sm:$0xf]
    %v5679 = vld [vmem:[#allocation20 + $0x294] sm:$0xff]
    %v5680 = vld [vmem:[#allocation20 + $0x29c] sm:$0xf]
    %v5681 = vld [vmem:[#allocation20 + $0x2a0] sm:$0xff]
    %v5682 = vld [vmem:[#allocation20 + $0x2a8] sm:$0xf]
    %v5683 = vld [vmem:[#allocation20 + $0x2ac] sm:$0xff]
    %v5684 = vld [vmem:[#allocation20 + $0x2b4] sm:$0xf]
    %v5685 = vld [vmem:[#allocation20 + $0x2b8] sm:$0xff]
    %v5686 = vld [vmem:[#allocation20 + $0x2c0] sm:$0xf]
    %v5687 = vld [vmem:[#allocation20 + $0x2c4] sm:$0xff]
    %v5688 = vld [vmem:[#allocation20 + $0x2cc] sm:$0xf]
    %v5689 = vld [vmem:[#allocation20 + $0x2d0] sm:$0xff]
    %v5690 = vld [vmem:[#allocation20 + $0x2d8] sm:$0xf]
    %v5691 = vld [vmem:[#allocation20 + $0x2dc] sm:$0xff]
    %v5692 = vld [vmem:[#allocation20 + $0x2e4] sm:$0xf]
    %v5693 = vld [vmem:[#allocation20 + $0x2e8] sm:$0xff]
    %v5694 = vld [vmem:[#allocation20 + $0x2f0] sm:$0xf]
    %v5695 = vld [vmem:[#allocation20 + $0x2f4] sm:$0xff]
    %v5696 = vld [vmem:[#allocation20 + $0x2fc] sm:$0xf]
    %v5697 = vld [vmem:[#allocation20 + $0x300] sm:$0xff]
    %v5698 = vld [vmem:[#allocation20 + $0x308] sm:$0xf]
    %v5699 = vld [vmem:[#allocation20 + $0x30c] sm:$0xff]
    %v5700 = vld [vmem:[#allocation20 + $0x314] sm:$0xf]
    %v5701 = vld [vmem:[#allocation20 + $0x318] sm:$0xff]
    %v5702 = vld [vmem:[#allocation20 + $0x320] sm:$0xf]
    %v5703 = vld [vmem:[#allocation20 + $0x324] sm:$0xff]
    %v5704 = vld [vmem:[#allocation20 + $0x32c] sm:$0xf]
    %v5705 = vld [vmem:[#allocation20 + $0x330] sm:$0xff]
    %v5706 = vld [vmem:[#allocation20 + $0x338] sm:$0xf]
    %v5707 = vld [vmem:[#allocation20 + $0x33c] sm:$0xff]
    %v5708 = vld [vmem:[#allocation20 + $0x344] sm:$0xf]
    %v5709 = vld [vmem:[#allocation20 + $0x348] sm:$0xff]
    %v5710 = vld [vmem:[#allocation20 + $0x350] sm:$0xf]
    %v5711 = vld [vmem:[#allocation20 + $0x354] sm:$0xff]
    %v5712 = vld [vmem:[#allocation20 + $0x35c] sm:$0xf]
    %v5713 = vld [vmem:[#allocation20 + $0x360] sm:$0xff]
    %v5714 = vld [vmem:[#allocation20 + $0x368] sm:$0xf]
    %v5715 = vld [vmem:[#allocation20 + $0x36c] sm:$0xff]
    %v5716 = vld [vmem:[#allocation20 + $0x374] sm:$0xf]
    %v5717 = vld [vmem:[#allocation20 + $0x378] sm:$0xff]
    %v5718 = vld [vmem:[#allocation20 + $0x380] sm:$0xf]
    %v5719 = vld [vmem:[#allocation20 + $0x384] sm:$0xff]
    %v5720 = vld [vmem:[#allocation20 + $0x38c] sm:$0xf]
    %v5721 = vld [vmem:[#allocation20 + $0x390] sm:$0xff]
    %v5722 = vld [vmem:[#allocation20 + $0x398] sm:$0xf]
    %v5723 = vld [vmem:[#allocation20 + $0x39c] sm:$0xff]
    %v5724 = vld [vmem:[#allocation20 + $0x3a4] sm:$0xf]
    %v5725 = vld [vmem:[#allocation20 + $0x3a8] sm:$0xff]
    %v5726 = vld [vmem:[#allocation20 + $0x3b0] sm:$0xf]
    %v5727 = vld [vmem:[#allocation20 + $0x3b4] sm:$0xff]
    %v5728 = vld [vmem:[#allocation20 + $0x3bc] sm:$0xf]
    %v5729 = vld [vmem:[#allocation20 + $0x3c0] sm:$0xff]
    %v5730 = vld [vmem:[#allocation20 + $0x3c8] sm:$0xf]
    %v5731 = vld [vmem:[#allocation20 + $0x3cc] sm:$0xff]
    %v5732 = vld [vmem:[#allocation20 + $0x3d4] sm:$0xf]
    %v5733 = vld [vmem:[#allocation20 + $0x3d8] sm:$0xff]
    %v5734 = vld [vmem:[#allocation20 + $0x3e0] sm:$0xf]
    %v5735 = vld [vmem:[#allocation20 + $0x3e4] sm:$0xff]
    %v5736 = vld [vmem:[#allocation20 + $0x3ec] sm:$0xf]
    %v5737 = vld [vmem:[#allocation20 + $0x3f0] sm:$0xff]
    %v5738 = vld [vmem:[#allocation20 + $0x3f8] sm:$0xf]
    %v5739 = vld [vmem:[#allocation20 + $0x3fc] sm:$0xff]
    %v5740 = vld [vmem:[#allocation20 + $0x404] sm:$0xf]
    %v5741 = vld [vmem:[#allocation20 + $0x408] sm:$0xff]
    %v5742 = vld [vmem:[#allocation20 + $0x410] sm:$0xf]
    %v5743 = vld [vmem:[#allocation20 + $0x414] sm:$0xff]
    %v5744 = vld [vmem:[#allocation20 + $0x41c] sm:$0xf]
    %v5745 = vld [vmem:[#allocation20 + $0x420] sm:$0xff]
    %v5746 = vld [vmem:[#allocation20 + $0x428] sm:$0xf]
    %v5747 = vld [vmem:[#allocation20 + $0x42c] sm:$0xff]
    %v5748 = vld [vmem:[#allocation20 + $0x434] sm:$0xf]
    %v5749 = vld [vmem:[#allocation20 + $0x438] sm:$0xff]
    %v5750 = vld [vmem:[#allocation20 + $0x440] sm:$0xf]
    %v5751 = vld [vmem:[#allocation20 + $0x444] sm:$0xff]
    %v5752 = vld [vmem:[#allocation20 + $0x44c] sm:$0xf]
    %v5753 = vld [vmem:[#allocation20 + $0x450] sm:$0xff]
    %v5754 = vld [vmem:[#allocation20 + $0x458] sm:$0xf]
    %v5755 = vld [vmem:[#allocation20 + $0x45c] sm:$0xff]
    %v5756 = vld [vmem:[#allocation20 + $0x464] sm:$0xf]
    %v5757 = vld [vmem:[#allocation20 + $0x468] sm:$0xff]
    %v5758 = vld [vmem:[#allocation20 + $0x470] sm:$0xf]
    %v5759 = vld [vmem:[#allocation20 + $0x474] sm:$0xff]
    %v5760 = vld [vmem:[#allocation20 + $0x47c] sm:$0xf]
    %v5761 = vld [vmem:[#allocation20 + $0x480] sm:$0xff]
    %v5762 = vld [vmem:[#allocation20 + $0x488] sm:$0xf]
    %v5763 = vld [vmem:[#allocation20 + $0x48c] sm:$0xff]
    %v5764 = vld [vmem:[#allocation20 + $0x494] sm:$0xf]
    %v5765 = vld [vmem:[#allocation20 + $0x498] sm:$0xff]
    %v5766 = vld [vmem:[#allocation20 + $0x4a0] sm:$0xf]
    %v5767 = vld [vmem:[#allocation20 + $0x4a4] sm:$0xff]
    %v5768 = vld [vmem:[#allocation20 + $0x4ac] sm:$0xf]
    %v5769 = vld [vmem:[#allocation20 + $0x4b0] sm:$0xff]
    %v5770 = vld [vmem:[#allocation20 + $0x4b8] sm:$0xf]
    %v5771 = vld [vmem:[#allocation20 + $0x4bc] sm:$0xff]
    %v5772 = vld [vmem:[#allocation20 + $0x4c4] sm:$0xf]
    %v5773 = vld [vmem:[#allocation20 + $0x4c8] sm:$0xff]
    %v5774 = vld [vmem:[#allocation20 + $0x4d0] sm:$0xf]
    %v5775 = vld [vmem:[#allocation20 + $0x4d4] sm:$0xff]
    %v5776 = vld [vmem:[#allocation20 + $0x4dc] sm:$0xf]
    %v5777 = vld [vmem:[#allocation20 + $0x4e0] sm:$0xff]
    %v5778 = vld [vmem:[#allocation20 + $0x4e8] sm:$0xf]
    %v5779 = vld [vmem:[#allocation20 + $0x4ec] sm:$0xff]
    %v5780 = vld [vmem:[#allocation20 + $0x4f4] sm:$0xf]
    %v5781 = vld [vmem:[#allocation20 + $0x4f8] sm:$0xff]
    %v5782 = vld [vmem:[#allocation20 + $0x500] sm:$0xf]
    %v5783 = vld [vmem:[#allocation20 + $0x504] sm:$0xff]
    %v5784 = vld [vmem:[#allocation20 + $0x50c] sm:$0xf]
    %v5785 = vld [vmem:[#allocation20 + $0x510] sm:$0xff]
    %v5786 = vld [vmem:[#allocation20 + $0x518] sm:$0xf]
    %v5787 = vld [vmem:[#allocation20 + $0x51c] sm:$0xff]
    %v5788 = vld [vmem:[#allocation20 + $0x524] sm:$0xf]
    %v5789 = vld [vmem:[#allocation20 + $0x528] sm:$0xff]
    %v5790 = vld [vmem:[#allocation20 + $0x530] sm:$0xf]
    %v5791 = vld [vmem:[#allocation20 + $0x534] sm:$0xff]
    %v5792 = vld [vmem:[#allocation20 + $0x53c] sm:$0xf]
    %v5793 = vld [vmem:[#allocation20 + $0x540] sm:$0xff]
    %v5794 = vld [vmem:[#allocation20 + $0x548] sm:$0xf]
    %v5795 = vld [vmem:[#allocation20 + $0x54c] sm:$0xff]
    %v5796 = vld [vmem:[#allocation20 + $0x554] sm:$0xf]
    %v5797 = vld [vmem:[#allocation20 + $0x558] sm:$0xff]
    %v5798 = vld [vmem:[#allocation20 + $0x560] sm:$0xf]
    %v5799 = vld [vmem:[#allocation20 + $0x564] sm:$0xff]
    %v5800 = vld [vmem:[#allocation20 + $0x56c] sm:$0xf]
    %v5801 = vld [vmem:[#allocation20 + $0x570] sm:$0xff]
    %v5802 = vld [vmem:[#allocation20 + $0x578] sm:$0xf]
    %v5803 = vld [vmem:[#allocation20 + $0x57c] sm:$0xff]
    %v5804 = vld [vmem:[#allocation20 + $0x584] sm:$0xf]
    %v5805 = vld [vmem:[#allocation20 + $0x588] sm:$0xff]
    %v5806 = vld [vmem:[#allocation20 + $0x590] sm:$0xf]
    %v5807 = vld [vmem:[#allocation20 + $0x594] sm:$0xff]
    %v5808 = vld [vmem:[#allocation20 + $0x59c] sm:$0xf]
    %v5809 = vld [vmem:[#allocation20 + $0x5a0] sm:$0xff]
    %v5810 = vld [vmem:[#allocation20 + $0x5a8] sm:$0xf]
    %v5811 = vld [vmem:[#allocation20 + $0x5ac] sm:$0xff]
    %v5812 = vld [vmem:[#allocation20 + $0x5b4] sm:$0xf]
    %v5813 = vld [vmem:[#allocation20 + $0x5b8] sm:$0xff]
    %v5814 = vld [vmem:[#allocation20 + $0x5c0] sm:$0xf]
    %v5815 = vld [vmem:[#allocation20 + $0x5c4] sm:$0xff]
    %v5816 = vld [vmem:[#allocation20 + $0x5cc] sm:$0xf]
    %v5817 = vld [vmem:[#allocation20 + $0x5d0] sm:$0xff]
    %v5818 = vld [vmem:[#allocation20 + $0x5d8] sm:$0xf]
    %v5819 = vld [vmem:[#allocation20 + $0x5dc] sm:$0xff]
    %v5820 = vld [vmem:[#allocation20 + $0x5e4] sm:$0xf]
    %v5821 = vld [vmem:[#allocation20 + $0x5e8] sm:$0xff]
    %v5822 = vld [vmem:[#allocation20 + $0x5f0] sm:$0xf]
    %v5823 = vld [vmem:[#allocation20 + $0x5f4] sm:$0xff]
    %v5824 = vld [vmem:[#allocation20 + $0x5fc] sm:$0xf]
    %v5825 = vld [vmem:[#allocation20 + $0x600] sm:$0xff]
    %v5826 = vld [vmem:[#allocation20 + $0x608] sm:$0xf]
    %v5827 = vld [vmem:[#allocation20 + $0x60c] sm:$0xff]
    %v5828 = vld [vmem:[#allocation20 + $0x614] sm:$0xf]
    %v5829 = vld [vmem:[#allocation20 + $0x618] sm:$0xff]
    %v5830 = vld [vmem:[#allocation20 + $0x620] sm:$0xf]
    %v5831 = vld [vmem:[#allocation20 + $0x624] sm:$0xff]
    %v5832 = vld [vmem:[#allocation20 + $0x62c] sm:$0xf]
    %v5833 = vld [vmem:[#allocation20 + $0x630] sm:$0xff]
    %v5834 = vld [vmem:[#allocation20 + $0x638] sm:$0xf]
    %v5835 = vld [vmem:[#allocation20 + $0x63c] sm:$0xff]
    %v5836 = vld [vmem:[#allocation20 + $0x644] sm:$0xf]
    %v5837 = vld [vmem:[#allocation20 + $0x648] sm:$0xff]
    %v5838 = vld [vmem:[#allocation20 + $0x650] sm:$0xf]
    %v5839 = vld [vmem:[#allocation20 + $0x654] sm:$0xff]
    %v5840 = vld [vmem:[#allocation20 + $0x65c] sm:$0xf]
    %v5841 = vld [vmem:[#allocation20 + $0x660] sm:$0xff]
    %v5842 = vld [vmem:[#allocation20 + $0x668] sm:$0xf]
    %v5843 = vld [vmem:[#allocation20 + $0x66c] sm:$0xff]
    %v5844 = vld [vmem:[#allocation20 + $0x674] sm:$0xf]
    %v5845 = vld [vmem:[#allocation20 + $0x678] sm:$0xff]
    %v5846 = vld [vmem:[#allocation20 + $0x680] sm:$0xf]
    %v5847 = vld [vmem:[#allocation20 + $0x684] sm:$0xff]
    %v5848 = vld [vmem:[#allocation20 + $0x68c] sm:$0xf]
    %v5849 = vld [vmem:[#allocation20 + $0x690] sm:$0xff]
    %v5850 = vld [vmem:[#allocation20 + $0x698] sm:$0xf]
    %v5851 = vld [vmem:[#allocation20 + $0x69c] sm:$0xff]
    %v5852 = vld [vmem:[#allocation20 + $0x6a4] sm:$0xf]
    %v5853 = vld [vmem:[#allocation20 + $0x6a8] sm:$0xff]
    %v5854 = vld [vmem:[#allocation20 + $0x6b0] sm:$0xf]
    %v5855 = vld [vmem:[#allocation20 + $0x6b4] sm:$0xff]
    %v5856 = vld [vmem:[#allocation20 + $0x6bc] sm:$0xf]
    %v5857 = vld [vmem:[#allocation20 + $0x6c0] sm:$0xff]
    %v5858 = vld [vmem:[#allocation20 + $0x6c8] sm:$0xf]
    %v5859 = vld [vmem:[#allocation20 + $0x6cc] sm:$0xff]
    %v5860 = vld [vmem:[#allocation20 + $0x6d4] sm:$0xf]
    %v5861 = vld [vmem:[#allocation20 + $0x6d8] sm:$0xff]
    %v5862 = vld [vmem:[#allocation20 + $0x6e0] sm:$0xf]
    %v5863 = vld [vmem:[#allocation20 + $0x6e4] sm:$0xff]
    %v5864 = vld [vmem:[#allocation20 + $0x6ec] sm:$0xf]
    %v5865 = vld [vmem:[#allocation20 + $0x6f0] sm:$0xff]
    %v5866 = vld [vmem:[#allocation20 + $0x6f8] sm:$0xf]
    %v5867 = vld [vmem:[#allocation20 + $0x6fc] sm:$0xff]
    %v5868 = vld [vmem:[#allocation20 + $0x704] sm:$0xf]
    %v5869 = vld [vmem:[#allocation20 + $0x708] sm:$0xff]
    %v5870 = vld [vmem:[#allocation20 + $0x710] sm:$0xf]
    %v5871 = vld [vmem:[#allocation20 + $0x714] sm:$0xff]
    %v5872 = vld [vmem:[#allocation20 + $0x71c] sm:$0xf]
    %v5873 = vld [vmem:[#allocation20 + $0x720] sm:$0xff]
    %v5874 = vld [vmem:[#allocation20 + $0x728] sm:$0xf]
    %v5875 = vld [vmem:[#allocation20 + $0x72c] sm:$0xff]
    %v5876 = vld [vmem:[#allocation20 + $0x734] sm:$0xf]
    %v5877 = vld [vmem:[#allocation20 + $0x738] sm:$0xff]
    %v5878 = vld [vmem:[#allocation20 + $0x740] sm:$0xf]
    %v5879 = vld [vmem:[#allocation20 + $0x744] sm:$0xff]
    %v5880 = vld [vmem:[#allocation20 + $0x74c] sm:$0xf]
    %v5881 = vld [vmem:[#allocation20 + $0x750] sm:$0xff]
    %v5882 = vld [vmem:[#allocation20 + $0x758] sm:$0xf]
    %v5883 = vld [vmem:[#allocation20 + $0x75c] sm:$0xff]
    %v5884 = vld [vmem:[#allocation20 + $0x764] sm:$0xf]
    %v5885 = vld [vmem:[#allocation20 + $0x768] sm:$0xff]
    %v5886 = vld [vmem:[#allocation20 + $0x770] sm:$0xf]
    %v5887 = vld [vmem:[#allocation20 + $0x774] sm:$0xff]
    %v5888 = vld [vmem:[#allocation20 + $0x77c] sm:$0xf]
    %v5889 = vld [vmem:[#allocation20 + $0x780] sm:$0xff]
    %v5890 = vld [vmem:[#allocation20 + $0x788] sm:$0xf]
    %v5891 = vld [vmem:[#allocation20 + $0x78c] sm:$0xff]
    %v5892 = vld [vmem:[#allocation20 + $0x794] sm:$0xf]
    %v5893 = vld [vmem:[#allocation20 + $0x798] sm:$0xff]
    %v5894 = vld [vmem:[#allocation20 + $0x7a0] sm:$0xf]
    %v5895 = vld [vmem:[#allocation20 + $0x7a4] sm:$0xff]
    %v5896 = vld [vmem:[#allocation20 + $0x7ac] sm:$0xf]
    %v5897 = vld [vmem:[#allocation20 + $0x7b0] sm:$0xff]
    %v5898 = vld [vmem:[#allocation20 + $0x7b8] sm:$0xf]
    %v5899 = vld [vmem:[#allocation20 + $0x7bc] sm:$0xff]
    %v5900 = vld [vmem:[#allocation20 + $0x7c4] sm:$0xf]
    %v5901 = vld [vmem:[#allocation20 + $0x7c8] sm:$0xff]
    %v5902 = vld [vmem:[#allocation20 + $0x7d0] sm:$0xf]
    %v5903 = vld [vmem:[#allocation20 + $0x7d4] sm:$0xff]
    %v5904 = vld [vmem:[#allocation20 + $0x7dc] sm:$0xf]
    %v5905 = vld [vmem:[#allocation20 + $0x7e0] sm:$0xff]
    %v5906 = vld [vmem:[#allocation20 + $0x7e8] sm:$0xf]
    %v5907 = vld [vmem:[#allocation20 + $0x7ec] sm:$0xff]
    %v5908 = vld [vmem:[#allocation20 + $0x7f4] sm:$0xf]
    %v5909 = vld [vmem:[#allocation20 + $0x7f8] sm:$0xff]
    %v5910 = vld [vmem:[#allocation20 + $0x800] sm:$0xf]
    %v5911 = vld [vmem:[#allocation20 + $0x804] sm:$0xff]
    %v5912 = vld [vmem:[#allocation20 + $0x80c] sm:$0xf]
    %v5913 = vld [vmem:[#allocation20 + $0x810] sm:$0xff]
    %v5914 = vld [vmem:[#allocation20 + $0x818] sm:$0xf]
    %v5915 = vld [vmem:[#allocation20 + $0x81c] sm:$0xff]
    %v5916 = vld [vmem:[#allocation20 + $0x824] sm:$0xf]
    %v5917 = vld [vmem:[#allocation20 + $0x828] sm:$0xff]
    %v5918 = vld [vmem:[#allocation20 + $0x830] sm:$0xf]
    %v5919 = vld [vmem:[#allocation20 + $0x834] sm:$0xff]
    %v5920 = vld [vmem:[#allocation20 + $0x83c] sm:$0xf]
    %v5921 = vld [vmem:[#allocation20 + $0x840] sm:$0xff]
    %v5922 = vld [vmem:[#allocation20 + $0x848] sm:$0xf]
    %v5923 = vld [vmem:[#allocation20 + $0x84c] sm:$0xff]
    %v5924 = vld [vmem:[#allocation20 + $0x854] sm:$0xf]
    %v5925 = vld [vmem:[#allocation20 + $0x858] sm:$0xff]
    %v5926 = vld [vmem:[#allocation20 + $0x860] sm:$0xf]
    %v5927 = vld [vmem:[#allocation20 + $0x864] sm:$0xff]
    %v5928 = vld [vmem:[#allocation20 + $0x86c] sm:$0xf]
    %v5929 = vld [vmem:[#allocation20 + $0x870] sm:$0xff]
    %v5930 = vld [vmem:[#allocation20 + $0x878] sm:$0xf]
    %v5931 = vld [vmem:[#allocation20 + $0x87c] sm:$0xff]
    %v5932 = vld [vmem:[#allocation20 + $0x884] sm:$0xf]
    %v5933 = vld [vmem:[#allocation20 + $0x888] sm:$0xff]
    %v5934 = vld [vmem:[#allocation20 + $0x890] sm:$0xf]
    %v5935 = vld [vmem:[#allocation20 + $0x894] sm:$0xff]
    %v5936 = vld [vmem:[#allocation20 + $0x89c] sm:$0xf]
    %v5937 = vld [vmem:[#allocation20 + $0x8a0] sm:$0xff]
    %v5938 = vld [vmem:[#allocation20 + $0x8a8] sm:$0xf]
    %v5939 = vld [vmem:[#allocation20 + $0x8ac] sm:$0xff]
    %v5940 = vld [vmem:[#allocation20 + $0x8b4] sm:$0xf]
    %v5941 = vld [vmem:[#allocation20 + $0x8b8] sm:$0xff]
    %v5942 = vld [vmem:[#allocation20 + $0x8c0] sm:$0xf]
    %v5943 = vld [vmem:[#allocation20 + $0x8c4] sm:$0xff]
    %v5944 = vld [vmem:[#allocation20 + $0x8cc] sm:$0xf]
    %v5945 = vld [vmem:[#allocation20 + $0x8d0] sm:$0xff]
    %v5946 = vld [vmem:[#allocation20 + $0x8d8] sm:$0xf]
    %v5947 = vld [vmem:[#allocation20 + $0x8dc] sm:$0xff]
    %v5948 = vld [vmem:[#allocation20 + $0x8e4] sm:$0xf]
    %v5949 = vld [vmem:[#allocation20 + $0x8e8] sm:$0xff]
    %v5950 = vld [vmem:[#allocation20 + $0x8f0] sm:$0xf]
    %v5951 = vld [vmem:[#allocation20 + $0x8f4] sm:$0xff]
    %v5952 = vld [vmem:[#allocation20 + $0x8fc] sm:$0xf]
    %v5953 = vld [vmem:[#allocation21] sm:$0x7]
    %v5955 = vperm.slane %v5953, 0
    %v5956 = vperm.slane %v5953, 1
    %v5957 = vperm.slane %v5953, 2
    %v6345 = vunpack.c.l.b16 %v5569
    %v6346 = vunpack.c.h.b16 %v5569
    %v6347 = vunpack.c.l.b16 %v5570
    %v6348 = vunpack.c.l.b16 %v5571
    %v6349 = vunpack.c.h.b16 %v5571
    %v6350 = vunpack.c.l.b16 %v5572
    %v6351 = vunpack.c.l.b16 %v5573
    %v6352 = vunpack.c.h.b16 %v5573
    %v6353 = vunpack.c.l.b16 %v5574
    %v6354 = vunpack.c.l.b16 %v5575
    %v6355 = vunpack.c.h.b16 %v5575
    %v6356 = vunpack.c.l.b16 %v5576
    %v6357 = vunpack.c.l.b16 %v5577
    %v6358 = vunpack.c.h.b16 %v5577
    %v6359 = vunpack.c.l.b16 %v5578
    %v6360 = vunpack.c.l.b16 %v5579
    %v6361 = vunpack.c.h.b16 %v5579
    %v6362 = vunpack.c.l.b16 %v5580
    %v6363 = vunpack.c.l.b16 %v5581
    %v6364 = vunpack.c.h.b16 %v5581
    %v6365 = vunpack.c.l.b16 %v5582
    %v6366 = vunpack.c.l.b16 %v5583
    %v6367 = vunpack.c.h.b16 %v5583
    %v6368 = vunpack.c.l.b16 %v5584
    %v6369 = vunpack.c.l.b16 %v5585
    %v6370 = vunpack.c.h.b16 %v5585
    %v6371 = vunpack.c.l.b16 %v5586
    %v6372 = vunpack.c.l.b16 %v5587
    %v6373 = vunpack.c.h.b16 %v5587
    %v6374 = vunpack.c.l.b16 %v5588
    %v6375 = vunpack.c.l.b16 %v5589
    %v6376 = vunpack.c.h.b16 %v5589
    %v6377 = vunpack.c.l.b16 %v5590
    %v6378 = vunpack.c.l.b16 %v5591
    %v6379 = vunpack.c.h.b16 %v5591
    %v6380 = vunpack.c.l.b16 %v5592
    %v6381 = vunpack.c.l.b16 %v5593
    %v6382 = vunpack.c.h.b16 %v5593
    %v6383 = vunpack.c.l.b16 %v5594
    %v6384 = vunpack.c.l.b16 %v5595
    %v6385 = vunpack.c.h.b16 %v5595
    %v6386 = vunpack.c.l.b16 %v5596
    %v6387 = vunpack.c.l.b16 %v5597
    %v6388 = vunpack.c.h.b16 %v5597
    %v6389 = vunpack.c.l.b16 %v5598
    %v6390 = vunpack.c.l.b16 %v5599
    %v6391 = vunpack.c.h.b16 %v5599
    %v6392 = vunpack.c.l.b16 %v5600
    %v6393 = vunpack.c.l.b16 %v5601
    %v6394 = vunpack.c.h.b16 %v5601
    %v6395 = vunpack.c.l.b16 %v5602
    %v6396 = vunpack.c.l.b16 %v5603
    %v6397 = vunpack.c.h.b16 %v5603
    %v6398 = vunpack.c.l.b16 %v5604
    %v6399 = vunpack.c.l.b16 %v5605
    %v6400 = vunpack.c.h.b16 %v5605
    %v6401 = vunpack.c.l.b16 %v5606
    %v6402 = vunpack.c.l.b16 %v5607
    %v6403 = vunpack.c.h.b16 %v5607
    %v6404 = vunpack.c.l.b16 %v5608
    %v6405 = vunpack.c.l.b16 %v5609
    %v6406 = vunpack.c.h.b16 %v5609
    %v6407 = vunpack.c.l.b16 %v5610
    %v6408 = vunpack.c.l.b16 %v5611
    %v6409 = vunpack.c.h.b16 %v5611
    %v6410 = vunpack.c.l.b16 %v5612
    %v6411 = vunpack.c.l.b16 %v5613
    %v6412 = vunpack.c.h.b16 %v5613
    %v6413 = vunpack.c.l.b16 %v5614
    %v6414 = vunpack.c.l.b16 %v5615
    %v6415 = vunpack.c.h.b16 %v5615
    %v6416 = vunpack.c.l.b16 %v5616
    %v6417 = vunpack.c.l.b16 %v5617
    %v6418 = vunpack.c.h.b16 %v5617
    %v6419 = vunpack.c.l.b16 %v5618
    %v6420 = vunpack.c.l.b16 %v5619
    %v6421 = vunpack.c.h.b16 %v5619
    %v6422 = vunpack.c.l.b16 %v5620
    %v6423 = vunpack.c.l.b16 %v5621
    %v6424 = vunpack.c.h.b16 %v5621
    %v6425 = vunpack.c.l.b16 %v5622
    %v6426 = vunpack.c.l.b16 %v5623
    %v6427 = vunpack.c.h.b16 %v5623
    %v6428 = vunpack.c.l.b16 %v5624
    %v6429 = vunpack.c.l.b16 %v5625
    %v6430 = vunpack.c.h.b16 %v5625
    %v6431 = vunpack.c.l.b16 %v5626
    %v6432 = vunpack.c.l.b16 %v5627
    %v6433 = vunpack.c.h.b16 %v5627
    %v6434 = vunpack.c.l.b16 %v5628
    %v6435 = vunpack.c.l.b16 %v5629
    %v6436 = vunpack.c.h.b16 %v5629
    %v6437 = vunpack.c.l.b16 %v5630
    %v6438 = vunpack.c.l.b16 %v5631
    %v6439 = vunpack.c.h.b16 %v5631
    %v6440 = vunpack.c.l.b16 %v5632
    %v6441 = vunpack.c.l.b16 %v5633
    %v6442 = vunpack.c.h.b16 %v5633
    %v6443 = vunpack.c.l.b16 %v5634
    %v6444 = vunpack.c.l.b16 %v5635
    %v6445 = vunpack.c.h.b16 %v5635
    %v6446 = vunpack.c.l.b16 %v5636
    %v6447 = vunpack.c.l.b16 %v5637
    %v6448 = vunpack.c.h.b16 %v5637
    %v6449 = vunpack.c.l.b16 %v5638
    %v6450 = vunpack.c.l.b16 %v5639
    %v6451 = vunpack.c.h.b16 %v5639
    %v6452 = vunpack.c.l.b16 %v5640
    %v6453 = vunpack.c.l.b16 %v5641
    %v6454 = vunpack.c.h.b16 %v5641
    %v6455 = vunpack.c.l.b16 %v5642
    %v6456 = vunpack.c.l.b16 %v5643
    %v6457 = vunpack.c.h.b16 %v5643
    %v6458 = vunpack.c.l.b16 %v5644
    %v6459 = vunpack.c.l.b16 %v5645
    %v6460 = vunpack.c.h.b16 %v5645
    %v6461 = vunpack.c.l.b16 %v5646
    %v6462 = vunpack.c.l.b16 %v5647
    %v6463 = vunpack.c.h.b16 %v5647
    %v6464 = vunpack.c.l.b16 %v5648
    %v6465 = vunpack.c.l.b16 %v5649
    %v6466 = vunpack.c.h.b16 %v5649
    %v6467 = vunpack.c.l.b16 %v5650
    %v6468 = vunpack.c.l.b16 %v5651
    %v6469 = vunpack.c.h.b16 %v5651
    %v6470 = vunpack.c.l.b16 %v5652
    %v6471 = vunpack.c.l.b16 %v5653
    %v6472 = vunpack.c.h.b16 %v5653
    %v6473 = vunpack.c.l.b16 %v5654
    %v6474 = vunpack.c.l.b16 %v5655
    %v6475 = vunpack.c.h.b16 %v5655
    %v6476 = vunpack.c.l.b16 %v5656
    %v6477 = vunpack.c.l.b16 %v5657
    %v6478 = vunpack.c.h.b16 %v5657
    %v6479 = vunpack.c.l.b16 %v5658
    %v6480 = vunpack.c.l.b16 %v5659
    %v6481 = vunpack.c.h.b16 %v5659
    %v6482 = vunpack.c.l.b16 %v5660
    %v6483 = vunpack.c.l.b16 %v5661
    %v6484 = vunpack.c.h.b16 %v5661
    %v6485 = vunpack.c.l.b16 %v5662
    %v6486 = vunpack.c.l.b16 %v5663
    %v6487 = vunpack.c.h.b16 %v5663
    %v6488 = vunpack.c.l.b16 %v5664
    %v6489 = vunpack.c.l.b16 %v5665
    %v6490 = vunpack.c.h.b16 %v5665
    %v6491 = vunpack.c.l.b16 %v5666
    %v6492 = vunpack.c.l.b16 %v5667
    %v6493 = vunpack.c.h.b16 %v5667
    %v6494 = vunpack.c.l.b16 %v5668
    %v6495 = vunpack.c.l.b16 %v5669
    %v6496 = vunpack.c.h.b16 %v5669
    %v6497 = vunpack.c.l.b16 %v5670
    %v6498 = vunpack.c.l.b16 %v5671
    %v6499 = vunpack.c.h.b16 %v5671
    %v6500 = vunpack.c.l.b16 %v5672
    %v6501 = vunpack.c.l.b16 %v5673
    %v6502 = vunpack.c.h.b16 %v5673
    %v6503 = vunpack.c.l.b16 %v5674
    %v6504 = vunpack.c.l.b16 %v5675
    %v6505 = vunpack.c.h.b16 %v5675
    %v6506 = vunpack.c.l.b16 %v5676
    %v6507 = vunpack.c.l.b16 %v5677
    %v6508 = vunpack.c.h.b16 %v5677
    %v6509 = vunpack.c.l.b16 %v5678
    %v6510 = vunpack.c.l.b16 %v5679
    %v6511 = vunpack.c.h.b16 %v5679
    %v6512 = vunpack.c.l.b16 %v5680
    %v6513 = vunpack.c.l.b16 %v5681
    %v6514 = vunpack.c.h.b16 %v5681
    %v6515 = vunpack.c.l.b16 %v5682
    %v6516 = vunpack.c.l.b16 %v5683
    %v6517 = vunpack.c.h.b16 %v5683
    %v6518 = vunpack.c.l.b16 %v5684
    %v6519 = vunpack.c.l.b16 %v5685
    %v6520 = vunpack.c.h.b16 %v5685
    %v6521 = vunpack.c.l.b16 %v5686
    %v6522 = vunpack.c.l.b16 %v5687
    %v6523 = vunpack.c.h.b16 %v5687
    %v6524 = vunpack.c.l.b16 %v5688
    %v6525 = vunpack.c.l.b16 %v5689
    %v6526 = vunpack.c.h.b16 %v5689
    %v6527 = vunpack.c.l.b16 %v5690
    %v6528 = vunpack.c.l.b16 %v5691
    %v6529 = vunpack.c.h.b16 %v5691
    %v6530 = vunpack.c.l.b16 %v5692
    %v6531 = vunpack.c.l.b16 %v5693
    %v6532 = vunpack.c.h.b16 %v5693
    %v6533 = vunpack.c.l.b16 %v5694
    %v6534 = vunpack.c.l.b16 %v5695
    %v6535 = vunpack.c.h.b16 %v5695
    %v6536 = vunpack.c.l.b16 %v5696
    %v6537 = vunpack.c.l.b16 %v5697
    %v6538 = vunpack.c.h.b16 %v5697
    %v6539 = vunpack.c.l.b16 %v5698
    %v6540 = vunpack.c.l.b16 %v5699
    %v6541 = vunpack.c.h.b16 %v5699
    %v6542 = vunpack.c.l.b16 %v5700
    %v6543 = vunpack.c.l.b16 %v5701
    %v6544 = vunpack.c.h.b16 %v5701
    %v6545 = vunpack.c.l.b16 %v5702
    %v6546 = vunpack.c.l.b16 %v5703
    %v6547 = vunpack.c.h.b16 %v5703
    %v6548 = vunpack.c.l.b16 %v5704
    %v6549 = vunpack.c.l.b16 %v5705
    %v6550 = vunpack.c.h.b16 %v5705
    %v6551 = vunpack.c.l.b16 %v5706
    %v6552 = vunpack.c.l.b16 %v5707
    %v6553 = vunpack.c.h.b16 %v5707
    %v6554 = vunpack.c.l.b16 %v5708
    %v6555 = vunpack.c.l.b16 %v5709
    %v6556 = vunpack.c.h.b16 %v5709
    %v6557 = vunpack.c.l.b16 %v5710
    %v6558 = vunpack.c.l.b16 %v5711
    %v6559 = vunpack.c.h.b16 %v5711
    %v6560 = vunpack.c.l.b16 %v5712
    %v6561 = vunpack.c.l.b16 %v5713
    %v6562 = vunpack.c.h.b16 %v5713
    %v6563 = vunpack.c.l.b16 %v5714
    %v6564 = vunpack.c.l.b16 %v5715
    %v6565 = vunpack.c.h.b16 %v5715
    %v6566 = vunpack.c.l.b16 %v5716
    %v6567 = vunpack.c.l.b16 %v5717
    %v6568 = vunpack.c.h.b16 %v5717
    %v6569 = vunpack.c.l.b16 %v5718
    %v6570 = vunpack.c.l.b16 %v5719
    %v6571 = vunpack.c.h.b16 %v5719
    %v6572 = vunpack.c.l.b16 %v5720
    %v6573 = vunpack.c.l.b16 %v5721
    %v6574 = vunpack.c.h.b16 %v5721
    %v6575 = vunpack.c.l.b16 %v5722
    %v6576 = vunpack.c.l.b16 %v5723
    %v6577 = vunpack.c.h.b16 %v5723
    %v6578 = vunpack.c.l.b16 %v5724
    %v6579 = vunpack.c.l.b16 %v5725
    %v6580 = vunpack.c.h.b16 %v5725
    %v6581 = vunpack.c.l.b16 %v5726
    %v6582 = vunpack.c.l.b16 %v5727
    %v6583 = vunpack.c.h.b16 %v5727
    %v6584 = vunpack.c.l.b16 %v5728
    %v6585 = vunpack.c.l.b16 %v5729
    %v6586 = vunpack.c.h.b16 %v5729
    %v6587 = vunpack.c.l.b16 %v5730
    %v6588 = vunpack.c.l.b16 %v5731
    %v6589 = vunpack.c.h.b16 %v5731
    %v6590 = vunpack.c.l.b16 %v5732
    %v6591 = vunpack.c.l.b16 %v5733
    %v6592 = vunpack.c.h.b16 %v5733
    %v6593 = vunpack.c.l.b16 %v5734
    %v6594 = vunpack.c.l.b16 %v5735
    %v6595 = vunpack.c.h.b16 %v5735
    %v6596 = vunpack.c.l.b16 %v5736
    %v6597 = vunpack.c.l.b16 %v5737
    %v6598 = vunpack.c.h.b16 %v5737
    %v6599 = vunpack.c.l.b16 %v5738
    %v6600 = vunpack.c.l.b16 %v5739
    %v6601 = vunpack.c.h.b16 %v5739
    %v6602 = vunpack.c.l.b16 %v5740
    %v6603 = vunpack.c.l.b16 %v5741
    %v6604 = vunpack.c.h.b16 %v5741
    %v6605 = vunpack.c.l.b16 %v5742
    %v6606 = vunpack.c.l.b16 %v5743
    %v6607 = vunpack.c.h.b16 %v5743
    %v6608 = vunpack.c.l.b16 %v5744
    %v6609 = vunpack.c.l.b16 %v5745
    %v6610 = vunpack.c.h.b16 %v5745
    %v6611 = vunpack.c.l.b16 %v5746
    %v6612 = vunpack.c.l.b16 %v5747
    %v6613 = vunpack.c.h.b16 %v5747
    %v6614 = vunpack.c.l.b16 %v5748
    %v6615 = vunpack.c.l.b16 %v5749
    %v6616 = vunpack.c.h.b16 %v5749
    %v6617 = vunpack.c.l.b16 %v5750
    %v6618 = vunpack.c.l.b16 %v5751
    %v6619 = vunpack.c.h.b16 %v5751
    %v6620 = vunpack.c.l.b16 %v5752
    %v6621 = vunpack.c.l.b16 %v5753
    %v6622 = vunpack.c.h.b16 %v5753
    %v6623 = vunpack.c.l.b16 %v5754
    %v6624 = vunpack.c.l.b16 %v5755
    %v6625 = vunpack.c.h.b16 %v5755
    %v6626 = vunpack.c.l.b16 %v5756
    %v6627 = vunpack.c.l.b16 %v5757
    %v6628 = vunpack.c.h.b16 %v5757
    %v6629 = vunpack.c.l.b16 %v5758
    %v6630 = vunpack.c.l.b16 %v5759
    %v6631 = vunpack.c.h.b16 %v5759
    %v6632 = vunpack.c.l.b16 %v5760
    %v6633 = vunpack.c.l.b16 %v5761
    %v6634 = vunpack.c.h.b16 %v5761
    %v6635 = vunpack.c.l.b16 %v5762
    %v6636 = vunpack.c.l.b16 %v5763
    %v6637 = vunpack.c.h.b16 %v5763
    %v6638 = vunpack.c.l.b16 %v5764
    %v6639 = vunpack.c.l.b16 %v5765
    %v6640 = vunpack.c.h.b16 %v5765
    %v6641 = vunpack.c.l.b16 %v5766
    %v6642 = vunpack.c.l.b16 %v5767
    %v6643 = vunpack.c.h.b16 %v5767
    %v6644 = vunpack.c.l.b16 %v5768
    %v6645 = vunpack.c.l.b16 %v5769
    %v6646 = vunpack.c.h.b16 %v5769
    %v6647 = vunpack.c.l.b16 %v5770
    %v6648 = vunpack.c.l.b16 %v5771
    %v6649 = vunpack.c.h.b16 %v5771
    %v6650 = vunpack.c.l.b16 %v5772
    %v6651 = vunpack.c.l.b16 %v5773
    %v6652 = vunpack.c.h.b16 %v5773
    %v6653 = vunpack.c.l.b16 %v5774
    %v6654 = vunpack.c.l.b16 %v5775
    %v6655 = vunpack.c.h.b16 %v5775
    %v6656 = vunpack.c.l.b16 %v5776
    %v6657 = vunpack.c.l.b16 %v5777
    %v6658 = vunpack.c.h.b16 %v5777
    %v6659 = vunpack.c.l.b16 %v5778
    %v6660 = vunpack.c.l.b16 %v5779
    %v6661 = vunpack.c.h.b16 %v5779
    %v6662 = vunpack.c.l.b16 %v5780
    %v6663 = vunpack.c.l.b16 %v5781
    %v6664 = vunpack.c.h.b16 %v5781
    %v6665 = vunpack.c.l.b16 %v5782
    %v6666 = vunpack.c.l.b16 %v5783
    %v6667 = vunpack.c.h.b16 %v5783
    %v6668 = vunpack.c.l.b16 %v5784
    %v6669 = vunpack.c.l.b16 %v5785
    %v6670 = vunpack.c.h.b16 %v5785
    %v6671 = vunpack.c.l.b16 %v5786
    %v6672 = vunpack.c.l.b16 %v5787
    %v6673 = vunpack.c.h.b16 %v5787
    %v6674 = vunpack.c.l.b16 %v5788
    %v6675 = vunpack.c.l.b16 %v5789
    %v6676 = vunpack.c.h.b16 %v5789
    %v6677 = vunpack.c.l.b16 %v5790
    %v6678 = vunpack.c.l.b16 %v5791
    %v6679 = vunpack.c.h.b16 %v5791
    %v6680 = vunpack.c.l.b16 %v5792
    %v6681 = vunpack.c.l.b16 %v5793
    %v6682 = vunpack.c.h.b16 %v5793
    %v6683 = vunpack.c.l.b16 %v5794
    %v6684 = vunpack.c.l.b16 %v5795
    %v6685 = vunpack.c.h.b16 %v5795
    %v6686 = vunpack.c.l.b16 %v5796
    %v6687 = vunpack.c.l.b16 %v5797
    %v6688 = vunpack.c.h.b16 %v5797
    %v6689 = vunpack.c.l.b16 %v5798
    %v6690 = vunpack.c.l.b16 %v5799
    %v6691 = vunpack.c.h.b16 %v5799
    %v6692 = vunpack.c.l.b16 %v5800
    %v6693 = vunpack.c.l.b16 %v5801
    %v6694 = vunpack.c.h.b16 %v5801
    %v6695 = vunpack.c.l.b16 %v5802
    %v6696 = vunpack.c.l.b16 %v5803
    %v6697 = vunpack.c.h.b16 %v5803
    %v6698 = vunpack.c.l.b16 %v5804
    %v6699 = vunpack.c.l.b16 %v5805
    %v6700 = vunpack.c.h.b16 %v5805
    %v6701 = vunpack.c.l.b16 %v5806
    %v6702 = vunpack.c.l.b16 %v5807
    %v6703 = vunpack.c.h.b16 %v5807
    %v6704 = vunpack.c.l.b16 %v5808
    %v6705 = vunpack.c.l.b16 %v5809
    %v6706 = vunpack.c.h.b16 %v5809
    %v6707 = vunpack.c.l.b16 %v5810
    %v6708 = vunpack.c.l.b16 %v5811
    %v6709 = vunpack.c.h.b16 %v5811
    %v6710 = vunpack.c.l.b16 %v5812
    %v6711 = vunpack.c.l.b16 %v5813
    %v6712 = vunpack.c.h.b16 %v5813
    %v6713 = vunpack.c.l.b16 %v5814
    %v6714 = vunpack.c.l.b16 %v5815
    %v6715 = vunpack.c.h.b16 %v5815
    %v6716 = vunpack.c.l.b16 %v5816
    %v6717 = vunpack.c.l.b16 %v5817
    %v6718 = vunpack.c.h.b16 %v5817
    %v6719 = vunpack.c.l.b16 %v5818
    %v6720 = vunpack.c.l.b16 %v5819
    %v6721 = vunpack.c.h.b16 %v5819
    %v6722 = vunpack.c.l.b16 %v5820
    %v6723 = vunpack.c.l.b16 %v5821
    %v6724 = vunpack.c.h.b16 %v5821
    %v6725 = vunpack.c.l.b16 %v5822
    %v6726 = vunpack.c.l.b16 %v5823
    %v6727 = vunpack.c.h.b16 %v5823
    %v6728 = vunpack.c.l.b16 %v5824
    %v6729 = vunpack.c.l.b16 %v5825
    %v6730 = vunpack.c.h.b16 %v5825
    %v6731 = vunpack.c.l.b16 %v5826
    %v6732 = vunpack.c.l.b16 %v5827
    %v6733 = vunpack.c.h.b16 %v5827
    %v6734 = vunpack.c.l.b16 %v5828
    %v6735 = vunpack.c.l.b16 %v5829
    %v6736 = vunpack.c.h.b16 %v5829
    %v6737 = vunpack.c.l.b16 %v5830
    %v6738 = vunpack.c.l.b16 %v5831
    %v6739 = vunpack.c.h.b16 %v5831
    %v6740 = vunpack.c.l.b16 %v5832
    %v6741 = vunpack.c.l.b16 %v5833
    %v6742 = vunpack.c.h.b16 %v5833
    %v6743 = vunpack.c.l.b16 %v5834
    %v6744 = vunpack.c.l.b16 %v5835
    %v6745 = vunpack.c.h.b16 %v5835
    %v6746 = vunpack.c.l.b16 %v5836
    %v6747 = vunpack.c.l.b16 %v5837
    %v6748 = vunpack.c.h.b16 %v5837
    %v6749 = vunpack.c.l.b16 %v5838
    %v6750 = vunpack.c.l.b16 %v5839
    %v6751 = vunpack.c.h.b16 %v5839
    %v6752 = vunpack.c.l.b16 %v5840
    %v6753 = vunpack.c.l.b16 %v5841
    %v6754 = vunpack.c.h.b16 %v5841
    %v6755 = vunpack.c.l.b16 %v5842
    %v6756 = vunpack.c.l.b16 %v5843
    %v6757 = vunpack.c.h.b16 %v5843
    %v6758 = vunpack.c.l.b16 %v5844
    %v6759 = vunpack.c.l.b16 %v5845
    %v6760 = vunpack.c.h.b16 %v5845
    %v6761 = vunpack.c.l.b16 %v5846
    %v6762 = vunpack.c.l.b16 %v5847
    %v6763 = vunpack.c.h.b16 %v5847
    %v6764 = vunpack.c.l.b16 %v5848
    %v6765 = vunpack.c.l.b16 %v5849
    %v6766 = vunpack.c.h.b16 %v5849
    %v6767 = vunpack.c.l.b16 %v5850
    %v6768 = vunpack.c.l.b16 %v5851
    %v6769 = vunpack.c.h.b16 %v5851
    %v6770 = vunpack.c.l.b16 %v5852
    %v6771 = vunpack.c.l.b16 %v5853
    %v6772 = vunpack.c.h.b16 %v5853
    %v6773 = vunpack.c.l.b16 %v5854
    %v6774 = vunpack.c.l.b16 %v5855
    %v6775 = vunpack.c.h.b16 %v5855
    %v6776 = vunpack.c.l.b16 %v5856
    %v6777 = vunpack.c.l.b16 %v5857
    %v6778 = vunpack.c.h.b16 %v5857
    %v6779 = vunpack.c.l.b16 %v5858
    %v6780 = vunpack.c.l.b16 %v5859
    %v6781 = vunpack.c.h.b16 %v5859
    %v6782 = vunpack.c.l.b16 %v5860
    %v6783 = vunpack.c.l.b16 %v5861
    %v6784 = vunpack.c.h.b16 %v5861
    %v6785 = vunpack.c.l.b16 %v5862
    %v6786 = vunpack.c.l.b16 %v5863
    %v6787 = vunpack.c.h.b16 %v5863
    %v6788 = vunpack.c.l.b16 %v5864
    %v6789 = vunpack.c.l.b16 %v5865
    %v6790 = vunpack.c.h.b16 %v5865
    %v6791 = vunpack.c.l.b16 %v5866
    %v6792 = vunpack.c.l.b16 %v5867
    %v6793 = vunpack.c.h.b16 %v5867
    %v6794 = vunpack.c.l.b16 %v5868
    %v6795 = vunpack.c.l.b16 %v5869
    %v6796 = vunpack.c.h.b16 %v5869
    %v6797 = vunpack.c.l.b16 %v5870
    %v6798 = vunpack.c.l.b16 %v5871
    %v6799 = vunpack.c.h.b16 %v5871
    %v6800 = vunpack.c.l.b16 %v5872
    %v6801 = vunpack.c.l.b16 %v5873
    %v6802 = vunpack.c.h.b16 %v5873
    %v6803 = vunpack.c.l.b16 %v5874
    %v6804 = vunpack.c.l.b16 %v5875
    %v6805 = vunpack.c.h.b16 %v5875
    %v6806 = vunpack.c.l.b16 %v5876
    %v6807 = vunpack.c.l.b16 %v5877
    %v6808 = vunpack.c.h.b16 %v5877
    %v6809 = vunpack.c.l.b16 %v5878
    %v6810 = vunpack.c.l.b16 %v5879
    %v6811 = vunpack.c.h.b16 %v5879
    %v6812 = vunpack.c.l.b16 %v5880
    %v6813 = vunpack.c.l.b16 %v5881
    %v6814 = vunpack.c.h.b16 %v5881
    %v6815 = vunpack.c.l.b16 %v5882
    %v6816 = vunpack.c.l.b16 %v5883
    %v6817 = vunpack.c.h.b16 %v5883
    %v6818 = vunpack.c.l.b16 %v5884
    %v6819 = vunpack.c.l.b16 %v5885
    %v6820 = vunpack.c.h.b16 %v5885
    %v6821 = vunpack.c.l.b16 %v5886
    %v6822 = vunpack.c.l.b16 %v5887
    %v6823 = vunpack.c.h.b16 %v5887
    %v6824 = vunpack.c.l.b16 %v5888
    %v6825 = vunpack.c.l.b16 %v5889
    %v6826 = vunpack.c.h.b16 %v5889
    %v6827 = vunpack.c.l.b16 %v5890
    %v6828 = vunpack.c.l.b16 %v5891
    %v6829 = vunpack.c.h.b16 %v5891
    %v6830 = vunpack.c.l.b16 %v5892
    %v6831 = vunpack.c.l.b16 %v5893
    %v6832 = vunpack.c.h.b16 %v5893
    %v6833 = vunpack.c.l.b16 %v5894
    %v6834 = vunpack.c.l.b16 %v5895
    %v6835 = vunpack.c.h.b16 %v5895
    %v6836 = vunpack.c.l.b16 %v5896
    %v6837 = vunpack.c.l.b16 %v5897
    %v6838 = vunpack.c.h.b16 %v5897
    %v6839 = vunpack.c.l.b16 %v5898
    %v6840 = vunpack.c.l.b16 %v5899
    %v6841 = vunpack.c.h.b16 %v5899
    %v6842 = vunpack.c.l.b16 %v5900
    %v6843 = vunpack.c.l.b16 %v5901
    %v6844 = vunpack.c.h.b16 %v5901
    %v6845 = vunpack.c.l.b16 %v5902
    %v6846 = vunpack.c.l.b16 %v5903
    %v6847 = vunpack.c.h.b16 %v5903
    %v6848 = vunpack.c.l.b16 %v5904
    %v6849 = vunpack.c.l.b16 %v5905
    %v6850 = vunpack.c.h.b16 %v5905
    %v6851 = vunpack.c.l.b16 %v5906
    %v6852 = vunpack.c.l.b16 %v5907
    %v6853 = vunpack.c.h.b16 %v5907
    %v6854 = vunpack.c.l.b16 %v5908
    %v6855 = vunpack.c.l.b16 %v5909
    %v6856 = vunpack.c.h.b16 %v5909
    %v6857 = vunpack.c.l.b16 %v5910
    %v6858 = vunpack.c.l.b16 %v5911
    %v6859 = vunpack.c.h.b16 %v5911
    %v6860 = vunpack.c.l.b16 %v5912
    %v6861 = vunpack.c.l.b16 %v5913
    %v6862 = vunpack.c.h.b16 %v5913
    %v6863 = vunpack.c.l.b16 %v5914
    %v6864 = vunpack.c.l.b16 %v5915
    %v6865 = vunpack.c.h.b16 %v5915
    %v6866 = vunpack.c.l.b16 %v5916
    %v6867 = vunpack.c.l.b16 %v5917
    %v6868 = vunpack.c.h.b16 %v5917
    %v6869 = vunpack.c.l.b16 %v5918
    %v6870 = vunpack.c.l.b16 %v5919
    %v6871 = vunpack.c.h.b16 %v5919
    %v6872 = vunpack.c.l.b16 %v5920
    %v6873 = vunpack.c.l.b16 %v5921
    %v6874 = vunpack.c.h.b16 %v5921
    %v6875 = vunpack.c.l.b16 %v5922
    %v6876 = vunpack.c.l.b16 %v5923
    %v6877 = vunpack.c.h.b16 %v5923
    %v6878 = vunpack.c.l.b16 %v5924
    %v6879 = vunpack.c.l.b16 %v5925
    %v6880 = vunpack.c.h.b16 %v5925
    %v6881 = vunpack.c.l.b16 %v5926
    %v6882 = vunpack.c.l.b16 %v5927
    %v6883 = vunpack.c.h.b16 %v5927
    %v6884 = vunpack.c.l.b16 %v5928
    %v6885 = vunpack.c.l.b16 %v5929
    %v6886 = vunpack.c.h.b16 %v5929
    %v6887 = vunpack.c.l.b16 %v5930
    %v6888 = vunpack.c.l.b16 %v5931
    %v6889 = vunpack.c.h.b16 %v5931
    %v6890 = vunpack.c.l.b16 %v5932
    %v6891 = vunpack.c.l.b16 %v5933
    %v6892 = vunpack.c.h.b16 %v5933
    %v6893 = vunpack.c.l.b16 %v5934
    %v6894 = vunpack.c.l.b16 %v5935
    %v6895 = vunpack.c.h.b16 %v5935
    %v6896 = vunpack.c.l.b16 %v5936
    %v6897 = vunpack.c.l.b16 %v5937
    %v6898 = vunpack.c.h.b16 %v5937
    %v6899 = vunpack.c.l.b16 %v5938
    %v6900 = vunpack.c.l.b16 %v5939
    %v6901 = vunpack.c.h.b16 %v5939
    %v6902 = vunpack.c.l.b16 %v5940
    %v6903 = vunpack.c.l.b16 %v5941
    %v6904 = vunpack.c.h.b16 %v5941
    %v6905 = vunpack.c.l.b16 %v5942
    %v6906 = vunpack.c.l.b16 %v5943
    %v6907 = vunpack.c.h.b16 %v5943
    %v6908 = vunpack.c.l.b16 %v5944
    %v6909 = vunpack.c.l.b16 %v5945
    %v6910 = vunpack.c.h.b16 %v5945
    %v6911 = vunpack.c.l.b16 %v5946
    %v6912 = vunpack.c.l.b16 %v5947
    %v6913 = vunpack.c.h.b16 %v5947
    %v6914 = vunpack.c.l.b16 %v5948
    %v6915 = vunpack.c.l.b16 %v5949
    %v6916 = vunpack.c.h.b16 %v5949
    %v6917 = vunpack.c.l.b16 %v5950
    %v6918 = vunpack.c.l.b16 %v5951
    %v6919 = vunpack.c.h.b16 %v5951
    %v6920 = vunpack.c.l.b16 %v5952
    %v6921 = vpack.c.b16 %v6348, %v6345
    %v6922 = vpack.c.b16 %v6349, %v6346
    %v6923 = vpack.c.b16 %v6350, %v6347
    %v6924 = vpack.c.b16 %v6354, %v6351
    %v6925 = vpack.c.b16 %v6355, %v6352
    %v6926 = vpack.c.b16 %v6356, %v6353
    %v6927 = vpack.c.b16 %v6360, %v6357
    %v6928 = vpack.c.b16 %v6361, %v6358
    %v6929 = vpack.c.b16 %v6362, %v6359
    %v6930 = vpack.c.b16 %v6366, %v6363
    %v6931 = vpack.c.b16 %v6367, %v6364
    %v6932 = vpack.c.b16 %v6368, %v6365
    %v6933 = vpack.c.b16 %v6372, %v6369
    %v6934 = vpack.c.b16 %v6373, %v6370
    %v6935 = vpack.c.b16 %v6374, %v6371
    %v6936 = vpack.c.b16 %v6378, %v6375
    %v6937 = vpack.c.b16 %v6379, %v6376
    %v6938 = vpack.c.b16 %v6380, %v6377
    %v6939 = vpack.c.b16 %v6384, %v6381
    %v6940 = vpack.c.b16 %v6385, %v6382
    %v6941 = vpack.c.b16 %v6386, %v6383
    %v6942 = vpack.c.b16 %v6390, %v6387
    %v6943 = vpack.c.b16 %v6391, %v6388
    %v6944 = vpack.c.b16 %v6392, %v6389
    %v6945 = vpack.c.b16 %v6396, %v6393
    %v6946 = vpack.c.b16 %v6397, %v6394
    %v6947 = vpack.c.b16 %v6398, %v6395
    %v6948 = vpack.c.b16 %v6402, %v6399
    %v6949 = vpack.c.b16 %v6403, %v6400
    %v6950 = vpack.c.b16 %v6404, %v6401
    %v6951 = vpack.c.b16 %v6408, %v6405
    %v6952 = vpack.c.b16 %v6409, %v6406
    %v6953 = vpack.c.b16 %v6410, %v6407
    %v6954 = vpack.c.b16 %v6414, %v6411
    %v6955 = vpack.c.b16 %v6415, %v6412
    %v6956 = vpack.c.b16 %v6416, %v6413
    %v6957 = vpack.c.b16 %v6420, %v6417
    %v6958 = vpack.c.b16 %v6421, %v6418
    %v6959 = vpack.c.b16 %v6422, %v6419
    %v6960 = vpack.c.b16 %v6426, %v6423
    %v6961 = vpack.c.b16 %v6427, %v6424
    %v6962 = vpack.c.b16 %v6428, %v6425
    %v6963 = vpack.c.b16 %v6432, %v6429
    %v6964 = vpack.c.b16 %v6433, %v6430
    %v6965 = vpack.c.b16 %v6434, %v6431
    %v6966 = vpack.c.b16 %v6438, %v6435
    %v6967 = vpack.c.b16 %v6439, %v6436
    %v6968 = vpack.c.b16 %v6440, %v6437
    %v6969 = vpack.c.b16 %v6444, %v6441
    %v6970 = vpack.c.b16 %v6445, %v6442
    %v6971 = vpack.c.b16 %v6446, %v6443
    %v6972 = vpack.c.b16 %v6450, %v6447
    %v6973 = vpack.c.b16 %v6451, %v6448
    %v6974 = vpack.c.b16 %v6452, %v6449
    %v6975 = vpack.c.b16 %v6456, %v6453
    %v6976 = vpack.c.b16 %v6457, %v6454
    %v6977 = vpack.c.b16 %v6458, %v6455
    %v6978 = vpack.c.b16 %v6462, %v6459
    %v6979 = vpack.c.b16 %v6463, %v6460
    %v6980 = vpack.c.b16 %v6464, %v6461
    %v6981 = vpack.c.b16 %v6468, %v6465
    %v6982 = vpack.c.b16 %v6469, %v6466
    %v6983 = vpack.c.b16 %v6470, %v6467
    %v6984 = vpack.c.b16 %v6474, %v6471
    %v6985 = vpack.c.b16 %v6475, %v6472
    %v6986 = vpack.c.b16 %v6476, %v6473
    %v6987 = vpack.c.b16 %v6480, %v6477
    %v6988 = vpack.c.b16 %v6481, %v6478
    %v6989 = vpack.c.b16 %v6482, %v6479
    %v6990 = vpack.c.b16 %v6486, %v6483
    %v6991 = vpack.c.b16 %v6487, %v6484
    %v6992 = vpack.c.b16 %v6488, %v6485
    %v6993 = vpack.c.b16 %v6492, %v6489
    %v6994 = vpack.c.b16 %v6493, %v6490
    %v6995 = vpack.c.b16 %v6494, %v6491
    %v6996 = vpack.c.b16 %v6498, %v6495
    %v6997 = vpack.c.b16 %v6499, %v6496
    %v6998 = vpack.c.b16 %v6500, %v6497
    %v6999 = vpack.c.b16 %v6504, %v6501
    %v7000 = vpack.c.b16 %v6505, %v6502
    %v7001 = vpack.c.b16 %v6506, %v6503
    %v7002 = vpack.c.b16 %v6510, %v6507
    %v7003 = vpack.c.b16 %v6511, %v6508
    %v7004 = vpack.c.b16 %v6512, %v6509
    %v7005 = vpack.c.b16 %v6516, %v6513
    %v7006 = vpack.c.b16 %v6517, %v6514
    %v7007 = vpack.c.b16 %v6518, %v6515
    %v7008 = vpack.c.b16 %v6522, %v6519
    %v7009 = vpack.c.b16 %v6523, %v6520
    %v7010 = vpack.c.b16 %v6524, %v6521
    %v7011 = vpack.c.b16 %v6528, %v6525
    %v7012 = vpack.c.b16 %v6529, %v6526
    %v7013 = vpack.c.b16 %v6530, %v6527
    %v7014 = vpack.c.b16 %v6534, %v6531
    %v7015 = vpack.c.b16 %v6535, %v6532
    %v7016 = vpack.c.b16 %v6536, %v6533
    %v7017 = vpack.c.b16 %v6540, %v6537
    %v7018 = vpack.c.b16 %v6541, %v6538
    %v7019 = vpack.c.b16 %v6542, %v6539
    %v7020 = vpack.c.b16 %v6546, %v6543
    %v7021 = vpack.c.b16 %v6547, %v6544
    %v7022 = vpack.c.b16 %v6548, %v6545
    %v7023 = vpack.c.b16 %v6552, %v6549
    %v7024 = vpack.c.b16 %v6553, %v6550
    %v7025 = vpack.c.b16 %v6554, %v6551
    %v7026 = vpack.c.b16 %v6558, %v6555
    %v7027 = vpack.c.b16 %v6559, %v6556
    %v7028 = vpack.c.b16 %v6560, %v6557
    %v7029 = vpack.c.b16 %v6564, %v6561
    %v7030 = vpack.c.b16 %v6565, %v6562
    %v7031 = vpack.c.b16 %v6566, %v6563
    %v7032 = vpack.c.b16 %v6570, %v6567
    %v7033 = vpack.c.b16 %v6571, %v6568
    %v7034 = vpack.c.b16 %v6572, %v6569
    %v7035 = vpack.c.b16 %v6576, %v6573
    %v7036 = vpack.c.b16 %v6577, %v6574
    %v7037 = vpack.c.b16 %v6578, %v6575
    %v7038 = vpack.c.b16 %v6582, %v6579
    %v7039 = vpack.c.b16 %v6583, %v6580
    %v7040 = vpack.c.b16 %v6584, %v6581
    %v7041 = vpack.c.b16 %v6588, %v6585
    %v7042 = vpack.c.b16 %v6589, %v6586
    %v7043 = vpack.c.b16 %v6590, %v6587
    %v7044 = vpack.c.b16 %v6594, %v6591
    %v7045 = vpack.c.b16 %v6595, %v6592
    %v7046 = vpack.c.b16 %v6596, %v6593
    %v7047 = vpack.c.b16 %v6600, %v6597
    %v7048 = vpack.c.b16 %v6601, %v6598
    %v7049 = vpack.c.b16 %v6602, %v6599
    %v7050 = vpack.c.b16 %v6606, %v6603
    %v7051 = vpack.c.b16 %v6607, %v6604
    %v7052 = vpack.c.b16 %v6608, %v6605
    %v7053 = vpack.c.b16 %v6612, %v6609
    %v7054 = vpack.c.b16 %v6613, %v6610
    %v7055 = vpack.c.b16 %v6614, %v6611
    %v7056 = vpack.c.b16 %v6618, %v6615
    %v7057 = vpack.c.b16 %v6619, %v6616
    %v7058 = vpack.c.b16 %v6620, %v6617
    %v7059 = vpack.c.b16 %v6624, %v6621
    %v7060 = vpack.c.b16 %v6625, %v6622
    %v7061 = vpack.c.b16 %v6626, %v6623
    %v7062 = vpack.c.b16 %v6630, %v6627
    %v7063 = vpack.c.b16 %v6631, %v6628
    %v7064 = vpack.c.b16 %v6632, %v6629
    %v7065 = vpack.c.b16 %v6636, %v6633
    %v7066 = vpack.c.b16 %v6637, %v6634
    %v7067 = vpack.c.b16 %v6638, %v6635
    %v7068 = vpack.c.b16 %v6642, %v6639
    %v7069 = vpack.c.b16 %v6643, %v6640
    %v7070 = vpack.c.b16 %v6644, %v6641
    %v7071 = vpack.c.b16 %v6648, %v6645
    %v7072 = vpack.c.b16 %v6649, %v6646
    %v7073 = vpack.c.b16 %v6650, %v6647
    %v7074 = vpack.c.b16 %v6654, %v6651
    %v7075 = vpack.c.b16 %v6655, %v6652
    %v7076 = vpack.c.b16 %v6656, %v6653
    %v7077 = vpack.c.b16 %v6660, %v6657
    %v7078 = vpack.c.b16 %v6661, %v6658
    %v7079 = vpack.c.b16 %v6662, %v6659
    %v7080 = vpack.c.b16 %v6666, %v6663
    %v7081 = vpack.c.b16 %v6667, %v6664
    %v7082 = vpack.c.b16 %v6668, %v6665
    %v7083 = vpack.c.b16 %v6672, %v6669
    %v7084 = vpack.c.b16 %v6673, %v6670
    %v7085 = vpack.c.b16 %v6674, %v6671
    %v7086 = vpack.c.b16 %v6678, %v6675
    %v7087 = vpack.c.b16 %v6679, %v6676
    %v7088 = vpack.c.b16 %v6680, %v6677
    %v7089 = vpack.c.b16 %v6684, %v6681
    %v7090 = vpack.c.b16 %v6685, %v6682
    %v7091 = vpack.c.b16 %v6686, %v6683
    %v7092 = vpack.c.b16 %v6690, %v6687
    %v7093 = vpack.c.b16 %v6691, %v6688
    %v7094 = vpack.c.b16 %v6692, %v6689
    %v7095 = vpack.c.b16 %v6696, %v6693
    %v7096 = vpack.c.b16 %v6697, %v6694
    %v7097 = vpack.c.b16 %v6698, %v6695
    %v7098 = vpack.c.b16 %v6702, %v6699
    %v7099 = vpack.c.b16 %v6703, %v6700
    %v7100 = vpack.c.b16 %v6704, %v6701
    %v7101 = vpack.c.b16 %v6708, %v6705
    %v7102 = vpack.c.b16 %v6709, %v6706
    %v7103 = vpack.c.b16 %v6710, %v6707
    %v7104 = vpack.c.b16 %v6714, %v6711
    %v7105 = vpack.c.b16 %v6715, %v6712
    %v7106 = vpack.c.b16 %v6716, %v6713
    %v7107 = vpack.c.b16 %v6720, %v6717
    %v7108 = vpack.c.b16 %v6721, %v6718
    %v7109 = vpack.c.b16 %v6722, %v6719
    %v7110 = vpack.c.b16 %v6726, %v6723
    %v7111 = vpack.c.b16 %v6727, %v6724
    %v7112 = vpack.c.b16 %v6728, %v6725
    %v7113 = vpack.c.b16 %v6732, %v6729
    %v7114 = vpack.c.b16 %v6733, %v6730
    %v7115 = vpack.c.b16 %v6734, %v6731
    %v7116 = vpack.c.b16 %v6738, %v6735
    %v7117 = vpack.c.b16 %v6739, %v6736
    %v7118 = vpack.c.b16 %v6740, %v6737
    %v7119 = vpack.c.b16 %v6744, %v6741
    %v7120 = vpack.c.b16 %v6745, %v6742
    %v7121 = vpack.c.b16 %v6746, %v6743
    %v7122 = vpack.c.b16 %v6750, %v6747
    %v7123 = vpack.c.b16 %v6751, %v6748
    %v7124 = vpack.c.b16 %v6752, %v6749
    %v7125 = vpack.c.b16 %v6756, %v6753
    %v7126 = vpack.c.b16 %v6757, %v6754
    %v7127 = vpack.c.b16 %v6758, %v6755
    %v7128 = vpack.c.b16 %v6762, %v6759
    %v7129 = vpack.c.b16 %v6763, %v6760
    %v7130 = vpack.c.b16 %v6764, %v6761
    %v7131 = vpack.c.b16 %v6768, %v6765
    %v7132 = vpack.c.b16 %v6769, %v6766
    %v7133 = vpack.c.b16 %v6770, %v6767
    %v7134 = vpack.c.b16 %v6774, %v6771
    %v7135 = vpack.c.b16 %v6775, %v6772
    %v7136 = vpack.c.b16 %v6776, %v6773
    %v7137 = vpack.c.b16 %v6780, %v6777
    %v7138 = vpack.c.b16 %v6781, %v6778
    %v7139 = vpack.c.b16 %v6782, %v6779
    %v7140 = vpack.c.b16 %v6786, %v6783
    %v7141 = vpack.c.b16 %v6787, %v6784
    %v7142 = vpack.c.b16 %v6788, %v6785
    %v7143 = vpack.c.b16 %v6792, %v6789
    %v7144 = vpack.c.b16 %v6793, %v6790
    %v7145 = vpack.c.b16 %v6794, %v6791
    %v7146 = vpack.c.b16 %v6798, %v6795
    %v7147 = vpack.c.b16 %v6799, %v6796
    %v7148 = vpack.c.b16 %v6800, %v6797
    %v7149 = vpack.c.b16 %v6804, %v6801
    %v7150 = vpack.c.b16 %v6805, %v6802
    %v7151 = vpack.c.b16 %v6806, %v6803
    %v7152 = vpack.c.b16 %v6810, %v6807
    %v7153 = vpack.c.b16 %v6811, %v6808
    %v7154 = vpack.c.b16 %v6812, %v6809
    %v7155 = vpack.c.b16 %v6816, %v6813
    %v7156 = vpack.c.b16 %v6817, %v6814
    %v7157 = vpack.c.b16 %v6818, %v6815
    %v7158 = vpack.c.b16 %v6822, %v6819
    %v7159 = vpack.c.b16 %v6823, %v6820
    %v7160 = vpack.c.b16 %v6824, %v6821
    %v7161 = vpack.c.b16 %v6828, %v6825
    %v7162 = vpack.c.b16 %v6829, %v6826
    %v7163 = vpack.c.b16 %v6830, %v6827
    %v7164 = vpack.c.b16 %v6834, %v6831
    %v7165 = vpack.c.b16 %v6835, %v6832
    %v7166 = vpack.c.b16 %v6836, %v6833
    %v7167 = vpack.c.b16 %v6840, %v6837
    %v7168 = vpack.c.b16 %v6841, %v6838
    %v7169 = vpack.c.b16 %v6842, %v6839
    %v7170 = vpack.c.b16 %v6846, %v6843
    %v7171 = vpack.c.b16 %v6847, %v6844
    %v7172 = vpack.c.b16 %v6848, %v6845
    %v7173 = vpack.c.b16 %v6852, %v6849
    %v7174 = vpack.c.b16 %v6853, %v6850
    %v7175 = vpack.c.b16 %v6854, %v6851
    %v7176 = vpack.c.b16 %v6858, %v6855
    %v7177 = vpack.c.b16 %v6859, %v6856
    %v7178 = vpack.c.b16 %v6860, %v6857
    %v7179 = vpack.c.b16 %v6864, %v6861
    %v7180 = vpack.c.b16 %v6865, %v6862
    %v7181 = vpack.c.b16 %v6866, %v6863
    %v7182 = vpack.c.b16 %v6870, %v6867
    %v7183 = vpack.c.b16 %v6871, %v6868
    %v7184 = vpack.c.b16 %v6872, %v6869
    %v7185 = vpack.c.b16 %v6876, %v6873
    %v7186 = vpack.c.b16 %v6877, %v6874
    %v7187 = vpack.c.b16 %v6878, %v6875
    %v7188 = vpack.c.b16 %v6882, %v6879
    %v7189 = vpack.c.b16 %v6883, %v6880
    %v7190 = vpack.c.b16 %v6884, %v6881
    %v7191 = vpack.c.b16 %v6888, %v6885
    %v7192 = vpack.c.b16 %v6889, %v6886
    %v7193 = vpack.c.b16 %v6890, %v6887
    %v7194 = vpack.c.b16 %v6894, %v6891
    %v7195 = vpack.c.b16 %v6895, %v6892
    %v7196 = vpack.c.b16 %v6896, %v6893
    %v7197 = vpack.c.b16 %v6900, %v6897
    %v7198 = vpack.c.b16 %v6901, %v6898
    %v7199 = vpack.c.b16 %v6902, %v6899
    %v7200 = vpack.c.b16 %v6906, %v6903
    %v7201 = vpack.c.b16 %v6907, %v6904
    %v7202 = vpack.c.b16 %v6908, %v6905
    %v7203 = vpack.c.b16 %v6912, %v6909
    %v7204 = vpack.c.b16 %v6913, %v6910
    %v7205 = vpack.c.b16 %v6914, %v6911
    %v7206 = vpack.c.b16 %v6918, %v6915
    %v7207 = vpack.c.b16 %v6919, %v6916
    %v7208 = vpack.c.b16 %v6920, %v6917
    %7497 = vmatpush.bf16.msra.mxu0 %v6942
    %7498 = vmatpush.bf16.msra.mxu0 %v6939
    %7499 = vmatpush.bf16.msra.mxu0 %v6936
    %7500 = vmatpush.bf16.msra.mxu0 %v6933
    %7501 = vmatpush.bf16.msra.mxu0 %v6930
    %7502 = vmatpush.bf16.msra.mxu0 %v6927
    %7503 = vmatpush.bf16.msra.mxu0 %v6924
    %7504 = vmatpush.bf16.msra.mxu0 %v6921
    %7505 = vmatmul.bf16.gmra.mxu0 %v5557
    %v7506 = vpop.f32.mrf.mxu0
    %v7507 = vadd.f32 %v5955, %v7506
    %v7508 = vpop.f32.mrf.mxu0
    %v7509 = vadd.f32 %v5955, %v7508
    %7510 = vdwg.mxu0
    %7511 = vmatpush.bf16.msra.mxu0 %v6966
    %7512 = vmatpush.bf16.msra.mxu0 %v6963
    %7513 = vmatpush.bf16.msra.mxu0 %v6960
    %7514 = vmatpush.bf16.msra.mxu0 %v6957
    %7515 = vmatpush.bf16.msra.mxu0 %v6954
    %7516 = vmatpush.bf16.msra.mxu0 %v6951
    %7517 = vmatpush.bf16.msra.mxu0 %v6948
    %7518 = vmatpush.bf16.msra.mxu0 %v6945
    %7519 = vmatmul.bf16.gmra.mxu0 %v5558
    %v7520 = vpop.f32.mrf.mxu0
    %v7521 = vadd.f32 %v7507, %v7520
    %v7522 = vpop.f32.mrf.mxu0
    %v7523 = vadd.f32 %v7509, %v7522
    %7524 = vdwg.mxu0
    %7525 = vmatpush.bf16.msra.mxu0 %v6990
    %7526 = vmatpush.bf16.msra.mxu0 %v6987
    %7527 = vmatpush.bf16.msra.mxu0 %v6984
    %7528 = vmatpush.bf16.msra.mxu0 %v6981
    %7529 = vmatpush.bf16.msra.mxu0 %v6978
    %7530 = vmatpush.bf16.msra.mxu0 %v6975
    %7531 = vmatpush.bf16.msra.mxu0 %v6972
    %7532 = vmatpush.bf16.msra.mxu0 %v6969
    %7533 = vmatmul.bf16.gmra.mxu0 %v5559
    %v7534 = vpop.f32.mrf.mxu0
    %v7535 = vadd.f32 %v7521, %v7534
    %v7536 = vpop.f32.mrf.mxu0
    %v7537 = vadd.f32 %v7523, %v7536
    %7538 = vdwg.mxu0
    %7539 = vmatpush.bf16.msra.mxu0 %v7014
    %7540 = vmatpush.bf16.msra.mxu0 %v7011
    %7541 = vmatpush.bf16.msra.mxu0 %v7008
    %7542 = vmatpush.bf16.msra.mxu0 %v7005
    %7543 = vmatpush.bf16.msra.mxu0 %v7002
    %7544 = vmatpush.bf16.msra.mxu0 %v6999
    %7545 = vmatpush.bf16.msra.mxu0 %v6996
    %7546 = vmatpush.bf16.msra.mxu0 %v6993
    %7547 = vmatmul.bf16.gmra.mxu0 %v5560
    %v7548 = vpop.f32.mrf.mxu0
    %v7549 = vadd.f32 %v7535, %v7548
    %v7550 = vpop.f32.mrf.mxu0
    %v7551 = vadd.f32 %v7537, %v7550
    %7552 = vdwg.mxu0
    %7553 = vmatpush.bf16.msra.mxu0 %v7038
    %7554 = vmatpush.bf16.msra.mxu0 %v7035
    %7555 = vmatpush.bf16.msra.mxu0 %v7032
    %7556 = vmatpush.bf16.msra.mxu0 %v7029
    %7557 = vmatpush.bf16.msra.mxu0 %v7026
    %7558 = vmatpush.bf16.msra.mxu0 %v7023
    %7559 = vmatpush.bf16.msra.mxu0 %v7020
    %7560 = vmatpush.bf16.msra.mxu0 %v7017
    %7561 = vmatmul.bf16.gmra.mxu0 %v5561
    %v7562 = vpop.f32.mrf.mxu0
    %v7563 = vadd.f32 %v7549, %v7562
    %v7564 = vpop.f32.mrf.mxu0
    %v7565 = vadd.f32 %v7551, %v7564
    %7566 = vdwg.mxu0
    %7567 = vmatpush.bf16.msra.mxu0 %v7062
    %7568 = vmatpush.bf16.msra.mxu0 %v7059
    %7569 = vmatpush.bf16.msra.mxu0 %v7056
    %7570 = vmatpush.bf16.msra.mxu0 %v7053
    %7571 = vmatpush.bf16.msra.mxu0 %v7050
    %7572 = vmatpush.bf16.msra.mxu0 %v7047
    %7573 = vmatpush.bf16.msra.mxu0 %v7044
    %7574 = vmatpush.bf16.msra.mxu0 %v7041
    %7575 = vmatmul.bf16.gmra.mxu0 %v5562
    %v7576 = vpop.f32.mrf.mxu0
    %v7577 = vadd.f32 %v7563, %v7576
    %v7578 = vpop.f32.mrf.mxu0
    %v7579 = vadd.f32 %v7565, %v7578
    %7580 = vdwg.mxu0
    %7581 = vmatpush.bf16.msra.mxu0 %v7086
    %7582 = vmatpush.bf16.msra.mxu0 %v7083
    %7583 = vmatpush.bf16.msra.mxu0 %v7080
    %7584 = vmatpush.bf16.msra.mxu0 %v7077
    %7585 = vmatpush.bf16.msra.mxu0 %v7074
    %7586 = vmatpush.bf16.msra.mxu0 %v7071
    %7587 = vmatpush.bf16.msra.mxu0 %v7068
    %7588 = vmatpush.bf16.msra.mxu0 %v7065
    %7589 = vmatmul.bf16.gmra.mxu0 %v5563
    %v7590 = vpop.f32.mrf.mxu0
    %v7591 = vadd.f32 %v7577, %v7590
    %v7592 = vpop.f32.mrf.mxu0
    %v7593 = vadd.f32 %v7579, %v7592
    %7594 = vdwg.mxu0
    %7595 = vmatpush.bf16.msra.mxu0 %v7110
    %7596 = vmatpush.bf16.msra.mxu0 %v7107
    %7597 = vmatpush.bf16.msra.mxu0 %v7104
    %7598 = vmatpush.bf16.msra.mxu0 %v7101
    %7599 = vmatpush.bf16.msra.mxu0 %v7098
    %7600 = vmatpush.bf16.msra.mxu0 %v7095
    %7601 = vmatpush.bf16.msra.mxu0 %v7092
    %7602 = vmatpush.bf16.msra.mxu0 %v7089
    %7603 = vmatmul.bf16.gmra.mxu0 %v5564
    %v7604 = vpop.f32.mrf.mxu0
    %v7605 = vadd.f32 %v7591, %v7604
    %v7606 = vpop.f32.mrf.mxu0
    %v7607 = vadd.f32 %v7593, %v7606
    %7608 = vdwg.mxu0
    %7609 = vmatpush.bf16.msra.mxu0 %v7134
    %7610 = vmatpush.bf16.msra.mxu0 %v7131
    %7611 = vmatpush.bf16.msra.mxu0 %v7128
    %7612 = vmatpush.bf16.msra.mxu0 %v7125
    %7613 = vmatpush.bf16.msra.mxu0 %v7122
    %7614 = vmatpush.bf16.msra.mxu0 %v7119
    %7615 = vmatpush.bf16.msra.mxu0 %v7116
    %7616 = vmatpush.bf16.msra.mxu0 %v7113
    %7617 = vmatmul.bf16.gmra.mxu0 %v5565
    %v7618 = vpop.f32.mrf.mxu0
    %v7619 = vadd.f32 %v7605, %v7618
    %v7620 = vpop.f32.mrf.mxu0
    %v7621 = vadd.f32 %v7607, %v7620
    %7622 = vdwg.mxu0
    %7623 = vmatpush.bf16.msra.mxu0 %v7158
    %7624 = vmatpush.bf16.msra.mxu0 %v7155
    %7625 = vmatpush.bf16.msra.mxu0 %v7152
    %7626 = vmatpush.bf16.msra.mxu0 %v7149
    %7627 = vmatpush.bf16.msra.mxu0 %v7146
    %7628 = vmatpush.bf16.msra.mxu0 %v7143
    %7629 = vmatpush.bf16.msra.mxu0 %v7140
    %7630 = vmatpush.bf16.msra.mxu0 %v7137
    %7631 = vmatmul.bf16.gmra.mxu0 %v5566
    %v7632 = vpop.f32.mrf.mxu0
    %v7633 = vadd.f32 %v7619, %v7632
    %v7634 = vpop.f32.mrf.mxu0
    %v7635 = vadd.f32 %v7621, %v7634
    %7636 = vdwg.mxu0
    %7637 = vmatpush.bf16.msra.mxu0 %v7182
    %7638 = vmatpush.bf16.msra.mxu0 %v7179
    %7639 = vmatpush.bf16.msra.mxu0 %v7176
    %7640 = vmatpush.bf16.msra.mxu0 %v7173
    %7641 = vmatpush.bf16.msra.mxu0 %v7170
    %7642 = vmatpush.bf16.msra.mxu0 %v7167
    %7643 = vmatpush.bf16.msra.mxu0 %v7164
    %7644 = vmatpush.bf16.msra.mxu0 %v7161
    %7645 = vmatmul.bf16.gmra.mxu0 %v5567
    %v7646 = vpop.f32.mrf.mxu0
    %v7647 = vadd.f32 %v7633, %v7646
    %v7648 = vpop.f32.mrf.mxu0
    %v7649 = vadd.f32 %v7635, %v7648
    %7650 = vdwg.mxu0
    %7651 = vmatpush.bf16.msra.mxu0 %v7206
    %7652 = vmatpush.bf16.msra.mxu0 %v7203
    %7653 = vmatpush.bf16.msra.mxu0 %v7200
    %7654 = vmatpush.bf16.msra.mxu0 %v7197
    %7655 = vmatpush.bf16.msra.mxu0 %v7194
    %7656 = vmatpush.bf16.msra.mxu0 %v7191
    %7657 = vmatpush.bf16.msra.mxu0 %v7188
    %7658 = vmatpush.bf16.msra.mxu0 %v7185
    %7659 = vmatmul.bf16.gmra.mxu0 %v5568
    %v7660 = vpop.f32.mrf.mxu0
    %v7661 = vadd.f32 %v7647, %v7660
    %v7662 = vpop.f32.mrf.mxu0
    %v7663 = vadd.f32 %v7649, %v7662
    %7664 = vdwg.mxu0
    %7665 = vmatpush.bf16.msra.mxu0 %v6943
    %7666 = vmatpush.bf16.msra.mxu0 %v6940
    %7667 = vmatpush.bf16.msra.mxu0 %v6937
    %7668 = vmatpush.bf16.msra.mxu0 %v6934
    %7669 = vmatpush.bf16.msra.mxu0 %v6931
    %7670 = vmatpush.bf16.msra.mxu0 %v6928
    %7671 = vmatpush.bf16.msra.mxu0 %v6925
    %7672 = vmatpush.bf16.msra.mxu0 %v6922
    %7673 = vmatmul.bf16.gmra.mxu0 %v5557
    %v7674 = vpop.f32.mrf.mxu0
    %v7675 = vadd.f32 %v5956, %v7674
    %v7676 = vpop.f32.mrf.mxu0
    %v7677 = vadd.f32 %v5956, %v7676
    %7678 = vdwg.mxu0
    %7679 = vmatpush.bf16.msra.mxu0 %v6967
    %7680 = vmatpush.bf16.msra.mxu0 %v6964
    %7681 = vmatpush.bf16.msra.mxu0 %v6961
    %7682 = vmatpush.bf16.msra.mxu0 %v6958
    %7683 = vmatpush.bf16.msra.mxu0 %v6955
    %7684 = vmatpush.bf16.msra.mxu0 %v6952
    %7685 = vmatpush.bf16.msra.mxu0 %v6949
    %7686 = vmatpush.bf16.msra.mxu0 %v6946
    %7687 = vmatmul.bf16.gmra.mxu0 %v5558
    %v7688 = vpop.f32.mrf.mxu0
    %v7689 = vadd.f32 %v7675, %v7688
    %v7690 = vpop.f32.mrf.mxu0
    %v7691 = vadd.f32 %v7677, %v7690
    %7692 = vdwg.mxu0
    %7693 = vmatpush.bf16.msra.mxu0 %v6991
    %7694 = vmatpush.bf16.msra.mxu0 %v6988
    %7695 = vmatpush.bf16.msra.mxu0 %v6985
    %7696 = vmatpush.bf16.msra.mxu0 %v6982
    %7697 = vmatpush.bf16.msra.mxu0 %v6979
    %7698 = vmatpush.bf16.msra.mxu0 %v6976
    %7699 = vmatpush.bf16.msra.mxu0 %v6973
    %7700 = vmatpush.bf16.msra.mxu0 %v6970
    %7701 = vmatmul.bf16.gmra.mxu0 %v5559
    %v7702 = vpop.f32.mrf.mxu0
    %v7703 = vadd.f32 %v7689, %v7702
    %v7704 = vpop.f32.mrf.mxu0
    %v7705 = vadd.f32 %v7691, %v7704
    %7706 = vdwg.mxu0
    %7707 = vmatpush.bf16.msra.mxu0 %v7015
    %7708 = vmatpush.bf16.msra.mxu0 %v7012
    %7709 = vmatpush.bf16.msra.mxu0 %v7009
    %7710 = vmatpush.bf16.msra.mxu0 %v7006
    %7711 = vmatpush.bf16.msra.mxu0 %v7003
    %7712 = vmatpush.bf16.msra.mxu0 %v7000
    %7713 = vmatpush.bf16.msra.mxu0 %v6997
    %7714 = vmatpush.bf16.msra.mxu0 %v6994
    %7715 = vmatmul.bf16.gmra.mxu0 %v5560
    %v7716 = vpop.f32.mrf.mxu0
    %v7717 = vadd.f32 %v7703, %v7716
    %v7718 = vpop.f32.mrf.mxu0
    %v7719 = vadd.f32 %v7705, %v7718
    %7720 = vdwg.mxu0
    %7721 = vmatpush.bf16.msra.mxu0 %v7039
    %7722 = vmatpush.bf16.msra.mxu0 %v7036
    %7723 = vmatpush.bf16.msra.mxu0 %v7033
    %7724 = vmatpush.bf16.msra.mxu0 %v7030
    %7725 = vmatpush.bf16.msra.mxu0 %v7027
    %7726 = vmatpush.bf16.msra.mxu0 %v7024
    %7727 = vmatpush.bf16.msra.mxu0 %v7021
    %7728 = vmatpush.bf16.msra.mxu0 %v7018
    %7729 = vmatmul.bf16.gmra.mxu0 %v5561
    %v7730 = vpop.f32.mrf.mxu0
    %v7731 = vadd.f32 %v7717, %v7730
    %v7732 = vpop.f32.mrf.mxu0
    %v7733 = vadd.f32 %v7719, %v7732
    %7734 = vdwg.mxu0
    %7735 = vmatpush.bf16.msra.mxu0 %v7063
    %7736 = vmatpush.bf16.msra.mxu0 %v7060
    %7737 = vmatpush.bf16.msra.mxu0 %v7057
    %7738 = vmatpush.bf16.msra.mxu0 %v7054
    %7739 = vmatpush.bf16.msra.mxu0 %v7051
    %7740 = vmatpush.bf16.msra.mxu0 %v7048
    %7741 = vmatpush.bf16.msra.mxu0 %v7045
    %7742 = vmatpush.bf16.msra.mxu0 %v7042
    %7743 = vmatmul.bf16.gmra.mxu0 %v5562
    %v7744 = vpop.f32.mrf.mxu0
    %v7745 = vadd.f32 %v7731, %v7744
    %v7746 = vpop.f32.mrf.mxu0
    %v7747 = vadd.f32 %v7733, %v7746
    %7748 = vdwg.mxu0
    %7749 = vmatpush.bf16.msra.mxu0 %v7087
    %7750 = vmatpush.bf16.msra.mxu0 %v7084
    %7751 = vmatpush.bf16.msra.mxu0 %v7081
    %7752 = vmatpush.bf16.msra.mxu0 %v7078
    %7753 = vmatpush.bf16.msra.mxu0 %v7075
    %7754 = vmatpush.bf16.msra.mxu0 %v7072
    %7755 = vmatpush.bf16.msra.mxu0 %v7069
    %7756 = vmatpush.bf16.msra.mxu0 %v7066
    %7757 = vmatmul.bf16.gmra.mxu0 %v5563
    %v7758 = vpop.f32.mrf.mxu0
    %v7759 = vadd.f32 %v7745, %v7758
    %v7760 = vpop.f32.mrf.mxu0
    %v7761 = vadd.f32 %v7747, %v7760
    %7762 = vdwg.mxu0
    %7763 = vmatpush.bf16.msra.mxu0 %v7111
    %7764 = vmatpush.bf16.msra.mxu0 %v7108
    %7765 = vmatpush.bf16.msra.mxu0 %v7105
    %7766 = vmatpush.bf16.msra.mxu0 %v7102
    %7767 = vmatpush.bf16.msra.mxu0 %v7099
    %7768 = vmatpush.bf16.msra.mxu0 %v7096
    %7769 = vmatpush.bf16.msra.mxu0 %v7093
    %7770 = vmatpush.bf16.msra.mxu0 %v7090
    %7771 = vmatmul.bf16.gmra.mxu0 %v5564
    %v7772 = vpop.f32.mrf.mxu0
    %v7773 = vadd.f32 %v7759, %v7772
    %v7774 = vpop.f32.mrf.mxu0
    %v7775 = vadd.f32 %v7761, %v7774
    %7776 = vdwg.mxu0
    %7777 = vmatpush.bf16.msra.mxu0 %v7135
    %7778 = vmatpush.bf16.msra.mxu0 %v7132
    %7779 = vmatpush.bf16.msra.mxu0 %v7129
    %7780 = vmatpush.bf16.msra.mxu0 %v7126
    %7781 = vmatpush.bf16.msra.mxu0 %v7123
    %7782 = vmatpush.bf16.msra.mxu0 %v7120
    %7783 = vmatpush.bf16.msra.mxu0 %v7117
    %7784 = vmatpush.bf16.msra.mxu0 %v7114
    %7785 = vmatmul.bf16.gmra.mxu0 %v5565
    %v7786 = vpop.f32.mrf.mxu0
    %v7787 = vadd.f32 %v7773, %v7786
    %v7788 = vpop.f32.mrf.mxu0
    %v7789 = vadd.f32 %v7775, %v7788
    %7790 = vdwg.mxu0
    %7791 = vmatpush.bf16.msra.mxu0 %v7159
    %7792 = vmatpush.bf16.msra.mxu0 %v7156
    %7793 = vmatpush.bf16.msra.mxu0 %v7153
    %7794 = vmatpush.bf16.msra.mxu0 %v7150
    %7795 = vmatpush.bf16.msra.mxu0 %v7147
    %7796 = vmatpush.bf16.msra.mxu0 %v7144
    %7797 = vmatpush.bf16.msra.mxu0 %v7141
    %7798 = vmatpush.bf16.msra.mxu0 %v7138
    %7799 = vmatmul.bf16.gmra.mxu0 %v5566
    %v7800 = vpop.f32.mrf.mxu0
    %v7801 = vadd.f32 %v7787, %v7800
    %v7802 = vpop.f32.mrf.mxu0
    %v7803 = vadd.f32 %v7789, %v7802
    %7804 = vdwg.mxu0
    %7805 = vmatpush.bf16.msra.mxu0 %v7183
    %7806 = vmatpush.bf16.msra.mxu0 %v7180
    %7807 = vmatpush.bf16.msra.mxu0 %v7177
    %7808 = vmatpush.bf16.msra.mxu0 %v7174
    %7809 = vmatpush.bf16.msra.mxu0 %v7171
    %7810 = vmatpush.bf16.msra.mxu0 %v7168
    %7811 = vmatpush.bf16.msra.mxu0 %v7165
    %7812 = vmatpush.bf16.msra.mxu0 %v7162
    %7813 = vmatmul.bf16.gmra.mxu0 %v5567
    %v7814 = vpop.f32.mrf.mxu0
    %v7815 = vadd.f32 %v7801, %v7814
    %v7816 = vpop.f32.mrf.mxu0
    %v7817 = vadd.f32 %v7803, %v7816
    %7818 = vdwg.mxu0
    %7819 = vmatpush.bf16.msra.mxu0 %v7207
    %7820 = vmatpush.bf16.msra.mxu0 %v7204
    %7821 = vmatpush.bf16.msra.mxu0 %v7201
    %7822 = vmatpush.bf16.msra.mxu0 %v7198
    %7823 = vmatpush.bf16.msra.mxu0 %v7195
    %7824 = vmatpush.bf16.msra.mxu0 %v7192
    %7825 = vmatpush.bf16.msra.mxu0 %v7189
    %7826 = vmatpush.bf16.msra.mxu0 %v7186
    %7827 = vmatmul.bf16.gmra.mxu0 %v5568
    %v7828 = vpop.f32.mrf.mxu0
    %v7829 = vadd.f32 %v7815, %v7828
    %v7830 = vpop.f32.mrf.mxu0
    %v7831 = vadd.f32 %v7817, %v7830
    %7832 = vdwg.mxu0
    %7833 = vmatpush.bf16.msra.mxu0 %v6944
    %7834 = vmatpush.bf16.msra.mxu0 %v6941
    %7835 = vmatpush.bf16.msra.mxu0 %v6938
    %7836 = vmatpush.bf16.msra.mxu0 %v6935
    %7837 = vmatpush.bf16.msra.mxu0 %v6932
    %7838 = vmatpush.bf16.msra.mxu0 %v6929
    %7839 = vmatpush.bf16.msra.mxu0 %v6926
    %7840 = vmatpush.bf16.msra.mxu0 %v6923
    %7841 = vmatmul.bf16.gmra.mxu0 %v5557
    %v7842 = vpop.f32.mrf.mxu0
    %v7843 = vadd.f32 %v5957, %v7842
    %v7844 = vpop.f32.mrf.mxu0
    %v7845 = vadd.f32 %v5957, %v7844
    %7846 = vdwg.mxu0
    %7847 = vmatpush.bf16.msra.mxu0 %v6968
    %7848 = vmatpush.bf16.msra.mxu0 %v6965
    %7849 = vmatpush.bf16.msra.mxu0 %v6962
    %7850 = vmatpush.bf16.msra.mxu0 %v6959
    %7851 = vmatpush.bf16.msra.mxu0 %v6956
    %7852 = vmatpush.bf16.msra.mxu0 %v6953
    %7853 = vmatpush.bf16.msra.mxu0 %v6950
    %7854 = vmatpush.bf16.msra.mxu0 %v6947
    %7855 = vmatmul.bf16.gmra.mxu0 %v5558
    %v7856 = vpop.f32.mrf.mxu0
    %v7857 = vadd.f32 %v7843, %v7856
    %v7858 = vpop.f32.mrf.mxu0
    %v7859 = vadd.f32 %v7845, %v7858
    %7860 = vdwg.mxu0
    %7861 = vmatpush.bf16.msra.mxu0 %v6992
    %7862 = vmatpush.bf16.msra.mxu0 %v6989
    %7863 = vmatpush.bf16.msra.mxu0 %v6986
    %7864 = vmatpush.bf16.msra.mxu0 %v6983
    %7865 = vmatpush.bf16.msra.mxu0 %v6980
    %7866 = vmatpush.bf16.msra.mxu0 %v6977
    %7867 = vmatpush.bf16.msra.mxu0 %v6974
    %7868 = vmatpush.bf16.msra.mxu0 %v6971
    %7869 = vmatmul.bf16.gmra.mxu0 %v5559
    %v7870 = vpop.f32.mrf.mxu0
    %v7871 = vadd.f32 %v7857, %v7870
    %v7872 = vpop.f32.mrf.mxu0
    %v7873 = vadd.f32 %v7859, %v7872
    %7874 = vdwg.mxu0
    %7875 = vmatpush.bf16.msra.mxu0 %v7016
    %7876 = vmatpush.bf16.msra.mxu0 %v7013
    %7877 = vmatpush.bf16.msra.mxu0 %v7010
    %7878 = vmatpush.bf16.msra.mxu0 %v7007
    %7879 = vmatpush.bf16.msra.mxu0 %v7004
    %7880 = vmatpush.bf16.msra.mxu0 %v7001
    %7881 = vmatpush.bf16.msra.mxu0 %v6998
    %7882 = vmatpush.bf16.msra.mxu0 %v6995
    %7883 = vmatmul.bf16.gmra.mxu0 %v5560
    %v7884 = vpop.f32.mrf.mxu0
    %v7885 = vadd.f32 %v7871, %v7884
    %v7886 = vpop.f32.mrf.mxu0
    %v7887 = vadd.f32 %v7873, %v7886
    %7888 = vdwg.mxu0
    %7889 = vmatpush.bf16.msra.mxu0 %v7040
    %7890 = vmatpush.bf16.msra.mxu0 %v7037
    %7891 = vmatpush.bf16.msra.mxu0 %v7034
    %7892 = vmatpush.bf16.msra.mxu0 %v7031
    %7893 = vmatpush.bf16.msra.mxu0 %v7028
    %7894 = vmatpush.bf16.msra.mxu0 %v7025
    %7895 = vmatpush.bf16.msra.mxu0 %v7022
    %7896 = vmatpush.bf16.msra.mxu0 %v7019
    %7897 = vmatmul.bf16.gmra.mxu0 %v5561
    %v7898 = vpop.f32.mrf.mxu0
    %v7899 = vadd.f32 %v7885, %v7898
    %v7900 = vpop.f32.mrf.mxu0
    %v7901 = vadd.f32 %v7887, %v7900
    %7902 = vdwg.mxu0
    %7903 = vmatpush.bf16.msra.mxu0 %v7064
    %7904 = vmatpush.bf16.msra.mxu0 %v7061
    %7905 = vmatpush.bf16.msra.mxu0 %v7058
    %7906 = vmatpush.bf16.msra.mxu0 %v7055
    %7907 = vmatpush.bf16.msra.mxu0 %v7052
    %7908 = vmatpush.bf16.msra.mxu0 %v7049
    %7909 = vmatpush.bf16.msra.mxu0 %v7046
    %7910 = vmatpush.bf16.msra.mxu0 %v7043
    %7911 = vmatmul.bf16.gmra.mxu0 %v5562
    %v7912 = vpop.f32.mrf.mxu0
    %v7913 = vadd.f32 %v7899, %v7912
    %v7914 = vpop.f32.mrf.mxu0
    %v7915 = vadd.f32 %v7901, %v7914
    %7916 = vdwg.mxu0
    %7917 = vmatpush.bf16.msra.mxu0 %v7088
    %7918 = vmatpush.bf16.msra.mxu0 %v7085
    %7919 = vmatpush.bf16.msra.mxu0 %v7082
    %7920 = vmatpush.bf16.msra.mxu0 %v7079
    %7921 = vmatpush.bf16.msra.mxu0 %v7076
    %7922 = vmatpush.bf16.msra.mxu0 %v7073
    %7923 = vmatpush.bf16.msra.mxu0 %v7070
    %7924 = vmatpush.bf16.msra.mxu0 %v7067
    %7925 = vmatmul.bf16.gmra.mxu0 %v5563
    %v7926 = vpop.f32.mrf.mxu0
    %v7927 = vadd.f32 %v7913, %v7926
    %v7928 = vpop.f32.mrf.mxu0
    %v7929 = vadd.f32 %v7915, %v7928
    %7930 = vdwg.mxu0
    %7931 = vmatpush.bf16.msra.mxu0 %v7112
    %7932 = vmatpush.bf16.msra.mxu0 %v7109
    %7933 = vmatpush.bf16.msra.mxu0 %v7106
    %7934 = vmatpush.bf16.msra.mxu0 %v7103
    %7935 = vmatpush.bf16.msra.mxu0 %v7100
    %7936 = vmatpush.bf16.msra.mxu0 %v7097
    %7937 = vmatpush.bf16.msra.mxu0 %v7094
    %7938 = vmatpush.bf16.msra.mxu0 %v7091
    %7939 = vmatmul.bf16.gmra.mxu0 %v5564
    %v7940 = vpop.f32.mrf.mxu0
    %v7941 = vadd.f32 %v7927, %v7940
    %v7942 = vpop.f32.mrf.mxu0
    %v7943 = vadd.f32 %v7929, %v7942
    %7944 = vdwg.mxu0
    %7945 = vmatpush.bf16.msra.mxu0 %v7136
    %7946 = vmatpush.bf16.msra.mxu0 %v7133
    %7947 = vmatpush.bf16.msra.mxu0 %v7130
    %7948 = vmatpush.bf16.msra.mxu0 %v7127
    %7949 = vmatpush.bf16.msra.mxu0 %v7124
    %7950 = vmatpush.bf16.msra.mxu0 %v7121
    %7951 = vmatpush.bf16.msra.mxu0 %v7118
    %7952 = vmatpush.bf16.msra.mxu0 %v7115
    %7953 = vmatmul.bf16.gmra.mxu0 %v5565
    %v7954 = vpop.f32.mrf.mxu0
    %v7955 = vadd.f32 %v7941, %v7954
    %v7956 = vpop.f32.mrf.mxu0
    %v7957 = vadd.f32 %v7943, %v7956
    %7958 = vdwg.mxu0
    %7959 = vmatpush.bf16.msra.mxu0 %v7160
    %7960 = vmatpush.bf16.msra.mxu0 %v7157
    %7961 = vmatpush.bf16.msra.mxu0 %v7154
    %7962 = vmatpush.bf16.msra.mxu0 %v7151
    %7963 = vmatpush.bf16.msra.mxu0 %v7148
    %7964 = vmatpush.bf16.msra.mxu0 %v7145
    %7965 = vmatpush.bf16.msra.mxu0 %v7142
    %7966 = vmatpush.bf16.msra.mxu0 %v7139
    %7967 = vmatmul.bf16.gmra.mxu0 %v5566
    %v7968 = vpop.f32.mrf.mxu0
    %v7969 = vadd.f32 %v7955, %v7968
    %v7970 = vpop.f32.mrf.mxu0
    %v7971 = vadd.f32 %v7957, %v7970
    %7972 = vdwg.mxu0
    %7973 = vmatpush.bf16.msra.mxu0 %v7184
    %7974 = vmatpush.bf16.msra.mxu0 %v7181
    %7975 = vmatpush.bf16.msra.mxu0 %v7178
    %7976 = vmatpush.bf16.msra.mxu0 %v7175
    %7977 = vmatpush.bf16.msra.mxu0 %v7172
    %7978 = vmatpush.bf16.msra.mxu0 %v7169
    %7979 = vmatpush.bf16.msra.mxu0 %v7166
    %7980 = vmatpush.bf16.msra.mxu0 %v7163
    %7981 = vmatmul.bf16.gmra.mxu0 %v5567
    %v7982 = vpop.f32.mrf.mxu0
    %v7983 = vadd.f32 %v7969, %v7982
    %v7984 = vpop.f32.mrf.mxu0
    %v7985 = vadd.f32 %v7971, %v7984
    %7986 = vdwg.mxu0
    %7987 = vmatpush.bf16.msra.mxu0 %v7208
    %7988 = vmatpush.bf16.msra.mxu0 %v7205
    %7989 = vmatpush.bf16.msra.mxu0 %v7202
    %7990 = vmatpush.bf16.msra.mxu0 %v7199
    %7991 = vmatpush.bf16.msra.mxu0 %v7196
    %7992 = vmatpush.bf16.msra.mxu0 %v7193
    %7993 = vmatpush.bf16.msra.mxu0 %v7190
    %7994 = vmatpush.bf16.msra.mxu0 %v7187
    %7995 = vmatmul.bf16.gmra.mxu0 %v5568
    %v7996 = vpop.f32.mrf.mxu0
    %v7997 = vadd.f32 %v7983, %v7996
    %v7998 = vpop.f32.mrf.mxu0
    %v7999 = vadd.f32 %v7985, %v7998
    %8000 = vdwg.mxu0
    %v8001 = vadd.f32 %v3176, %v7661
    %v8002 = vadd.f32 %v3177, %v7829
    %v8003 = vadd.f32 %v3178, %v7997
    %v8004 = vadd.f32 %v3179, %v7663
    %v8005 = vadd.f32 %v3180, %v7831
    %v8006 = vadd.f32 %v3181, %v7999
    %8007 = vst [vmem:[#allocation23] sm:$0xff] %v8001
    %8008 = vst [vmem:[#allocation23 + $0x8] sm:$0xff] %v8002
    %8009 = vst [vmem:[#allocation23 + $0x10] sm:$0xff] %v8003
    %8010 = vst [vmem:[#allocation23 + $0x18] sm:$0xff] %v8004
    %8011 = vst [vmem:[#allocation23 + $0x20] sm:$0xff] %v8005
    %8012 = vst [vmem:[#allocation23 + $0x28] sm:$0xff] %v8006
    // Predicated region
    $region98: #{tpu_custom_call.1} parent=1 // pred_check
      _
    $region99: #{tpu_custom_call.1} parent=1 // pred_check_branch
      %8014 = sbr.rel (0) target = $region101
    $region100: #{tpu_custom_call.1} parent=1 // pred_region
      %8016 = vsyncadd [#allocation5], 0
      %s8017 = sshll.u32 [#allocation23], 4
      %s8018 = int_to_ptr.vmem [resolvable:$true] %s8017
      %s8019 = sshll.u32 %s12, 4
      %s8020 = int_to_ptr.hbm [resolvable:$true] %s8019
      %8025 = dma.vmem_to_hbm [thread:$0]  %s8018, 768, %s8020, [#allocation5], 384, 384, 24
    $region101: #{tpu_custom_call.1} parent=1 // pred_fallthru
      _
    // Predicated region
    $region102: #{tpu_custom_call.1} parent=1 // pred_check
      _
    $region103: #{tpu_custom_call.1} parent=1 // pred_check_branch
      %8027 = sbr.rel (0) target = $region105
    $region104: #{tpu_custom_call.1} parent=1 // pred_region
      %8029 = dma.done [#allocation5], 768
    $region105: #{tpu_custom_call.1} parent=1 // pred_fallthru
      _
    %8030 = vsyncpa [#allocation4], 1
    %8031 = vsyncpa [#allocation7], 1
    %8032 = vsyncpa [#allocation10], 1
    %8033 = vsyncpa [#allocation13], 1
    %8034 = vsyncpa [#allocation16], 1
    %8035 = vsyncpa [#allocation19], 1
    %8036 = vsyncpa [#allocation22], 1
    %8037 = vsyncpa [#allocation5], 1

</llo_original>
